<compile_context>
chip_gen: v6e
topology: v6e:2x2x1
jax: 0.10.0
libtpu: 0.0.40
codegen_flags: <defaults>
</compile_context>

<pallas_src>
import numpy as np
import jax
import jax.numpy as jnp
from jax.experimental import pallas as pl
from jax.experimental.pallas import tpu as pltpu

C_IN = 28 * 28                  # 784 real features (fixed by get_mask())
C_HALF = C_IN // 2              # 392 features per checkerboard parity
HALF = 512                      # lane-padded half width (4 * 128)
C_PAD = 2 * HALF                # 1024 = padded feature dim (both halves)
N_HIDDEN = 1024
N_COUPLINGS = 8
_LOG_SQRT_2PI = float(np.log(np.sqrt(2.0 * np.pi)))
_LOG_256 = float(np.log(256.0))
_ALPHA = 1e-5


# --------------------------------------------------------------------------
# Fused kernel: grid = (batch_tiles, n_layers), layer axis innermost.
# --------------------------------------------------------------------------
def _fused_flow_kernel(x_ref, w1_ref, b1_ref, w2_ref, b2_ref, wst_ref, bst_ref,
                       z_out_ref, logpx_ref,
                       za_sc, zb_sc, ldj_sc):
    l = pl.program_id(1)
    n_l = pl.num_programs(1)
    even = (l % 2) == 0          # conditioning half: A on even layers, B on odd

    # ---- layer 0: dequantize + logit-normalize into resident VMEM scratch ----
    @pl.when(l == 0)
    def _():
        lane = jax.lax.broadcasted_iota(jnp.int32, (1, C_PAD), 1)
        valid = ((lane % HALF) < C_HALF).astype(jnp.float32)   # 1 on real lanes
        z0 = x_ref[...] * (1.0 / 256.0)                        # x + noise prefused
        z0 = z0 * (1.0 - _ALPHA) + _ALPHA * 0.5
        # NOTE: like the original template, the constant 784*log(1-alpha)
        # Jacobian term of the alpha-squash is omitted.
        ldj0 = jnp.full((x_ref.shape[0], 1), -_LOG_256 * C_IN, dtype=jnp.float32)
        ldj0 = ldj0 + jnp.sum(valid * (-jnp.log(z0) - jnp.log(1.0 - z0)),
                              axis=1, keepdims=True)
        z_init = valid * (jnp.log(z0) - jnp.log(1.0 - z0))
        za_sc[...] = z_init[:, :HALF]
        zb_sc[...] = z_init[:, HALF:]
        ldj_sc[...] = ldj0

    # ---- Coupling layer l (forward direction), compacted halves -------------
    za = za_sc[...]
    zb = zb_sc[...]
    z_kept = jnp.where(even, za, zb)       # conditioning half (masked features)
    z_upd = jnp.where(even, zb, za)        # half that gets transformed

    h = jnp.dot(z_kept.astype(jnp.bfloat16), w1_ref[0],
                preferred_element_type=jnp.float32) + b1_ref[0]
    h = jnp.maximum(h, 0.0)
    h = jnp.dot(h.astype(jnp.bfloat16), w2_ref[0],
                preferred_element_type=jnp.float32) + b2_ref[0]
    h = jnp.maximum(h, 0.0)
    st = jnp.dot(h.astype(jnp.bfloat16), wst_ref[0],
                 preferred_element_type=jnp.float32) + bst_ref[0]
    log_scale = jnp.tanh(st[:, :HALF])     # pad lanes: zero weights -> tanh(0)=0
    transform = st[:, HALF:]               # pad lanes: 0
    z_new = z_upd * jnp.exp(log_scale) + transform        # pad lanes stay 0
    za_sc[...] = jnp.where(even, za, z_new)
    zb_sc[...] = jnp.where(even, z_new, zb)
    ldj_sc[...] = ldj_sc[...] + jnp.sum(log_scale, axis=1, keepdims=True)

    # ---- last layer: log_prior(z) + ldj, single HBM writeback ---------------
    @pl.when(l == n_l - 1)
    def _():
        za_f = za_sc[...]
        zb_f = zb_sc[...]
        quad = (jnp.sum(za_f * za_f, axis=1, keepdims=True) +
                jnp.sum(zb_f * zb_f, axis=1, keepdims=True))
        log_pz = (-_LOG_SQRT_2PI * C_IN) - 0.5 * quad      # pad lanes contribute 0
        z_out_ref[:, :HALF] = za_f
        z_out_ref[:, HALF:] = zb_f
        logpx_ref[...] = log_pz + ldj_sc[...]


# --------------------------------------------------------------------------
# Chip-aware tiling / buffering configuration (review item: tb is the knob)
# --------------------------------------------------------------------------
def _flow_config(B, block_b, weight_buffers):
    kind = ""
    try:
        kind = jax.devices()[0].device_kind.lower()
    except Exception:
        pass
    if "v5 lite" in kind or "v5e" in kind:
        target, vmem, is_v7 = 256, 96 * 2**20, False     # knee ~240 FLOPs/B
    elif "v6" in kind:
        target, vmem, is_v7 = 768, 96 * 2**20, False     # knee ~640 FLOPs/B
    elif "v7" in kind:
        target, vmem, is_v7 = 512, 48 * 2**20, True      # 64 MiB VMEM budget
    else:
        target, vmem, is_v7 = 256, 48 * 2**20, False

    if block_b is not None:
        tb = block_b
    elif B % 8 != 0 or B <= target:
        tb = B
    else:
        tb = (min(B, target) // 8) * 8
        while B % tb != 0:
            tb -= 8
        # v7x: keep >= 2 batch tiles so the "parallel" axis uses both TensorCores
        if is_v7 and B // tb < 2 and B >= 512:
            tb2 = (B // 2 // 8) * 8
            while tb2 > 8 and B % tb2 != 0:
                tb2 -= 8
            if tb2 >= 8 and B % tb2 == 0:
                tb = tb2

    if weight_buffers is None:
        # Deeper weight pipelining only where HBM BW per TF is scarce and VMEM
        # is plentiful (v5e/v6e at sub-knee batch tiles); never on v7x.
        weight_buffers = 3 if (not is_v7 and tb < 512) else 2
    return tb, vmem, weight_buffers


# --------------------------------------------------------------------------
# Host wrapper
# --------------------------------------------------------------------------
def flow_forward_pallas(x, noise, packed, *, block_b=None, weight_buffers=None):
    """x, noise: (B, 784) f32. packed: output of pack_flow(). -> (z, log_px)."""
    idx_a, idx_b, w1s, b1s, w2s, b2s, wsts, bsts = packed
    B = x.shape[0]
    L = w1s.shape[0]
    tb, vmem_limit, wb = _flow_config(B, block_b, weight_buffers)
    assert B % tb == 0, "batch must be divisible by the batch tile"

    # x + noise fused outside the kernel; permute features into the
    # half-stacked [parity-A | pad | parity-B | pad] lane layout.
    xn = x + noise
    pad = HALF - C_HALF
    x_pn = jnp.concatenate(
        [jnp.pad(xn[:, idx_a], ((0, 0), (0, pad))),
         jnp.pad(xn[:, idx_b], ((0, 0), (0, pad)))], axis=1)       # (B, C_PAD)

    w_mode = pl.Buffered(wb) if wb != 2 else None
    if w_mode is None:
        w2_spec = pl.BlockSpec((1, N_HIDDEN, N_HIDDEN), lambda b, l: (l, 0, 0))
        wst_spec = pl.BlockSpec((1, N_HIDDEN, 2 * HALF), lambda b, l: (l, 0, 0))
    else:
        w2_spec = pl.BlockSpec((1, N_HIDDEN, N_HIDDEN), lambda b, l: (l, 0, 0),
                               pipeline_mode=w_mode)
        wst_spec = pl.BlockSpec((1, N_HIDDEN, 2 * HALF), lambda b, l: (l, 0, 0),
                                pipeline_mode=w_mode)

    z_out, log_px = pl.pallas_call(
        _fused_flow_kernel,
        out_shape=(jax.ShapeDtypeStruct((B, C_PAD), jnp.float32),
                   jax.ShapeDtypeStruct((B, 1), jnp.float32)),
        grid_spec=pltpu.PrefetchScalarGridSpec(
            num_scalar_prefetch=0,
            grid=(B // tb, L),
            in_specs=[
                pl.BlockSpec((tb, C_PAD), lambda b, l: (b, 0)),              # x+noise
                pl.BlockSpec((1, HALF, N_HIDDEN), lambda b, l: (l, 0, 0)),   # W1 bf16
                pl.BlockSpec((1, 1, N_HIDDEN), lambda b, l: (l, 0, 0)),      # b1
                w2_spec,                                                     # W2 bf16
                pl.BlockSpec((1, 1, N_HIDDEN), lambda b, l: (l, 0, 0)),      # b2
                wst_spec,                                                    # [Ws|Wt]
                pl.BlockSpec((1, 1, 2 * HALF), lambda b, l: (l, 0, 0)),      # [bs|bt]
            ],
            out_specs=(
                pl.BlockSpec((tb, C_PAD), lambda b, l: (b, 0)),              # final z
                pl.BlockSpec((tb, 1), lambda b, l: (b, 0)),                  # log_px
            ),
            scratch_shapes=[
                pltpu.VMEM((tb, HALF), jnp.float32),     # resident z (half A)
                pltpu.VMEM((tb, HALF), jnp.float32),     # resident z (half B)
                pltpu.VMEM((tb, 1), jnp.float32),        # resident ldj
            ],
        ),
        compiler_params=pltpu.CompilerParams(
            dimension_semantics=("parallel", "arbitrary"),
            vmem_limit_bytes=vmem_limit,
        ),
    )(x_pn, w1s, b1s, w2s, b2s, wsts, bsts)

    # Scatter halves back to the original 784-feature order.
    perm = jnp.concatenate([idx_a, idx_b])
    inv_perm = jnp.argsort(perm)
    z_cat = jnp.concatenate([z_out[:, :C_HALF], z_out[:, HALF:HALF + C_HALF]],
                            axis=1)
    return z_cat[:, inv_perm], log_px[:, 0]


# --------------------------------------------------------------------------
# Parameter / mask construction and packing (plain JAX glue, runs once)
# --------------------------------------------------------------------------
def get_mask():
    i = np.arange(28)[:, None]
    j = np.arange(28)[None, :]
    m = ((i + j) % 2 == 0).astype(np.float32)
    return jnp.asarray(m.reshape(1, C_IN))


def _linear_init(key, fan_in, fan_out, scale=None):
    kw, kb = jax.random.split(key)
    if scale is None:                                  # PyTorch-default-like uniform
        bound = 1.0 / np.sqrt(fan_in)
        w = jax.random.uniform(kw, (fan_in, fan_out), jnp.float32, -bound, bound)
        b = jax.random.uniform(kb, (1, fan_out), jnp.float32, -bound, bound)
    else:                                              # small random (see note below)
        w = scale * jax.random.normal(kw, (fan_in, fan_out), jnp.float32)
        b = scale * jax.random.normal(kb, (1, fan_out), jnp.float32)
    return w, b


def init_params(key, n_couplings=N_COUPLINGS):
    """One tuple (w1,b1,w2,b2,wt,bt,ws,bs) per coupling layer, f32.

    NOTE: the PyTorch module zero-initializes the final s/t linears (identity
    flow at init). Small random values are used here instead so the coupling
    transform is actually exercised by the test.
    """
    params = []
    for k in jax.random.split(key, n_couplings):
        k1, k2, kt, ks = jax.random.split(k, 4)
        w1, b1 = _linear_init(k1, C_IN, N_HIDDEN)
        w2, b2 = _linear_init(k2, N_HIDDEN, N_HIDDEN)
        wt, bt = _linear_init(kt, N_HIDDEN, C_IN, scale=0.01)
        ws, bs = _linear_init(ks, N_HIDDEN, C_IN, scale=0.01)
        params.append((w1, b1, w2, b2, wt, bt, ws, bs))
    return params


def pack_flow(mask, params):
    """Stack per-layer params: mask-compacted, half-padded, bf16 weights."""
    m = np.asarray(mask).reshape(-1)
    idx_a = np.nonzero(m > 0.5)[0]                 # checkerboard parity A (392)
    idx_b = np.nonzero(m <= 0.5)[0]                # checkerboard parity B (392)
    pad = HALF - C_HALF
    w1s, b1s, w2s, b2s, wsts, bsts = [], [], [], [], [], []
    for i, (w1, b1, w2, b2, wt, bt, ws, bs) in enumerate(params):
        kept = idx_a if i % 2 == 0 else idx_b      # conditioning (mask==1) feats
        upd = idx_b if i % 2 == 0 else idx_a       # transformed (mask==0) feats
        w1s.append(jnp.pad(w1[kept, :], ((0, pad), (0, 0))).astype(jnp.bfloat16))
        b1s.append(b1)
        w2s.append(w2.astype(jnp.bfloat16))
        b2s.append(b2)
        ws_c = jnp.pad(ws[:, upd], ((0, 0), (0, pad)))
        wt_c = jnp.pad(wt[:, upd], ((0, 0), (0, pad)))
        wsts.append(jnp.concatenate([ws_c, wt_c], axis=1).astype(jnp.bfloat16))
        bs_c = jnp.pad(bs[:, upd], ((0, 0), (0, pad)))
        bt_c = jnp.pad(bt[:, upd], ((0, 0), (0, pad)))
        bsts.append(jnp.concatenate([bs_c, bt_c], axis=1))
    return (jnp.asarray(idx_a, jnp.int32), jnp.asarray(idx_b, jnp.int32),
            jnp.stack(w1s), jnp.stack(b1s), jnp.stack(w2s), jnp.stack(b2s),
            jnp.stack(wsts), jnp.stack(bsts))


# --------------------------------------------------------------------------
# Pure-JAX reference (same bf16-weight precision) for numerical sanity check
# --------------------------------------------------------------------------
def reference_forward(x, noise, mask, params):
    bf = jnp.bfloat16
    z = (x + noise) / 256.0
    ldj = jnp.full((x.shape[0],), -_LOG_256 * C_IN, dtype=jnp.float32)
    z = z * (1.0 - _ALPHA) + _ALPHA * 0.5
    ldj = ldj + jnp.sum(-jnp.log(z) - jnp.log(1.0 - z), axis=1)
    z = jnp.log(z) - jnp.log(1.0 - z)
    for i, (w1, b1, w2, b2, wt, bt, ws, bs) in enumerate(params):
        m = mask if i % 2 == 0 else 1.0 - mask
        z_m = m * z
        h = jnp.maximum(jnp.dot(z_m.astype(bf), w1.astype(bf),
                                preferred_element_type=jnp.float32) + b1, 0.0)
        h = jnp.maximum(jnp.dot(h.astype(bf), w2.astype(bf),
                                preferred_element_type=jnp.float32) + b2, 0.0)
        log_scale = jnp.tanh(jnp.dot(h.astype(bf), ws.astype(bf),
                                     preferred_element_type=jnp.float32) + bs)
        transform = jnp.dot(h.astype(bf), wt.astype(bf),
                            preferred_element_type=jnp.float32) + bt
        z = z_m + (1.0 - m) * (z * jnp.exp(log_scale) + transform)
        ldj = ldj + jnp.sum((1.0 - m) * log_scale, axis=1)
    log_pz = jnp.sum(-_LOG_SQRT_2PI - 0.5 * z * z, axis=1)
    return z, log_pz + ldj


# TODO(synk): only the forward (reverse=False) Coupling path is implemented;
# the reverse/sampling path would need a second (also fusable) kernel.
# TODO(synk): v7x fp8 (e4m3) storage for W2/W_st and in-kernel batch
# sub-tiling (amortizing each weight fetch over 2 sub-tiles at very large B)
# are left out pending accuracy / deployment-batch validation.

if __name__ == "__main__":
    B = 16
    key = jax.random.PRNGKey(0)
    k_x, k_noise, k_params = jax.random.split(key, 3)

    # pixel-like input in [0, 255), plus deterministic "dequantization" noise
    x = jax.random.uniform(k_x, (B, C_IN), jnp.float32, 0.0, 255.0)
    noise = jax.random.uniform(k_noise, (B, C_IN), jnp.float32)
    mask = get_mask()
    params = init_params(k_params)
    packed = pack_flow(mask, params)        # one-time layout / bf16 packing

    fwd = jax.jit(flow_forward_pallas,
                  static_argnames=("block_b", "weight_buffers"))
    try:
        z_out, log_px = fwd(x, noise, packed)
        jax.block_until_ready((z_out, log_px))
    except Exception:
        # Fallback: plain double-buffered weights if deep buffering unsupported.
        z_out, log_px = fwd(x, noise, packed, weight_buffers=2)
        jax.block_until_ready((z_out, log_px))

    z_ref, log_px_ref = reference_forward(x, noise, mask, params)
    assert log_px.shape == (B,)
    assert z_out.shape == (B, C_IN)
    assert bool(jnp.all(jnp.isfinite(log_px)))
    assert bool(jnp.allclose(log_px, log_px_ref, rtol=2e-3, atol=2.0)), (
        log_px, log_px_ref)
    assert bool(jnp.allclose(z_out, z_ref, rtol=1e-2, atol=1e-1)), float(
        jnp.max(jnp.abs(z_out - z_ref)))

    print("KERNEL_OK")
</pallas_src>

<mosaic_0001>
module attributes {stable_mosaic.version = 11 : i64} {
  func.func @_fused_flow_kernel(%arg0: i32, %arg1: i32, %arg2: memref<16x1024xf32, #tpu.memory_space<vmem>>, %arg3: memref<1x512x1024xbf16, #tpu.memory_space<vmem>>, %arg4: memref<1x1x1024xf32, #tpu.memory_space<vmem>>, %arg5: memref<1x1024x1024xbf16, #tpu.memory_space<vmem>>, %arg6: memref<1x1x1024xf32, #tpu.memory_space<vmem>>, %arg7: memref<1x1024x1024xbf16, #tpu.memory_space<vmem>>, %arg8: memref<1x1x1024xf32, #tpu.memory_space<vmem>>, %arg9: memref<16x1024xf32, #tpu.memory_space<vmem>>, %arg10: memref<16x1xf32, #tpu.memory_space<vmem>>, %arg11: memref<16x512xf32, #tpu.memory_space<vmem>>, %arg12: memref<16x512xf32, #tpu.memory_space<vmem>>, %arg13: memref<16x1xf32, #tpu.memory_space<vmem>>) attributes {dimension_semantics = [#tpu.dimension_semantics<parallel>, #tpu.dimension_semantics<arbitrary>], iteration_bounds = array<i64: 1, 8>, scalar_prefetch = 0 : i64, scratch_operands = 3 : i64, tpu.core_type = #tpu.core_type<tc>, window_params = [{transform_indices = @transform_0, window_bounds = array<i64: 16, 1024>}, {transform_indices = @transform_1, window_bounds = array<i64: 1, 512, 1024>}, {transform_indices = @transform_2, window_bounds = array<i64: 1, 1, 1024>}, {transform_indices = @transform_3, window_bounds = array<i64: 1, 1024, 1024>}, {transform_indices = @transform_4, window_bounds = array<i64: 1, 1, 1024>}, {transform_indices = @transform_5, window_bounds = array<i64: 1, 1024, 1024>}, {transform_indices = @transform_6, window_bounds = array<i64: 1, 1, 1024>}, {transform_indices = @transform_7, window_bounds = array<i64: 16, 1024>}, {transform_indices = @transform_8, window_bounds = array<i64: 16, 1>}]} {
    %c2_i32 = arith.constant 2 : i32
    %c0_i32 = arith.constant 0 : i32
    %0 = arith.cmpi eq, %c2_i32, %c0_i32 : i32
    %c1_i32 = arith.constant 1 : i32
    %1 = arith.select %0, %c1_i32, %c2_i32 : i32
    %2 = arith.remsi %arg1, %1 : i32
    %c0_i32_0 = arith.constant 0 : i32
    %3 = arith.cmpi ne, %2, %c0_i32_0 : i32
    %c0_i32_1 = arith.constant 0 : i32
    %4 = arith.cmpi slt, %2, %c0_i32_1 : i32
    %c0_i32_2 = arith.constant 0 : i32
    %5 = arith.cmpi slt, %1, %c0_i32_2 : i32
    %6 = arith.xori %4, %5 : i1
    %7 = arith.andi %6, %3 : i1
    %8 = arith.addi %2, %1 : i32
    %9 = arith.select %7, %8, %2 : i32
    %c0_i32_3 = arith.constant 0 : i32
    %10 = arith.cmpi eq, %9, %c0_i32_3 : i32
    %c0_i32_4 = arith.constant 0 : i32
    %11 = arith.cmpi eq, %arg1, %c0_i32_4 : i32
    %12 = arith.extui %11 : i1 to i32
    %c0_i32_5 = arith.constant 0 : i32
    %13 = arith.cmpi ne, %12, %c0_i32_5 : i32
    scf.if %13 {
      %64 = tpu.iota {dimensions = array<i32: 1>} : vector<1x1024xi32>
      %c512_i32 = arith.constant 512 : i32
      %c0_i32_41 = arith.constant 0 : i32
      %65 = arith.cmpi eq, %c512_i32, %c0_i32_41 : i32
      %c1_i32_42 = arith.constant 1 : i32
      %66 = arith.select %65, %c1_i32_42, %c512_i32 : i32
      %67 = vector.broadcast %66 : i32 to vector<1x1024xi32>
      %68 = arith.remsi %64, %67 : vector<1x1024xi32>
      %c0_i32_43 = arith.constant 0 : i32
      %69 = vector.broadcast %c0_i32_43 : i32 to vector<1x1024xi32>
      %70 = arith.cmpi ne, %68, %69 : vector<1x1024xi32>
      %c0_i32_44 = arith.constant 0 : i32
      %71 = vector.broadcast %c0_i32_44 : i32 to vector<1x1024xi32>
      %72 = arith.cmpi slt, %68, %71 : vector<1x1024xi32>
      %c0_i32_45 = arith.constant 0 : i32
      %73 = arith.cmpi slt, %66, %c0_i32_45 : i32
      %74 = vector.broadcast %73 : i1 to vector<1x1024xi1>
      %75 = vector.broadcast %74 : vector<1x1024xi1> to vector<1x1024xi1>
      %76 = arith.xori %72, %75 : vector<1x1024xi1>
      %77 = arith.andi %76, %70 : vector<1x1024xi1>
      %78 = vector.broadcast %66 : i32 to vector<1x1024xi32>
      %79 = arith.addi %68, %78 : vector<1x1024xi32>
      %80 = arith.select %77, %79, %68 : vector<1x1024xi1>, vector<1x1024xi32>
      %c392_i32 = arith.constant 392 : i32
      %81 = vector.broadcast %c392_i32 : i32 to vector<1x1024xi32>
      %82 = arith.cmpi slt, %80, %81 : vector<1x1024xi32>
      %83 = arith.extui %82 : vector<1x1024xi1> to vector<1x1024xi32>
      %84 = arith.sitofp %83 : vector<1x1024xi32> to vector<1x1024xf32>
      %c0_46 = arith.constant 0 : index
      %c0_47 = arith.constant 0 : index
      %85 = vector.load %arg2[%c0_46, %c0_47] : memref<16x1024xf32, #tpu.memory_space<vmem>>, vector<16x1024xf32>
      %cst_48 = arith.constant 3.906250e-03 : f32
      %86 = vector.broadcast %cst_48 : f32 to vector<16x1024xf32>
      %87 = arith.mulf %85, %86 : vector<16x1024xf32>
      %cst_49 = arith.constant 0.999989986 : f32
      %88 = vector.broadcast %cst_49 : f32 to vector<16x1024xf32>
      %89 = arith.mulf %87, %88 : vector<16x1024xf32>
      %cst_50 = arith.constant 5.000000e-06 : f32
      %90 = vector.broadcast %cst_50 : f32 to vector<16x1024xf32>
      %91 = arith.addf %89, %90 : vector<16x1024xf32>
      %cst_51 = arith.constant -4347.41895 : f32
      %92 = vector.broadcast %cst_51 : f32 to vector<16x1xf32>
      %93 = math.log %91 : vector<16x1024xf32>
      %cst_52 = arith.constant 0.000000e+00 : f32
      %94 = vector.broadcast %cst_52 : f32 to vector<16x1024xf32>
      %95 = arith.subf %94, %93 : vector<16x1024xf32>
      %cst_53 = arith.constant 1.000000e+00 : f32
      %96 = vector.broadcast %cst_53 : f32 to vector<16x1024xf32>
      %97 = arith.subf %96, %91 : vector<16x1024xf32>
      %98 = math.log %97 : vector<16x1024xf32>
      %99 = arith.subf %95, %98 : vector<16x1024xf32>
      %100 = vector.broadcast %84 : vector<1x1024xf32> to vector<16x1024xf32>
      %101 = arith.mulf %100, %99 : vector<16x1024xf32>
      %cst_54 = arith.constant dense<0.000000e+00> : vector<16xf32>
      %102 = vector.multi_reduction <add>, %101, %cst_54 [1] : vector<16x1024xf32> to vector<16xf32>
      %103 = vector.shape_cast %102 : vector<16xf32> to vector<16x1xf32>
      %104 = arith.addf %92, %103 : vector<16x1xf32>
      %105 = math.log %91 : vector<16x1024xf32>
      %cst_55 = arith.constant 1.000000e+00 : f32
      %106 = vector.broadcast %cst_55 : f32 to vector<16x1024xf32>
      %107 = arith.subf %106, %91 : vector<16x1024xf32>
      %108 = math.log %107 : vector<16x1024xf32>
      %109 = arith.subf %105, %108 : vector<16x1024xf32>
      %110 = vector.broadcast %84 : vector<1x1024xf32> to vector<16x1024xf32>
      %111 = arith.mulf %110, %109 : vector<16x1024xf32>
      %112 = vector.extract_strided_slice %111 {offsets = [0, 0], sizes = [16, 512], strides = [1, 1]} : vector<16x1024xf32> to vector<16x512xf32>
      %c0_56 = arith.constant 0 : index
      %c0_57 = arith.constant 0 : index
      %113 = vector.load %arg11[%c0_56, %c0_57] : memref<16x512xf32, #tpu.memory_space<vmem>>, vector<16x512xf32>
      tpu.vector_store %arg11[%c0_56, %c0_57], %112 {strides = array<i32>} : memref<16x512xf32, #tpu.memory_space<vmem>>, vector<16x512xf32>,
      %114 = vector.extract_strided_slice %111 {offsets = [0, 512], sizes = [16, 512], strides = [1, 1]} : vector<16x1024xf32> to vector<16x512xf32>
      %c0_58 = arith.constant 0 : index
      %c0_59 = arith.constant 0 : index
      %115 = vector.load %arg12[%c0_58, %c0_59] : memref<16x512xf32, #tpu.memory_space<vmem>>, vector<16x512xf32>
      tpu.vector_store %arg12[%c0_58, %c0_59], %114 {strides = array<i32>} : memref<16x512xf32, #tpu.memory_space<vmem>>, vector<16x512xf32>,
      %c0_60 = arith.constant 0 : index
      %c0_61 = arith.constant 0 : index
      %116 = vector.load %arg13[%c0_60, %c0_61] : memref<16x1xf32, #tpu.memory_space<vmem>>, vector<16x1xf32>
      tpu.vector_store %arg13[%c0_60, %c0_61], %104 {strides = array<i32>} : memref<16x1xf32, #tpu.memory_space<vmem>>, vector<16x1xf32>,
    } else {
    }
    %c0 = arith.constant 0 : index
    %c0_6 = arith.constant 0 : index
    %14 = vector.load %arg11[%c0, %c0_6] : memref<16x512xf32, #tpu.memory_space<vmem>>, vector<16x512xf32>
    %c0_7 = arith.constant 0 : index
    %c0_8 = arith.constant 0 : index
    %15 = vector.load %arg12[%c0_7, %c0_8] : memref<16x512xf32, #tpu.memory_space<vmem>>, vector<16x512xf32>
    %16 = arith.select %10, %14, %15 : vector<16x512xf32>
    %17 = arith.select %10, %15, %14 : vector<16x512xf32>
    %18 = arith.truncf %16 : vector<16x512xf32> to vector<16x512xbf16>
    %c0_9 = arith.constant 0 : index
    %c0_10 = arith.constant 0 : index
    %c0_11 = arith.constant 0 : index
    %19 = vector.load %arg3[%c0_9, %c0_10, %c0_11] : memref<1x512x1024xbf16, #tpu.memory_space<vmem>>, vector<1x512x1024xbf16>
    %20 = vector.shape_cast %19 : vector<1x512x1024xbf16> to vector<512x1024xbf16>
    %cst = arith.constant dense<0.000000e+00> : vector<16x1024xf32>
    %21 = tpu.matmul %18, %20, %cst {dimension_numbers = #tpu.dot_dimension_numbers<[1], [0], [0], [1], [0, 0, 1, 1], [], []>} : vector<16x512xbf16>, vector<512x1024xbf16>, vector<16x1024xf32> -> vector<16x1024xf32>
    %c0_12 = arith.constant 0 : index
    %c0_13 = arith.constant 0 : index
    %c0_14 = arith.constant 0 : index
    %22 = vector.load %arg4[%c0_12, %c0_13, %c0_14] : memref<1x1x1024xf32, #tpu.memory_space<vmem>>, vector<1x1x1024xf32>
    %23 = vector.shape_cast %22 : vector<1x1x1024xf32> to vector<1x1024xf32>
    %24 = vector.broadcast %23 : vector<1x1024xf32> to vector<16x1024xf32>
    %25 = arith.addf %21, %24 : vector<16x1024xf32>
    %cst_15 = arith.constant 0.000000e+00 : f32
    %26 = vector.broadcast %cst_15 : f32 to vector<16x1024xf32>
    %27 = arith.maximumf %25, %26 : vector<16x1024xf32>
    %28 = arith.truncf %27 : vector<16x1024xf32> to vector<16x1024xbf16>
    %c0_16 = arith.constant 0 : index
    %c0_17 = arith.constant 0 : index
    %c0_18 = arith.constant 0 : index
    %29 = vector.load %arg5[%c0_16, %c0_17, %c0_18] : memref<1x1024x1024xbf16, #tpu.memory_space<vmem>>, vector<1x1024x1024xbf16>
    %30 = vector.shape_cast %29 : vector<1x1024x1024xbf16> to vector<1024x1024xbf16>
    %cst_19 = arith.constant dense<0.000000e+00> : vector<16x1024xf32>
    %31 = tpu.matmul %28, %30, %cst_19 {dimension_numbers = #tpu.dot_dimension_numbers<[1], [0], [0], [1], [0, 0, 1, 1], [], []>} : vector<16x1024xbf16>, vector<1024x1024xbf16>, vector<16x1024xf32> -> vector<16x1024xf32>
    %c0_20 = arith.constant 0 : index
    %c0_21 = arith.constant 0 : index
    %c0_22 = arith.constant 0 : index
    %32 = vector.load %arg6[%c0_20, %c0_21, %c0_22] : memref<1x1x1024xf32, #tpu.memory_space<vmem>>, vector<1x1x1024xf32>
    %33 = vector.shape_cast %32 : vector<1x1x1024xf32> to vector<1x1024xf32>
    %34 = vector.broadcast %33 : vector<1x1024xf32> to vector<16x1024xf32>
    %35 = arith.addf %31, %34 : vector<16x1024xf32>
    %cst_23 = arith.constant 0.000000e+00 : f32
    %36 = vector.broadcast %cst_23 : f32 to vector<16x1024xf32>
    %37 = arith.maximumf %35, %36 : vector<16x1024xf32>
    %38 = arith.truncf %37 : vector<16x1024xf32> to vector<16x1024xbf16>
    %c0_24 = arith.constant 0 : index
    %c0_25 = arith.constant 0 : index
    %c0_26 = arith.constant 0 : index
    %39 = vector.load %arg7[%c0_24, %c0_25, %c0_26] : memref<1x1024x1024xbf16, #tpu.memory_space<vmem>>, vector<1x1024x1024xbf16>
    %40 = vector.shape_cast %39 : vector<1x1024x1024xbf16> to vector<1024x1024xbf16>
    %cst_27 = arith.constant dense<0.000000e+00> : vector<16x1024xf32>
    %41 = tpu.matmul %38, %40, %cst_27 {dimension_numbers = #tpu.dot_dimension_numbers<[1], [0], [0], [1], [0, 0, 1, 1], [], []>} : vector<16x1024xbf16>, vector<1024x1024xbf16>, vector<16x1024xf32> -> vector<16x1024xf32>
    %c0_28 = arith.constant 0 : index
    %c0_29 = arith.constant 0 : index
    %c0_30 = arith.constant 0 : index
    %42 = vector.load %arg8[%c0_28, %c0_29, %c0_30] : memref<1x1x1024xf32, #tpu.memory_space<vmem>>, vector<1x1x1024xf32>
    %43 = vector.shape_cast %42 : vector<1x1x1024xf32> to vector<1x1024xf32>
    %44 = vector.broadcast %43 : vector<1x1024xf32> to vector<16x1024xf32>
    %45 = arith.addf %41, %44 : vector<16x1024xf32>
    %46 = vector.extract_strided_slice %45 {offsets = [0, 0], sizes = [16, 512], strides = [1, 1]} : vector<16x1024xf32> to vector<16x512xf32>
    %47 = math.tanh %46 : vector<16x512xf32>
    %48 = vector.extract_strided_slice %45 {offsets = [0, 512], sizes = [16, 512], strides = [1, 1]} : vector<16x1024xf32> to vector<16x512xf32>
    %49 = math.exp %47 : vector<16x512xf32>
    %50 = arith.mulf %17, %49 : vector<16x512xf32>
    %51 = arith.addf %50, %48 : vector<16x512xf32>
    %52 = arith.select %10, %14, %51 : vector<16x512xf32>
    %c0_31 = arith.constant 0 : index
    %c0_32 = arith.constant 0 : index
    %53 = vector.load %arg11[%c0_31, %c0_32] : memref<16x512xf32, #tpu.memory_space<vmem>>, vector<16x512xf32>
    tpu.vector_store %arg11[%c0_31, %c0_32], %52 {strides = array<i32>} : memref<16x512xf32, #tpu.memory_space<vmem>>, vector<16x512xf32>,
    %54 = arith.select %10, %51, %15 : vector<16x512xf32>
    %c0_33 = arith.constant 0 : index
    %c0_34 = arith.constant 0 : index
    %55 = vector.load %arg12[%c0_33, %c0_34] : memref<16x512xf32, #tpu.memory_space<vmem>>, vector<16x512xf32>
    tpu.vector_store %arg12[%c0_33, %c0_34], %54 {strides = array<i32>} : memref<16x512xf32, #tpu.memory_space<vmem>>, vector<16x512xf32>,
    %c0_35 = arith.constant 0 : index
    %c0_36 = arith.constant 0 : index
    %56 = vector.load %arg13[%c0_35, %c0_36] : memref<16x1xf32, #tpu.memory_space<vmem>>, vector<16x1xf32>
    %cst_37 = arith.constant dense<0.000000e+00> : vector<16xf32>
    %57 = vector.multi_reduction <add>, %47, %cst_37 [1] : vector<16x512xf32> to vector<16xf32>
    %58 = vector.shape_cast %57 : vector<16xf32> to vector<16x1xf32>
    %59 = arith.addf %56, %58 : vector<16x1xf32>
    %c0_38 = arith.constant 0 : index
    %c0_39 = arith.constant 0 : index
    %60 = vector.load %arg13[%c0_38, %c0_39] : memref<16x1xf32, #tpu.memory_space<vmem>>, vector<16x1xf32>
    tpu.vector_store %arg13[%c0_38, %c0_39], %59 {strides = array<i32>} : memref<16x1xf32, #tpu.memory_space<vmem>>, vector<16x1xf32>,
    %c7_i32 = arith.constant 7 : i32
    %61 = arith.cmpi eq, %arg1, %c7_i32 : i32
    %62 = arith.extui %61 : i1 to i32
    %c0_i32_40 = arith.constant 0 : i32
    %63 = arith.cmpi ne, %62, %c0_i32_40 : i32
    scf.if %63 {
      %c0_41 = arith.constant 0 : index
      %c0_42 = arith.constant 0 : index
      %64 = vector.load %arg11[%c0_41, %c0_42] : memref<16x512xf32, #tpu.memory_space<vmem>>, vector<16x512xf32>
      %c0_43 = arith.constant 0 : index
      %c0_44 = arith.constant 0 : index
      %65 = vector.load %arg12[%c0_43, %c0_44] : memref<16x512xf32, #tpu.memory_space<vmem>>, vector<16x512xf32>
      %66 = arith.mulf %64, %64 : vector<16x512xf32>
      %cst_45 = arith.constant dense<0.000000e+00> : vector<16xf32>
      %67 = vector.multi_reduction <add>, %66, %cst_45 [1] : vector<16x512xf32> to vector<16xf32>
      %68 = vector.shape_cast %67 : vector<16xf32> to vector<16x1xf32>
      %69 = arith.mulf %65, %65 : vector<16x512xf32>
      %cst_46 = arith.constant dense<0.000000e+00> : vector<16xf32>
      %70 = vector.multi_reduction <add>, %69, %cst_46 [1] : vector<16x512xf32> to vector<16xf32>
      %71 = vector.shape_cast %70 : vector<16xf32> to vector<16x1xf32>
      %72 = arith.addf %68, %71 : vector<16x1xf32>
      %cst_47 = arith.constant 5.000000e-01 : f32
      %73 = vector.broadcast %cst_47 : f32 to vector<16x1xf32>
      %74 = arith.mulf %73, %72 : vector<16x1xf32>
      %cst_48 = arith.constant -720.447815 : f32
      %75 = vector.broadcast %cst_48 : f32 to vector<16x1xf32>
      %76 = arith.subf %75, %74 : vector<16x1xf32>
      %c0_49 = arith.constant 0 : index
      %c0_50 = arith.constant 0 : index
      %77 = vector.load %arg9[%c0_49, %c0_50] : memref<16x1024xf32, #tpu.memory_space<vmem>>, vector<16x512xf32>
      tpu.vector_store %arg9[%c0_49, %c0_50], %64 {strides = array<i32>} : memref<16x1024xf32, #tpu.memory_space<vmem>>, vector<16x512xf32>,
      %c0_51 = arith.constant 0 : index
      %c512 = arith.constant 512 : index
      %78 = vector.load %arg9[%c0_51, %c512] : memref<16x1024xf32, #tpu.memory_space<vmem>>, vector<16x512xf32>
      tpu.vector_store %arg9[%c0_51, %c512], %65 {strides = array<i32>} : memref<16x1024xf32, #tpu.memory_space<vmem>>, vector<16x512xf32>,
      %c0_52 = arith.constant 0 : index
      %c0_53 = arith.constant 0 : index
      %79 = vector.load %arg13[%c0_52, %c0_53] : memref<16x1xf32, #tpu.memory_space<vmem>>, vector<16x1xf32>
      %80 = arith.addf %76, %79 : vector<16x1xf32>
      %c0_54 = arith.constant 0 : index
      %c0_55 = arith.constant 0 : index
      %81 = vector.load %arg10[%c0_54, %c0_55] : memref<16x1xf32, #tpu.memory_space<vmem>>, vector<16x1xf32>
      tpu.vector_store %arg10[%c0_54, %c0_55], %80 {strides = array<i32>} : memref<16x1xf32, #tpu.memory_space<vmem>>, vector<16x1xf32>,
    } else {
    }
    return
  }
  func.func @transform_0(%arg0: i32, %arg1: i32) -> (i32, i32) {
    %c0_i32 = arith.constant 0 : i32
    %c0_i32_0 = arith.constant 0 : i32
    return %arg0, %c0_i32 : i32, i32
  }
  func.func @transform_1(%arg0: i32, %arg1: i32) -> (i32, i32, i32) {
    %c0_i32 = arith.constant 0 : i32
    %c0_i32_0 = arith.constant 0 : i32
    %c0_i32_1 = arith.constant 0 : i32
    return %arg1, %c0_i32, %c0_i32_0 : i32, i32, i32
  }
  func.func @transform_2(%arg0: i32, %arg1: i32) -> (i32, i32, i32) {
    %c0_i32 = arith.constant 0 : i32
    %c0_i32_0 = arith.constant 0 : i32
    %c0_i32_1 = arith.constant 0 : i32
    return %arg1, %c0_i32, %c0_i32_0 : i32, i32, i32
  }
  func.func @transform_3(%arg0: i32, %arg1: i32) -> (i32, i32, i32) {
    %c0_i32 = arith.constant 0 : i32
    %c0_i32_0 = arith.constant 0 : i32
    %c0_i32_1 = arith.constant 0 : i32
    return %arg1, %c0_i32, %c0_i32_0 : i32, i32, i32
  }
  func.func @transform_4(%arg0: i32, %arg1: i32) -> (i32, i32, i32) {
    %c0_i32 = arith.constant 0 : i32
    %c0_i32_0 = arith.constant 0 : i32
    %c0_i32_1 = arith.constant 0 : i32
    return %arg1, %c0_i32, %c0_i32_0 : i32, i32, i32
  }
  func.func @transform_5(%arg0: i32, %arg1: i32) -> (i32, i32, i32) {
    %c0_i32 = arith.constant 0 : i32
    %c0_i32_0 = arith.constant 0 : i32
    %c0_i32_1 = arith.constant 0 : i32
    return %arg1, %c0_i32, %c0_i32_0 : i32, i32, i32
  }
  func.func @transform_6(%arg0: i32, %arg1: i32) -> (i32, i32, i32) {
    %c0_i32 = arith.constant 0 : i32
    %c0_i32_0 = arith.constant 0 : i32
    %c0_i32_1 = arith.constant 0 : i32
    return %arg1, %c0_i32, %c0_i32_0 : i32, i32, i32
  }
  func.func @transform_7(%arg0: i32, %arg1: i32) -> (i32, i32) {
    %c0_i32 = arith.constant 0 : i32
    %c0_i32_0 = arith.constant 0 : i32
    return %arg0, %c0_i32 : i32, i32
  }
  func.func @transform_8(%arg0: i32, %arg1: i32) -> (i32, i32) {
    %c0_i32 = arith.constant 0 : i32
    %c0_i32_0 = arith.constant 0 : i32
    return %arg0, %c0_i32 : i32, i32
  }
}

</mosaic_0001>

<llo_original>
// kernel: flow_forward_pallas.1
$region0: #{flow_forward_pallas.1}
  #allocation0 [shape = 'u32[]', space=smem, size = 0x4, offset = 0x4, fixed_abs, tag = 'smem constant byte address 0x4 - core index']
  #allocation1 [shape = 'u32[144,128]{1,0:T(1,128)}', space=vmem, size = 0x12000, scoped, tag = 'internal scratch']
  #allocation2 [shape = 'f32[16,512]{1,0:T(8,128)}', space=vmem, size = 0x8000, scoped, tag = 'scratch operand']
  #allocation3 [shape = 'f32[16,512]{1,0:T(8,128)}', space=vmem, size = 0x8000, scoped, tag = 'scratch operand']
  #allocation4 [shape = 'f32[16,1]{1,0:T(8,128)}', space=vmem, size = 0x2000, scoped, tag = 'scratch operand']
  %s0 = inlined_call_operand.vmem [shape: f32[16,1024], index: 0, kind: input, shape index: {}]
  %s1 = inlined_call_operand.hbm [shape: bf16[8,512,1024], index: 1, kind: input, shape index: {}]
  %s2 = inlined_call_operand.hbm [shape: f32[8,1,1024], index: 2, kind: input, shape index: {}]
  %s3 = inlined_call_operand.hbm [shape: bf16[8,1024,1024], index: 3, kind: input, shape index: {}]
  %s4 = inlined_call_operand.hbm [shape: f32[8,1,1024], index: 4, kind: input, shape index: {}]
  %s5 = inlined_call_operand.hbm [shape: bf16[8,1024,1024], index: 5, kind: input, shape index: {}]
  %s6 = inlined_call_operand.hbm [shape: f32[8,1,1024], index: 6, kind: input, shape index: {}]
  %s7 = inlined_call_operand.vmem [shape: f32[16,1024], index: 7, kind: output, shape index: {0}]
  %s8 = inlined_call_operand.vmem [shape: f32[16,1], index: 8, kind: output, shape index: {1}]
  %9 = xla_tuple %s7, %s8
  %s10 = sld [smem:[#allocation0]]
  $region101: #{flow_forward_pallas.1} parent=0
    _
  %s12 = ssub.s32 1, %s10
  %s13 = scalar_select 0, %s12, %s10
  $region1: #{flow_forward_pallas.1} parent=0
    #allocation5 [shape = 'u8[2097152]{0}', space=vmem, size = 0x200000, scoped, tag = 'input window, operand 1']
    #allocation6 [shape = 's32[2]{0}', space=sflag, size = 0x8, scoped, tag = 'scoped memory for flow_forward_pallas.1']
    #allocation7 [shape = 'u8[8192]{0}', space=vmem, size = 0x2000, scoped, tag = 'input window, operand 2']
    #allocation8 [shape = 's32[2]{0}', space=sflag, size = 0x8, scoped, tag = 'scoped memory for flow_forward_pallas.1']
    #allocation9 [shape = 'u8[4194304]{0}', space=vmem, size = 0x400000, scoped, tag = 'input window, operand 3']
    #allocation10 [shape = 'u8[8192]{0}', space=vmem, size = 0x2000, scoped, tag = 'input window, operand 4']
    #allocation11 [shape = 's32[2]{0}', space=sflag, size = 0x8, scoped, tag = 'scoped memory for flow_forward_pallas.1']
    #allocation12 [shape = 'u8[4194304]{0}', space=vmem, size = 0x400000, scoped, tag = 'input window, operand 5']
    #allocation13 [shape = 'u8[8192]{0}', space=vmem, size = 0x2000, scoped, tag = 'input window, operand 6']
    #allocation14 [shape = 's32[2]{0}', space=sflag, size = 0x8, scoped, tag = 'scoped memory for flow_forward_pallas.1']
    %14 = vsyncpa [#allocation6], 0
    %s15 = scalar_lea.sflag [#allocation6], 1
    %16 = vsyncpa %s15, 0
    %17 = vsyncpa [#allocation8], 0
    %s18 = scalar_lea.sflag [#allocation8], 1
    %19 = vsyncpa %s18, 0
    %20 = vsyncpa [#allocation11], 0
    %s21 = scalar_lea.sflag [#allocation11], 1
    %22 = vsyncpa %s21, 0
    %23 = vsyncpa [#allocation14], 0
    %s24 = scalar_lea.sflag [#allocation14], 1
    %25 = vsyncpa %s24, 0
    loop: start=0, step=1, limit=10
    $region2: #{flow_forward_pallas.1} parent=1 // loop_pre_header
      _
    $region3: #{flow_forward_pallas.1} parent=1 // loop_header
      %s27 = sphi 0, %s31
      %p28 = scmp.ge.s32.totalorder %s27, 10
      %s34 = sphi 0, %s46
      %s35 = sphi 0, %s42
      %s36 = sphi 0, %s34
      %s37 = sphi 0, %s35
      %s38 = sphi 0, %s36
      %s39 = sphi 0, %s37
      %s49 = sphi 0, %s51
      %s52 = sphi 0, %s49
      %s53 = sphi 0, %s52
      %s69 = sphi 0, %s53
      %s75 = sphi 0, %s77
      %s78 = sphi 0, %s75
      %s79 = sphi 0, %s78
      %s95 = sphi 0, %s79
      %s101 = sphi 0, %s103
      %s104 = sphi 0, %s101
      %s105 = sphi 0, %s104
      %s121 = sphi 0, %s105
      %s127 = sphi 0, %s129
      %s130 = sphi 0, %s127
      %s131 = sphi 0, %s130
      %s147 = sphi 0, %s131
      %s153 = sphi 0, %s155
      %s156 = sphi 0, %s153
      %s157 = sphi 0, %s156
      %s173 = sphi 0, %s157
      %s179 = sphi 0, %s181
      %s182 = sphi 0, %s179
      %s183 = sphi 0, %s182
      %s199 = sphi 0, %s183
      %s205 = sphi 0, %s207
      %s208 = sphi 0, %s205
      %s209 = sphi 0, %s208
      %s225 = sphi 0, %s209
      %s231 = sphi 0, %s233
      %s234 = sphi 0, %s231
      %s235 = sphi 0, %s234
      %s251 = sphi 0, %s235
      %s257 = sphi 0, %s259
      %s260 = sphi 0, %s257
      %s261 = sphi 0, %s260
      %s277 = sphi 0, %s261
    $region4: #{flow_forward_pallas.1} parent=1 // loop_header_branch
      %30 = sbr.rel (%p28) target = $region8
    $region5: #{flow_forward_pallas.1} parent=1 // loop_body
      %s32 = ssub.s32 %s27, 1
      %s33 = ssub.s32 %s27, 2
      %s40 = sadd.s32 1, %s35
      %p41 = scmp.ge.s32.totalorder %s40, 8
      %s42 = scalar_select %p41, 0, %s40
      %s43 = sadd.s32 1, %s34
      %s44 = scalar_select %p41, %s43, %s34
      %p45 = scmp.ge.s32.totalorder %s44, 1
      %s46 = scalar_select %p45, 0, %s44
      %s47 = ssub.s32 %s34, %s46
      %p48 = scmp.eq.s32.totalorder %s47, 0
      %s50 = sadd.s32 %s49, 1
      %s51 = scalar_select %p48, %s49, %s50
      %p54 = pneg %p48
      %p55 = scmp.eq.s32.totalorder %s27, 7
      %p56 = por %p54, %p55
      %p57 = scmp.ne.s32.totalorder %s49, %s52
      %p58 = scmp.eq.s32.totalorder %s27, 0
      %p59 = por %p57, %p58
      %p60 = scmp.ne.s32.totalorder %s49, %s52
      %p61 = scmp.eq.s32.totalorder %s32, 7
      %p62 = por %p60, %p61
      %p63 = scmp.ne.s32.totalorder %s52, %s53
      %p64 = scmp.eq.s32.totalorder %s32, 0
      %p65 = por %p63, %p64
      %p66 = scmp.ne.s32.totalorder %s52, %s53
      %p67 = scmp.eq.s32.totalorder %s33, 7
      %p68 = por %p66, %p67
      %p70 = scmp.ne.s32.totalorder %s53, %s69
      %p71 = scmp.eq.s32.totalorder %s33, 0
      %p72 = por %p70, %p71
      %s73 = ssub.s32 %s35, %s42
      %p74 = scmp.eq.s32.totalorder %s73, 0
      %s76 = sadd.s32 %s75, 1
      %s77 = scalar_select %p74, %s75, %s76
      %p80 = pneg %p74
      %p81 = scmp.eq.s32.totalorder %s27, 7
      %p82 = por %p80, %p81
      %p83 = scmp.ne.s32.totalorder %s75, %s78
      %p84 = scmp.eq.s32.totalorder %s27, 0
      %p85 = por %p83, %p84
      %p86 = scmp.ne.s32.totalorder %s75, %s78
      %p87 = scmp.eq.s32.totalorder %s32, 7
      %p88 = por %p86, %p87
      %p89 = scmp.ne.s32.totalorder %s78, %s79
      %p90 = scmp.eq.s32.totalorder %s32, 0
      %p91 = por %p89, %p90
      %p92 = scmp.ne.s32.totalorder %s78, %s79
      %p93 = scmp.eq.s32.totalorder %s33, 7
      %p94 = por %p92, %p93
      %p96 = scmp.ne.s32.totalorder %s79, %s95
      %p97 = scmp.eq.s32.totalorder %s33, 0
      %p98 = por %p96, %p97
      %s99 = ssub.s32 %s35, %s42
      %p100 = scmp.eq.s32.totalorder %s99, 0
      %s102 = sadd.s32 %s101, 1
      %s103 = scalar_select %p100, %s101, %s102
      %p106 = pneg %p100
      %p107 = scmp.eq.s32.totalorder %s27, 7
      %p108 = por %p106, %p107
      %p109 = scmp.ne.s32.totalorder %s101, %s104
      %p110 = scmp.eq.s32.totalorder %s27, 0
      %p111 = por %p109, %p110
      %p112 = scmp.ne.s32.totalorder %s101, %s104
      %p113 = scmp.eq.s32.totalorder %s32, 7
      %p114 = por %p112, %p113
      %p115 = scmp.ne.s32.totalorder %s104, %s105
      %p116 = scmp.eq.s32.totalorder %s32, 0
      %p117 = por %p115, %p116
      %p118 = scmp.ne.s32.totalorder %s104, %s105
      %p119 = scmp.eq.s32.totalorder %s33, 7
      %p120 = por %p118, %p119
      %p122 = scmp.ne.s32.totalorder %s105, %s121
      %p123 = scmp.eq.s32.totalorder %s33, 0
      %p124 = por %p122, %p123
      %s125 = ssub.s32 %s35, %s42
      %p126 = scmp.eq.s32.totalorder %s125, 0
      %s128 = sadd.s32 %s127, 1
      %s129 = scalar_select %p126, %s127, %s128
      %p132 = pneg %p126
      %p133 = scmp.eq.s32.totalorder %s27, 7
      %p134 = por %p132, %p133
      %p135 = scmp.ne.s32.totalorder %s127, %s130
      %p136 = scmp.eq.s32.totalorder %s27, 0
      %p137 = por %p135, %p136
      %p138 = scmp.ne.s32.totalorder %s127, %s130
      %p139 = scmp.eq.s32.totalorder %s32, 7
      %p140 = por %p138, %p139
      %p141 = scmp.ne.s32.totalorder %s130, %s131
      %p142 = scmp.eq.s32.totalorder %s32, 0
      %p143 = por %p141, %p142
      %p144 = scmp.ne.s32.totalorder %s130, %s131
      %p145 = scmp.eq.s32.totalorder %s33, 7
      %p146 = por %p144, %p145
      %p148 = scmp.ne.s32.totalorder %s131, %s147
      %p149 = scmp.eq.s32.totalorder %s33, 0
      %p150 = por %p148, %p149
      %s151 = ssub.s32 %s35, %s42
      %p152 = scmp.eq.s32.totalorder %s151, 0
      %s154 = sadd.s32 %s153, 1
      %s155 = scalar_select %p152, %s153, %s154
      %p158 = pneg %p152
      %p159 = scmp.eq.s32.totalorder %s27, 7
      %p160 = por %p158, %p159
      %p161 = scmp.ne.s32.totalorder %s153, %s156
      %p162 = scmp.eq.s32.totalorder %s27, 0
      %p163 = por %p161, %p162
      %p164 = scmp.ne.s32.totalorder %s153, %s156
      %p165 = scmp.eq.s32.totalorder %s32, 7
      %p166 = por %p164, %p165
      %p167 = scmp.ne.s32.totalorder %s156, %s157
      %p168 = scmp.eq.s32.totalorder %s32, 0
      %p169 = por %p167, %p168
      %p170 = scmp.ne.s32.totalorder %s156, %s157
      %p171 = scmp.eq.s32.totalorder %s33, 7
      %p172 = por %p170, %p171
      %p174 = scmp.ne.s32.totalorder %s157, %s173
      %p175 = scmp.eq.s32.totalorder %s33, 0
      %p176 = por %p174, %p175
      %s177 = ssub.s32 %s35, %s42
      %p178 = scmp.eq.s32.totalorder %s177, 0
      %s180 = sadd.s32 %s179, 1
      %s181 = scalar_select %p178, %s179, %s180
      %p184 = pneg %p178
      %p185 = scmp.eq.s32.totalorder %s27, 7
      %p186 = por %p184, %p185
      %p187 = scmp.ne.s32.totalorder %s179, %s182
      %p188 = scmp.eq.s32.totalorder %s27, 0
      %p189 = por %p187, %p188
      %p190 = scmp.ne.s32.totalorder %s179, %s182
      %p191 = scmp.eq.s32.totalorder %s32, 7
      %p192 = por %p190, %p191
      %p193 = scmp.ne.s32.totalorder %s182, %s183
      %p194 = scmp.eq.s32.totalorder %s32, 0
      %p195 = por %p193, %p194
      %p196 = scmp.ne.s32.totalorder %s182, %s183
      %p197 = scmp.eq.s32.totalorder %s33, 7
      %p198 = por %p196, %p197
      %p200 = scmp.ne.s32.totalorder %s183, %s199
      %p201 = scmp.eq.s32.totalorder %s33, 0
      %p202 = por %p200, %p201
      %s203 = ssub.s32 %s35, %s42
      %p204 = scmp.eq.s32.totalorder %s203, 0
      %s206 = sadd.s32 %s205, 1
      %s207 = scalar_select %p204, %s205, %s206
      %p210 = pneg %p204
      %p211 = scmp.eq.s32.totalorder %s27, 7
      %p212 = por %p210, %p211
      %p213 = scmp.ne.s32.totalorder %s205, %s208
      %p214 = scmp.eq.s32.totalorder %s27, 0
      %p215 = por %p213, %p214
      %p216 = scmp.ne.s32.totalorder %s205, %s208
      %p217 = scmp.eq.s32.totalorder %s32, 7
      %p218 = por %p216, %p217
      %p219 = scmp.ne.s32.totalorder %s208, %s209
      %p220 = scmp.eq.s32.totalorder %s32, 0
      %p221 = por %p219, %p220
      %p222 = scmp.ne.s32.totalorder %s208, %s209
      %p223 = scmp.eq.s32.totalorder %s33, 7
      %p224 = por %p222, %p223
      %p226 = scmp.ne.s32.totalorder %s209, %s225
      %p227 = scmp.eq.s32.totalorder %s33, 0
      %p228 = por %p226, %p227
      %s229 = ssub.s32 %s34, %s46
      %p230 = scmp.eq.s32.totalorder %s229, 0
      %s232 = sadd.s32 %s231, 1
      %s233 = scalar_select %p230, %s231, %s232
      %p236 = pneg %p230
      %p237 = scmp.eq.s32.totalorder %s27, 7
      %p238 = por %p236, %p237
      %p239 = scmp.ne.s32.totalorder %s231, %s234
      %p240 = scmp.eq.s32.totalorder %s27, 0
      %p241 = por %p239, %p240
      %p242 = scmp.ne.s32.totalorder %s231, %s234
      %p243 = scmp.eq.s32.totalorder %s32, 7
      %p244 = por %p242, %p243
      %p245 = scmp.ne.s32.totalorder %s234, %s235
      %p246 = scmp.eq.s32.totalorder %s32, 0
      %p247 = por %p245, %p246
      %p248 = scmp.ne.s32.totalorder %s234, %s235
      %p249 = scmp.eq.s32.totalorder %s33, 7
      %p250 = por %p248, %p249
      %p252 = scmp.ne.s32.totalorder %s235, %s251
      %p253 = scmp.eq.s32.totalorder %s33, 0
      %p254 = por %p252, %p253
      %s255 = ssub.s32 %s34, %s46
      %p256 = scmp.eq.s32.totalorder %s255, 0
      %s258 = sadd.s32 %s257, 1
      %s259 = scalar_select %p256, %s257, %s258
      %p262 = pneg %p256
      %p263 = scmp.eq.s32.totalorder %s27, 7
      %p264 = por %p262, %p263
      %p265 = scmp.ne.s32.totalorder %s257, %s260
      %p266 = scmp.eq.s32.totalorder %s27, 0
      %p267 = por %p265, %p266
      %p268 = scmp.ne.s32.totalorder %s257, %s260
      %p269 = scmp.eq.s32.totalorder %s32, 7
      %p270 = por %p268, %p269
      %p271 = scmp.ne.s32.totalorder %s260, %s261
      %p272 = scmp.eq.s32.totalorder %s32, 0
      %p273 = por %p271, %p272
      %p274 = scmp.ne.s32.totalorder %s260, %s261
      %p275 = scmp.eq.s32.totalorder %s33, 7
      %p276 = por %p274, %p275
      %p278 = scmp.ne.s32.totalorder %s261, %s277
      %p279 = scmp.eq.s32.totalorder %s33, 0
      %p280 = por %p278, %p279
      %p281 = scmp.le.s32.totalorder 1, %s27
      %p282 = scmp.lt.s32.totalorder %s27, 9
      %p283 = pnand %p281, %p282
      %p284 = pneg %p283
      // Predicated region
      $region9: #{flow_forward_pallas.1} parent=5 // pred_check
        _
      $region10: #{flow_forward_pallas.1} parent=5 // pred_check_branch
        %286 = sbr.rel (%p283) target = $region12
      $region11: #{flow_forward_pallas.1} parent=5 // pred_region
        %s287 = ssub.s32 %s27, 1
        // Predicated region
        $region13: #{flow_forward_pallas.1} parent=11 // pred_check
          %p288 = pneg %p65
        $region14: #{flow_forward_pallas.1} parent=11 // pred_check_branch
          %290 = sbr.rel (%p288) target = $region16
        $region15: #{flow_forward_pallas.1} parent=11 // pred_region
          %s291 = smul.u32 2, %s36
          %p292 = scmp.lt.s32.totalorder %s291, 1
          %s293 = scalar_select %p292, %s291, 1
          %s294 = smul.addr %s293, 8
          %s295 = smul.addr %s294, 8
          %s296 = scalar_lea.vmem %s0, %s295
          %s297 = smul.u32 2, %s36
        $region16: #{flow_forward_pallas.1} parent=11 // pred_fallthru
          _
      $region12: #{flow_forward_pallas.1} parent=5 // pred_fallthru
        _
      %p298 = scmp.lt.s32.totalorder %s27, 8
      // Predicated region
      $region17: #{flow_forward_pallas.1} parent=5 // pred_check
        %p299 = pneg %p298
      $region18: #{flow_forward_pallas.1} parent=5 // pred_check_branch
        %301 = sbr.rel (%p299) target = $region20
      $region19: #{flow_forward_pallas.1} parent=5 // pred_region
        // Predicated region
        $region21: #{flow_forward_pallas.1} parent=19 // pred_check
          %p302 = pneg %p85
        $region22: #{flow_forward_pallas.1} parent=19 // pred_check_branch
          %304 = sbr.rel (%p302) target = $region24
        $region23: #{flow_forward_pallas.1} parent=19 // pred_region
          %s305 = sand.u32 %s75, 1
          %s306 = scalar_lea.sflag [#allocation6], %s305
          %s307 = sand.u32 %s75, 1
          %s308 = smul.addr %s307, 2048
          %s309 = scalar_lea.vmem [#allocation5], %s308
          %s311 = ssub.s32 32768, 32768
          %312 = vsyncadd %s306, %s311
          %s313 = smul.addr %s35, 512
          %s314 = smul.addr %s313, 64
          %s315 = scalar_lea.hbm %s1, %s314
          %s316 = sshll.u32 %s309, 4
          %s317 = int_to_ptr.vmem [resolvable:$true] %s316
          %322 = dma.hbm_to_vmem [thread:$0]  %s315, 32768, %s317, %s306, 512, 512, 32
        $region24: #{flow_forward_pallas.1} parent=19 // pred_fallthru
          _
        // Predicated region
        $region25: #{flow_forward_pallas.1} parent=19 // pred_check
          %p323 = pneg %p111
        $region26: #{flow_forward_pallas.1} parent=19 // pred_check_branch
          %325 = sbr.rel (%p323) target = $region28
        $region27: #{flow_forward_pallas.1} parent=19 // pred_region
          %s326 = sand.u32 %s27, 1
          %s327 = scalar_lea.sflag [#allocation8], %s326
          %s328 = sand.u32 %s101, 1
          %s329 = smul.addr %s328, 8
          %s330 = scalar_lea.vmem [#allocation7], %s329
          %s332 = ssub.s32 128, 128
          %333 = vsyncadd %s327, %s332
          %s334 = smul.addr %s35, 8
          %s335 = smul.addr %s334, 16
          %s336 = scalar_lea.hbm %s2, %s335
          %s338 = sshll.u32 %s330, 4
          %s339 = int_to_ptr.vmem [resolvable:$true] %s338
          %341 = dma.hbm_to_vmem [thread:$0]  %s336, 128, %s339, %s327
        $region28: #{flow_forward_pallas.1} parent=19 // pred_fallthru
          _
        // Predicated region
        $region29: #{flow_forward_pallas.1} parent=19 // pred_check
          %p342 = pneg %p137
        $region30: #{flow_forward_pallas.1} parent=19 // pred_check_branch
          %344 = sbr.rel (%p342) target = $region32
        $region31: #{flow_forward_pallas.1} parent=19 // pred_region
          %s345 = sand.u32 %s27, 1
          %s346 = scalar_lea.sflag [#allocation8], %s345
          %s347 = sand.u32 %s127, 1
          %s348 = smul.addr %s347, 4096
          %s349 = scalar_lea.vmem [#allocation9], %s348
          %s351 = ssub.s32 65536, 65536
          %352 = vsyncadd %s346, %s351
          %s353 = smul.addr %s35, 1024
          %s354 = smul.addr %s353, 64
          %s355 = scalar_lea.hbm %s3, %s354
          %s356 = sshll.u32 %s349, 4
          %s357 = int_to_ptr.vmem [resolvable:$true] %s356
          %362 = dma.hbm_to_vmem [thread:$0]  %s355, 65536, %s357, %s346, 512, 512, 32
        $region32: #{flow_forward_pallas.1} parent=19 // pred_fallthru
          _
        // Predicated region
        $region33: #{flow_forward_pallas.1} parent=19 // pred_check
          %p363 = pneg %p163
        $region34: #{flow_forward_pallas.1} parent=19 // pred_check_branch
          %365 = sbr.rel (%p363) target = $region36
        $region35: #{flow_forward_pallas.1} parent=19 // pred_region
          %s366 = sand.u32 %s27, 1
          %s367 = scalar_lea.sflag [#allocation11], %s366
          %s368 = sand.u32 %s153, 1
          %s369 = smul.addr %s368, 8
          %s370 = scalar_lea.vmem [#allocation10], %s369
          %s372 = ssub.s32 128, 128
          %373 = vsyncadd %s367, %s372
          %s374 = smul.addr %s35, 8
          %s375 = smul.addr %s374, 16
          %s376 = scalar_lea.hbm %s4, %s375
          %s378 = sshll.u32 %s370, 4
          %s379 = int_to_ptr.vmem [resolvable:$true] %s378
          %381 = dma.hbm_to_vmem [thread:$0]  %s376, 128, %s379, %s367
        $region36: #{flow_forward_pallas.1} parent=19 // pred_fallthru
          _
        // Predicated region
        $region37: #{flow_forward_pallas.1} parent=19 // pred_check
          %p382 = pneg %p189
        $region38: #{flow_forward_pallas.1} parent=19 // pred_check_branch
          %384 = sbr.rel (%p382) target = $region40
        $region39: #{flow_forward_pallas.1} parent=19 // pred_region
          %s385 = sand.u32 %s27, 1
          %s386 = scalar_lea.sflag [#allocation11], %s385
          %s387 = sand.u32 %s179, 1
          %s388 = smul.addr %s387, 4096
          %s389 = scalar_lea.vmem [#allocation12], %s388
          %s391 = ssub.s32 65536, 65536
          %392 = vsyncadd %s386, %s391
          %s393 = smul.addr %s35, 1024
          %s394 = smul.addr %s393, 64
          %s395 = scalar_lea.hbm %s5, %s394
          %s396 = sshll.u32 %s389, 4
          %s397 = int_to_ptr.vmem [resolvable:$true] %s396
          %402 = dma.hbm_to_vmem [thread:$0]  %s395, 65536, %s397, %s386, 512, 512, 32
        $region40: #{flow_forward_pallas.1} parent=19 // pred_fallthru
          _
        // Predicated region
        $region41: #{flow_forward_pallas.1} parent=19 // pred_check
          %p403 = pneg %p215
        $region42: #{flow_forward_pallas.1} parent=19 // pred_check_branch
          %405 = sbr.rel (%p403) target = $region44
        $region43: #{flow_forward_pallas.1} parent=19 // pred_region
          %s406 = sand.u32 %s205, 1
          %s407 = scalar_lea.sflag [#allocation14], %s406
          %s408 = sand.u32 %s205, 1
          %s409 = smul.addr %s408, 8
          %s410 = scalar_lea.vmem [#allocation13], %s409
          %s412 = ssub.s32 128, 128
          %413 = vsyncadd %s407, %s412
          %s414 = smul.addr %s35, 8
          %s415 = smul.addr %s414, 16
          %s416 = scalar_lea.hbm %s6, %s415
          %s418 = sshll.u32 %s410, 4
          %s419 = int_to_ptr.vmem [resolvable:$true] %s418
          %421 = dma.hbm_to_vmem [thread:$0]  %s416, 128, %s419, %s407
        $region44: #{flow_forward_pallas.1} parent=19 // pred_fallthru
          _
      $region20: #{flow_forward_pallas.1} parent=5 // pred_fallthru
        _
      %p422 = scmp.le.s32.totalorder 1, %s27
      %p423 = scmp.lt.s32.totalorder %s27, 9
      %p424 = pnand %p422, %p423
      %p425 = pneg %p424
      // Predicated region
      $region45: #{flow_forward_pallas.1} parent=5 // pred_check
        _
      $region46: #{flow_forward_pallas.1} parent=5 // pred_check_branch
        %427 = sbr.rel (%p424) target = $region48
      $region47: #{flow_forward_pallas.1} parent=5 // pred_region
        %s428 = ssub.s32 %s27, 1
        %s429 = sand.u32 %s78, 1
        %s430 = scalar_lea.sflag [#allocation6], %s429
        %s431 = sand.u32 %s78, 1
        %s432 = smul.addr %s431, 2048
        %s433 = scalar_lea.vmem [#allocation5], %s432
        // Predicated region
        $region49: #{flow_forward_pallas.1} parent=47 // pred_check
          %p434 = pneg %p91
        $region50: #{flow_forward_pallas.1} parent=47 // pred_check_branch
          %436 = sbr.rel (%p434) target = $region52
        $region51: #{flow_forward_pallas.1} parent=47 // pred_region
          %437 = dma.done %s430, 32768
        $region52: #{flow_forward_pallas.1} parent=47 // pred_fallthru
          _
        %s438 = sand.u32 %s32, 1
        %s439 = scalar_lea.sflag [#allocation8], %s438
        %s440 = sand.u32 %s104, 1
        %s441 = smul.addr %s440, 8
        %s442 = scalar_lea.vmem [#allocation7], %s441
        // Predicated region
        $region53: #{flow_forward_pallas.1} parent=47 // pred_check
          %p443 = pneg %p117
        $region54: #{flow_forward_pallas.1} parent=47 // pred_check_branch
          %445 = sbr.rel (%p443) target = $region56
        $region55: #{flow_forward_pallas.1} parent=47 // pred_region
          %446 = dma.done %s439, 128
        $region56: #{flow_forward_pallas.1} parent=47 // pred_fallthru
          _
        %s447 = sand.u32 %s32, 1
        %s448 = scalar_lea.sflag [#allocation8], %s447
        %s449 = sand.u32 %s130, 1
        %s450 = smul.addr %s449, 4096
        %s451 = scalar_lea.vmem [#allocation9], %s450
        // Predicated region
        $region57: #{flow_forward_pallas.1} parent=47 // pred_check
          %p452 = pneg %p143
        $region58: #{flow_forward_pallas.1} parent=47 // pred_check_branch
          %454 = sbr.rel (%p452) target = $region60
        $region59: #{flow_forward_pallas.1} parent=47 // pred_region
          %455 = dma.done %s448, 65536
        $region60: #{flow_forward_pallas.1} parent=47 // pred_fallthru
          _
        %s456 = sand.u32 %s32, 1
        %s457 = scalar_lea.sflag [#allocation11], %s456
        %s458 = sand.u32 %s156, 1
        %s459 = smul.addr %s458, 8
        %s460 = scalar_lea.vmem [#allocation10], %s459
        // Predicated region
        $region61: #{flow_forward_pallas.1} parent=47 // pred_check
          %p461 = pneg %p169
        $region62: #{flow_forward_pallas.1} parent=47 // pred_check_branch
          %463 = sbr.rel (%p461) target = $region64
        $region63: #{flow_forward_pallas.1} parent=47 // pred_region
          %464 = dma.done %s457, 128
        $region64: #{flow_forward_pallas.1} parent=47 // pred_fallthru
          _
        %s465 = sand.u32 %s32, 1
        %s466 = scalar_lea.sflag [#allocation11], %s465
        %s467 = sand.u32 %s182, 1
        %s468 = smul.addr %s467, 4096
        %s469 = scalar_lea.vmem [#allocation12], %s468
        // Predicated region
        $region65: #{flow_forward_pallas.1} parent=47 // pred_check
          %p470 = pneg %p195
        $region66: #{flow_forward_pallas.1} parent=47 // pred_check_branch
          %472 = sbr.rel (%p470) target = $region68
        $region67: #{flow_forward_pallas.1} parent=47 // pred_region
          %473 = dma.done %s466, 65536
        $region68: #{flow_forward_pallas.1} parent=47 // pred_fallthru
          _
        %s474 = sand.u32 %s208, 1
        %s475 = scalar_lea.sflag [#allocation14], %s474
        %s476 = sand.u32 %s208, 1
        %s477 = smul.addr %s476, 8
        %s478 = scalar_lea.vmem [#allocation13], %s477
        // Predicated region
        $region69: #{flow_forward_pallas.1} parent=47 // pred_check
          %p479 = pneg %p221
        $region70: #{flow_forward_pallas.1} parent=47 // pred_check_branch
          %481 = sbr.rel (%p479) target = $region72
        $region71: #{flow_forward_pallas.1} parent=47 // pred_region
          %482 = dma.done %s475, 128
        $region72: #{flow_forward_pallas.1} parent=47 // pred_fallthru
          _
        %s483 = smul.u32 2, %s36
        %p484 = scmp.lt.s32.totalorder %s483, 1
        %s485 = scalar_select %p484, %s483, 1
        %s486 = smul.addr %s485, 8
        %s487 = smul.addr %s486, 8
        %s488 = scalar_lea.vmem %s0, %s487
        %p489 = pneg %p65
        %p490 = pneg %p62
        %s491 = sand.u32 %s78, 1
        %s492 = scalar_lea.sflag [#allocation6], %s491
        %s493 = sand.u32 %s78, 1
        %s494 = smul.addr %s493, 2048
        %s495 = scalar_lea.vmem [#allocation5], %s494
        %p496 = pneg %p91
        %p497 = pneg %p88
        %s498 = sand.u32 %s32, 1
        %s499 = scalar_lea.sflag [#allocation8], %s498
        %s500 = sand.u32 %s104, 1
        %s501 = smul.addr %s500, 8
        %s502 = scalar_lea.vmem [#allocation7], %s501
        %p503 = pneg %p117
        %p504 = pneg %p114
        %s505 = sand.u32 %s32, 1
        %s506 = scalar_lea.sflag [#allocation8], %s505
        %s507 = sand.u32 %s130, 1
        %s508 = smul.addr %s507, 4096
        %s509 = scalar_lea.vmem [#allocation9], %s508
        %p510 = pneg %p143
        %p511 = pneg %p140
        %s512 = sand.u32 %s32, 1
        %s513 = scalar_lea.sflag [#allocation11], %s512
        %s514 = sand.u32 %s156, 1
        %s515 = smul.addr %s514, 8
        %s516 = scalar_lea.vmem [#allocation10], %s515
        %p517 = pneg %p169
        %p518 = pneg %p166
        %s519 = sand.u32 %s32, 1
        %s520 = scalar_lea.sflag [#allocation11], %s519
        %s521 = sand.u32 %s182, 1
        %s522 = smul.addr %s521, 4096
        %s523 = scalar_lea.vmem [#allocation12], %s522
        %p524 = pneg %p195
        %p525 = pneg %p192
        %s526 = sand.u32 %s208, 1
        %s527 = scalar_lea.sflag [#allocation14], %s526
        %s528 = sand.u32 %s208, 1
        %s529 = smul.addr %s528, 8
        %s530 = scalar_lea.vmem [#allocation13], %s529
        %p531 = pneg %p221
        %p532 = pneg %p218
        %p533 = pneg %p247
        %p534 = pneg %p244
        %s535 = smul.u32 2, %s36
        %p536 = scmp.lt.s32.totalorder %s535, 1
        %s537 = scalar_select %p536, %s535, 1
        %s538 = smul.addr %s537, 8
        %s539 = smul.addr %s538, 8
        %s540 = scalar_lea.vmem %s7, %s539
        %p541 = pneg %p273
        %p542 = pneg %p270
        %s543 = smul.u32 2, %s36
        %p544 = scmp.lt.s32.totalorder %s543, 1
        %s545 = scalar_select %p544, %s543, 1
        %s546 = smul.addr %s545, 8
        %s547 = scalar_lea.vmem %s8, %s546
        %s548 = smul.u32 2, %s36
        %p549 = scmp.lt.s32.totalorder %s548, 1
        %s550 = scalar_select %p549, %s548, 1
        %s551 = smul.addr %s550, 8
        %s552 = smul.addr %s551, 8
        %s553 = scalar_lea.vmem %s0, %s552
        %s554 = smul.u32 2, %s36
        %s555 = smul.u32 2, %s36
        %p556 = scmp.lt.s32.totalorder %s555, 1
        %s557 = scalar_select %p556, %s555, 1
        %s558 = smul.addr %s557, 8
        %s559 = smul.addr %s558, 8
        %s560 = scalar_lea.vmem %s7, %s559
        %s561 = smul.u32 2, %s36
        %s562 = smul.u32 2, %s36
        %p563 = scmp.lt.s32.totalorder %s562, 1
        %s564 = scalar_select %p563, %s562, 1
        %s565 = smul.addr %s564, 8
        %s566 = scalar_lea.vmem %s8, %s565
        %s567 = smul.u32 2, %s36
        %p568 = scmp.lt.s32.totalorder %s37, 0
        %s569 = ssub.s32 0, %s37
        %s570 = scalar_select %p568, %s569, %s37
        %s571 = sand.u32 %s570, 1
        %s572 = ssub.s32 0, %s571
        %s573 = scalar_select %p568, %s572, %s571
        %p574 = scmp.ne.s32.totalorder %s573, 0
        %p575 = scmp.lt.s32.totalorder %s573, 0
        %p576 = pnand %p575, %p574
        %p577 = pneg %p576
        %s578 = sadd.s32 %s573, 2
        %s579 = scalar_select %p577, %s578, %s573
        %p580 = scmp.eq.s32.totalorder %s579, 0
        %p581 = scmp.eq.s32.totalorder %s37, 0
        // Predicated region
        $region73: #{flow_forward_pallas.1} parent=47 // pred_check
          %p582 = pneg %p581
        $region74: #{flow_forward_pallas.1} parent=47 // pred_check_branch
          %584 = sbr.rel (%p582) target = $region76
        $region75: #{flow_forward_pallas.1} parent=47 // pred_region
          %v585 = vlaneseq
          %v586 = vand.u32 %v585, 127
          %v587 = vadd.s32 %v586, 128
          %v588 = vadd.s32 %v586, 256
          %v589 = vadd.s32 %v586, 384
          %v590 = vadd.s32 %v586, 512
          %v591 = vadd.s32 %v586, 640
          %v592 = vadd.s32 %v586, 768
          %v593 = vadd.s32 %v586, 896
          %vm594 = vcmp.lt.s32.totalorder %v586, 0
          %v595 = vsub.s32 0, %v586
          %v596 = vsel %vm594, %v595, %v586
          %v597 = vshrl.u32 %v596, 9
          %v598 = vand.u32 %v596, 511
          %v599 = vsub.s32 0, %v598
          %v600 = vsel %vm594, %v599, %v598
          %vm601 = vcmp.lt.s32.totalorder %v587, 0
          %v602 = vsub.s32 0, %v587
          %v603 = vsel %vm601, %v602, %v587
          %v604 = vshrl.u32 %v603, 9
          %v605 = vand.u32 %v603, 511
          %v606 = vsub.s32 0, %v605
          %v607 = vsel %vm601, %v606, %v605
          %vm608 = vcmp.lt.s32.totalorder %v588, 0
          %v609 = vsub.s32 0, %v588
          %v610 = vsel %vm608, %v609, %v588
          %v611 = vshrl.u32 %v610, 9
          %v612 = vand.u32 %v610, 511
          %v613 = vsub.s32 0, %v612
          %v614 = vsel %vm608, %v613, %v612
          %vm615 = vcmp.lt.s32.totalorder %v589, 0
          %v616 = vsub.s32 0, %v589
          %v617 = vsel %vm615, %v616, %v589
          %v618 = vshrl.u32 %v617, 9
          %v619 = vand.u32 %v617, 511
          %v620 = vsub.s32 0, %v619
          %v621 = vsel %vm615, %v620, %v619
          %vm622 = vcmp.lt.s32.totalorder %v590, 0
          %v623 = vsub.s32 0, %v590
          %v624 = vsel %vm622, %v623, %v590
          %v625 = vshrl.u32 %v624, 9
          %v626 = vand.u32 %v624, 511
          %v627 = vsub.s32 0, %v626
          %v628 = vsel %vm622, %v627, %v626
          %vm629 = vcmp.lt.s32.totalorder %v591, 0
          %v630 = vsub.s32 0, %v591
          %v631 = vsel %vm629, %v630, %v591
          %v632 = vshrl.u32 %v631, 9
          %v633 = vand.u32 %v631, 511
          %v634 = vsub.s32 0, %v633
          %v635 = vsel %vm629, %v634, %v633
          %vm636 = vcmp.lt.s32.totalorder %v592, 0
          %v637 = vsub.s32 0, %v592
          %v638 = vsel %vm636, %v637, %v592
          %v639 = vshrl.u32 %v638, 9
          %v640 = vand.u32 %v638, 511
          %v641 = vsub.s32 0, %v640
          %v642 = vsel %vm636, %v641, %v640
          %vm643 = vcmp.lt.s32.totalorder %v593, 0
          %v644 = vsub.s32 0, %v593
          %v645 = vsel %vm643, %v644, %v593
          %v646 = vshrl.u32 %v645, 9
          %v647 = vand.u32 %v645, 511
          %v648 = vsub.s32 0, %v647
          %v649 = vsel %vm643, %v648, %v647
          %vm650 = vcmp.ne.s32.totalorder %v600, 0
          %vm651 = vcmp.ne.s32.totalorder %v607, 0
          %vm652 = vcmp.ne.s32.totalorder %v614, 0
          %vm653 = vcmp.ne.s32.totalorder %v621, 0
          %vm654 = vcmp.ne.s32.totalorder %v628, 0
          %vm655 = vcmp.ne.s32.totalorder %v635, 0
          %vm656 = vcmp.ne.s32.totalorder %v642, 0
          %vm657 = vcmp.ne.s32.totalorder %v649, 0
          %vm658 = vcmp.lt.s32.totalorder %v600, 0
          %vm659 = vcmp.lt.s32.totalorder %v607, 0
          %vm660 = vcmp.lt.s32.totalorder %v614, 0
          %vm661 = vcmp.lt.s32.totalorder %v621, 0
          %vm662 = vcmp.lt.s32.totalorder %v628, 0
          %vm663 = vcmp.lt.s32.totalorder %v635, 0
          %vm664 = vcmp.lt.s32.totalorder %v642, 0
          %vm665 = vcmp.lt.s32.totalorder %v649, 0
          %vm666 = vmand %vm658, %vm650
          %vm667 = vmand %vm659, %vm651
          %vm668 = vmand %vm660, %vm652
          %vm669 = vmand %vm661, %vm653
          %vm670 = vmand %vm662, %vm654
          %vm671 = vmand %vm663, %vm655
          %vm672 = vmand %vm664, %vm656
          %vm673 = vmand %vm665, %vm657
          %v674 = vadd.s32 %v600, 512
          %v675 = vadd.s32 %v607, 512
          %v676 = vadd.s32 %v614, 512
          %v677 = vadd.s32 %v621, 512
          %v678 = vadd.s32 %v628, 512
          %v679 = vadd.s32 %v635, 512
          %v680 = vadd.s32 %v642, 512
          %v681 = vadd.s32 %v649, 512
          %v682 = vsel %vm666, %v674, %v600
          %v683 = vsel %vm667, %v675, %v607
          %v684 = vsel %vm668, %v676, %v614
          %v685 = vsel %vm669, %v677, %v621
          %v686 = vsel %vm670, %v678, %v628
          %v687 = vsel %vm671, %v679, %v635
          %v688 = vsel %vm672, %v680, %v642
          %v689 = vsel %vm673, %v681, %v649
          %vm690 = vcmp.lt.s32.totalorder %v682, 392
          %vm691 = vcmp.lt.s32.totalorder %v683, 392
          %vm692 = vcmp.lt.s32.totalorder %v684, 392
          %vm693 = vcmp.lt.s32.totalorder %v685, 392
          %vm694 = vcmp.lt.s32.totalorder %v686, 392
          %vm695 = vcmp.lt.s32.totalorder %v687, 392
          %vm696 = vcmp.lt.s32.totalorder %v688, 392
          %vm697 = vcmp.lt.s32.totalorder %v689, 392
          %v698 = vsel %vm690, 1, 0
          %v699 = vsel %vm691, 1, 0
          %v700 = vsel %vm692, 1, 0
          %v701 = vsel %vm693, 1, 0
          %v702 = vsel %vm694, 1, 0
          %v703 = vsel %vm695, 1, 0
          %v704 = vsel %vm696, 1, 0
          %v705 = vsel %vm697, 1, 0
          %v706 = vcvt.s32.f32 %v698
          %v707 = vcvt.s32.f32 %v699
          %v708 = vcvt.s32.f32 %v700
          %v709 = vcvt.s32.f32 %v701
          %v710 = vcvt.s32.f32 %v702
          %v711 = vcvt.s32.f32 %v703
          %v712 = vcvt.s32.f32 %v704
          %v713 = vcvt.s32.f32 %v705
          %v714 = vld [vmem:[%s553] sm:$0xff]
          %v715 = vld [vmem:[%s553 + $0x8] sm:$0xff]
          %v716 = vld [vmem:[%s553 + $0x10] sm:$0xff]
          %v717 = vld [vmem:[%s553 + $0x18] sm:$0xff]
          %v718 = vld [vmem:[%s553 + $0x20] sm:$0xff]
          %v719 = vld [vmem:[%s553 + $0x28] sm:$0xff]
          %v720 = vld [vmem:[%s553 + $0x30] sm:$0xff]
          %v721 = vld [vmem:[%s553 + $0x38] sm:$0xff]
          %v722 = vld [vmem:[%s553 + $0x40] sm:$0xff]
          %v723 = vld [vmem:[%s553 + $0x48] sm:$0xff]
          %v724 = vld [vmem:[%s553 + $0x50] sm:$0xff]
          %v725 = vld [vmem:[%s553 + $0x58] sm:$0xff]
          %v726 = vld [vmem:[%s553 + $0x60] sm:$0xff]
          %v727 = vld [vmem:[%s553 + $0x68] sm:$0xff]
          %v728 = vld [vmem:[%s553 + $0x70] sm:$0xff]
          %v729 = vld [vmem:[%s553 + $0x78] sm:$0xff]
          %v730 = vmul.f32 %v714, 0.00390625
          %v731 = vmul.f32 %v715, 0.00390625
          %v732 = vmul.f32 %v716, 0.00390625
          %v733 = vmul.f32 %v717, 0.00390625
          %v734 = vmul.f32 %v718, 0.00390625
          %v735 = vmul.f32 %v719, 0.00390625
          %v736 = vmul.f32 %v720, 0.00390625
          %v737 = vmul.f32 %v721, 0.00390625
          %v738 = vmul.f32 %v722, 0.00390625
          %v739 = vmul.f32 %v723, 0.00390625
          %v740 = vmul.f32 %v724, 0.00390625
          %v741 = vmul.f32 %v725, 0.00390625
          %v742 = vmul.f32 %v726, 0.00390625
          %v743 = vmul.f32 %v727, 0.00390625
          %v744 = vmul.f32 %v728, 0.00390625
          %v745 = vmul.f32 %v729, 0.00390625
          %v746 = vmul.f32 %v730, 0.99999
          %v747 = vmul.f32 %v731, 0.99999
          %v748 = vmul.f32 %v732, 0.99999
          %v749 = vmul.f32 %v733, 0.99999
          %v750 = vmul.f32 %v734, 0.99999
          %v751 = vmul.f32 %v735, 0.99999
          %v752 = vmul.f32 %v736, 0.99999
          %v753 = vmul.f32 %v737, 0.99999
          %v754 = vmul.f32 %v738, 0.99999
          %v755 = vmul.f32 %v739, 0.99999
          %v756 = vmul.f32 %v740, 0.99999
          %v757 = vmul.f32 %v741, 0.99999
          %v758 = vmul.f32 %v742, 0.99999
          %v759 = vmul.f32 %v743, 0.99999
          %v760 = vmul.f32 %v744, 0.99999
          %v761 = vmul.f32 %v745, 0.99999
          %v762 = vadd.f32 %v746, 5e-06
          %v763 = vadd.f32 %v747, 5e-06
          %v764 = vadd.f32 %v748, 5e-06
          %v765 = vadd.f32 %v749, 5e-06
          %v766 = vadd.f32 %v750, 5e-06
          %v767 = vadd.f32 %v751, 5e-06
          %v768 = vadd.f32 %v752, 5e-06
          %v769 = vadd.f32 %v753, 5e-06
          %v770 = vadd.f32 %v754, 5e-06
          %v771 = vadd.f32 %v755, 5e-06
          %v772 = vadd.f32 %v756, 5e-06
          %v773 = vadd.f32 %v757, 5e-06
          %v774 = vadd.f32 %v758, 5e-06
          %v775 = vadd.f32 %v759, 5e-06
          %v776 = vadd.f32 %v760, 5e-06
          %v777 = vadd.f32 %v761, 5e-06
          %v778 = vlog2.pop %v762
          %v779 = vmul.f32 %v778, 0.6931472
          %v780 = vlog2.pop %v763
          %v781 = vmul.f32 %v780, 0.6931472
          %v782 = vlog2.pop %v764
          %v783 = vmul.f32 %v782, 0.6931472
          %v784 = vlog2.pop %v765
          %v785 = vmul.f32 %v784, 0.6931472
          %v786 = vlog2.pop %v766
          %v787 = vmul.f32 %v786, 0.6931472
          %v788 = vlog2.pop %v767
          %v789 = vmul.f32 %v788, 0.6931472
          %v790 = vlog2.pop %v768
          %v791 = vmul.f32 %v790, 0.6931472
          %v792 = vlog2.pop %v769
          %v793 = vmul.f32 %v792, 0.6931472
          %v794 = vlog2.pop %v770
          %v795 = vmul.f32 %v794, 0.6931472
          %v796 = vlog2.pop %v771
          %v797 = vmul.f32 %v796, 0.6931472
          %v798 = vlog2.pop %v772
          %v799 = vmul.f32 %v798, 0.6931472
          %v800 = vlog2.pop %v773
          %v801 = vmul.f32 %v800, 0.6931472
          %v802 = vlog2.pop %v774
          %v803 = vmul.f32 %v802, 0.6931472
          %v804 = vlog2.pop %v775
          %v805 = vmul.f32 %v804, 0.6931472
          %v806 = vlog2.pop %v776
          %v807 = vmul.f32 %v806, 0.6931472
          %v808 = vlog2.pop %v777
          %v809 = vmul.f32 %v808, 0.6931472
          %v810 = vsub.f32 0.0, %v779
          %v811 = vsub.f32 0.0, %v781
          %v812 = vsub.f32 0.0, %v783
          %v813 = vsub.f32 0.0, %v785
          %v814 = vsub.f32 0.0, %v787
          %v815 = vsub.f32 0.0, %v789
          %v816 = vsub.f32 0.0, %v791
          %v817 = vsub.f32 0.0, %v793
          %v818 = vsub.f32 0.0, %v795
          %v819 = vsub.f32 0.0, %v797
          %v820 = vsub.f32 0.0, %v799
          %v821 = vsub.f32 0.0, %v801
          %v822 = vsub.f32 0.0, %v803
          %v823 = vsub.f32 0.0, %v805
          %v824 = vsub.f32 0.0, %v807
          %v825 = vsub.f32 0.0, %v809
          %v826 = vsub.f32 1.0, %v762
          %v827 = vsub.f32 1.0, %v763
          %v828 = vsub.f32 1.0, %v764
          %v829 = vsub.f32 1.0, %v765
          %v830 = vsub.f32 1.0, %v766
          %v831 = vsub.f32 1.0, %v767
          %v832 = vsub.f32 1.0, %v768
          %v833 = vsub.f32 1.0, %v769
          %v834 = vsub.f32 1.0, %v770
          %v835 = vsub.f32 1.0, %v771
          %v836 = vsub.f32 1.0, %v772
          %v837 = vsub.f32 1.0, %v773
          %v838 = vsub.f32 1.0, %v774
          %v839 = vsub.f32 1.0, %v775
          %v840 = vsub.f32 1.0, %v776
          %v841 = vsub.f32 1.0, %v777
          %v842 = vlog2.pop %v826
          %v843 = vmul.f32 %v842, 0.6931472
          %v844 = vlog2.pop %v827
          %v845 = vmul.f32 %v844, 0.6931472
          %v846 = vlog2.pop %v828
          %v847 = vmul.f32 %v846, 0.6931472
          %v848 = vlog2.pop %v829
          %v849 = vmul.f32 %v848, 0.6931472
          %v850 = vlog2.pop %v830
          %v851 = vmul.f32 %v850, 0.6931472
          %v852 = vlog2.pop %v831
          %v853 = vmul.f32 %v852, 0.6931472
          %v854 = vlog2.pop %v832
          %v855 = vmul.f32 %v854, 0.6931472
          %v856 = vlog2.pop %v833
          %v857 = vmul.f32 %v856, 0.6931472
          %v858 = vlog2.pop %v834
          %v859 = vmul.f32 %v858, 0.6931472
          %v860 = vlog2.pop %v835
          %v861 = vmul.f32 %v860, 0.6931472
          %v862 = vlog2.pop %v836
          %v863 = vmul.f32 %v862, 0.6931472
          %v864 = vlog2.pop %v837
          %v865 = vmul.f32 %v864, 0.6931472
          %v866 = vlog2.pop %v838
          %v867 = vmul.f32 %v866, 0.6931472
          %v868 = vlog2.pop %v839
          %v869 = vmul.f32 %v868, 0.6931472
          %v870 = vlog2.pop %v840
          %v871 = vmul.f32 %v870, 0.6931472
          %v872 = vlog2.pop %v841
          %v873 = vmul.f32 %v872, 0.6931472
          %v874 = vsub.f32 %v810, %v843
          %v875 = vsub.f32 %v811, %v845
          %v876 = vsub.f32 %v812, %v847
          %v877 = vsub.f32 %v813, %v849
          %v878 = vsub.f32 %v814, %v851
          %v879 = vsub.f32 %v815, %v853
          %v880 = vsub.f32 %v816, %v855
          %v881 = vsub.f32 %v817, %v857
          %v882 = vsub.f32 %v818, %v859
          %v883 = vsub.f32 %v819, %v861
          %v884 = vsub.f32 %v820, %v863
          %v885 = vsub.f32 %v821, %v865
          %v886 = vsub.f32 %v822, %v867
          %v887 = vsub.f32 %v823, %v869
          %v888 = vsub.f32 %v824, %v871
          %v889 = vsub.f32 %v825, %v873
          %v890 = vmul.f32 %v706, %v874
          %v891 = vmul.f32 %v707, %v875
          %v892 = vmul.f32 %v708, %v876
          %v893 = vmul.f32 %v709, %v877
          %v894 = vmul.f32 %v710, %v878
          %v895 = vmul.f32 %v711, %v879
          %v896 = vmul.f32 %v712, %v880
          %v897 = vmul.f32 %v713, %v881
          %v898 = vmul.f32 %v706, %v882
          %v899 = vmul.f32 %v707, %v883
          %v900 = vmul.f32 %v708, %v884
          %v901 = vmul.f32 %v709, %v885
          %v902 = vmul.f32 %v710, %v886
          %v903 = vmul.f32 %v711, %v887
          %v904 = vmul.f32 %v712, %v888
          %v905 = vmul.f32 %v713, %v889
          %v906 = vadd.f32 %v890, %v891
          %v907 = vadd.f32 %v906, %v892
          %v908 = vadd.f32 %v907, %v893
          %v909 = vadd.f32 %v908, %v894
          %v910 = vadd.f32 %v909, %v895
          %v911 = vadd.f32 %v910, %v896
          %v912 = vadd.f32 %v911, %v897
          %913 = vadd.xlane.f32.xlu0 %v912
          %v914 = vpop.xlane.xlu0 %913
          %v915 = vadd.f32 %v898, %v899
          %v916 = vadd.f32 %v915, %v900
          %v917 = vadd.f32 %v916, %v901
          %v918 = vadd.f32 %v917, %v902
          %v919 = vadd.f32 %v918, %v903
          %v920 = vadd.f32 %v919, %v904
          %v921 = vadd.f32 %v920, %v905
          %922 = vadd.xlane.f32.xlu0 %v921
          %v923 = vpop.xlane.xlu0 %922
          %v924 = vadd.f32 %v914, -4347.419
          %v925 = vadd.f32 %v923, -4347.419
          %v926 = vsub.f32 %v779, %v843
          %v927 = vsub.f32 %v781, %v845
          %v928 = vsub.f32 %v783, %v847
          %v929 = vsub.f32 %v785, %v849
          %v930 = vsub.f32 %v787, %v851
          %v931 = vsub.f32 %v789, %v853
          %v932 = vsub.f32 %v791, %v855
          %v933 = vsub.f32 %v793, %v857
          %v934 = vsub.f32 %v795, %v859
          %v935 = vsub.f32 %v797, %v861
          %v936 = vsub.f32 %v799, %v863
          %v937 = vsub.f32 %v801, %v865
          %v938 = vsub.f32 %v803, %v867
          %v939 = vsub.f32 %v805, %v869
          %v940 = vsub.f32 %v807, %v871
          %v941 = vsub.f32 %v809, %v873
          %v942 = vmul.f32 %v706, %v926
          %v943 = vmul.f32 %v707, %v927
          %v944 = vmul.f32 %v708, %v928
          %v945 = vmul.f32 %v709, %v929
          %v946 = vmul.f32 %v710, %v930
          %v947 = vmul.f32 %v711, %v931
          %v948 = vmul.f32 %v712, %v932
          %v949 = vmul.f32 %v713, %v933
          %v950 = vmul.f32 %v706, %v934
          %v951 = vmul.f32 %v707, %v935
          %v952 = vmul.f32 %v708, %v936
          %v953 = vmul.f32 %v709, %v937
          %v954 = vmul.f32 %v710, %v938
          %v955 = vmul.f32 %v711, %v939
          %v956 = vmul.f32 %v712, %v940
          %v957 = vmul.f32 %v713, %v941
          %958 = vst [vmem:[#allocation2] sm:$0xff] %v942
          %959 = vst [vmem:[#allocation2 + $0x8] sm:$0xff] %v943
          %960 = vst [vmem:[#allocation2 + $0x10] sm:$0xff] %v944
          %961 = vst [vmem:[#allocation2 + $0x18] sm:$0xff] %v945
          %962 = vst [vmem:[#allocation2 + $0x20] sm:$0xff] %v950
          %963 = vst [vmem:[#allocation2 + $0x28] sm:$0xff] %v951
          %964 = vst [vmem:[#allocation2 + $0x30] sm:$0xff] %v952
          %965 = vst [vmem:[#allocation2 + $0x38] sm:$0xff] %v953
          %966 = vst [vmem:[#allocation3] sm:$0xff] %v946
          %967 = vst [vmem:[#allocation3 + $0x8] sm:$0xff] %v947
          %968 = vst [vmem:[#allocation3 + $0x10] sm:$0xff] %v948
          %969 = vst [vmem:[#allocation3 + $0x18] sm:$0xff] %v949
          %970 = vst [vmem:[#allocation3 + $0x20] sm:$0xff] %v954
          %971 = vst [vmem:[#allocation3 + $0x28] sm:$0xff] %v955
          %972 = vst [vmem:[#allocation3 + $0x30] sm:$0xff] %v956
          %973 = vst [vmem:[#allocation3 + $0x38] sm:$0xff] %v957
          %vm974 = vcmask 7168
          %975 = vst.msk [vmem:[#allocation4] sm:$0xff] %vm974, %v924
          %976 = vst.msk [vmem:[#allocation4 + $0x8] sm:$0xff] %vm974, %v925
        $region76: #{flow_forward_pallas.1} parent=47 // pred_fallthru
          _
        %v977 = vld [vmem:[#allocation2] sm:$0xff]
        %v978 = vld [vmem:[#allocation2 + $0x8] sm:$0xff]
        %v979 = vld [vmem:[#allocation2 + $0x10] sm:$0xff]
        %v980 = vld [vmem:[#allocation2 + $0x18] sm:$0xff]
        %v981 = vld [vmem:[#allocation2 + $0x20] sm:$0xff]
        %v982 = vld [vmem:[#allocation2 + $0x28] sm:$0xff]
        %v983 = vld [vmem:[#allocation2 + $0x30] sm:$0xff]
        %v984 = vld [vmem:[#allocation2 + $0x38] sm:$0xff]
        %v985 = vld [vmem:[#allocation3] sm:$0xff]
        %v986 = vld [vmem:[#allocation3 + $0x8] sm:$0xff]
        %v987 = vld [vmem:[#allocation3 + $0x10] sm:$0xff]
        %v988 = vld [vmem:[#allocation3 + $0x18] sm:$0xff]
        %v989 = vld [vmem:[#allocation3 + $0x20] sm:$0xff]
        %v990 = vld [vmem:[#allocation3 + $0x28] sm:$0xff]
        %v991 = vld [vmem:[#allocation3 + $0x30] sm:$0xff]
        %v992 = vld [vmem:[#allocation3 + $0x38] sm:$0xff]
        %s993 = scalar_select %p580, 1, 0
        %v994 = vstv %s993
        %vm995 = vcmp.eq.s32.totalorder %v994, 1
        %v996 = vsel %vm995, %v977, %v985
        %v997 = vsel %vm995, %v978, %v986
        %v998 = vsel %vm995, %v979, %v987
        %v999 = vsel %vm995, %v980, %v988
        %v1000 = vsel %vm995, %v981, %v989
        %v1001 = vsel %vm995, %v982, %v990
        %v1002 = vsel %vm995, %v983, %v991
        %v1003 = vsel %vm995, %v984, %v992
        %v1004 = vsel %vm995, %v985, %v977
        %v1005 = vsel %vm995, %v986, %v978
        %v1006 = vsel %vm995, %v987, %v979
        %v1007 = vsel %vm995, %v988, %v980
        %v1008 = vsel %vm995, %v989, %v981
        %v1009 = vsel %vm995, %v990, %v982
        %v1010 = vsel %vm995, %v991, %v983
        %v1011 = vsel %vm995, %v992, %v984
        %v1012 = vpack.c.bf16 %v1000, %v996
        %v1013 = vpack.c.bf16 %v1001, %v997
        %v1014 = vpack.c.bf16 %v1002, %v998
        %v1015 = vpack.c.bf16 %v1003, %v999
        %v1016 = vld [vmem:[%s433] sm:$0xff]
        %v1017 = vld [vmem:[%s433 + $0x8] sm:$0xff]
        %v1018 = vld [vmem:[%s433 + $0x10] sm:$0xff]
        %v1019 = vld [vmem:[%s433 + $0x18] sm:$0xff]
        %v1020 = vld [vmem:[%s433 + $0x20] sm:$0xff]
        %v1021 = vld [vmem:[%s433 + $0x28] sm:$0xff]
        %v1022 = vld [vmem:[%s433 + $0x30] sm:$0xff]
        %v1023 = vld [vmem:[%s433 + $0x38] sm:$0xff]
        %v1024 = vld [vmem:[%s433 + $0x40] sm:$0xff]
        %v1025 = vld [vmem:[%s433 + $0x48] sm:$0xff]
        %v1026 = vld [vmem:[%s433 + $0x50] sm:$0xff]
        %v1027 = vld [vmem:[%s433 + $0x58] sm:$0xff]
        %v1028 = vld [vmem:[%s433 + $0x60] sm:$0xff]
        %v1029 = vld [vmem:[%s433 + $0x68] sm:$0xff]
        %v1030 = vld [vmem:[%s433 + $0x70] sm:$0xff]
        %v1031 = vld [vmem:[%s433 + $0x78] sm:$0xff]
        %v1032 = vld [vmem:[%s433 + $0x80] sm:$0xff]
        %v1033 = vld [vmem:[%s433 + $0x88] sm:$0xff]
        %v1034 = vld [vmem:[%s433 + $0x90] sm:$0xff]
        %v1035 = vld [vmem:[%s433 + $0x98] sm:$0xff]
        %v1036 = vld [vmem:[%s433 + $0xa0] sm:$0xff]
        %v1037 = vld [vmem:[%s433 + $0xa8] sm:$0xff]
        %v1038 = vld [vmem:[%s433 + $0xb0] sm:$0xff]
        %v1039 = vld [vmem:[%s433 + $0xb8] sm:$0xff]
        %v1040 = vld [vmem:[%s433 + $0xc0] sm:$0xff]
        %v1041 = vld [vmem:[%s433 + $0xc8] sm:$0xff]
        %v1042 = vld [vmem:[%s433 + $0xd0] sm:$0xff]
        %v1043 = vld [vmem:[%s433 + $0xd8] sm:$0xff]
        %v1044 = vld [vmem:[%s433 + $0xe0] sm:$0xff]
        %v1045 = vld [vmem:[%s433 + $0xe8] sm:$0xff]
        %v1046 = vld [vmem:[%s433 + $0xf0] sm:$0xff]
        %v1047 = vld [vmem:[%s433 + $0xf8] sm:$0xff]
        %v1048 = vld [vmem:[%s433 + $0x100] sm:$0xff]
        %v1049 = vld [vmem:[%s433 + $0x108] sm:$0xff]
        %v1050 = vld [vmem:[%s433 + $0x110] sm:$0xff]
        %v1051 = vld [vmem:[%s433 + $0x118] sm:$0xff]
        %v1052 = vld [vmem:[%s433 + $0x120] sm:$0xff]
        %v1053 = vld [vmem:[%s433 + $0x128] sm:$0xff]
        %v1054 = vld [vmem:[%s433 + $0x130] sm:$0xff]
        %v1055 = vld [vmem:[%s433 + $0x138] sm:$0xff]
        %v1056 = vld [vmem:[%s433 + $0x140] sm:$0xff]
        %v1057 = vld [vmem:[%s433 + $0x148] sm:$0xff]
        %v1058 = vld [vmem:[%s433 + $0x150] sm:$0xff]
        %v1059 = vld [vmem:[%s433 + $0x158] sm:$0xff]
        %v1060 = vld [vmem:[%s433 + $0x160] sm:$0xff]
        %v1061 = vld [vmem:[%s433 + $0x168] sm:$0xff]
        %v1062 = vld [vmem:[%s433 + $0x170] sm:$0xff]
        %v1063 = vld [vmem:[%s433 + $0x178] sm:$0xff]
        %v1064 = vld [vmem:[%s433 + $0x180] sm:$0xff]
        %v1065 = vld [vmem:[%s433 + $0x188] sm:$0xff]
        %v1066 = vld [vmem:[%s433 + $0x190] sm:$0xff]
        %v1067 = vld [vmem:[%s433 + $0x198] sm:$0xff]
        %v1068 = vld [vmem:[%s433 + $0x1a0] sm:$0xff]
        %v1069 = vld [vmem:[%s433 + $0x1a8] sm:$0xff]
        %v1070 = vld [vmem:[%s433 + $0x1b0] sm:$0xff]
        %v1071 = vld [vmem:[%s433 + $0x1b8] sm:$0xff]
        %v1072 = vld [vmem:[%s433 + $0x1c0] sm:$0xff]
        %v1073 = vld [vmem:[%s433 + $0x1c8] sm:$0xff]
        %v1074 = vld [vmem:[%s433 + $0x1d0] sm:$0xff]
        %v1075 = vld [vmem:[%s433 + $0x1d8] sm:$0xff]
        %v1076 = vld [vmem:[%s433 + $0x1e0] sm:$0xff]
        %v1077 = vld [vmem:[%s433 + $0x1e8] sm:$0xff]
        %v1078 = vld [vmem:[%s433 + $0x1f0] sm:$0xff]
        %v1079 = vld [vmem:[%s433 + $0x1f8] sm:$0xff]
        %v1080 = vld [vmem:[%s433 + $0x200] sm:$0xff]
        %v1081 = vld [vmem:[%s433 + $0x208] sm:$0xff]
        %v1082 = vld [vmem:[%s433 + $0x210] sm:$0xff]
        %v1083 = vld [vmem:[%s433 + $0x218] sm:$0xff]
        %v1084 = vld [vmem:[%s433 + $0x220] sm:$0xff]
        %v1085 = vld [vmem:[%s433 + $0x228] sm:$0xff]
        %v1086 = vld [vmem:[%s433 + $0x230] sm:$0xff]
        %v1087 = vld [vmem:[%s433 + $0x238] sm:$0xff]
        %v1088 = vld [vmem:[%s433 + $0x240] sm:$0xff]
        %v1089 = vld [vmem:[%s433 + $0x248] sm:$0xff]
        %v1090 = vld [vmem:[%s433 + $0x250] sm:$0xff]
        %v1091 = vld [vmem:[%s433 + $0x258] sm:$0xff]
        %v1092 = vld [vmem:[%s433 + $0x260] sm:$0xff]
        %v1093 = vld [vmem:[%s433 + $0x268] sm:$0xff]
        %v1094 = vld [vmem:[%s433 + $0x270] sm:$0xff]
        %v1095 = vld [vmem:[%s433 + $0x278] sm:$0xff]
        %v1096 = vld [vmem:[%s433 + $0x280] sm:$0xff]
        %v1097 = vld [vmem:[%s433 + $0x288] sm:$0xff]
        %v1098 = vld [vmem:[%s433 + $0x290] sm:$0xff]
        %v1099 = vld [vmem:[%s433 + $0x298] sm:$0xff]
        %v1100 = vld [vmem:[%s433 + $0x2a0] sm:$0xff]
        %v1101 = vld [vmem:[%s433 + $0x2a8] sm:$0xff]
        %v1102 = vld [vmem:[%s433 + $0x2b0] sm:$0xff]
        %v1103 = vld [vmem:[%s433 + $0x2b8] sm:$0xff]
        %v1104 = vld [vmem:[%s433 + $0x2c0] sm:$0xff]
        %v1105 = vld [vmem:[%s433 + $0x2c8] sm:$0xff]
        %v1106 = vld [vmem:[%s433 + $0x2d0] sm:$0xff]
        %v1107 = vld [vmem:[%s433 + $0x2d8] sm:$0xff]
        %v1108 = vld [vmem:[%s433 + $0x2e0] sm:$0xff]
        %v1109 = vld [vmem:[%s433 + $0x2e8] sm:$0xff]
        %v1110 = vld [vmem:[%s433 + $0x2f0] sm:$0xff]
        %v1111 = vld [vmem:[%s433 + $0x2f8] sm:$0xff]
        %v1112 = vld [vmem:[%s433 + $0x300] sm:$0xff]
        %v1113 = vld [vmem:[%s433 + $0x308] sm:$0xff]
        %v1114 = vld [vmem:[%s433 + $0x310] sm:$0xff]
        %v1115 = vld [vmem:[%s433 + $0x318] sm:$0xff]
        %v1116 = vld [vmem:[%s433 + $0x320] sm:$0xff]
        %v1117 = vld [vmem:[%s433 + $0x328] sm:$0xff]
        %v1118 = vld [vmem:[%s433 + $0x330] sm:$0xff]
        %v1119 = vld [vmem:[%s433 + $0x338] sm:$0xff]
        %v1120 = vld [vmem:[%s433 + $0x340] sm:$0xff]
        %v1121 = vld [vmem:[%s433 + $0x348] sm:$0xff]
        %v1122 = vld [vmem:[%s433 + $0x350] sm:$0xff]
        %v1123 = vld [vmem:[%s433 + $0x358] sm:$0xff]
        %v1124 = vld [vmem:[%s433 + $0x360] sm:$0xff]
        %v1125 = vld [vmem:[%s433 + $0x368] sm:$0xff]
        %v1126 = vld [vmem:[%s433 + $0x370] sm:$0xff]
        %v1127 = vld [vmem:[%s433 + $0x378] sm:$0xff]
        %v1128 = vld [vmem:[%s433 + $0x380] sm:$0xff]
        %v1129 = vld [vmem:[%s433 + $0x388] sm:$0xff]
        %v1130 = vld [vmem:[%s433 + $0x390] sm:$0xff]
        %v1131 = vld [vmem:[%s433 + $0x398] sm:$0xff]
        %v1132 = vld [vmem:[%s433 + $0x3a0] sm:$0xff]
        %v1133 = vld [vmem:[%s433 + $0x3a8] sm:$0xff]
        %v1134 = vld [vmem:[%s433 + $0x3b0] sm:$0xff]
        %v1135 = vld [vmem:[%s433 + $0x3b8] sm:$0xff]
        %v1136 = vld [vmem:[%s433 + $0x3c0] sm:$0xff]
        %v1137 = vld [vmem:[%s433 + $0x3c8] sm:$0xff]
        %v1138 = vld [vmem:[%s433 + $0x3d0] sm:$0xff]
        %v1139 = vld [vmem:[%s433 + $0x3d8] sm:$0xff]
        %v1140 = vld [vmem:[%s433 + $0x3e0] sm:$0xff]
        %v1141 = vld [vmem:[%s433 + $0x3e8] sm:$0xff]
        %v1142 = vld [vmem:[%s433 + $0x3f0] sm:$0xff]
        %v1143 = vld [vmem:[%s433 + $0x3f8] sm:$0xff]
        %v1144 = vld [vmem:[%s433 + $0x400] sm:$0xff]
        %v1145 = vld [vmem:[%s433 + $0x408] sm:$0xff]
        %v1146 = vld [vmem:[%s433 + $0x410] sm:$0xff]
        %v1147 = vld [vmem:[%s433 + $0x418] sm:$0xff]
        %v1148 = vld [vmem:[%s433 + $0x420] sm:$0xff]
        %v1149 = vld [vmem:[%s433 + $0x428] sm:$0xff]
        %v1150 = vld [vmem:[%s433 + $0x430] sm:$0xff]
        %v1151 = vld [vmem:[%s433 + $0x438] sm:$0xff]
        %v1152 = vld [vmem:[%s433 + $0x440] sm:$0xff]
        %v1153 = vld [vmem:[%s433 + $0x448] sm:$0xff]
        %v1154 = vld [vmem:[%s433 + $0x450] sm:$0xff]
        %v1155 = vld [vmem:[%s433 + $0x458] sm:$0xff]
        %v1156 = vld [vmem:[%s433 + $0x460] sm:$0xff]
        %v1157 = vld [vmem:[%s433 + $0x468] sm:$0xff]
        %v1158 = vld [vmem:[%s433 + $0x470] sm:$0xff]
        %v1159 = vld [vmem:[%s433 + $0x478] sm:$0xff]
        %v1160 = vld [vmem:[%s433 + $0x480] sm:$0xff]
        %v1161 = vld [vmem:[%s433 + $0x488] sm:$0xff]
        %v1162 = vld [vmem:[%s433 + $0x490] sm:$0xff]
        %v1163 = vld [vmem:[%s433 + $0x498] sm:$0xff]
        %v1164 = vld [vmem:[%s433 + $0x4a0] sm:$0xff]
        %v1165 = vld [vmem:[%s433 + $0x4a8] sm:$0xff]
        %v1166 = vld [vmem:[%s433 + $0x4b0] sm:$0xff]
        %v1167 = vld [vmem:[%s433 + $0x4b8] sm:$0xff]
        %v1168 = vld [vmem:[%s433 + $0x4c0] sm:$0xff]
        %v1169 = vld [vmem:[%s433 + $0x4c8] sm:$0xff]
        %v1170 = vld [vmem:[%s433 + $0x4d0] sm:$0xff]
        %v1171 = vld [vmem:[%s433 + $0x4d8] sm:$0xff]
        %v1172 = vld [vmem:[%s433 + $0x4e0] sm:$0xff]
        %v1173 = vld [vmem:[%s433 + $0x4e8] sm:$0xff]
        %v1174 = vld [vmem:[%s433 + $0x4f0] sm:$0xff]
        %v1175 = vld [vmem:[%s433 + $0x4f8] sm:$0xff]
        %v1176 = vld [vmem:[%s433 + $0x500] sm:$0xff]
        %v1177 = vld [vmem:[%s433 + $0x508] sm:$0xff]
        %v1178 = vld [vmem:[%s433 + $0x510] sm:$0xff]
        %v1179 = vld [vmem:[%s433 + $0x518] sm:$0xff]
        %v1180 = vld [vmem:[%s433 + $0x520] sm:$0xff]
        %v1181 = vld [vmem:[%s433 + $0x528] sm:$0xff]
        %v1182 = vld [vmem:[%s433 + $0x530] sm:$0xff]
        %v1183 = vld [vmem:[%s433 + $0x538] sm:$0xff]
        %v1184 = vld [vmem:[%s433 + $0x540] sm:$0xff]
        %v1185 = vld [vmem:[%s433 + $0x548] sm:$0xff]
        %v1186 = vld [vmem:[%s433 + $0x550] sm:$0xff]
        %v1187 = vld [vmem:[%s433 + $0x558] sm:$0xff]
        %v1188 = vld [vmem:[%s433 + $0x560] sm:$0xff]
        %v1189 = vld [vmem:[%s433 + $0x568] sm:$0xff]
        %v1190 = vld [vmem:[%s433 + $0x570] sm:$0xff]
        %v1191 = vld [vmem:[%s433 + $0x578] sm:$0xff]
        %v1192 = vld [vmem:[%s433 + $0x580] sm:$0xff]
        %v1193 = vld [vmem:[%s433 + $0x588] sm:$0xff]
        %v1194 = vld [vmem:[%s433 + $0x590] sm:$0xff]
        %v1195 = vld [vmem:[%s433 + $0x598] sm:$0xff]
        %v1196 = vld [vmem:[%s433 + $0x5a0] sm:$0xff]
        %v1197 = vld [vmem:[%s433 + $0x5a8] sm:$0xff]
        %v1198 = vld [vmem:[%s433 + $0x5b0] sm:$0xff]
        %v1199 = vld [vmem:[%s433 + $0x5b8] sm:$0xff]
        %v1200 = vld [vmem:[%s433 + $0x5c0] sm:$0xff]
        %v1201 = vld [vmem:[%s433 + $0x5c8] sm:$0xff]
        %v1202 = vld [vmem:[%s433 + $0x5d0] sm:$0xff]
        %v1203 = vld [vmem:[%s433 + $0x5d8] sm:$0xff]
        %v1204 = vld [vmem:[%s433 + $0x5e0] sm:$0xff]
        %v1205 = vld [vmem:[%s433 + $0x5e8] sm:$0xff]
        %v1206 = vld [vmem:[%s433 + $0x5f0] sm:$0xff]
        %v1207 = vld [vmem:[%s433 + $0x5f8] sm:$0xff]
        %v1208 = vld [vmem:[%s433 + $0x600] sm:$0xff]
        %v1209 = vld [vmem:[%s433 + $0x608] sm:$0xff]
        %v1210 = vld [vmem:[%s433 + $0x610] sm:$0xff]
        %v1211 = vld [vmem:[%s433 + $0x618] sm:$0xff]
        %v1212 = vld [vmem:[%s433 + $0x620] sm:$0xff]
        %v1213 = vld [vmem:[%s433 + $0x628] sm:$0xff]
        %v1214 = vld [vmem:[%s433 + $0x630] sm:$0xff]
        %v1215 = vld [vmem:[%s433 + $0x638] sm:$0xff]
        %v1216 = vld [vmem:[%s433 + $0x640] sm:$0xff]
        %v1217 = vld [vmem:[%s433 + $0x648] sm:$0xff]
        %v1218 = vld [vmem:[%s433 + $0x650] sm:$0xff]
        %v1219 = vld [vmem:[%s433 + $0x658] sm:$0xff]
        %v1220 = vld [vmem:[%s433 + $0x660] sm:$0xff]
        %v1221 = vld [vmem:[%s433 + $0x668] sm:$0xff]
        %v1222 = vld [vmem:[%s433 + $0x670] sm:$0xff]
        %v1223 = vld [vmem:[%s433 + $0x678] sm:$0xff]
        %v1224 = vld [vmem:[%s433 + $0x680] sm:$0xff]
        %v1225 = vld [vmem:[%s433 + $0x688] sm:$0xff]
        %v1226 = vld [vmem:[%s433 + $0x690] sm:$0xff]
        %v1227 = vld [vmem:[%s433 + $0x698] sm:$0xff]
        %v1228 = vld [vmem:[%s433 + $0x6a0] sm:$0xff]
        %v1229 = vld [vmem:[%s433 + $0x6a8] sm:$0xff]
        %v1230 = vld [vmem:[%s433 + $0x6b0] sm:$0xff]
        %v1231 = vld [vmem:[%s433 + $0x6b8] sm:$0xff]
        %v1232 = vld [vmem:[%s433 + $0x6c0] sm:$0xff]
        %v1233 = vld [vmem:[%s433 + $0x6c8] sm:$0xff]
        %v1234 = vld [vmem:[%s433 + $0x6d0] sm:$0xff]
        %v1235 = vld [vmem:[%s433 + $0x6d8] sm:$0xff]
        %v1236 = vld [vmem:[%s433 + $0x6e0] sm:$0xff]
        %v1237 = vld [vmem:[%s433 + $0x6e8] sm:$0xff]
        %v1238 = vld [vmem:[%s433 + $0x6f0] sm:$0xff]
        %v1239 = vld [vmem:[%s433 + $0x6f8] sm:$0xff]
        %v1240 = vld [vmem:[%s433 + $0x700] sm:$0xff]
        %v1241 = vld [vmem:[%s433 + $0x708] sm:$0xff]
        %v1242 = vld [vmem:[%s433 + $0x710] sm:$0xff]
        %v1243 = vld [vmem:[%s433 + $0x718] sm:$0xff]
        %v1244 = vld [vmem:[%s433 + $0x720] sm:$0xff]
        %v1245 = vld [vmem:[%s433 + $0x728] sm:$0xff]
        %v1246 = vld [vmem:[%s433 + $0x730] sm:$0xff]
        %v1247 = vld [vmem:[%s433 + $0x738] sm:$0xff]
        %v1248 = vld [vmem:[%s433 + $0x740] sm:$0xff]
        %v1249 = vld [vmem:[%s433 + $0x748] sm:$0xff]
        %v1250 = vld [vmem:[%s433 + $0x750] sm:$0xff]
        %v1251 = vld [vmem:[%s433 + $0x758] sm:$0xff]
        %v1252 = vld [vmem:[%s433 + $0x760] sm:$0xff]
        %v1253 = vld [vmem:[%s433 + $0x768] sm:$0xff]
        %v1254 = vld [vmem:[%s433 + $0x770] sm:$0xff]
        %v1255 = vld [vmem:[%s433 + $0x778] sm:$0xff]
        %v1256 = vld [vmem:[%s433 + $0x780] sm:$0xff]
        %v1257 = vld [vmem:[%s433 + $0x788] sm:$0xff]
        %v1258 = vld [vmem:[%s433 + $0x790] sm:$0xff]
        %v1259 = vld [vmem:[%s433 + $0x798] sm:$0xff]
        %v1260 = vld [vmem:[%s433 + $0x7a0] sm:$0xff]
        %v1261 = vld [vmem:[%s433 + $0x7a8] sm:$0xff]
        %v1262 = vld [vmem:[%s433 + $0x7b0] sm:$0xff]
        %v1263 = vld [vmem:[%s433 + $0x7b8] sm:$0xff]
        %v1264 = vld [vmem:[%s433 + $0x7c0] sm:$0xff]
        %v1265 = vld [vmem:[%s433 + $0x7c8] sm:$0xff]
        %v1266 = vld [vmem:[%s433 + $0x7d0] sm:$0xff]
        %v1267 = vld [vmem:[%s433 + $0x7d8] sm:$0xff]
        %v1268 = vld [vmem:[%s433 + $0x7e0] sm:$0xff]
        %v1269 = vld [vmem:[%s433 + $0x7e8] sm:$0xff]
        %v1270 = vld [vmem:[%s433 + $0x7f0] sm:$0xff]
        %v1271 = vld [vmem:[%s433 + $0x7f8] sm:$0xff]
        %v1272 = vld [vmem:[%s442] sm:$0xff]
        %v1274 = vlaneseq
        %v1275 = vshrl.u32 %v1274, 7
        %v1276 = vsub.s32 0, %v1275
        %v1277 = vrot.slane %v1272, %v1276
        %v1278 = vlaneseq
        %v1279 = vshrl.u32 %v1278, 7
        %v1280 = vsub.s32 1, %v1279
        %v1281 = vrot.slane %v1272, %v1280
        %v1282 = vlaneseq
        %v1283 = vshrl.u32 %v1282, 7
        %v1284 = vsub.s32 2, %v1283
        %v1285 = vrot.slane %v1272, %v1284
        %v1286 = vlaneseq
        %v1287 = vshrl.u32 %v1286, 7
        %v1288 = vsub.s32 3, %v1287
        %v1289 = vrot.slane %v1272, %v1288
        %v1290 = vlaneseq
        %v1291 = vshrl.u32 %v1290, 7
        %v1292 = vsub.s32 4, %v1291
        %v1293 = vrot.slane %v1272, %v1292
        %v1294 = vlaneseq
        %v1295 = vshrl.u32 %v1294, 7
        %v1296 = vsub.s32 5, %v1295
        %v1297 = vrot.slane %v1272, %v1296
        %v1298 = vlaneseq
        %v1299 = vshrl.u32 %v1298, 7
        %v1300 = vsub.s32 6, %v1299
        %v1301 = vrot.slane %v1272, %v1300
        %v1302 = vlaneseq
        %v1303 = vshrl.u32 %v1302, 7
        %v1304 = vsub.s32 7, %v1303
        %v1305 = vrot.slane %v1272, %v1304
        %v1570 = vunpack.c.l.b16 %v1016
        %v1571 = vunpack.c.h.b16 %v1016
        %v1572 = vunpack.c.l.b16 %v1017
        %v1573 = vunpack.c.h.b16 %v1017
        %v1574 = vunpack.c.l.b16 %v1018
        %v1575 = vunpack.c.h.b16 %v1018
        %v1576 = vunpack.c.l.b16 %v1019
        %v1577 = vunpack.c.h.b16 %v1019
        %v1578 = vunpack.c.l.b16 %v1020
        %v1579 = vunpack.c.h.b16 %v1020
        %v1580 = vunpack.c.l.b16 %v1021
        %v1581 = vunpack.c.h.b16 %v1021
        %v1582 = vunpack.c.l.b16 %v1022
        %v1583 = vunpack.c.h.b16 %v1022
        %v1584 = vunpack.c.l.b16 %v1023
        %v1585 = vunpack.c.h.b16 %v1023
        %v1586 = vunpack.c.l.b16 %v1024
        %v1587 = vunpack.c.h.b16 %v1024
        %v1588 = vunpack.c.l.b16 %v1025
        %v1589 = vunpack.c.h.b16 %v1025
        %v1590 = vunpack.c.l.b16 %v1026
        %v1591 = vunpack.c.h.b16 %v1026
        %v1592 = vunpack.c.l.b16 %v1027
        %v1593 = vunpack.c.h.b16 %v1027
        %v1594 = vunpack.c.l.b16 %v1028
        %v1595 = vunpack.c.h.b16 %v1028
        %v1596 = vunpack.c.l.b16 %v1029
        %v1597 = vunpack.c.h.b16 %v1029
        %v1598 = vunpack.c.l.b16 %v1030
        %v1599 = vunpack.c.h.b16 %v1030
        %v1600 = vunpack.c.l.b16 %v1031
        %v1601 = vunpack.c.h.b16 %v1031
        %v1602 = vunpack.c.l.b16 %v1032
        %v1603 = vunpack.c.h.b16 %v1032
        %v1604 = vunpack.c.l.b16 %v1033
        %v1605 = vunpack.c.h.b16 %v1033
        %v1606 = vunpack.c.l.b16 %v1034
        %v1607 = vunpack.c.h.b16 %v1034
        %v1608 = vunpack.c.l.b16 %v1035
        %v1609 = vunpack.c.h.b16 %v1035
        %v1610 = vunpack.c.l.b16 %v1036
        %v1611 = vunpack.c.h.b16 %v1036
        %v1612 = vunpack.c.l.b16 %v1037
        %v1613 = vunpack.c.h.b16 %v1037
        %v1614 = vunpack.c.l.b16 %v1038
        %v1615 = vunpack.c.h.b16 %v1038
        %v1616 = vunpack.c.l.b16 %v1039
        %v1617 = vunpack.c.h.b16 %v1039
        %v1618 = vunpack.c.l.b16 %v1040
        %v1619 = vunpack.c.h.b16 %v1040
        %v1620 = vunpack.c.l.b16 %v1041
        %v1621 = vunpack.c.h.b16 %v1041
        %v1622 = vunpack.c.l.b16 %v1042
        %v1623 = vunpack.c.h.b16 %v1042
        %v1624 = vunpack.c.l.b16 %v1043
        %v1625 = vunpack.c.h.b16 %v1043
        %v1626 = vunpack.c.l.b16 %v1044
        %v1627 = vunpack.c.h.b16 %v1044
        %v1628 = vunpack.c.l.b16 %v1045
        %v1629 = vunpack.c.h.b16 %v1045
        %v1630 = vunpack.c.l.b16 %v1046
        %v1631 = vunpack.c.h.b16 %v1046
        %v1632 = vunpack.c.l.b16 %v1047
        %v1633 = vunpack.c.h.b16 %v1047
        %v1634 = vunpack.c.l.b16 %v1048
        %v1635 = vunpack.c.h.b16 %v1048
        %v1636 = vunpack.c.l.b16 %v1049
        %v1637 = vunpack.c.h.b16 %v1049
        %v1638 = vunpack.c.l.b16 %v1050
        %v1639 = vunpack.c.h.b16 %v1050
        %v1640 = vunpack.c.l.b16 %v1051
        %v1641 = vunpack.c.h.b16 %v1051
        %v1642 = vunpack.c.l.b16 %v1052
        %v1643 = vunpack.c.h.b16 %v1052
        %v1644 = vunpack.c.l.b16 %v1053
        %v1645 = vunpack.c.h.b16 %v1053
        %v1646 = vunpack.c.l.b16 %v1054
        %v1647 = vunpack.c.h.b16 %v1054
        %v1648 = vunpack.c.l.b16 %v1055
        %v1649 = vunpack.c.h.b16 %v1055
        %v1650 = vunpack.c.l.b16 %v1056
        %v1651 = vunpack.c.h.b16 %v1056
        %v1652 = vunpack.c.l.b16 %v1057
        %v1653 = vunpack.c.h.b16 %v1057
        %v1654 = vunpack.c.l.b16 %v1058
        %v1655 = vunpack.c.h.b16 %v1058
        %v1656 = vunpack.c.l.b16 %v1059
        %v1657 = vunpack.c.h.b16 %v1059
        %v1658 = vunpack.c.l.b16 %v1060
        %v1659 = vunpack.c.h.b16 %v1060
        %v1660 = vunpack.c.l.b16 %v1061
        %v1661 = vunpack.c.h.b16 %v1061
        %v1662 = vunpack.c.l.b16 %v1062
        %v1663 = vunpack.c.h.b16 %v1062
        %v1664 = vunpack.c.l.b16 %v1063
        %v1665 = vunpack.c.h.b16 %v1063
        %v1666 = vunpack.c.l.b16 %v1064
        %v1667 = vunpack.c.h.b16 %v1064
        %v1668 = vunpack.c.l.b16 %v1065
        %v1669 = vunpack.c.h.b16 %v1065
        %v1670 = vunpack.c.l.b16 %v1066
        %v1671 = vunpack.c.h.b16 %v1066
        %v1672 = vunpack.c.l.b16 %v1067
        %v1673 = vunpack.c.h.b16 %v1067
        %v1674 = vunpack.c.l.b16 %v1068
        %v1675 = vunpack.c.h.b16 %v1068
        %v1676 = vunpack.c.l.b16 %v1069
        %v1677 = vunpack.c.h.b16 %v1069
        %v1678 = vunpack.c.l.b16 %v1070
        %v1679 = vunpack.c.h.b16 %v1070
        %v1680 = vunpack.c.l.b16 %v1071
        %v1681 = vunpack.c.h.b16 %v1071
        %v1682 = vunpack.c.l.b16 %v1072
        %v1683 = vunpack.c.h.b16 %v1072
        %v1684 = vunpack.c.l.b16 %v1073
        %v1685 = vunpack.c.h.b16 %v1073
        %v1686 = vunpack.c.l.b16 %v1074
        %v1687 = vunpack.c.h.b16 %v1074
        %v1688 = vunpack.c.l.b16 %v1075
        %v1689 = vunpack.c.h.b16 %v1075
        %v1690 = vunpack.c.l.b16 %v1076
        %v1691 = vunpack.c.h.b16 %v1076
        %v1692 = vunpack.c.l.b16 %v1077
        %v1693 = vunpack.c.h.b16 %v1077
        %v1694 = vunpack.c.l.b16 %v1078
        %v1695 = vunpack.c.h.b16 %v1078
        %v1696 = vunpack.c.l.b16 %v1079
        %v1697 = vunpack.c.h.b16 %v1079
        %v1698 = vunpack.c.l.b16 %v1080
        %v1699 = vunpack.c.h.b16 %v1080
        %v1700 = vunpack.c.l.b16 %v1081
        %v1701 = vunpack.c.h.b16 %v1081
        %v1702 = vunpack.c.l.b16 %v1082
        %v1703 = vunpack.c.h.b16 %v1082
        %v1704 = vunpack.c.l.b16 %v1083
        %v1705 = vunpack.c.h.b16 %v1083
        %v1706 = vunpack.c.l.b16 %v1084
        %v1707 = vunpack.c.h.b16 %v1084
        %v1708 = vunpack.c.l.b16 %v1085
        %v1709 = vunpack.c.h.b16 %v1085
        %v1710 = vunpack.c.l.b16 %v1086
        %v1711 = vunpack.c.h.b16 %v1086
        %v1712 = vunpack.c.l.b16 %v1087
        %v1713 = vunpack.c.h.b16 %v1087
        %v1714 = vunpack.c.l.b16 %v1088
        %v1715 = vunpack.c.h.b16 %v1088
        %v1716 = vunpack.c.l.b16 %v1089
        %v1717 = vunpack.c.h.b16 %v1089
        %v1718 = vunpack.c.l.b16 %v1090
        %v1719 = vunpack.c.h.b16 %v1090
        %v1720 = vunpack.c.l.b16 %v1091
        %v1721 = vunpack.c.h.b16 %v1091
        %v1722 = vunpack.c.l.b16 %v1092
        %v1723 = vunpack.c.h.b16 %v1092
        %v1724 = vunpack.c.l.b16 %v1093
        %v1725 = vunpack.c.h.b16 %v1093
        %v1726 = vunpack.c.l.b16 %v1094
        %v1727 = vunpack.c.h.b16 %v1094
        %v1728 = vunpack.c.l.b16 %v1095
        %v1729 = vunpack.c.h.b16 %v1095
        %v1730 = vunpack.c.l.b16 %v1096
        %v1731 = vunpack.c.h.b16 %v1096
        %v1732 = vunpack.c.l.b16 %v1097
        %v1733 = vunpack.c.h.b16 %v1097
        %v1734 = vunpack.c.l.b16 %v1098
        %v1735 = vunpack.c.h.b16 %v1098
        %v1736 = vunpack.c.l.b16 %v1099
        %v1737 = vunpack.c.h.b16 %v1099
        %v1738 = vunpack.c.l.b16 %v1100
        %v1739 = vunpack.c.h.b16 %v1100
        %v1740 = vunpack.c.l.b16 %v1101
        %v1741 = vunpack.c.h.b16 %v1101
        %v1742 = vunpack.c.l.b16 %v1102
        %v1743 = vunpack.c.h.b16 %v1102
        %v1744 = vunpack.c.l.b16 %v1103
        %v1745 = vunpack.c.h.b16 %v1103
        %v1746 = vunpack.c.l.b16 %v1104
        %v1747 = vunpack.c.h.b16 %v1104
        %v1748 = vunpack.c.l.b16 %v1105
        %v1749 = vunpack.c.h.b16 %v1105
        %v1750 = vunpack.c.l.b16 %v1106
        %v1751 = vunpack.c.h.b16 %v1106
        %v1752 = vunpack.c.l.b16 %v1107
        %v1753 = vunpack.c.h.b16 %v1107
        %v1754 = vunpack.c.l.b16 %v1108
        %v1755 = vunpack.c.h.b16 %v1108
        %v1756 = vunpack.c.l.b16 %v1109
        %v1757 = vunpack.c.h.b16 %v1109
        %v1758 = vunpack.c.l.b16 %v1110
        %v1759 = vunpack.c.h.b16 %v1110
        %v1760 = vunpack.c.l.b16 %v1111
        %v1761 = vunpack.c.h.b16 %v1111
        %v1762 = vunpack.c.l.b16 %v1112
        %v1763 = vunpack.c.h.b16 %v1112
        %v1764 = vunpack.c.l.b16 %v1113
        %v1765 = vunpack.c.h.b16 %v1113
        %v1766 = vunpack.c.l.b16 %v1114
        %v1767 = vunpack.c.h.b16 %v1114
        %v1768 = vunpack.c.l.b16 %v1115
        %v1769 = vunpack.c.h.b16 %v1115
        %v1770 = vunpack.c.l.b16 %v1116
        %v1771 = vunpack.c.h.b16 %v1116
        %v1772 = vunpack.c.l.b16 %v1117
        %v1773 = vunpack.c.h.b16 %v1117
        %v1774 = vunpack.c.l.b16 %v1118
        %v1775 = vunpack.c.h.b16 %v1118
        %v1776 = vunpack.c.l.b16 %v1119
        %v1777 = vunpack.c.h.b16 %v1119
        %v1778 = vunpack.c.l.b16 %v1120
        %v1779 = vunpack.c.h.b16 %v1120
        %v1780 = vunpack.c.l.b16 %v1121
        %v1781 = vunpack.c.h.b16 %v1121
        %v1782 = vunpack.c.l.b16 %v1122
        %v1783 = vunpack.c.h.b16 %v1122
        %v1784 = vunpack.c.l.b16 %v1123
        %v1785 = vunpack.c.h.b16 %v1123
        %v1786 = vunpack.c.l.b16 %v1124
        %v1787 = vunpack.c.h.b16 %v1124
        %v1788 = vunpack.c.l.b16 %v1125
        %v1789 = vunpack.c.h.b16 %v1125
        %v1790 = vunpack.c.l.b16 %v1126
        %v1791 = vunpack.c.h.b16 %v1126
        %v1792 = vunpack.c.l.b16 %v1127
        %v1793 = vunpack.c.h.b16 %v1127
        %v1794 = vunpack.c.l.b16 %v1128
        %v1795 = vunpack.c.h.b16 %v1128
        %v1796 = vunpack.c.l.b16 %v1129
        %v1797 = vunpack.c.h.b16 %v1129
        %v1798 = vunpack.c.l.b16 %v1130
        %v1799 = vunpack.c.h.b16 %v1130
        %v1800 = vunpack.c.l.b16 %v1131
        %v1801 = vunpack.c.h.b16 %v1131
        %v1802 = vunpack.c.l.b16 %v1132
        %v1803 = vunpack.c.h.b16 %v1132
        %v1804 = vunpack.c.l.b16 %v1133
        %v1805 = vunpack.c.h.b16 %v1133
        %v1806 = vunpack.c.l.b16 %v1134
        %v1807 = vunpack.c.h.b16 %v1134
        %v1808 = vunpack.c.l.b16 %v1135
        %v1809 = vunpack.c.h.b16 %v1135
        %v1810 = vunpack.c.l.b16 %v1136
        %v1811 = vunpack.c.h.b16 %v1136
        %v1812 = vunpack.c.l.b16 %v1137
        %v1813 = vunpack.c.h.b16 %v1137
        %v1814 = vunpack.c.l.b16 %v1138
        %v1815 = vunpack.c.h.b16 %v1138
        %v1816 = vunpack.c.l.b16 %v1139
        %v1817 = vunpack.c.h.b16 %v1139
        %v1818 = vunpack.c.l.b16 %v1140
        %v1819 = vunpack.c.h.b16 %v1140
        %v1820 = vunpack.c.l.b16 %v1141
        %v1821 = vunpack.c.h.b16 %v1141
        %v1822 = vunpack.c.l.b16 %v1142
        %v1823 = vunpack.c.h.b16 %v1142
        %v1824 = vunpack.c.l.b16 %v1143
        %v1825 = vunpack.c.h.b16 %v1143
        %v1826 = vunpack.c.l.b16 %v1144
        %v1827 = vunpack.c.h.b16 %v1144
        %v1828 = vunpack.c.l.b16 %v1145
        %v1829 = vunpack.c.h.b16 %v1145
        %v1830 = vunpack.c.l.b16 %v1146
        %v1831 = vunpack.c.h.b16 %v1146
        %v1832 = vunpack.c.l.b16 %v1147
        %v1833 = vunpack.c.h.b16 %v1147
        %v1834 = vunpack.c.l.b16 %v1148
        %v1835 = vunpack.c.h.b16 %v1148
        %v1836 = vunpack.c.l.b16 %v1149
        %v1837 = vunpack.c.h.b16 %v1149
        %v1838 = vunpack.c.l.b16 %v1150
        %v1839 = vunpack.c.h.b16 %v1150
        %v1840 = vunpack.c.l.b16 %v1151
        %v1841 = vunpack.c.h.b16 %v1151
        %v1842 = vunpack.c.l.b16 %v1152
        %v1843 = vunpack.c.h.b16 %v1152
        %v1844 = vunpack.c.l.b16 %v1153
        %v1845 = vunpack.c.h.b16 %v1153
        %v1846 = vunpack.c.l.b16 %v1154
        %v1847 = vunpack.c.h.b16 %v1154
        %v1848 = vunpack.c.l.b16 %v1155
        %v1849 = vunpack.c.h.b16 %v1155
        %v1850 = vunpack.c.l.b16 %v1156
        %v1851 = vunpack.c.h.b16 %v1156
        %v1852 = vunpack.c.l.b16 %v1157
        %v1853 = vunpack.c.h.b16 %v1157
        %v1854 = vunpack.c.l.b16 %v1158
        %v1855 = vunpack.c.h.b16 %v1158
        %v1856 = vunpack.c.l.b16 %v1159
        %v1857 = vunpack.c.h.b16 %v1159
        %v1858 = vunpack.c.l.b16 %v1160
        %v1859 = vunpack.c.h.b16 %v1160
        %v1860 = vunpack.c.l.b16 %v1161
        %v1861 = vunpack.c.h.b16 %v1161
        %v1862 = vunpack.c.l.b16 %v1162
        %v1863 = vunpack.c.h.b16 %v1162
        %v1864 = vunpack.c.l.b16 %v1163
        %v1865 = vunpack.c.h.b16 %v1163
        %v1866 = vunpack.c.l.b16 %v1164
        %v1867 = vunpack.c.h.b16 %v1164
        %v1868 = vunpack.c.l.b16 %v1165
        %v1869 = vunpack.c.h.b16 %v1165
        %v1870 = vunpack.c.l.b16 %v1166
        %v1871 = vunpack.c.h.b16 %v1166
        %v1872 = vunpack.c.l.b16 %v1167
        %v1873 = vunpack.c.h.b16 %v1167
        %v1874 = vunpack.c.l.b16 %v1168
        %v1875 = vunpack.c.h.b16 %v1168
        %v1876 = vunpack.c.l.b16 %v1169
        %v1877 = vunpack.c.h.b16 %v1169
        %v1878 = vunpack.c.l.b16 %v1170
        %v1879 = vunpack.c.h.b16 %v1170
        %v1880 = vunpack.c.l.b16 %v1171
        %v1881 = vunpack.c.h.b16 %v1171
        %v1882 = vunpack.c.l.b16 %v1172
        %v1883 = vunpack.c.h.b16 %v1172
        %v1884 = vunpack.c.l.b16 %v1173
        %v1885 = vunpack.c.h.b16 %v1173
        %v1886 = vunpack.c.l.b16 %v1174
        %v1887 = vunpack.c.h.b16 %v1174
        %v1888 = vunpack.c.l.b16 %v1175
        %v1889 = vunpack.c.h.b16 %v1175
        %v1890 = vunpack.c.l.b16 %v1176
        %v1891 = vunpack.c.h.b16 %v1176
        %v1892 = vunpack.c.l.b16 %v1177
        %v1893 = vunpack.c.h.b16 %v1177
        %v1894 = vunpack.c.l.b16 %v1178
        %v1895 = vunpack.c.h.b16 %v1178
        %v1896 = vunpack.c.l.b16 %v1179
        %v1897 = vunpack.c.h.b16 %v1179
        %v1898 = vunpack.c.l.b16 %v1180
        %v1899 = vunpack.c.h.b16 %v1180
        %v1900 = vunpack.c.l.b16 %v1181
        %v1901 = vunpack.c.h.b16 %v1181
        %v1902 = vunpack.c.l.b16 %v1182
        %v1903 = vunpack.c.h.b16 %v1182
        %v1904 = vunpack.c.l.b16 %v1183
        %v1905 = vunpack.c.h.b16 %v1183
        %v1906 = vunpack.c.l.b16 %v1184
        %v1907 = vunpack.c.h.b16 %v1184
        %v1908 = vunpack.c.l.b16 %v1185
        %v1909 = vunpack.c.h.b16 %v1185
        %v1910 = vunpack.c.l.b16 %v1186
        %v1911 = vunpack.c.h.b16 %v1186
        %v1912 = vunpack.c.l.b16 %v1187
        %v1913 = vunpack.c.h.b16 %v1187
        %v1914 = vunpack.c.l.b16 %v1188
        %v1915 = vunpack.c.h.b16 %v1188
        %v1916 = vunpack.c.l.b16 %v1189
        %v1917 = vunpack.c.h.b16 %v1189
        %v1918 = vunpack.c.l.b16 %v1190
        %v1919 = vunpack.c.h.b16 %v1190
        %v1920 = vunpack.c.l.b16 %v1191
        %v1921 = vunpack.c.h.b16 %v1191
        %v1922 = vunpack.c.l.b16 %v1192
        %v1923 = vunpack.c.h.b16 %v1192
        %v1924 = vunpack.c.l.b16 %v1193
        %v1925 = vunpack.c.h.b16 %v1193
        %v1926 = vunpack.c.l.b16 %v1194
        %v1927 = vunpack.c.h.b16 %v1194
        %v1928 = vunpack.c.l.b16 %v1195
        %v1929 = vunpack.c.h.b16 %v1195
        %v1930 = vunpack.c.l.b16 %v1196
        %v1931 = vunpack.c.h.b16 %v1196
        %v1932 = vunpack.c.l.b16 %v1197
        %v1933 = vunpack.c.h.b16 %v1197
        %v1934 = vunpack.c.l.b16 %v1198
        %v1935 = vunpack.c.h.b16 %v1198
        %v1936 = vunpack.c.l.b16 %v1199
        %v1937 = vunpack.c.h.b16 %v1199
        %v1938 = vunpack.c.l.b16 %v1200
        %v1939 = vunpack.c.h.b16 %v1200
        %v1940 = vunpack.c.l.b16 %v1201
        %v1941 = vunpack.c.h.b16 %v1201
        %v1942 = vunpack.c.l.b16 %v1202
        %v1943 = vunpack.c.h.b16 %v1202
        %v1944 = vunpack.c.l.b16 %v1203
        %v1945 = vunpack.c.h.b16 %v1203
        %v1946 = vunpack.c.l.b16 %v1204
        %v1947 = vunpack.c.h.b16 %v1204
        %v1948 = vunpack.c.l.b16 %v1205
        %v1949 = vunpack.c.h.b16 %v1205
        %v1950 = vunpack.c.l.b16 %v1206
        %v1951 = vunpack.c.h.b16 %v1206
        %v1952 = vunpack.c.l.b16 %v1207
        %v1953 = vunpack.c.h.b16 %v1207
        %v1954 = vunpack.c.l.b16 %v1208
        %v1955 = vunpack.c.h.b16 %v1208
        %v1956 = vunpack.c.l.b16 %v1209
        %v1957 = vunpack.c.h.b16 %v1209
        %v1958 = vunpack.c.l.b16 %v1210
        %v1959 = vunpack.c.h.b16 %v1210
        %v1960 = vunpack.c.l.b16 %v1211
        %v1961 = vunpack.c.h.b16 %v1211
        %v1962 = vunpack.c.l.b16 %v1212
        %v1963 = vunpack.c.h.b16 %v1212
        %v1964 = vunpack.c.l.b16 %v1213
        %v1965 = vunpack.c.h.b16 %v1213
        %v1966 = vunpack.c.l.b16 %v1214
        %v1967 = vunpack.c.h.b16 %v1214
        %v1968 = vunpack.c.l.b16 %v1215
        %v1969 = vunpack.c.h.b16 %v1215
        %v1970 = vunpack.c.l.b16 %v1216
        %v1971 = vunpack.c.h.b16 %v1216
        %v1972 = vunpack.c.l.b16 %v1217
        %v1973 = vunpack.c.h.b16 %v1217
        %v1974 = vunpack.c.l.b16 %v1218
        %v1975 = vunpack.c.h.b16 %v1218
        %v1976 = vunpack.c.l.b16 %v1219
        %v1977 = vunpack.c.h.b16 %v1219
        %v1978 = vunpack.c.l.b16 %v1220
        %v1979 = vunpack.c.h.b16 %v1220
        %v1980 = vunpack.c.l.b16 %v1221
        %v1981 = vunpack.c.h.b16 %v1221
        %v1982 = vunpack.c.l.b16 %v1222
        %v1983 = vunpack.c.h.b16 %v1222
        %v1984 = vunpack.c.l.b16 %v1223
        %v1985 = vunpack.c.h.b16 %v1223
        %v1986 = vunpack.c.l.b16 %v1224
        %v1987 = vunpack.c.h.b16 %v1224
        %v1988 = vunpack.c.l.b16 %v1225
        %v1989 = vunpack.c.h.b16 %v1225
        %v1990 = vunpack.c.l.b16 %v1226
        %v1991 = vunpack.c.h.b16 %v1226
        %v1992 = vunpack.c.l.b16 %v1227
        %v1993 = vunpack.c.h.b16 %v1227
        %v1994 = vunpack.c.l.b16 %v1228
        %v1995 = vunpack.c.h.b16 %v1228
        %v1996 = vunpack.c.l.b16 %v1229
        %v1997 = vunpack.c.h.b16 %v1229
        %v1998 = vunpack.c.l.b16 %v1230
        %v1999 = vunpack.c.h.b16 %v1230
        %v2000 = vunpack.c.l.b16 %v1231
        %v2001 = vunpack.c.h.b16 %v1231
        %v2002 = vunpack.c.l.b16 %v1232
        %v2003 = vunpack.c.h.b16 %v1232
        %v2004 = vunpack.c.l.b16 %v1233
        %v2005 = vunpack.c.h.b16 %v1233
        %v2006 = vunpack.c.l.b16 %v1234
        %v2007 = vunpack.c.h.b16 %v1234
        %v2008 = vunpack.c.l.b16 %v1235
        %v2009 = vunpack.c.h.b16 %v1235
        %v2010 = vunpack.c.l.b16 %v1236
        %v2011 = vunpack.c.h.b16 %v1236
        %v2012 = vunpack.c.l.b16 %v1237
        %v2013 = vunpack.c.h.b16 %v1237
        %v2014 = vunpack.c.l.b16 %v1238
        %v2015 = vunpack.c.h.b16 %v1238
        %v2016 = vunpack.c.l.b16 %v1239
        %v2017 = vunpack.c.h.b16 %v1239
        %v2018 = vunpack.c.l.b16 %v1240
        %v2019 = vunpack.c.h.b16 %v1240
        %v2020 = vunpack.c.l.b16 %v1241
        %v2021 = vunpack.c.h.b16 %v1241
        %v2022 = vunpack.c.l.b16 %v1242
        %v2023 = vunpack.c.h.b16 %v1242
        %v2024 = vunpack.c.l.b16 %v1243
        %v2025 = vunpack.c.h.b16 %v1243
        %v2026 = vunpack.c.l.b16 %v1244
        %v2027 = vunpack.c.h.b16 %v1244
        %v2028 = vunpack.c.l.b16 %v1245
        %v2029 = vunpack.c.h.b16 %v1245
        %v2030 = vunpack.c.l.b16 %v1246
        %v2031 = vunpack.c.h.b16 %v1246
        %v2032 = vunpack.c.l.b16 %v1247
        %v2033 = vunpack.c.h.b16 %v1247
        %v2034 = vunpack.c.l.b16 %v1248
        %v2035 = vunpack.c.h.b16 %v1248
        %v2036 = vunpack.c.l.b16 %v1249
        %v2037 = vunpack.c.h.b16 %v1249
        %v2038 = vunpack.c.l.b16 %v1250
        %v2039 = vunpack.c.h.b16 %v1250
        %v2040 = vunpack.c.l.b16 %v1251
        %v2041 = vunpack.c.h.b16 %v1251
        %v2042 = vunpack.c.l.b16 %v1252
        %v2043 = vunpack.c.h.b16 %v1252
        %v2044 = vunpack.c.l.b16 %v1253
        %v2045 = vunpack.c.h.b16 %v1253
        %v2046 = vunpack.c.l.b16 %v1254
        %v2047 = vunpack.c.h.b16 %v1254
        %v2048 = vunpack.c.l.b16 %v1255
        %v2049 = vunpack.c.h.b16 %v1255
        %v2050 = vunpack.c.l.b16 %v1256
        %v2051 = vunpack.c.h.b16 %v1256
        %v2052 = vunpack.c.l.b16 %v1257
        %v2053 = vunpack.c.h.b16 %v1257
        %v2054 = vunpack.c.l.b16 %v1258
        %v2055 = vunpack.c.h.b16 %v1258
        %v2056 = vunpack.c.l.b16 %v1259
        %v2057 = vunpack.c.h.b16 %v1259
        %v2058 = vunpack.c.l.b16 %v1260
        %v2059 = vunpack.c.h.b16 %v1260
        %v2060 = vunpack.c.l.b16 %v1261
        %v2061 = vunpack.c.h.b16 %v1261
        %v2062 = vunpack.c.l.b16 %v1262
        %v2063 = vunpack.c.h.b16 %v1262
        %v2064 = vunpack.c.l.b16 %v1263
        %v2065 = vunpack.c.h.b16 %v1263
        %v2066 = vunpack.c.l.b16 %v1264
        %v2067 = vunpack.c.h.b16 %v1264
        %v2068 = vunpack.c.l.b16 %v1265
        %v2069 = vunpack.c.h.b16 %v1265
        %v2070 = vunpack.c.l.b16 %v1266
        %v2071 = vunpack.c.h.b16 %v1266
        %v2072 = vunpack.c.l.b16 %v1267
        %v2073 = vunpack.c.h.b16 %v1267
        %v2074 = vunpack.c.l.b16 %v1268
        %v2075 = vunpack.c.h.b16 %v1268
        %v2076 = vunpack.c.l.b16 %v1269
        %v2077 = vunpack.c.h.b16 %v1269
        %v2078 = vunpack.c.l.b16 %v1270
        %v2079 = vunpack.c.h.b16 %v1270
        %v2080 = vunpack.c.l.b16 %v1271
        %v2081 = vunpack.c.h.b16 %v1271
        %v2082 = vpack.c.b16 %v1578, %v1570
        %v2083 = vpack.c.b16 %v1579, %v1571
        %v2084 = vpack.c.b16 %v1580, %v1572
        %v2085 = vpack.c.b16 %v1581, %v1573
        %v2086 = vpack.c.b16 %v1582, %v1574
        %v2087 = vpack.c.b16 %v1583, %v1575
        %v2088 = vpack.c.b16 %v1584, %v1576
        %v2089 = vpack.c.b16 %v1585, %v1577
        %v2090 = vpack.c.b16 %v1594, %v1586
        %v2091 = vpack.c.b16 %v1595, %v1587
        %v2092 = vpack.c.b16 %v1596, %v1588
        %v2093 = vpack.c.b16 %v1597, %v1589
        %v2094 = vpack.c.b16 %v1598, %v1590
        %v2095 = vpack.c.b16 %v1599, %v1591
        %v2096 = vpack.c.b16 %v1600, %v1592
        %v2097 = vpack.c.b16 %v1601, %v1593
        %v2098 = vpack.c.b16 %v1610, %v1602
        %v2099 = vpack.c.b16 %v1611, %v1603
        %v2100 = vpack.c.b16 %v1612, %v1604
        %v2101 = vpack.c.b16 %v1613, %v1605
        %v2102 = vpack.c.b16 %v1614, %v1606
        %v2103 = vpack.c.b16 %v1615, %v1607
        %v2104 = vpack.c.b16 %v1616, %v1608
        %v2105 = vpack.c.b16 %v1617, %v1609
        %v2106 = vpack.c.b16 %v1626, %v1618
        %v2107 = vpack.c.b16 %v1627, %v1619
        %v2108 = vpack.c.b16 %v1628, %v1620
        %v2109 = vpack.c.b16 %v1629, %v1621
        %v2110 = vpack.c.b16 %v1630, %v1622
        %v2111 = vpack.c.b16 %v1631, %v1623
        %v2112 = vpack.c.b16 %v1632, %v1624
        %v2113 = vpack.c.b16 %v1633, %v1625
        %v2114 = vpack.c.b16 %v1642, %v1634
        %v2115 = vpack.c.b16 %v1643, %v1635
        %v2116 = vpack.c.b16 %v1644, %v1636
        %v2117 = vpack.c.b16 %v1645, %v1637
        %v2118 = vpack.c.b16 %v1646, %v1638
        %v2119 = vpack.c.b16 %v1647, %v1639
        %v2120 = vpack.c.b16 %v1648, %v1640
        %v2121 = vpack.c.b16 %v1649, %v1641
        %v2122 = vpack.c.b16 %v1658, %v1650
        %v2123 = vpack.c.b16 %v1659, %v1651
        %v2124 = vpack.c.b16 %v1660, %v1652
        %v2125 = vpack.c.b16 %v1661, %v1653
        %v2126 = vpack.c.b16 %v1662, %v1654
        %v2127 = vpack.c.b16 %v1663, %v1655
        %v2128 = vpack.c.b16 %v1664, %v1656
        %v2129 = vpack.c.b16 %v1665, %v1657
        %v2130 = vpack.c.b16 %v1674, %v1666
        %v2131 = vpack.c.b16 %v1675, %v1667
        %v2132 = vpack.c.b16 %v1676, %v1668
        %v2133 = vpack.c.b16 %v1677, %v1669
        %v2134 = vpack.c.b16 %v1678, %v1670
        %v2135 = vpack.c.b16 %v1679, %v1671
        %v2136 = vpack.c.b16 %v1680, %v1672
        %v2137 = vpack.c.b16 %v1681, %v1673
        %v2138 = vpack.c.b16 %v1690, %v1682
        %v2139 = vpack.c.b16 %v1691, %v1683
        %v2140 = vpack.c.b16 %v1692, %v1684
        %v2141 = vpack.c.b16 %v1693, %v1685
        %v2142 = vpack.c.b16 %v1694, %v1686
        %v2143 = vpack.c.b16 %v1695, %v1687
        %v2144 = vpack.c.b16 %v1696, %v1688
        %v2145 = vpack.c.b16 %v1697, %v1689
        %v2146 = vpack.c.b16 %v1706, %v1698
        %v2147 = vpack.c.b16 %v1707, %v1699
        %v2148 = vpack.c.b16 %v1708, %v1700
        %v2149 = vpack.c.b16 %v1709, %v1701
        %v2150 = vpack.c.b16 %v1710, %v1702
        %v2151 = vpack.c.b16 %v1711, %v1703
        %v2152 = vpack.c.b16 %v1712, %v1704
        %v2153 = vpack.c.b16 %v1713, %v1705
        %v2154 = vpack.c.b16 %v1722, %v1714
        %v2155 = vpack.c.b16 %v1723, %v1715
        %v2156 = vpack.c.b16 %v1724, %v1716
        %v2157 = vpack.c.b16 %v1725, %v1717
        %v2158 = vpack.c.b16 %v1726, %v1718
        %v2159 = vpack.c.b16 %v1727, %v1719
        %v2160 = vpack.c.b16 %v1728, %v1720
        %v2161 = vpack.c.b16 %v1729, %v1721
        %v2162 = vpack.c.b16 %v1738, %v1730
        %v2163 = vpack.c.b16 %v1739, %v1731
        %v2164 = vpack.c.b16 %v1740, %v1732
        %v2165 = vpack.c.b16 %v1741, %v1733
        %v2166 = vpack.c.b16 %v1742, %v1734
        %v2167 = vpack.c.b16 %v1743, %v1735
        %v2168 = vpack.c.b16 %v1744, %v1736
        %v2169 = vpack.c.b16 %v1745, %v1737
        %v2170 = vpack.c.b16 %v1754, %v1746
        %v2171 = vpack.c.b16 %v1755, %v1747
        %v2172 = vpack.c.b16 %v1756, %v1748
        %v2173 = vpack.c.b16 %v1757, %v1749
        %v2174 = vpack.c.b16 %v1758, %v1750
        %v2175 = vpack.c.b16 %v1759, %v1751
        %v2176 = vpack.c.b16 %v1760, %v1752
        %v2177 = vpack.c.b16 %v1761, %v1753
        %v2178 = vpack.c.b16 %v1770, %v1762
        %v2179 = vpack.c.b16 %v1771, %v1763
        %v2180 = vpack.c.b16 %v1772, %v1764
        %v2181 = vpack.c.b16 %v1773, %v1765
        %v2182 = vpack.c.b16 %v1774, %v1766
        %v2183 = vpack.c.b16 %v1775, %v1767
        %v2184 = vpack.c.b16 %v1776, %v1768
        %v2185 = vpack.c.b16 %v1777, %v1769
        %v2186 = vpack.c.b16 %v1786, %v1778
        %v2187 = vpack.c.b16 %v1787, %v1779
        %v2188 = vpack.c.b16 %v1788, %v1780
        %v2189 = vpack.c.b16 %v1789, %v1781
        %v2190 = vpack.c.b16 %v1790, %v1782
        %v2191 = vpack.c.b16 %v1791, %v1783
        %v2192 = vpack.c.b16 %v1792, %v1784
        %v2193 = vpack.c.b16 %v1793, %v1785
        %v2194 = vpack.c.b16 %v1802, %v1794
        %v2195 = vpack.c.b16 %v1803, %v1795
        %v2196 = vpack.c.b16 %v1804, %v1796
        %v2197 = vpack.c.b16 %v1805, %v1797
        %v2198 = vpack.c.b16 %v1806, %v1798
        %v2199 = vpack.c.b16 %v1807, %v1799
        %v2200 = vpack.c.b16 %v1808, %v1800
        %v2201 = vpack.c.b16 %v1809, %v1801
        %v2202 = vpack.c.b16 %v1818, %v1810
        %v2203 = vpack.c.b16 %v1819, %v1811
        %v2204 = vpack.c.b16 %v1820, %v1812
        %v2205 = vpack.c.b16 %v1821, %v1813
        %v2206 = vpack.c.b16 %v1822, %v1814
        %v2207 = vpack.c.b16 %v1823, %v1815
        %v2208 = vpack.c.b16 %v1824, %v1816
        %v2209 = vpack.c.b16 %v1825, %v1817
        %v2210 = vpack.c.b16 %v1834, %v1826
        %v2211 = vpack.c.b16 %v1835, %v1827
        %v2212 = vpack.c.b16 %v1836, %v1828
        %v2213 = vpack.c.b16 %v1837, %v1829
        %v2214 = vpack.c.b16 %v1838, %v1830
        %v2215 = vpack.c.b16 %v1839, %v1831
        %v2216 = vpack.c.b16 %v1840, %v1832
        %v2217 = vpack.c.b16 %v1841, %v1833
        %v2218 = vpack.c.b16 %v1850, %v1842
        %v2219 = vpack.c.b16 %v1851, %v1843
        %v2220 = vpack.c.b16 %v1852, %v1844
        %v2221 = vpack.c.b16 %v1853, %v1845
        %v2222 = vpack.c.b16 %v1854, %v1846
        %v2223 = vpack.c.b16 %v1855, %v1847
        %v2224 = vpack.c.b16 %v1856, %v1848
        %v2225 = vpack.c.b16 %v1857, %v1849
        %v2226 = vpack.c.b16 %v1866, %v1858
        %v2227 = vpack.c.b16 %v1867, %v1859
        %v2228 = vpack.c.b16 %v1868, %v1860
        %v2229 = vpack.c.b16 %v1869, %v1861
        %v2230 = vpack.c.b16 %v1870, %v1862
        %v2231 = vpack.c.b16 %v1871, %v1863
        %v2232 = vpack.c.b16 %v1872, %v1864
        %v2233 = vpack.c.b16 %v1873, %v1865
        %v2234 = vpack.c.b16 %v1882, %v1874
        %v2235 = vpack.c.b16 %v1883, %v1875
        %v2236 = vpack.c.b16 %v1884, %v1876
        %v2237 = vpack.c.b16 %v1885, %v1877
        %v2238 = vpack.c.b16 %v1886, %v1878
        %v2239 = vpack.c.b16 %v1887, %v1879
        %v2240 = vpack.c.b16 %v1888, %v1880
        %v2241 = vpack.c.b16 %v1889, %v1881
        %v2242 = vpack.c.b16 %v1898, %v1890
        %v2243 = vpack.c.b16 %v1899, %v1891
        %v2244 = vpack.c.b16 %v1900, %v1892
        %v2245 = vpack.c.b16 %v1901, %v1893
        %v2246 = vpack.c.b16 %v1902, %v1894
        %v2247 = vpack.c.b16 %v1903, %v1895
        %v2248 = vpack.c.b16 %v1904, %v1896
        %v2249 = vpack.c.b16 %v1905, %v1897
        %v2250 = vpack.c.b16 %v1914, %v1906
        %v2251 = vpack.c.b16 %v1915, %v1907
        %v2252 = vpack.c.b16 %v1916, %v1908
        %v2253 = vpack.c.b16 %v1917, %v1909
        %v2254 = vpack.c.b16 %v1918, %v1910
        %v2255 = vpack.c.b16 %v1919, %v1911
        %v2256 = vpack.c.b16 %v1920, %v1912
        %v2257 = vpack.c.b16 %v1921, %v1913
        %v2258 = vpack.c.b16 %v1930, %v1922
        %v2259 = vpack.c.b16 %v1931, %v1923
        %v2260 = vpack.c.b16 %v1932, %v1924
        %v2261 = vpack.c.b16 %v1933, %v1925
        %v2262 = vpack.c.b16 %v1934, %v1926
        %v2263 = vpack.c.b16 %v1935, %v1927
        %v2264 = vpack.c.b16 %v1936, %v1928
        %v2265 = vpack.c.b16 %v1937, %v1929
        %v2266 = vpack.c.b16 %v1946, %v1938
        %v2267 = vpack.c.b16 %v1947, %v1939
        %v2268 = vpack.c.b16 %v1948, %v1940
        %v2269 = vpack.c.b16 %v1949, %v1941
        %v2270 = vpack.c.b16 %v1950, %v1942
        %v2271 = vpack.c.b16 %v1951, %v1943
        %v2272 = vpack.c.b16 %v1952, %v1944
        %v2273 = vpack.c.b16 %v1953, %v1945
        %v2274 = vpack.c.b16 %v1962, %v1954
        %v2275 = vpack.c.b16 %v1963, %v1955
        %v2276 = vpack.c.b16 %v1964, %v1956
        %v2277 = vpack.c.b16 %v1965, %v1957
        %v2278 = vpack.c.b16 %v1966, %v1958
        %v2279 = vpack.c.b16 %v1967, %v1959
        %v2280 = vpack.c.b16 %v1968, %v1960
        %v2281 = vpack.c.b16 %v1969, %v1961
        %v2282 = vpack.c.b16 %v1978, %v1970
        %v2283 = vpack.c.b16 %v1979, %v1971
        %v2284 = vpack.c.b16 %v1980, %v1972
        %v2285 = vpack.c.b16 %v1981, %v1973
        %v2286 = vpack.c.b16 %v1982, %v1974
        %v2287 = vpack.c.b16 %v1983, %v1975
        %v2288 = vpack.c.b16 %v1984, %v1976
        %v2289 = vpack.c.b16 %v1985, %v1977
        %v2290 = vpack.c.b16 %v1994, %v1986
        %v2291 = vpack.c.b16 %v1995, %v1987
        %v2292 = vpack.c.b16 %v1996, %v1988
        %v2293 = vpack.c.b16 %v1997, %v1989
        %v2294 = vpack.c.b16 %v1998, %v1990
        %v2295 = vpack.c.b16 %v1999, %v1991
        %v2296 = vpack.c.b16 %v2000, %v1992
        %v2297 = vpack.c.b16 %v2001, %v1993
        %v2298 = vpack.c.b16 %v2010, %v2002
        %v2299 = vpack.c.b16 %v2011, %v2003
        %v2300 = vpack.c.b16 %v2012, %v2004
        %v2301 = vpack.c.b16 %v2013, %v2005
        %v2302 = vpack.c.b16 %v2014, %v2006
        %v2303 = vpack.c.b16 %v2015, %v2007
        %v2304 = vpack.c.b16 %v2016, %v2008
        %v2305 = vpack.c.b16 %v2017, %v2009
        %v2306 = vpack.c.b16 %v2026, %v2018
        %v2307 = vpack.c.b16 %v2027, %v2019
        %v2308 = vpack.c.b16 %v2028, %v2020
        %v2309 = vpack.c.b16 %v2029, %v2021
        %v2310 = vpack.c.b16 %v2030, %v2022
        %v2311 = vpack.c.b16 %v2031, %v2023
        %v2312 = vpack.c.b16 %v2032, %v2024
        %v2313 = vpack.c.b16 %v2033, %v2025
        %v2314 = vpack.c.b16 %v2042, %v2034
        %v2315 = vpack.c.b16 %v2043, %v2035
        %v2316 = vpack.c.b16 %v2044, %v2036
        %v2317 = vpack.c.b16 %v2045, %v2037
        %v2318 = vpack.c.b16 %v2046, %v2038
        %v2319 = vpack.c.b16 %v2047, %v2039
        %v2320 = vpack.c.b16 %v2048, %v2040
        %v2321 = vpack.c.b16 %v2049, %v2041
        %v2322 = vpack.c.b16 %v2058, %v2050
        %v2323 = vpack.c.b16 %v2059, %v2051
        %v2324 = vpack.c.b16 %v2060, %v2052
        %v2325 = vpack.c.b16 %v2061, %v2053
        %v2326 = vpack.c.b16 %v2062, %v2054
        %v2327 = vpack.c.b16 %v2063, %v2055
        %v2328 = vpack.c.b16 %v2064, %v2056
        %v2329 = vpack.c.b16 %v2065, %v2057
        %v2330 = vpack.c.b16 %v2074, %v2066
        %v2331 = vpack.c.b16 %v2075, %v2067
        %v2332 = vpack.c.b16 %v2076, %v2068
        %v2333 = vpack.c.b16 %v2077, %v2069
        %v2334 = vpack.c.b16 %v2078, %v2070
        %v2335 = vpack.c.b16 %v2079, %v2071
        %v2336 = vpack.c.b16 %v2080, %v2072
        %v2337 = vpack.c.b16 %v2081, %v2073
        %2594 = vmatprep.subr.bf16.mxu0 %v2139
        %2595 = vmatpush1.bf16.msra.mxu0 %v2138
        %2596 = vmatprep.subr.bf16.mxu0 %v2131
        %2597 = vmatpush1.bf16.msra.mxu0 %v2130
        %2598 = vmatprep.subr.bf16.mxu0 %v2123
        %2599 = vmatpush1.bf16.msra.mxu0 %v2122
        %2600 = vmatprep.subr.bf16.mxu0 %v2115
        %2601 = vmatpush1.bf16.msra.mxu0 %v2114
        %2602 = vmatprep.subr.bf16.mxu0 %v2107
        %2603 = vmatpush1.bf16.msra.mxu0 %v2106
        %2604 = vmatprep.subr.bf16.mxu0 %v2099
        %2605 = vmatpush1.bf16.msra.mxu0 %v2098
        %2606 = vmatprep.subr.bf16.mxu0 %v2091
        %2607 = vmatpush1.bf16.msra.mxu0 %v2090
        %2608 = vmatprep.subr.bf16.mxu0 %v2083
        %2609 = vmatpush1.bf16.msra.mxu0 %v2082
        %2610 = vmatprep.subr.bf16.mxu0 %v2203
        %2611 = vmatpush2.bf16.msra.mxu0 %v2202
        %2612 = vmatprep.subr.bf16.mxu0 %v2195
        %2613 = vmatpush2.bf16.msra.mxu0 %v2194
        %2614 = vmatprep.subr.bf16.mxu0 %v2187
        %2615 = vmatpush2.bf16.msra.mxu0 %v2186
        %2616 = vmatprep.subr.bf16.mxu0 %v2179
        %2617 = vmatpush2.bf16.msra.mxu0 %v2178
        %2618 = vmatprep.subr.bf16.mxu0 %v2171
        %2619 = vmatpush2.bf16.msra.mxu0 %v2170
        %2620 = vmatprep.subr.bf16.mxu0 %v2163
        %2621 = vmatpush2.bf16.msra.mxu0 %v2162
        %2622 = vmatprep.subr.bf16.mxu0 %v2155
        %2623 = vmatpush2.bf16.msra.mxu0 %v2154
        %2624 = vmatprep.subr.bf16.mxu0 %v2147
        %2625 = vmatpush2.bf16.msra.mxu0 %v2146
        %2626 = vmatprep.mubr.bf16.mxu0 %v1013
        %2627 = vmatmul.mubr.bf16.gmra.mxu0 %v1012
        %v2628 = vpop.f32.mrf.mxu0
        %v2629 = vadd.f32 %v1277, %v2628
        %v2630 = vpop.f32.mrf.mxu0
        %v2631 = vadd.f32 %v1281, %v2630
        %v2632 = vpop.f32.mrf.mxu0
        %v2633 = vadd.f32 %v1277, %v2632
        %v2634 = vpop.f32.mrf.mxu0
        %v2635 = vadd.f32 %v1281, %v2634
        %2636 = vdwg.mxu0
        %2637 = vmatprep.subr.bf16.mxu0 %v2267
        %2638 = vmatpush1.bf16.msra.mxu0 %v2266
        %2639 = vmatprep.subr.bf16.mxu0 %v2259
        %2640 = vmatpush1.bf16.msra.mxu0 %v2258
        %2641 = vmatprep.subr.bf16.mxu0 %v2251
        %2642 = vmatpush1.bf16.msra.mxu0 %v2250
        %2643 = vmatprep.subr.bf16.mxu0 %v2243
        %2644 = vmatpush1.bf16.msra.mxu0 %v2242
        %2645 = vmatprep.subr.bf16.mxu0 %v2235
        %2646 = vmatpush1.bf16.msra.mxu0 %v2234
        %2647 = vmatprep.subr.bf16.mxu0 %v2227
        %2648 = vmatpush1.bf16.msra.mxu0 %v2226
        %2649 = vmatprep.subr.bf16.mxu0 %v2219
        %2650 = vmatpush1.bf16.msra.mxu0 %v2218
        %2651 = vmatprep.subr.bf16.mxu0 %v2211
        %2652 = vmatpush1.bf16.msra.mxu0 %v2210
        %2653 = vmatprep.subr.bf16.mxu0 %v2331
        %2654 = vmatpush2.bf16.msra.mxu0 %v2330
        %2655 = vmatprep.subr.bf16.mxu0 %v2323
        %2656 = vmatpush2.bf16.msra.mxu0 %v2322
        %2657 = vmatprep.subr.bf16.mxu0 %v2315
        %2658 = vmatpush2.bf16.msra.mxu0 %v2314
        %2659 = vmatprep.subr.bf16.mxu0 %v2307
        %2660 = vmatpush2.bf16.msra.mxu0 %v2306
        %2661 = vmatprep.subr.bf16.mxu0 %v2299
        %2662 = vmatpush2.bf16.msra.mxu0 %v2298
        %2663 = vmatprep.subr.bf16.mxu0 %v2291
        %2664 = vmatpush2.bf16.msra.mxu0 %v2290
        %2665 = vmatprep.subr.bf16.mxu0 %v2283
        %2666 = vmatpush2.bf16.msra.mxu0 %v2282
        %2667 = vmatprep.subr.bf16.mxu0 %v2275
        %2668 = vmatpush2.bf16.msra.mxu0 %v2274
        %2669 = vmatprep.mubr.bf16.mxu0 %v1015
        %2670 = vmatmul.mubr.bf16.gmra.mxu0 %v1014
        %v2671 = vpop.f32.mrf.mxu0
        %v2672 = vadd.f32 %v2629, %v2671
        %v2673 = vpop.f32.mrf.mxu0
        %v2674 = vadd.f32 %v2631, %v2673
        %v2675 = vpop.f32.mrf.mxu0
        %v2676 = vadd.f32 %v2633, %v2675
        %v2677 = vpop.f32.mrf.mxu0
        %v2678 = vadd.f32 %v2635, %v2677
        %2679 = vdwg.mxu0
        %2680 = vmatprep.subr.bf16.mxu0 %v2141
        %2681 = vmatpush1.bf16.msra.mxu0 %v2140
        %2682 = vmatprep.subr.bf16.mxu0 %v2133
        %2683 = vmatpush1.bf16.msra.mxu0 %v2132
        %2684 = vmatprep.subr.bf16.mxu0 %v2125
        %2685 = vmatpush1.bf16.msra.mxu0 %v2124
        %2686 = vmatprep.subr.bf16.mxu0 %v2117
        %2687 = vmatpush1.bf16.msra.mxu0 %v2116
        %2688 = vmatprep.subr.bf16.mxu0 %v2109
        %2689 = vmatpush1.bf16.msra.mxu0 %v2108
        %2690 = vmatprep.subr.bf16.mxu0 %v2101
        %2691 = vmatpush1.bf16.msra.mxu0 %v2100
        %2692 = vmatprep.subr.bf16.mxu0 %v2093
        %2693 = vmatpush1.bf16.msra.mxu0 %v2092
        %2694 = vmatprep.subr.bf16.mxu0 %v2085
        %2695 = vmatpush1.bf16.msra.mxu0 %v2084
        %2696 = vmatprep.subr.bf16.mxu0 %v2205
        %2697 = vmatpush2.bf16.msra.mxu0 %v2204
        %2698 = vmatprep.subr.bf16.mxu0 %v2197
        %2699 = vmatpush2.bf16.msra.mxu0 %v2196
        %2700 = vmatprep.subr.bf16.mxu0 %v2189
        %2701 = vmatpush2.bf16.msra.mxu0 %v2188
        %2702 = vmatprep.subr.bf16.mxu0 %v2181
        %2703 = vmatpush2.bf16.msra.mxu0 %v2180
        %2704 = vmatprep.subr.bf16.mxu0 %v2173
        %2705 = vmatpush2.bf16.msra.mxu0 %v2172
        %2706 = vmatprep.subr.bf16.mxu0 %v2165
        %2707 = vmatpush2.bf16.msra.mxu0 %v2164
        %2708 = vmatprep.subr.bf16.mxu0 %v2157
        %2709 = vmatpush2.bf16.msra.mxu0 %v2156
        %2710 = vmatprep.subr.bf16.mxu0 %v2149
        %2711 = vmatpush2.bf16.msra.mxu0 %v2148
        %2712 = vmatprep.mubr.bf16.mxu0 %v1013
        %2713 = vmatmul.mubr.bf16.gmra.mxu0 %v1012
        %v2714 = vpop.f32.mrf.mxu0
        %v2715 = vadd.f32 %v1285, %v2714
        %v2716 = vpop.f32.mrf.mxu0
        %v2717 = vadd.f32 %v1289, %v2716
        %v2718 = vpop.f32.mrf.mxu0
        %v2719 = vadd.f32 %v1285, %v2718
        %v2720 = vpop.f32.mrf.mxu0
        %v2721 = vadd.f32 %v1289, %v2720
        %2722 = vdwg.mxu0
        %2723 = vmatprep.subr.bf16.mxu0 %v2269
        %2724 = vmatpush1.bf16.msra.mxu0 %v2268
        %2725 = vmatprep.subr.bf16.mxu0 %v2261
        %2726 = vmatpush1.bf16.msra.mxu0 %v2260
        %2727 = vmatprep.subr.bf16.mxu0 %v2253
        %2728 = vmatpush1.bf16.msra.mxu0 %v2252
        %2729 = vmatprep.subr.bf16.mxu0 %v2245
        %2730 = vmatpush1.bf16.msra.mxu0 %v2244
        %2731 = vmatprep.subr.bf16.mxu0 %v2237
        %2732 = vmatpush1.bf16.msra.mxu0 %v2236
        %2733 = vmatprep.subr.bf16.mxu0 %v2229
        %2734 = vmatpush1.bf16.msra.mxu0 %v2228
        %2735 = vmatprep.subr.bf16.mxu0 %v2221
        %2736 = vmatpush1.bf16.msra.mxu0 %v2220
        %2737 = vmatprep.subr.bf16.mxu0 %v2213
        %2738 = vmatpush1.bf16.msra.mxu0 %v2212
        %2739 = vmatprep.subr.bf16.mxu0 %v2333
        %2740 = vmatpush2.bf16.msra.mxu0 %v2332
        %2741 = vmatprep.subr.bf16.mxu0 %v2325
        %2742 = vmatpush2.bf16.msra.mxu0 %v2324
        %2743 = vmatprep.subr.bf16.mxu0 %v2317
        %2744 = vmatpush2.bf16.msra.mxu0 %v2316
        %2745 = vmatprep.subr.bf16.mxu0 %v2309
        %2746 = vmatpush2.bf16.msra.mxu0 %v2308
        %2747 = vmatprep.subr.bf16.mxu0 %v2301
        %2748 = vmatpush2.bf16.msra.mxu0 %v2300
        %2749 = vmatprep.subr.bf16.mxu0 %v2293
        %2750 = vmatpush2.bf16.msra.mxu0 %v2292
        %2751 = vmatprep.subr.bf16.mxu0 %v2285
        %2752 = vmatpush2.bf16.msra.mxu0 %v2284
        %2753 = vmatprep.subr.bf16.mxu0 %v2277
        %2754 = vmatpush2.bf16.msra.mxu0 %v2276
        %2755 = vmatprep.mubr.bf16.mxu0 %v1015
        %2756 = vmatmul.mubr.bf16.gmra.mxu0 %v1014
        %v2757 = vpop.f32.mrf.mxu0
        %v2758 = vadd.f32 %v2715, %v2757
        %v2759 = vpop.f32.mrf.mxu0
        %v2760 = vadd.f32 %v2717, %v2759
        %v2761 = vpop.f32.mrf.mxu0
        %v2762 = vadd.f32 %v2719, %v2761
        %v2763 = vpop.f32.mrf.mxu0
        %v2764 = vadd.f32 %v2721, %v2763
        %2765 = vdwg.mxu0
        %2766 = vmatprep.subr.bf16.mxu0 %v2143
        %2767 = vmatpush1.bf16.msra.mxu0 %v2142
        %2768 = vmatprep.subr.bf16.mxu0 %v2135
        %2769 = vmatpush1.bf16.msra.mxu0 %v2134
        %2770 = vmatprep.subr.bf16.mxu0 %v2127
        %2771 = vmatpush1.bf16.msra.mxu0 %v2126
        %2772 = vmatprep.subr.bf16.mxu0 %v2119
        %2773 = vmatpush1.bf16.msra.mxu0 %v2118
        %2774 = vmatprep.subr.bf16.mxu0 %v2111
        %2775 = vmatpush1.bf16.msra.mxu0 %v2110
        %2776 = vmatprep.subr.bf16.mxu0 %v2103
        %2777 = vmatpush1.bf16.msra.mxu0 %v2102
        %2778 = vmatprep.subr.bf16.mxu0 %v2095
        %2779 = vmatpush1.bf16.msra.mxu0 %v2094
        %2780 = vmatprep.subr.bf16.mxu0 %v2087
        %2781 = vmatpush1.bf16.msra.mxu0 %v2086
        %2782 = vmatprep.subr.bf16.mxu0 %v2207
        %2783 = vmatpush2.bf16.msra.mxu0 %v2206
        %2784 = vmatprep.subr.bf16.mxu0 %v2199
        %2785 = vmatpush2.bf16.msra.mxu0 %v2198
        %2786 = vmatprep.subr.bf16.mxu0 %v2191
        %2787 = vmatpush2.bf16.msra.mxu0 %v2190
        %2788 = vmatprep.subr.bf16.mxu0 %v2183
        %2789 = vmatpush2.bf16.msra.mxu0 %v2182
        %2790 = vmatprep.subr.bf16.mxu0 %v2175
        %2791 = vmatpush2.bf16.msra.mxu0 %v2174
        %2792 = vmatprep.subr.bf16.mxu0 %v2167
        %2793 = vmatpush2.bf16.msra.mxu0 %v2166
        %2794 = vmatprep.subr.bf16.mxu0 %v2159
        %2795 = vmatpush2.bf16.msra.mxu0 %v2158
        %2796 = vmatprep.subr.bf16.mxu0 %v2151
        %2797 = vmatpush2.bf16.msra.mxu0 %v2150
        %2798 = vmatprep.mubr.bf16.mxu0 %v1013
        %2799 = vmatmul.mubr.bf16.gmra.mxu0 %v1012
        %v2800 = vpop.f32.mrf.mxu0
        %v2801 = vadd.f32 %v1293, %v2800
        %v2802 = vpop.f32.mrf.mxu0
        %v2803 = vadd.f32 %v1297, %v2802
        %v2804 = vpop.f32.mrf.mxu0
        %v2805 = vadd.f32 %v1293, %v2804
        %v2806 = vpop.f32.mrf.mxu0
        %v2807 = vadd.f32 %v1297, %v2806
        %2808 = vdwg.mxu0
        %2809 = vmatprep.subr.bf16.mxu0 %v2271
        %2810 = vmatpush1.bf16.msra.mxu0 %v2270
        %2811 = vmatprep.subr.bf16.mxu0 %v2263
        %2812 = vmatpush1.bf16.msra.mxu0 %v2262
        %2813 = vmatprep.subr.bf16.mxu0 %v2255
        %2814 = vmatpush1.bf16.msra.mxu0 %v2254
        %2815 = vmatprep.subr.bf16.mxu0 %v2247
        %2816 = vmatpush1.bf16.msra.mxu0 %v2246
        %2817 = vmatprep.subr.bf16.mxu0 %v2239
        %2818 = vmatpush1.bf16.msra.mxu0 %v2238
        %2819 = vmatprep.subr.bf16.mxu0 %v2231
        %2820 = vmatpush1.bf16.msra.mxu0 %v2230
        %2821 = vmatprep.subr.bf16.mxu0 %v2223
        %2822 = vmatpush1.bf16.msra.mxu0 %v2222
        %2823 = vmatprep.subr.bf16.mxu0 %v2215
        %2824 = vmatpush1.bf16.msra.mxu0 %v2214
        %2825 = vmatprep.subr.bf16.mxu0 %v2335
        %2826 = vmatpush2.bf16.msra.mxu0 %v2334
        %2827 = vmatprep.subr.bf16.mxu0 %v2327
        %2828 = vmatpush2.bf16.msra.mxu0 %v2326
        %2829 = vmatprep.subr.bf16.mxu0 %v2319
        %2830 = vmatpush2.bf16.msra.mxu0 %v2318
        %2831 = vmatprep.subr.bf16.mxu0 %v2311
        %2832 = vmatpush2.bf16.msra.mxu0 %v2310
        %2833 = vmatprep.subr.bf16.mxu0 %v2303
        %2834 = vmatpush2.bf16.msra.mxu0 %v2302
        %2835 = vmatprep.subr.bf16.mxu0 %v2295
        %2836 = vmatpush2.bf16.msra.mxu0 %v2294
        %2837 = vmatprep.subr.bf16.mxu0 %v2287
        %2838 = vmatpush2.bf16.msra.mxu0 %v2286
        %2839 = vmatprep.subr.bf16.mxu0 %v2279
        %2840 = vmatpush2.bf16.msra.mxu0 %v2278
        %2841 = vmatprep.mubr.bf16.mxu0 %v1015
        %2842 = vmatmul.mubr.bf16.gmra.mxu0 %v1014
        %v2843 = vpop.f32.mrf.mxu0
        %v2844 = vadd.f32 %v2801, %v2843
        %v2845 = vpop.f32.mrf.mxu0
        %v2846 = vadd.f32 %v2803, %v2845
        %v2847 = vpop.f32.mrf.mxu0
        %v2848 = vadd.f32 %v2805, %v2847
        %v2849 = vpop.f32.mrf.mxu0
        %v2850 = vadd.f32 %v2807, %v2849
        %2851 = vdwg.mxu0
        %2852 = vmatprep.subr.bf16.mxu0 %v2145
        %2853 = vmatpush1.bf16.msra.mxu0 %v2144
        %2854 = vmatprep.subr.bf16.mxu0 %v2137
        %2855 = vmatpush1.bf16.msra.mxu0 %v2136
        %2856 = vmatprep.subr.bf16.mxu0 %v2129
        %2857 = vmatpush1.bf16.msra.mxu0 %v2128
        %2858 = vmatprep.subr.bf16.mxu0 %v2121
        %2859 = vmatpush1.bf16.msra.mxu0 %v2120
        %2860 = vmatprep.subr.bf16.mxu0 %v2113
        %2861 = vmatpush1.bf16.msra.mxu0 %v2112
        %2862 = vmatprep.subr.bf16.mxu0 %v2105
        %2863 = vmatpush1.bf16.msra.mxu0 %v2104
        %2864 = vmatprep.subr.bf16.mxu0 %v2097
        %2865 = vmatpush1.bf16.msra.mxu0 %v2096
        %2866 = vmatprep.subr.bf16.mxu0 %v2089
        %2867 = vmatpush1.bf16.msra.mxu0 %v2088
        %2868 = vmatprep.subr.bf16.mxu0 %v2209
        %2869 = vmatpush2.bf16.msra.mxu0 %v2208
        %2870 = vmatprep.subr.bf16.mxu0 %v2201
        %2871 = vmatpush2.bf16.msra.mxu0 %v2200
        %2872 = vmatprep.subr.bf16.mxu0 %v2193
        %2873 = vmatpush2.bf16.msra.mxu0 %v2192
        %2874 = vmatprep.subr.bf16.mxu0 %v2185
        %2875 = vmatpush2.bf16.msra.mxu0 %v2184
        %2876 = vmatprep.subr.bf16.mxu0 %v2177
        %2877 = vmatpush2.bf16.msra.mxu0 %v2176
        %2878 = vmatprep.subr.bf16.mxu0 %v2169
        %2879 = vmatpush2.bf16.msra.mxu0 %v2168
        %2880 = vmatprep.subr.bf16.mxu0 %v2161
        %2881 = vmatpush2.bf16.msra.mxu0 %v2160
        %2882 = vmatprep.subr.bf16.mxu0 %v2153
        %2883 = vmatpush2.bf16.msra.mxu0 %v2152
        %2884 = vmatprep.mubr.bf16.mxu0 %v1013
        %2885 = vmatmul.mubr.bf16.gmra.mxu0 %v1012
        %v2886 = vpop.f32.mrf.mxu0
        %v2887 = vadd.f32 %v1301, %v2886
        %v2888 = vpop.f32.mrf.mxu0
        %v2889 = vadd.f32 %v1305, %v2888
        %v2890 = vpop.f32.mrf.mxu0
        %v2891 = vadd.f32 %v1301, %v2890
        %v2892 = vpop.f32.mrf.mxu0
        %v2893 = vadd.f32 %v1305, %v2892
        %2894 = vdwg.mxu0
        %2895 = vmatprep.subr.bf16.mxu0 %v2273
        %2896 = vmatpush1.bf16.msra.mxu0 %v2272
        %2897 = vmatprep.subr.bf16.mxu0 %v2265
        %2898 = vmatpush1.bf16.msra.mxu0 %v2264
        %2899 = vmatprep.subr.bf16.mxu0 %v2257
        %2900 = vmatpush1.bf16.msra.mxu0 %v2256
        %2901 = vmatprep.subr.bf16.mxu0 %v2249
        %2902 = vmatpush1.bf16.msra.mxu0 %v2248
        %2903 = vmatprep.subr.bf16.mxu0 %v2241
        %2904 = vmatpush1.bf16.msra.mxu0 %v2240
        %2905 = vmatprep.subr.bf16.mxu0 %v2233
        %2906 = vmatpush1.bf16.msra.mxu0 %v2232
        %2907 = vmatprep.subr.bf16.mxu0 %v2225
        %2908 = vmatpush1.bf16.msra.mxu0 %v2224
        %2909 = vmatprep.subr.bf16.mxu0 %v2217
        %2910 = vmatpush1.bf16.msra.mxu0 %v2216
        %2911 = vmatprep.subr.bf16.mxu0 %v2337
        %2912 = vmatpush2.bf16.msra.mxu0 %v2336
        %2913 = vmatprep.subr.bf16.mxu0 %v2329
        %2914 = vmatpush2.bf16.msra.mxu0 %v2328
        %2915 = vmatprep.subr.bf16.mxu0 %v2321
        %2916 = vmatpush2.bf16.msra.mxu0 %v2320
        %2917 = vmatprep.subr.bf16.mxu0 %v2313
        %2918 = vmatpush2.bf16.msra.mxu0 %v2312
        %2919 = vmatprep.subr.bf16.mxu0 %v2305
        %2920 = vmatpush2.bf16.msra.mxu0 %v2304
        %2921 = vmatprep.subr.bf16.mxu0 %v2297
        %2922 = vmatpush2.bf16.msra.mxu0 %v2296
        %2923 = vmatprep.subr.bf16.mxu0 %v2289
        %2924 = vmatpush2.bf16.msra.mxu0 %v2288
        %2925 = vmatprep.subr.bf16.mxu0 %v2281
        %2926 = vmatpush2.bf16.msra.mxu0 %v2280
        %2927 = vmatprep.mubr.bf16.mxu0 %v1015
        %2928 = vmatmul.mubr.bf16.gmra.mxu0 %v1014
        %v2929 = vpop.f32.mrf.mxu0
        %v2930 = vadd.f32 %v2887, %v2929
        %v2931 = vpop.f32.mrf.mxu0
        %v2932 = vadd.f32 %v2889, %v2931
        %v2933 = vpop.f32.mrf.mxu0
        %v2934 = vadd.f32 %v2891, %v2933
        %v2935 = vpop.f32.mrf.mxu0
        %v2936 = vadd.f32 %v2893, %v2935
        %2937 = vdwg.mxu0
        %v2938 = vmax.f32 %v2672, 0.0
        %v2939 = vmax.f32 %v2674, 0.0
        %v2940 = vmax.f32 %v2758, 0.0
        %v2941 = vmax.f32 %v2760, 0.0
        %v2942 = vmax.f32 %v2844, 0.0
        %v2943 = vmax.f32 %v2846, 0.0
        %v2944 = vmax.f32 %v2930, 0.0
        %v2945 = vmax.f32 %v2932, 0.0
        %v2946 = vmax.f32 %v2676, 0.0
        %v2947 = vmax.f32 %v2678, 0.0
        %v2948 = vmax.f32 %v2762, 0.0
        %v2949 = vmax.f32 %v2764, 0.0
        %v2950 = vmax.f32 %v2848, 0.0
        %v2951 = vmax.f32 %v2850, 0.0
        %v2952 = vmax.f32 %v2934, 0.0
        %v2953 = vmax.f32 %v2936, 0.0
        %v2954 = vpack.c.bf16 %v2946, %v2938
        %v2955 = vpack.c.bf16 %v2947, %v2939
        %v2956 = vpack.c.bf16 %v2948, %v2940
        %v2957 = vpack.c.bf16 %v2949, %v2941
        %v2958 = vpack.c.bf16 %v2950, %v2942
        %v2959 = vpack.c.bf16 %v2951, %v2943
        %v2960 = vpack.c.bf16 %v2952, %v2944
        %v2961 = vpack.c.bf16 %v2953, %v2945
        %v2962 = vld [vmem:[%s451] sm:$0xff]
        %v2963 = vld [vmem:[%s451 + $0x8] sm:$0xff]
        %v2964 = vld [vmem:[%s451 + $0x10] sm:$0xff]
        %v2965 = vld [vmem:[%s451 + $0x18] sm:$0xff]
        %v2966 = vld [vmem:[%s451 + $0x20] sm:$0xff]
        %v2967 = vld [vmem:[%s451 + $0x28] sm:$0xff]
        %v2968 = vld [vmem:[%s451 + $0x30] sm:$0xff]
        %v2969 = vld [vmem:[%s451 + $0x38] sm:$0xff]
        %v2970 = vld [vmem:[%s451 + $0x40] sm:$0xff]
        %v2971 = vld [vmem:[%s451 + $0x48] sm:$0xff]
        %v2972 = vld [vmem:[%s451 + $0x50] sm:$0xff]
        %v2973 = vld [vmem:[%s451 + $0x58] sm:$0xff]
        %v2974 = vld [vmem:[%s451 + $0x60] sm:$0xff]
        %v2975 = vld [vmem:[%s451 + $0x68] sm:$0xff]
        %v2976 = vld [vmem:[%s451 + $0x70] sm:$0xff]
        %v2977 = vld [vmem:[%s451 + $0x78] sm:$0xff]
        %v2978 = vld [vmem:[%s451 + $0x80] sm:$0xff]
        %v2979 = vld [vmem:[%s451 + $0x88] sm:$0xff]
        %v2980 = vld [vmem:[%s451 + $0x90] sm:$0xff]
        %v2981 = vld [vmem:[%s451 + $0x98] sm:$0xff]
        %v2982 = vld [vmem:[%s451 + $0xa0] sm:$0xff]
        %v2983 = vld [vmem:[%s451 + $0xa8] sm:$0xff]
        %v2984 = vld [vmem:[%s451 + $0xb0] sm:$0xff]
        %v2985 = vld [vmem:[%s451 + $0xb8] sm:$0xff]
        %v2986 = vld [vmem:[%s451 + $0xc0] sm:$0xff]
        %v2987 = vld [vmem:[%s451 + $0xc8] sm:$0xff]
        %v2988 = vld [vmem:[%s451 + $0xd0] sm:$0xff]
        %v2989 = vld [vmem:[%s451 + $0xd8] sm:$0xff]
        %v2990 = vld [vmem:[%s451 + $0xe0] sm:$0xff]
        %v2991 = vld [vmem:[%s451 + $0xe8] sm:$0xff]
        %v2992 = vld [vmem:[%s451 + $0xf0] sm:$0xff]
        %v2993 = vld [vmem:[%s451 + $0xf8] sm:$0xff]
        %v2994 = vld [vmem:[%s451 + $0x100] sm:$0xff]
        %v2995 = vld [vmem:[%s451 + $0x108] sm:$0xff]
        %v2996 = vld [vmem:[%s451 + $0x110] sm:$0xff]
        %v2997 = vld [vmem:[%s451 + $0x118] sm:$0xff]
        %v2998 = vld [vmem:[%s451 + $0x120] sm:$0xff]
        %v2999 = vld [vmem:[%s451 + $0x128] sm:$0xff]
        %v3000 = vld [vmem:[%s451 + $0x130] sm:$0xff]
        %v3001 = vld [vmem:[%s451 + $0x138] sm:$0xff]
        %v3002 = vld [vmem:[%s451 + $0x140] sm:$0xff]
        %v3003 = vld [vmem:[%s451 + $0x148] sm:$0xff]
        %v3004 = vld [vmem:[%s451 + $0x150] sm:$0xff]
        %v3005 = vld [vmem:[%s451 + $0x158] sm:$0xff]
        %v3006 = vld [vmem:[%s451 + $0x160] sm:$0xff]
        %v3007 = vld [vmem:[%s451 + $0x168] sm:$0xff]
        %v3008 = vld [vmem:[%s451 + $0x170] sm:$0xff]
        %v3009 = vld [vmem:[%s451 + $0x178] sm:$0xff]
        %v3010 = vld [vmem:[%s451 + $0x180] sm:$0xff]
        %v3011 = vld [vmem:[%s451 + $0x188] sm:$0xff]
        %v3012 = vld [vmem:[%s451 + $0x190] sm:$0xff]
        %v3013 = vld [vmem:[%s451 + $0x198] sm:$0xff]
        %v3014 = vld [vmem:[%s451 + $0x1a0] sm:$0xff]
        %v3015 = vld [vmem:[%s451 + $0x1a8] sm:$0xff]
        %v3016 = vld [vmem:[%s451 + $0x1b0] sm:$0xff]
        %v3017 = vld [vmem:[%s451 + $0x1b8] sm:$0xff]
        %v3018 = vld [vmem:[%s451 + $0x1c0] sm:$0xff]
        %v3019 = vld [vmem:[%s451 + $0x1c8] sm:$0xff]
        %v3020 = vld [vmem:[%s451 + $0x1d0] sm:$0xff]
        %v3021 = vld [vmem:[%s451 + $0x1d8] sm:$0xff]
        %v3022 = vld [vmem:[%s451 + $0x1e0] sm:$0xff]
        %v3023 = vld [vmem:[%s451 + $0x1e8] sm:$0xff]
        %v3024 = vld [vmem:[%s451 + $0x1f0] sm:$0xff]
        %v3025 = vld [vmem:[%s451 + $0x1f8] sm:$0xff]
        %v3026 = vld [vmem:[%s451 + $0x200] sm:$0xff]
        %v3027 = vld [vmem:[%s451 + $0x208] sm:$0xff]
        %v3028 = vld [vmem:[%s451 + $0x210] sm:$0xff]
        %v3029 = vld [vmem:[%s451 + $0x218] sm:$0xff]
        %v3030 = vld [vmem:[%s451 + $0x220] sm:$0xff]
        %v3031 = vld [vmem:[%s451 + $0x228] sm:$0xff]
        %v3032 = vld [vmem:[%s451 + $0x230] sm:$0xff]
        %v3033 = vld [vmem:[%s451 + $0x238] sm:$0xff]
        %v3034 = vld [vmem:[%s451 + $0x240] sm:$0xff]
        %v3035 = vld [vmem:[%s451 + $0x248] sm:$0xff]
        %v3036 = vld [vmem:[%s451 + $0x250] sm:$0xff]
        %v3037 = vld [vmem:[%s451 + $0x258] sm:$0xff]
        %v3038 = vld [vmem:[%s451 + $0x260] sm:$0xff]
        %v3039 = vld [vmem:[%s451 + $0x268] sm:$0xff]
        %v3040 = vld [vmem:[%s451 + $0x270] sm:$0xff]
        %v3041 = vld [vmem:[%s451 + $0x278] sm:$0xff]
        %v3042 = vld [vmem:[%s451 + $0x280] sm:$0xff]
        %v3043 = vld [vmem:[%s451 + $0x288] sm:$0xff]
        %v3044 = vld [vmem:[%s451 + $0x290] sm:$0xff]
        %v3045 = vld [vmem:[%s451 + $0x298] sm:$0xff]
        %v3046 = vld [vmem:[%s451 + $0x2a0] sm:$0xff]
        %v3047 = vld [vmem:[%s451 + $0x2a8] sm:$0xff]
        %v3048 = vld [vmem:[%s451 + $0x2b0] sm:$0xff]
        %v3049 = vld [vmem:[%s451 + $0x2b8] sm:$0xff]
        %v3050 = vld [vmem:[%s451 + $0x2c0] sm:$0xff]
        %v3051 = vld [vmem:[%s451 + $0x2c8] sm:$0xff]
        %v3052 = vld [vmem:[%s451 + $0x2d0] sm:$0xff]
        %v3053 = vld [vmem:[%s451 + $0x2d8] sm:$0xff]
        %v3054 = vld [vmem:[%s451 + $0x2e0] sm:$0xff]
        %v3055 = vld [vmem:[%s451 + $0x2e8] sm:$0xff]
        %v3056 = vld [vmem:[%s451 + $0x2f0] sm:$0xff]
        %v3057 = vld [vmem:[%s451 + $0x2f8] sm:$0xff]
        %v3058 = vld [vmem:[%s451 + $0x300] sm:$0xff]
        %v3059 = vld [vmem:[%s451 + $0x308] sm:$0xff]
        %v3060 = vld [vmem:[%s451 + $0x310] sm:$0xff]
        %v3061 = vld [vmem:[%s451 + $0x318] sm:$0xff]
        %v3062 = vld [vmem:[%s451 + $0x320] sm:$0xff]
        %v3063 = vld [vmem:[%s451 + $0x328] sm:$0xff]
        %v3064 = vld [vmem:[%s451 + $0x330] sm:$0xff]
        %v3065 = vld [vmem:[%s451 + $0x338] sm:$0xff]
        %v3066 = vld [vmem:[%s451 + $0x340] sm:$0xff]
        %v3067 = vld [vmem:[%s451 + $0x348] sm:$0xff]
        %v3068 = vld [vmem:[%s451 + $0x350] sm:$0xff]
        %v3069 = vld [vmem:[%s451 + $0x358] sm:$0xff]
        %v3070 = vld [vmem:[%s451 + $0x360] sm:$0xff]
        %v3071 = vld [vmem:[%s451 + $0x368] sm:$0xff]
        %v3072 = vld [vmem:[%s451 + $0x370] sm:$0xff]
        %v3073 = vld [vmem:[%s451 + $0x378] sm:$0xff]
        %v3074 = vld [vmem:[%s451 + $0x380] sm:$0xff]
        %v3075 = vld [vmem:[%s451 + $0x388] sm:$0xff]
        %v3076 = vld [vmem:[%s451 + $0x390] sm:$0xff]
        %v3077 = vld [vmem:[%s451 + $0x398] sm:$0xff]
        %v3078 = vld [vmem:[%s451 + $0x3a0] sm:$0xff]
        %v3079 = vld [vmem:[%s451 + $0x3a8] sm:$0xff]
        %v3080 = vld [vmem:[%s451 + $0x3b0] sm:$0xff]
        %v3081 = vld [vmem:[%s451 + $0x3b8] sm:$0xff]
        %v3082 = vld [vmem:[%s451 + $0x3c0] sm:$0xff]
        %v3083 = vld [vmem:[%s451 + $0x3c8] sm:$0xff]
        %v3084 = vld [vmem:[%s451 + $0x3d0] sm:$0xff]
        %v3085 = vld [vmem:[%s451 + $0x3d8] sm:$0xff]
        %v3086 = vld [vmem:[%s451 + $0x3e0] sm:$0xff]
        %v3087 = vld [vmem:[%s451 + $0x3e8] sm:$0xff]
        %v3088 = vld [vmem:[%s451 + $0x3f0] sm:$0xff]
        %v3089 = vld [vmem:[%s451 + $0x3f8] sm:$0xff]
        %v3090 = vld [vmem:[%s451 + $0x400] sm:$0xff]
        %v3091 = vld [vmem:[%s451 + $0x408] sm:$0xff]
        %v3092 = vld [vmem:[%s451 + $0x410] sm:$0xff]
        %v3093 = vld [vmem:[%s451 + $0x418] sm:$0xff]
        %v3094 = vld [vmem:[%s451 + $0x420] sm:$0xff]
        %v3095 = vld [vmem:[%s451 + $0x428] sm:$0xff]
        %v3096 = vld [vmem:[%s451 + $0x430] sm:$0xff]
        %v3097 = vld [vmem:[%s451 + $0x438] sm:$0xff]
        %v3098 = vld [vmem:[%s451 + $0x440] sm:$0xff]
        %v3099 = vld [vmem:[%s451 + $0x448] sm:$0xff]
        %v3100 = vld [vmem:[%s451 + $0x450] sm:$0xff]
        %v3101 = vld [vmem:[%s451 + $0x458] sm:$0xff]
        %v3102 = vld [vmem:[%s451 + $0x460] sm:$0xff]
        %v3103 = vld [vmem:[%s451 + $0x468] sm:$0xff]
        %v3104 = vld [vmem:[%s451 + $0x470] sm:$0xff]
        %v3105 = vld [vmem:[%s451 + $0x478] sm:$0xff]
        %v3106 = vld [vmem:[%s451 + $0x480] sm:$0xff]
        %v3107 = vld [vmem:[%s451 + $0x488] sm:$0xff]
        %v3108 = vld [vmem:[%s451 + $0x490] sm:$0xff]
        %v3109 = vld [vmem:[%s451 + $0x498] sm:$0xff]
        %v3110 = vld [vmem:[%s451 + $0x4a0] sm:$0xff]
        %v3111 = vld [vmem:[%s451 + $0x4a8] sm:$0xff]
        %v3112 = vld [vmem:[%s451 + $0x4b0] sm:$0xff]
        %v3113 = vld [vmem:[%s451 + $0x4b8] sm:$0xff]
        %v3114 = vld [vmem:[%s451 + $0x4c0] sm:$0xff]
        %v3115 = vld [vmem:[%s451 + $0x4c8] sm:$0xff]
        %v3116 = vld [vmem:[%s451 + $0x4d0] sm:$0xff]
        %v3117 = vld [vmem:[%s451 + $0x4d8] sm:$0xff]
        %v3118 = vld [vmem:[%s451 + $0x4e0] sm:$0xff]
        %v3119 = vld [vmem:[%s451 + $0x4e8] sm:$0xff]
        %v3120 = vld [vmem:[%s451 + $0x4f0] sm:$0xff]
        %v3121 = vld [vmem:[%s451 + $0x4f8] sm:$0xff]
        %v3122 = vld [vmem:[%s451 + $0x500] sm:$0xff]
        %v3123 = vld [vmem:[%s451 + $0x508] sm:$0xff]
        %v3124 = vld [vmem:[%s451 + $0x510] sm:$0xff]
        %v3125 = vld [vmem:[%s451 + $0x518] sm:$0xff]
        %v3126 = vld [vmem:[%s451 + $0x520] sm:$0xff]
        %v3127 = vld [vmem:[%s451 + $0x528] sm:$0xff]
        %v3128 = vld [vmem:[%s451 + $0x530] sm:$0xff]
        %v3129 = vld [vmem:[%s451 + $0x538] sm:$0xff]
        %v3130 = vld [vmem:[%s451 + $0x540] sm:$0xff]
        %v3131 = vld [vmem:[%s451 + $0x548] sm:$0xff]
        %v3132 = vld [vmem:[%s451 + $0x550] sm:$0xff]
        %v3133 = vld [vmem:[%s451 + $0x558] sm:$0xff]
        %v3134 = vld [vmem:[%s451 + $0x560] sm:$0xff]
        %v3135 = vld [vmem:[%s451 + $0x568] sm:$0xff]
        %v3136 = vld [vmem:[%s451 + $0x570] sm:$0xff]
        %v3137 = vld [vmem:[%s451 + $0x578] sm:$0xff]
        %v3138 = vld [vmem:[%s451 + $0x580] sm:$0xff]
        %v3139 = vld [vmem:[%s451 + $0x588] sm:$0xff]
        %v3140 = vld [vmem:[%s451 + $0x590] sm:$0xff]
        %v3141 = vld [vmem:[%s451 + $0x598] sm:$0xff]
        %v3142 = vld [vmem:[%s451 + $0x5a0] sm:$0xff]
        %v3143 = vld [vmem:[%s451 + $0x5a8] sm:$0xff]
        %v3144 = vld [vmem:[%s451 + $0x5b0] sm:$0xff]
        %v3145 = vld [vmem:[%s451 + $0x5b8] sm:$0xff]
        %v3146 = vld [vmem:[%s451 + $0x5c0] sm:$0xff]
        %v3147 = vld [vmem:[%s451 + $0x5c8] sm:$0xff]
        %v3148 = vld [vmem:[%s451 + $0x5d0] sm:$0xff]
        %v3149 = vld [vmem:[%s451 + $0x5d8] sm:$0xff]
        %v3150 = vld [vmem:[%s451 + $0x5e0] sm:$0xff]
        %v3151 = vld [vmem:[%s451 + $0x5e8] sm:$0xff]
        %v3152 = vld [vmem:[%s451 + $0x5f0] sm:$0xff]
        %v3153 = vld [vmem:[%s451 + $0x5f8] sm:$0xff]
        %v3154 = vld [vmem:[%s451 + $0x600] sm:$0xff]
        %v3155 = vld [vmem:[%s451 + $0x608] sm:$0xff]
        %v3156 = vld [vmem:[%s451 + $0x610] sm:$0xff]
        %v3157 = vld [vmem:[%s451 + $0x618] sm:$0xff]
        %v3158 = vld [vmem:[%s451 + $0x620] sm:$0xff]
        %v3159 = vld [vmem:[%s451 + $0x628] sm:$0xff]
        %v3160 = vld [vmem:[%s451 + $0x630] sm:$0xff]
        %v3161 = vld [vmem:[%s451 + $0x638] sm:$0xff]
        %v3162 = vld [vmem:[%s451 + $0x640] sm:$0xff]
        %v3163 = vld [vmem:[%s451 + $0x648] sm:$0xff]
        %v3164 = vld [vmem:[%s451 + $0x650] sm:$0xff]
        %v3165 = vld [vmem:[%s451 + $0x658] sm:$0xff]
        %v3166 = vld [vmem:[%s451 + $0x660] sm:$0xff]
        %v3167 = vld [vmem:[%s451 + $0x668] sm:$0xff]
        %v3168 = vld [vmem:[%s451 + $0x670] sm:$0xff]
        %v3169 = vld [vmem:[%s451 + $0x678] sm:$0xff]
        %v3170 = vld [vmem:[%s451 + $0x680] sm:$0xff]
        %v3171 = vld [vmem:[%s451 + $0x688] sm:$0xff]
        %v3172 = vld [vmem:[%s451 + $0x690] sm:$0xff]
        %v3173 = vld [vmem:[%s451 + $0x698] sm:$0xff]
        %v3174 = vld [vmem:[%s451 + $0x6a0] sm:$0xff]
        %v3175 = vld [vmem:[%s451 + $0x6a8] sm:$0xff]
        %v3176 = vld [vmem:[%s451 + $0x6b0] sm:$0xff]
        %v3177 = vld [vmem:[%s451 + $0x6b8] sm:$0xff]
        %v3178 = vld [vmem:[%s451 + $0x6c0] sm:$0xff]
        %v3179 = vld [vmem:[%s451 + $0x6c8] sm:$0xff]
        %v3180 = vld [vmem:[%s451 + $0x6d0] sm:$0xff]
        %v3181 = vld [vmem:[%s451 + $0x6d8] sm:$0xff]
        %v3182 = vld [vmem:[%s451 + $0x6e0] sm:$0xff]
        %v3183 = vld [vmem:[%s451 + $0x6e8] sm:$0xff]
        %v3184 = vld [vmem:[%s451 + $0x6f0] sm:$0xff]
        %v3185 = vld [vmem:[%s451 + $0x6f8] sm:$0xff]
        %v3186 = vld [vmem:[%s451 + $0x700] sm:$0xff]
        %v3187 = vld [vmem:[%s451 + $0x708] sm:$0xff]
        %v3188 = vld [vmem:[%s451 + $0x710] sm:$0xff]
        %v3189 = vld [vmem:[%s451 + $0x718] sm:$0xff]
        %v3190 = vld [vmem:[%s451 + $0x720] sm:$0xff]
        %v3191 = vld [vmem:[%s451 + $0x728] sm:$0xff]
        %v3192 = vld [vmem:[%s451 + $0x730] sm:$0xff]
        %v3193 = vld [vmem:[%s451 + $0x738] sm:$0xff]
        %v3194 = vld [vmem:[%s451 + $0x740] sm:$0xff]
        %v3195 = vld [vmem:[%s451 + $0x748] sm:$0xff]
        %v3196 = vld [vmem:[%s451 + $0x750] sm:$0xff]
        %v3197 = vld [vmem:[%s451 + $0x758] sm:$0xff]
        %v3198 = vld [vmem:[%s451 + $0x760] sm:$0xff]
        %v3199 = vld [vmem:[%s451 + $0x768] sm:$0xff]
        %v3200 = vld [vmem:[%s451 + $0x770] sm:$0xff]
        %v3201 = vld [vmem:[%s451 + $0x778] sm:$0xff]
        %v3202 = vld [vmem:[%s451 + $0x780] sm:$0xff]
        %v3203 = vld [vmem:[%s451 + $0x788] sm:$0xff]
        %v3204 = vld [vmem:[%s451 + $0x790] sm:$0xff]
        %v3205 = vld [vmem:[%s451 + $0x798] sm:$0xff]
        %v3206 = vld [vmem:[%s451 + $0x7a0] sm:$0xff]
        %v3207 = vld [vmem:[%s451 + $0x7a8] sm:$0xff]
        %v3208 = vld [vmem:[%s451 + $0x7b0] sm:$0xff]
        %v3209 = vld [vmem:[%s451 + $0x7b8] sm:$0xff]
        %v3210 = vld [vmem:[%s451 + $0x7c0] sm:$0xff]
        %v3211 = vld [vmem:[%s451 + $0x7c8] sm:$0xff]
        %v3212 = vld [vmem:[%s451 + $0x7d0] sm:$0xff]
        %v3213 = vld [vmem:[%s451 + $0x7d8] sm:$0xff]
        %v3214 = vld [vmem:[%s451 + $0x7e0] sm:$0xff]
        %v3215 = vld [vmem:[%s451 + $0x7e8] sm:$0xff]
        %v3216 = vld [vmem:[%s451 + $0x7f0] sm:$0xff]
        %v3217 = vld [vmem:[%s451 + $0x7f8] sm:$0xff]
        %v3218 = vld [vmem:[%s451 + $0x800] sm:$0xff]
        %v3219 = vld [vmem:[%s451 + $0x808] sm:$0xff]
        %v3220 = vld [vmem:[%s451 + $0x810] sm:$0xff]
        %v3221 = vld [vmem:[%s451 + $0x818] sm:$0xff]
        %v3222 = vld [vmem:[%s451 + $0x820] sm:$0xff]
        %v3223 = vld [vmem:[%s451 + $0x828] sm:$0xff]
        %v3224 = vld [vmem:[%s451 + $0x830] sm:$0xff]
        %v3225 = vld [vmem:[%s451 + $0x838] sm:$0xff]
        %v3226 = vld [vmem:[%s451 + $0x840] sm:$0xff]
        %v3227 = vld [vmem:[%s451 + $0x848] sm:$0xff]
        %v3228 = vld [vmem:[%s451 + $0x850] sm:$0xff]
        %v3229 = vld [vmem:[%s451 + $0x858] sm:$0xff]
        %v3230 = vld [vmem:[%s451 + $0x860] sm:$0xff]
        %v3231 = vld [vmem:[%s451 + $0x868] sm:$0xff]
        %v3232 = vld [vmem:[%s451 + $0x870] sm:$0xff]
        %v3233 = vld [vmem:[%s451 + $0x878] sm:$0xff]
        %v3234 = vld [vmem:[%s451 + $0x880] sm:$0xff]
        %v3235 = vld [vmem:[%s451 + $0x888] sm:$0xff]
        %v3236 = vld [vmem:[%s451 + $0x890] sm:$0xff]
        %v3237 = vld [vmem:[%s451 + $0x898] sm:$0xff]
        %v3238 = vld [vmem:[%s451 + $0x8a0] sm:$0xff]
        %v3239 = vld [vmem:[%s451 + $0x8a8] sm:$0xff]
        %v3240 = vld [vmem:[%s451 + $0x8b0] sm:$0xff]
        %v3241 = vld [vmem:[%s451 + $0x8b8] sm:$0xff]
        %v3242 = vld [vmem:[%s451 + $0x8c0] sm:$0xff]
        %v3243 = vld [vmem:[%s451 + $0x8c8] sm:$0xff]
        %v3244 = vld [vmem:[%s451 + $0x8d0] sm:$0xff]
        %v3245 = vld [vmem:[%s451 + $0x8d8] sm:$0xff]
        %v3246 = vld [vmem:[%s451 + $0x8e0] sm:$0xff]
        %v3247 = vld [vmem:[%s451 + $0x8e8] sm:$0xff]
        %v3248 = vld [vmem:[%s451 + $0x8f0] sm:$0xff]
        %v3249 = vld [vmem:[%s451 + $0x8f8] sm:$0xff]
        %v3250 = vld [vmem:[%s451 + $0x900] sm:$0xff]
        %v3251 = vld [vmem:[%s451 + $0x908] sm:$0xff]
        %v3252 = vld [vmem:[%s451 + $0x910] sm:$0xff]
        %v3253 = vld [vmem:[%s451 + $0x918] sm:$0xff]
        %v3254 = vld [vmem:[%s451 + $0x920] sm:$0xff]
        %v3255 = vld [vmem:[%s451 + $0x928] sm:$0xff]
        %v3256 = vld [vmem:[%s451 + $0x930] sm:$0xff]
        %v3257 = vld [vmem:[%s451 + $0x938] sm:$0xff]
        %v3258 = vld [vmem:[%s451 + $0x940] sm:$0xff]
        %v3259 = vld [vmem:[%s451 + $0x948] sm:$0xff]
        %v3260 = vld [vmem:[%s451 + $0x950] sm:$0xff]
        %v3261 = vld [vmem:[%s451 + $0x958] sm:$0xff]
        %v3262 = vld [vmem:[%s451 + $0x960] sm:$0xff]
        %v3263 = vld [vmem:[%s451 + $0x968] sm:$0xff]
        %v3264 = vld [vmem:[%s451 + $0x970] sm:$0xff]
        %v3265 = vld [vmem:[%s451 + $0x978] sm:$0xff]
        %v3266 = vld [vmem:[%s451 + $0x980] sm:$0xff]
        %v3267 = vld [vmem:[%s451 + $0x988] sm:$0xff]
        %v3268 = vld [vmem:[%s451 + $0x990] sm:$0xff]
        %v3269 = vld [vmem:[%s451 + $0x998] sm:$0xff]
        %v3270 = vld [vmem:[%s451 + $0x9a0] sm:$0xff]
        %v3271 = vld [vmem:[%s451 + $0x9a8] sm:$0xff]
        %v3272 = vld [vmem:[%s451 + $0x9b0] sm:$0xff]
        %v3273 = vld [vmem:[%s451 + $0x9b8] sm:$0xff]
        %v3274 = vld [vmem:[%s451 + $0x9c0] sm:$0xff]
        %v3275 = vld [vmem:[%s451 + $0x9c8] sm:$0xff]
        %v3276 = vld [vmem:[%s451 + $0x9d0] sm:$0xff]
        %v3277 = vld [vmem:[%s451 + $0x9d8] sm:$0xff]
        %v3278 = vld [vmem:[%s451 + $0x9e0] sm:$0xff]
        %v3279 = vld [vmem:[%s451 + $0x9e8] sm:$0xff]
        %v3280 = vld [vmem:[%s451 + $0x9f0] sm:$0xff]
        %v3281 = vld [vmem:[%s451 + $0x9f8] sm:$0xff]
        %v3282 = vld [vmem:[%s451 + $0xa00] sm:$0xff]
        %v3283 = vld [vmem:[%s451 + $0xa08] sm:$0xff]
        %v3284 = vld [vmem:[%s451 + $0xa10] sm:$0xff]
        %v3285 = vld [vmem:[%s451 + $0xa18] sm:$0xff]
        %v3286 = vld [vmem:[%s451 + $0xa20] sm:$0xff]
        %v3287 = vld [vmem:[%s451 + $0xa28] sm:$0xff]
        %v3288 = vld [vmem:[%s451 + $0xa30] sm:$0xff]
        %v3289 = vld [vmem:[%s451 + $0xa38] sm:$0xff]
        %v3290 = vld [vmem:[%s451 + $0xa40] sm:$0xff]
        %v3291 = vld [vmem:[%s451 + $0xa48] sm:$0xff]
        %v3292 = vld [vmem:[%s451 + $0xa50] sm:$0xff]
        %v3293 = vld [vmem:[%s451 + $0xa58] sm:$0xff]
        %v3294 = vld [vmem:[%s451 + $0xa60] sm:$0xff]
        %v3295 = vld [vmem:[%s451 + $0xa68] sm:$0xff]
        %v3296 = vld [vmem:[%s451 + $0xa70] sm:$0xff]
        %v3297 = vld [vmem:[%s451 + $0xa78] sm:$0xff]
        %v3298 = vld [vmem:[%s451 + $0xa80] sm:$0xff]
        %v3299 = vld [vmem:[%s451 + $0xa88] sm:$0xff]
        %v3300 = vld [vmem:[%s451 + $0xa90] sm:$0xff]
        %v3301 = vld [vmem:[%s451 + $0xa98] sm:$0xff]
        %v3302 = vld [vmem:[%s451 + $0xaa0] sm:$0xff]
        %v3303 = vld [vmem:[%s451 + $0xaa8] sm:$0xff]
        %v3304 = vld [vmem:[%s451 + $0xab0] sm:$0xff]
        %v3305 = vld [vmem:[%s451 + $0xab8] sm:$0xff]
        %v3306 = vld [vmem:[%s451 + $0xac0] sm:$0xff]
        %v3307 = vld [vmem:[%s451 + $0xac8] sm:$0xff]
        %v3308 = vld [vmem:[%s451 + $0xad0] sm:$0xff]
        %v3309 = vld [vmem:[%s451 + $0xad8] sm:$0xff]
        %v3310 = vld [vmem:[%s451 + $0xae0] sm:$0xff]
        %v3311 = vld [vmem:[%s451 + $0xae8] sm:$0xff]
        %v3312 = vld [vmem:[%s451 + $0xaf0] sm:$0xff]
        %v3313 = vld [vmem:[%s451 + $0xaf8] sm:$0xff]
        %v3314 = vld [vmem:[%s451 + $0xb00] sm:$0xff]
        %v3315 = vld [vmem:[%s451 + $0xb08] sm:$0xff]
        %v3316 = vld [vmem:[%s451 + $0xb10] sm:$0xff]
        %v3317 = vld [vmem:[%s451 + $0xb18] sm:$0xff]
        %v3318 = vld [vmem:[%s451 + $0xb20] sm:$0xff]
        %v3319 = vld [vmem:[%s451 + $0xb28] sm:$0xff]
        %v3320 = vld [vmem:[%s451 + $0xb30] sm:$0xff]
        %v3321 = vld [vmem:[%s451 + $0xb38] sm:$0xff]
        %v3322 = vld [vmem:[%s451 + $0xb40] sm:$0xff]
        %v3323 = vld [vmem:[%s451 + $0xb48] sm:$0xff]
        %v3324 = vld [vmem:[%s451 + $0xb50] sm:$0xff]
        %v3325 = vld [vmem:[%s451 + $0xb58] sm:$0xff]
        %v3326 = vld [vmem:[%s451 + $0xb60] sm:$0xff]
        %v3327 = vld [vmem:[%s451 + $0xb68] sm:$0xff]
        %v3328 = vld [vmem:[%s451 + $0xb70] sm:$0xff]
        %v3329 = vld [vmem:[%s451 + $0xb78] sm:$0xff]
        %v3330 = vld [vmem:[%s451 + $0xb80] sm:$0xff]
        %v3331 = vld [vmem:[%s451 + $0xb88] sm:$0xff]
        %v3332 = vld [vmem:[%s451 + $0xb90] sm:$0xff]
        %v3333 = vld [vmem:[%s451 + $0xb98] sm:$0xff]
        %v3334 = vld [vmem:[%s451 + $0xba0] sm:$0xff]
        %v3335 = vld [vmem:[%s451 + $0xba8] sm:$0xff]
        %v3336 = vld [vmem:[%s451 + $0xbb0] sm:$0xff]
        %v3337 = vld [vmem:[%s451 + $0xbb8] sm:$0xff]
        %v3338 = vld [vmem:[%s451 + $0xbc0] sm:$0xff]
        %v3339 = vld [vmem:[%s451 + $0xbc8] sm:$0xff]
        %v3340 = vld [vmem:[%s451 + $0xbd0] sm:$0xff]
        %v3341 = vld [vmem:[%s451 + $0xbd8] sm:$0xff]
        %v3342 = vld [vmem:[%s451 + $0xbe0] sm:$0xff]
        %v3343 = vld [vmem:[%s451 + $0xbe8] sm:$0xff]
        %v3344 = vld [vmem:[%s451 + $0xbf0] sm:$0xff]
        %v3345 = vld [vmem:[%s451 + $0xbf8] sm:$0xff]
        %v3346 = vld [vmem:[%s451 + $0xc00] sm:$0xff]
        %v3347 = vld [vmem:[%s451 + $0xc08] sm:$0xff]
        %v3348 = vld [vmem:[%s451 + $0xc10] sm:$0xff]
        %v3349 = vld [vmem:[%s451 + $0xc18] sm:$0xff]
        %v3350 = vld [vmem:[%s451 + $0xc20] sm:$0xff]
        %v3351 = vld [vmem:[%s451 + $0xc28] sm:$0xff]
        %v3352 = vld [vmem:[%s451 + $0xc30] sm:$0xff]
        %v3353 = vld [vmem:[%s451 + $0xc38] sm:$0xff]
        %v3354 = vld [vmem:[%s451 + $0xc40] sm:$0xff]
        %v3355 = vld [vmem:[%s451 + $0xc48] sm:$0xff]
        %v3356 = vld [vmem:[%s451 + $0xc50] sm:$0xff]
        %v3357 = vld [vmem:[%s451 + $0xc58] sm:$0xff]
        %v3358 = vld [vmem:[%s451 + $0xc60] sm:$0xff]
        %v3359 = vld [vmem:[%s451 + $0xc68] sm:$0xff]
        %v3360 = vld [vmem:[%s451 + $0xc70] sm:$0xff]
        %v3361 = vld [vmem:[%s451 + $0xc78] sm:$0xff]
        %v3362 = vld [vmem:[%s451 + $0xc80] sm:$0xff]
        %v3363 = vld [vmem:[%s451 + $0xc88] sm:$0xff]
        %v3364 = vld [vmem:[%s451 + $0xc90] sm:$0xff]
        %v3365 = vld [vmem:[%s451 + $0xc98] sm:$0xff]
        %v3366 = vld [vmem:[%s451 + $0xca0] sm:$0xff]
        %v3367 = vld [vmem:[%s451 + $0xca8] sm:$0xff]
        %v3368 = vld [vmem:[%s451 + $0xcb0] sm:$0xff]
        %v3369 = vld [vmem:[%s451 + $0xcb8] sm:$0xff]
        %v3370 = vld [vmem:[%s451 + $0xcc0] sm:$0xff]
        %v3371 = vld [vmem:[%s451 + $0xcc8] sm:$0xff]
        %v3372 = vld [vmem:[%s451 + $0xcd0] sm:$0xff]
        %v3373 = vld [vmem:[%s451 + $0xcd8] sm:$0xff]
        %v3374 = vld [vmem:[%s451 + $0xce0] sm:$0xff]
        %v3375 = vld [vmem:[%s451 + $0xce8] sm:$0xff]
        %v3376 = vld [vmem:[%s451 + $0xcf0] sm:$0xff]
        %v3377 = vld [vmem:[%s451 + $0xcf8] sm:$0xff]
        %v3378 = vld [vmem:[%s451 + $0xd00] sm:$0xff]
        %v3379 = vld [vmem:[%s451 + $0xd08] sm:$0xff]
        %v3380 = vld [vmem:[%s451 + $0xd10] sm:$0xff]
        %v3381 = vld [vmem:[%s451 + $0xd18] sm:$0xff]
        %v3382 = vld [vmem:[%s451 + $0xd20] sm:$0xff]
        %v3383 = vld [vmem:[%s451 + $0xd28] sm:$0xff]
        %v3384 = vld [vmem:[%s451 + $0xd30] sm:$0xff]
        %v3385 = vld [vmem:[%s451 + $0xd38] sm:$0xff]
        %v3386 = vld [vmem:[%s451 + $0xd40] sm:$0xff]
        %v3387 = vld [vmem:[%s451 + $0xd48] sm:$0xff]
        %v3388 = vld [vmem:[%s451 + $0xd50] sm:$0xff]
        %v3389 = vld [vmem:[%s451 + $0xd58] sm:$0xff]
        %v3390 = vld [vmem:[%s451 + $0xd60] sm:$0xff]
        %v3391 = vld [vmem:[%s451 + $0xd68] sm:$0xff]
        %v3392 = vld [vmem:[%s451 + $0xd70] sm:$0xff]
        %v3393 = vld [vmem:[%s451 + $0xd78] sm:$0xff]
        %v3394 = vld [vmem:[%s451 + $0xd80] sm:$0xff]
        %v3395 = vld [vmem:[%s451 + $0xd88] sm:$0xff]
        %v3396 = vld [vmem:[%s451 + $0xd90] sm:$0xff]
        %v3397 = vld [vmem:[%s451 + $0xd98] sm:$0xff]
        %v3398 = vld [vmem:[%s451 + $0xda0] sm:$0xff]
        %v3399 = vld [vmem:[%s451 + $0xda8] sm:$0xff]
        %v3400 = vld [vmem:[%s451 + $0xdb0] sm:$0xff]
        %v3401 = vld [vmem:[%s451 + $0xdb8] sm:$0xff]
        %v3402 = vld [vmem:[%s451 + $0xdc0] sm:$0xff]
        %v3403 = vld [vmem:[%s451 + $0xdc8] sm:$0xff]
        %v3404 = vld [vmem:[%s451 + $0xdd0] sm:$0xff]
        %v3405 = vld [vmem:[%s451 + $0xdd8] sm:$0xff]
        %v3406 = vld [vmem:[%s451 + $0xde0] sm:$0xff]
        %v3407 = vld [vmem:[%s451 + $0xde8] sm:$0xff]
        %v3408 = vld [vmem:[%s451 + $0xdf0] sm:$0xff]
        %v3409 = vld [vmem:[%s451 + $0xdf8] sm:$0xff]
        %v3410 = vld [vmem:[%s451 + $0xe00] sm:$0xff]
        %v3411 = vld [vmem:[%s451 + $0xe08] sm:$0xff]
        %v3412 = vld [vmem:[%s451 + $0xe10] sm:$0xff]
        %v3413 = vld [vmem:[%s451 + $0xe18] sm:$0xff]
        %v3414 = vld [vmem:[%s451 + $0xe20] sm:$0xff]
        %v3415 = vld [vmem:[%s451 + $0xe28] sm:$0xff]
        %v3416 = vld [vmem:[%s451 + $0xe30] sm:$0xff]
        %v3417 = vld [vmem:[%s451 + $0xe38] sm:$0xff]
        %v3418 = vld [vmem:[%s451 + $0xe40] sm:$0xff]
        %v3419 = vld [vmem:[%s451 + $0xe48] sm:$0xff]
        %v3420 = vld [vmem:[%s451 + $0xe50] sm:$0xff]
        %v3421 = vld [vmem:[%s451 + $0xe58] sm:$0xff]
        %v3422 = vld [vmem:[%s451 + $0xe60] sm:$0xff]
        %v3423 = vld [vmem:[%s451 + $0xe68] sm:$0xff]
        %v3424 = vld [vmem:[%s451 + $0xe70] sm:$0xff]
        %v3425 = vld [vmem:[%s451 + $0xe78] sm:$0xff]
        %v3426 = vld [vmem:[%s451 + $0xe80] sm:$0xff]
        %v3427 = vld [vmem:[%s451 + $0xe88] sm:$0xff]
        %v3428 = vld [vmem:[%s451 + $0xe90] sm:$0xff]
        %v3429 = vld [vmem:[%s451 + $0xe98] sm:$0xff]
        %v3430 = vld [vmem:[%s451 + $0xea0] sm:$0xff]
        %v3431 = vld [vmem:[%s451 + $0xea8] sm:$0xff]
        %v3432 = vld [vmem:[%s451 + $0xeb0] sm:$0xff]
        %v3433 = vld [vmem:[%s451 + $0xeb8] sm:$0xff]
        %v3434 = vld [vmem:[%s451 + $0xec0] sm:$0xff]
        %v3435 = vld [vmem:[%s451 + $0xec8] sm:$0xff]
        %v3436 = vld [vmem:[%s451 + $0xed0] sm:$0xff]
        %v3437 = vld [vmem:[%s451 + $0xed8] sm:$0xff]
        %v3438 = vld [vmem:[%s451 + $0xee0] sm:$0xff]
        %v3439 = vld [vmem:[%s451 + $0xee8] sm:$0xff]
        %v3440 = vld [vmem:[%s451 + $0xef0] sm:$0xff]
        %v3441 = vld [vmem:[%s451 + $0xef8] sm:$0xff]
        %v3442 = vld [vmem:[%s451 + $0xf00] sm:$0xff]
        %v3443 = vld [vmem:[%s451 + $0xf08] sm:$0xff]
        %v3444 = vld [vmem:[%s451 + $0xf10] sm:$0xff]
        %v3445 = vld [vmem:[%s451 + $0xf18] sm:$0xff]
        %v3446 = vld [vmem:[%s451 + $0xf20] sm:$0xff]
        %v3447 = vld [vmem:[%s451 + $0xf28] sm:$0xff]
        %v3448 = vld [vmem:[%s451 + $0xf30] sm:$0xff]
        %v3449 = vld [vmem:[%s451 + $0xf38] sm:$0xff]
        %v3450 = vld [vmem:[%s451 + $0xf40] sm:$0xff]
        %v3451 = vld [vmem:[%s451 + $0xf48] sm:$0xff]
        %v3452 = vld [vmem:[%s451 + $0xf50] sm:$0xff]
        %v3453 = vld [vmem:[%s451 + $0xf58] sm:$0xff]
        %v3454 = vld [vmem:[%s451 + $0xf60] sm:$0xff]
        %v3455 = vld [vmem:[%s451 + $0xf68] sm:$0xff]
        %v3456 = vld [vmem:[%s451 + $0xf70] sm:$0xff]
        %v3457 = vld [vmem:[%s451 + $0xf78] sm:$0xff]
        %v3458 = vld [vmem:[%s451 + $0xf80] sm:$0xff]
        %v3459 = vld [vmem:[%s451 + $0xf88] sm:$0xff]
        %v3460 = vld [vmem:[%s451 + $0xf90] sm:$0xff]
        %v3461 = vld [vmem:[%s451 + $0xf98] sm:$0xff]
        %v3462 = vld [vmem:[%s451 + $0xfa0] sm:$0xff]
        %v3463 = vld [vmem:[%s451 + $0xfa8] sm:$0xff]
        %v3464 = vld [vmem:[%s451 + $0xfb0] sm:$0xff]
        %v3465 = vld [vmem:[%s451 + $0xfb8] sm:$0xff]
        %v3466 = vld [vmem:[%s451 + $0xfc0] sm:$0xff]
        %v3467 = vld [vmem:[%s451 + $0xfc8] sm:$0xff]
        %v3468 = vld [vmem:[%s451 + $0xfd0] sm:$0xff]
        %v3469 = vld [vmem:[%s451 + $0xfd8] sm:$0xff]
        %v3470 = vld [vmem:[%s451 + $0xfe0] sm:$0xff]
        %v3471 = vld [vmem:[%s451 + $0xfe8] sm:$0xff]
        %v3472 = vld [vmem:[%s451 + $0xff0] sm:$0xff]
        %v3473 = vld [vmem:[%s451 + $0xff8] sm:$0xff]
        %v3474 = vld [vmem:[%s460] sm:$0xff]
        %v3476 = vlaneseq
        %v3477 = vshrl.u32 %v3476, 7
        %v3478 = vsub.s32 0, %v3477
        %v3479 = vrot.slane %v3474, %v3478
        %v3480 = vlaneseq
        %v3481 = vshrl.u32 %v3480, 7
        %v3482 = vsub.s32 1, %v3481
        %v3483 = vrot.slane %v3474, %v3482
        %v3484 = vlaneseq
        %v3485 = vshrl.u32 %v3484, 7
        %v3486 = vsub.s32 2, %v3485
        %v3487 = vrot.slane %v3474, %v3486
        %v3488 = vlaneseq
        %v3489 = vshrl.u32 %v3488, 7
        %v3490 = vsub.s32 3, %v3489
        %v3491 = vrot.slane %v3474, %v3490
        %v3492 = vlaneseq
        %v3493 = vshrl.u32 %v3492, 7
        %v3494 = vsub.s32 4, %v3493
        %v3495 = vrot.slane %v3474, %v3494
        %v3496 = vlaneseq
        %v3497 = vshrl.u32 %v3496, 7
        %v3498 = vsub.s32 5, %v3497
        %v3499 = vrot.slane %v3474, %v3498
        %v3500 = vlaneseq
        %v3501 = vshrl.u32 %v3500, 7
        %v3502 = vsub.s32 6, %v3501
        %v3503 = vrot.slane %v3474, %v3502
        %v3504 = vlaneseq
        %v3505 = vshrl.u32 %v3504, 7
        %v3506 = vsub.s32 7, %v3505
        %v3507 = vrot.slane %v3474, %v3506
        %v4028 = vunpack.c.l.b16 %v2962
        %v4029 = vunpack.c.h.b16 %v2962
        %v4030 = vunpack.c.l.b16 %v2963
        %v4031 = vunpack.c.h.b16 %v2963
        %v4032 = vunpack.c.l.b16 %v2964
        %v4033 = vunpack.c.h.b16 %v2964
        %v4034 = vunpack.c.l.b16 %v2965
        %v4035 = vunpack.c.h.b16 %v2965
        %v4036 = vunpack.c.l.b16 %v2966
        %v4037 = vunpack.c.h.b16 %v2966
        %v4038 = vunpack.c.l.b16 %v2967
        %v4039 = vunpack.c.h.b16 %v2967
        %v4040 = vunpack.c.l.b16 %v2968
        %v4041 = vunpack.c.h.b16 %v2968
        %v4042 = vunpack.c.l.b16 %v2969
        %v4043 = vunpack.c.h.b16 %v2969
        %v4044 = vunpack.c.l.b16 %v2970
        %v4045 = vunpack.c.h.b16 %v2970
        %v4046 = vunpack.c.l.b16 %v2971
        %v4047 = vunpack.c.h.b16 %v2971
        %v4048 = vunpack.c.l.b16 %v2972
        %v4049 = vunpack.c.h.b16 %v2972
        %v4050 = vunpack.c.l.b16 %v2973
        %v4051 = vunpack.c.h.b16 %v2973
        %v4052 = vunpack.c.l.b16 %v2974
        %v4053 = vunpack.c.h.b16 %v2974
        %v4054 = vunpack.c.l.b16 %v2975
        %v4055 = vunpack.c.h.b16 %v2975
        %v4056 = vunpack.c.l.b16 %v2976
        %v4057 = vunpack.c.h.b16 %v2976
        %v4058 = vunpack.c.l.b16 %v2977
        %v4059 = vunpack.c.h.b16 %v2977
        %v4060 = vunpack.c.l.b16 %v2978
        %v4061 = vunpack.c.h.b16 %v2978
        %v4062 = vunpack.c.l.b16 %v2979
        %v4063 = vunpack.c.h.b16 %v2979
        %v4064 = vunpack.c.l.b16 %v2980
        %v4065 = vunpack.c.h.b16 %v2980
        %v4066 = vunpack.c.l.b16 %v2981
        %v4067 = vunpack.c.h.b16 %v2981
        %v4068 = vunpack.c.l.b16 %v2982
        %v4069 = vunpack.c.h.b16 %v2982
        %v4070 = vunpack.c.l.b16 %v2983
        %v4071 = vunpack.c.h.b16 %v2983
        %v4072 = vunpack.c.l.b16 %v2984
        %v4073 = vunpack.c.h.b16 %v2984
        %v4074 = vunpack.c.l.b16 %v2985
        %v4075 = vunpack.c.h.b16 %v2985
        %v4076 = vunpack.c.l.b16 %v2986
        %v4077 = vunpack.c.h.b16 %v2986
        %v4078 = vunpack.c.l.b16 %v2987
        %v4079 = vunpack.c.h.b16 %v2987
        %v4080 = vunpack.c.l.b16 %v2988
        %v4081 = vunpack.c.h.b16 %v2988
        %v4082 = vunpack.c.l.b16 %v2989
        %v4083 = vunpack.c.h.b16 %v2989
        %v4084 = vunpack.c.l.b16 %v2990
        %v4085 = vunpack.c.h.b16 %v2990
        %v4086 = vunpack.c.l.b16 %v2991
        %v4087 = vunpack.c.h.b16 %v2991
        %v4088 = vunpack.c.l.b16 %v2992
        %v4089 = vunpack.c.h.b16 %v2992
        %v4090 = vunpack.c.l.b16 %v2993
        %v4091 = vunpack.c.h.b16 %v2993
        %v4092 = vunpack.c.l.b16 %v2994
        %v4093 = vunpack.c.h.b16 %v2994
        %v4094 = vunpack.c.l.b16 %v2995
        %v4095 = vunpack.c.h.b16 %v2995
        %v4096 = vunpack.c.l.b16 %v2996
        %v4097 = vunpack.c.h.b16 %v2996
        %v4098 = vunpack.c.l.b16 %v2997
        %v4099 = vunpack.c.h.b16 %v2997
        %v4100 = vunpack.c.l.b16 %v2998
        %v4101 = vunpack.c.h.b16 %v2998
        %v4102 = vunpack.c.l.b16 %v2999
        %v4103 = vunpack.c.h.b16 %v2999
        %v4104 = vunpack.c.l.b16 %v3000
        %v4105 = vunpack.c.h.b16 %v3000
        %v4106 = vunpack.c.l.b16 %v3001
        %v4107 = vunpack.c.h.b16 %v3001
        %v4108 = vunpack.c.l.b16 %v3002
        %v4109 = vunpack.c.h.b16 %v3002
        %v4110 = vunpack.c.l.b16 %v3003
        %v4111 = vunpack.c.h.b16 %v3003
        %v4112 = vunpack.c.l.b16 %v3004
        %v4113 = vunpack.c.h.b16 %v3004
        %v4114 = vunpack.c.l.b16 %v3005
        %v4115 = vunpack.c.h.b16 %v3005
        %v4116 = vunpack.c.l.b16 %v3006
        %v4117 = vunpack.c.h.b16 %v3006
        %v4118 = vunpack.c.l.b16 %v3007
        %v4119 = vunpack.c.h.b16 %v3007
        %v4120 = vunpack.c.l.b16 %v3008
        %v4121 = vunpack.c.h.b16 %v3008
        %v4122 = vunpack.c.l.b16 %v3009
        %v4123 = vunpack.c.h.b16 %v3009
        %v4124 = vunpack.c.l.b16 %v3010
        %v4125 = vunpack.c.h.b16 %v3010
        %v4126 = vunpack.c.l.b16 %v3011
        %v4127 = vunpack.c.h.b16 %v3011
        %v4128 = vunpack.c.l.b16 %v3012
        %v4129 = vunpack.c.h.b16 %v3012
        %v4130 = vunpack.c.l.b16 %v3013
        %v4131 = vunpack.c.h.b16 %v3013
        %v4132 = vunpack.c.l.b16 %v3014
        %v4133 = vunpack.c.h.b16 %v3014
        %v4134 = vunpack.c.l.b16 %v3015
        %v4135 = vunpack.c.h.b16 %v3015
        %v4136 = vunpack.c.l.b16 %v3016
        %v4137 = vunpack.c.h.b16 %v3016
        %v4138 = vunpack.c.l.b16 %v3017
        %v4139 = vunpack.c.h.b16 %v3017
        %v4140 = vunpack.c.l.b16 %v3018
        %v4141 = vunpack.c.h.b16 %v3018
        %v4142 = vunpack.c.l.b16 %v3019
        %v4143 = vunpack.c.h.b16 %v3019
        %v4144 = vunpack.c.l.b16 %v3020
        %v4145 = vunpack.c.h.b16 %v3020
        %v4146 = vunpack.c.l.b16 %v3021
        %v4147 = vunpack.c.h.b16 %v3021
        %v4148 = vunpack.c.l.b16 %v3022
        %v4149 = vunpack.c.h.b16 %v3022
        %v4150 = vunpack.c.l.b16 %v3023
        %v4151 = vunpack.c.h.b16 %v3023
        %v4152 = vunpack.c.l.b16 %v3024
        %v4153 = vunpack.c.h.b16 %v3024
        %v4154 = vunpack.c.l.b16 %v3025
        %v4155 = vunpack.c.h.b16 %v3025
        %v4156 = vunpack.c.l.b16 %v3026
        %v4157 = vunpack.c.h.b16 %v3026
        %v4158 = vunpack.c.l.b16 %v3027
        %v4159 = vunpack.c.h.b16 %v3027
        %v4160 = vunpack.c.l.b16 %v3028
        %v4161 = vunpack.c.h.b16 %v3028
        %v4162 = vunpack.c.l.b16 %v3029
        %v4163 = vunpack.c.h.b16 %v3029
        %v4164 = vunpack.c.l.b16 %v3030
        %v4165 = vunpack.c.h.b16 %v3030
        %v4166 = vunpack.c.l.b16 %v3031
        %v4167 = vunpack.c.h.b16 %v3031
        %v4168 = vunpack.c.l.b16 %v3032
        %v4169 = vunpack.c.h.b16 %v3032
        %v4170 = vunpack.c.l.b16 %v3033
        %v4171 = vunpack.c.h.b16 %v3033
        %v4172 = vunpack.c.l.b16 %v3034
        %v4173 = vunpack.c.h.b16 %v3034
        %v4174 = vunpack.c.l.b16 %v3035
        %v4175 = vunpack.c.h.b16 %v3035
        %v4176 = vunpack.c.l.b16 %v3036
        %v4177 = vunpack.c.h.b16 %v3036
        %v4178 = vunpack.c.l.b16 %v3037
        %v4179 = vunpack.c.h.b16 %v3037
        %v4180 = vunpack.c.l.b16 %v3038
        %v4181 = vunpack.c.h.b16 %v3038
        %v4182 = vunpack.c.l.b16 %v3039
        %v4183 = vunpack.c.h.b16 %v3039
        %v4184 = vunpack.c.l.b16 %v3040
        %v4185 = vunpack.c.h.b16 %v3040
        %v4186 = vunpack.c.l.b16 %v3041
        %v4187 = vunpack.c.h.b16 %v3041
        %v4188 = vunpack.c.l.b16 %v3042
        %v4189 = vunpack.c.h.b16 %v3042
        %v4190 = vunpack.c.l.b16 %v3043
        %v4191 = vunpack.c.h.b16 %v3043
        %v4192 = vunpack.c.l.b16 %v3044
        %v4193 = vunpack.c.h.b16 %v3044
        %v4194 = vunpack.c.l.b16 %v3045
        %v4195 = vunpack.c.h.b16 %v3045
        %v4196 = vunpack.c.l.b16 %v3046
        %v4197 = vunpack.c.h.b16 %v3046
        %v4198 = vunpack.c.l.b16 %v3047
        %v4199 = vunpack.c.h.b16 %v3047
        %v4200 = vunpack.c.l.b16 %v3048
        %v4201 = vunpack.c.h.b16 %v3048
        %v4202 = vunpack.c.l.b16 %v3049
        %v4203 = vunpack.c.h.b16 %v3049
        %v4204 = vunpack.c.l.b16 %v3050
        %v4205 = vunpack.c.h.b16 %v3050
        %v4206 = vunpack.c.l.b16 %v3051
        %v4207 = vunpack.c.h.b16 %v3051
        %v4208 = vunpack.c.l.b16 %v3052
        %v4209 = vunpack.c.h.b16 %v3052
        %v4210 = vunpack.c.l.b16 %v3053
        %v4211 = vunpack.c.h.b16 %v3053
        %v4212 = vunpack.c.l.b16 %v3054
        %v4213 = vunpack.c.h.b16 %v3054
        %v4214 = vunpack.c.l.b16 %v3055
        %v4215 = vunpack.c.h.b16 %v3055
        %v4216 = vunpack.c.l.b16 %v3056
        %v4217 = vunpack.c.h.b16 %v3056
        %v4218 = vunpack.c.l.b16 %v3057
        %v4219 = vunpack.c.h.b16 %v3057
        %v4220 = vunpack.c.l.b16 %v3058
        %v4221 = vunpack.c.h.b16 %v3058
        %v4222 = vunpack.c.l.b16 %v3059
        %v4223 = vunpack.c.h.b16 %v3059
        %v4224 = vunpack.c.l.b16 %v3060
        %v4225 = vunpack.c.h.b16 %v3060
        %v4226 = vunpack.c.l.b16 %v3061
        %v4227 = vunpack.c.h.b16 %v3061
        %v4228 = vunpack.c.l.b16 %v3062
        %v4229 = vunpack.c.h.b16 %v3062
        %v4230 = vunpack.c.l.b16 %v3063
        %v4231 = vunpack.c.h.b16 %v3063
        %v4232 = vunpack.c.l.b16 %v3064
        %v4233 = vunpack.c.h.b16 %v3064
        %v4234 = vunpack.c.l.b16 %v3065
        %v4235 = vunpack.c.h.b16 %v3065
        %v4236 = vunpack.c.l.b16 %v3066
        %v4237 = vunpack.c.h.b16 %v3066
        %v4238 = vunpack.c.l.b16 %v3067
        %v4239 = vunpack.c.h.b16 %v3067
        %v4240 = vunpack.c.l.b16 %v3068
        %v4241 = vunpack.c.h.b16 %v3068
        %v4242 = vunpack.c.l.b16 %v3069
        %v4243 = vunpack.c.h.b16 %v3069
        %v4244 = vunpack.c.l.b16 %v3070
        %v4245 = vunpack.c.h.b16 %v3070
        %v4246 = vunpack.c.l.b16 %v3071
        %v4247 = vunpack.c.h.b16 %v3071
        %v4248 = vunpack.c.l.b16 %v3072
        %v4249 = vunpack.c.h.b16 %v3072
        %v4250 = vunpack.c.l.b16 %v3073
        %v4251 = vunpack.c.h.b16 %v3073
        %v4252 = vunpack.c.l.b16 %v3074
        %v4253 = vunpack.c.h.b16 %v3074
        %v4254 = vunpack.c.l.b16 %v3075
        %v4255 = vunpack.c.h.b16 %v3075
        %v4256 = vunpack.c.l.b16 %v3076
        %v4257 = vunpack.c.h.b16 %v3076
        %v4258 = vunpack.c.l.b16 %v3077
        %v4259 = vunpack.c.h.b16 %v3077
        %v4260 = vunpack.c.l.b16 %v3078
        %v4261 = vunpack.c.h.b16 %v3078
        %v4262 = vunpack.c.l.b16 %v3079
        %v4263 = vunpack.c.h.b16 %v3079
        %v4264 = vunpack.c.l.b16 %v3080
        %v4265 = vunpack.c.h.b16 %v3080
        %v4266 = vunpack.c.l.b16 %v3081
        %v4267 = vunpack.c.h.b16 %v3081
        %v4268 = vunpack.c.l.b16 %v3082
        %v4269 = vunpack.c.h.b16 %v3082
        %v4270 = vunpack.c.l.b16 %v3083
        %v4271 = vunpack.c.h.b16 %v3083
        %v4272 = vunpack.c.l.b16 %v3084
        %v4273 = vunpack.c.h.b16 %v3084
        %v4274 = vunpack.c.l.b16 %v3085
        %v4275 = vunpack.c.h.b16 %v3085
        %v4276 = vunpack.c.l.b16 %v3086
        %v4277 = vunpack.c.h.b16 %v3086
        %v4278 = vunpack.c.l.b16 %v3087
        %v4279 = vunpack.c.h.b16 %v3087
        %v4280 = vunpack.c.l.b16 %v3088
        %v4281 = vunpack.c.h.b16 %v3088
        %v4282 = vunpack.c.l.b16 %v3089
        %v4283 = vunpack.c.h.b16 %v3089
        %v4284 = vunpack.c.l.b16 %v3090
        %v4285 = vunpack.c.h.b16 %v3090
        %v4286 = vunpack.c.l.b16 %v3091
        %v4287 = vunpack.c.h.b16 %v3091
        %v4288 = vunpack.c.l.b16 %v3092
        %v4289 = vunpack.c.h.b16 %v3092
        %v4290 = vunpack.c.l.b16 %v3093
        %v4291 = vunpack.c.h.b16 %v3093
        %v4292 = vunpack.c.l.b16 %v3094
        %v4293 = vunpack.c.h.b16 %v3094
        %v4294 = vunpack.c.l.b16 %v3095
        %v4295 = vunpack.c.h.b16 %v3095
        %v4296 = vunpack.c.l.b16 %v3096
        %v4297 = vunpack.c.h.b16 %v3096
        %v4298 = vunpack.c.l.b16 %v3097
        %v4299 = vunpack.c.h.b16 %v3097
        %v4300 = vunpack.c.l.b16 %v3098
        %v4301 = vunpack.c.h.b16 %v3098
        %v4302 = vunpack.c.l.b16 %v3099
        %v4303 = vunpack.c.h.b16 %v3099
        %v4304 = vunpack.c.l.b16 %v3100
        %v4305 = vunpack.c.h.b16 %v3100
        %v4306 = vunpack.c.l.b16 %v3101
        %v4307 = vunpack.c.h.b16 %v3101
        %v4308 = vunpack.c.l.b16 %v3102
        %v4309 = vunpack.c.h.b16 %v3102
        %v4310 = vunpack.c.l.b16 %v3103
        %v4311 = vunpack.c.h.b16 %v3103
        %v4312 = vunpack.c.l.b16 %v3104
        %v4313 = vunpack.c.h.b16 %v3104
        %v4314 = vunpack.c.l.b16 %v3105
        %v4315 = vunpack.c.h.b16 %v3105
        %v4316 = vunpack.c.l.b16 %v3106
        %v4317 = vunpack.c.h.b16 %v3106
        %v4318 = vunpack.c.l.b16 %v3107
        %v4319 = vunpack.c.h.b16 %v3107
        %v4320 = vunpack.c.l.b16 %v3108
        %v4321 = vunpack.c.h.b16 %v3108
        %v4322 = vunpack.c.l.b16 %v3109
        %v4323 = vunpack.c.h.b16 %v3109
        %v4324 = vunpack.c.l.b16 %v3110
        %v4325 = vunpack.c.h.b16 %v3110
        %v4326 = vunpack.c.l.b16 %v3111
        %v4327 = vunpack.c.h.b16 %v3111
        %v4328 = vunpack.c.l.b16 %v3112
        %v4329 = vunpack.c.h.b16 %v3112
        %v4330 = vunpack.c.l.b16 %v3113
        %v4331 = vunpack.c.h.b16 %v3113
        %v4332 = vunpack.c.l.b16 %v3114
        %v4333 = vunpack.c.h.b16 %v3114
        %v4334 = vunpack.c.l.b16 %v3115
        %v4335 = vunpack.c.h.b16 %v3115
        %v4336 = vunpack.c.l.b16 %v3116
        %v4337 = vunpack.c.h.b16 %v3116
        %v4338 = vunpack.c.l.b16 %v3117
        %v4339 = vunpack.c.h.b16 %v3117
        %v4340 = vunpack.c.l.b16 %v3118
        %v4341 = vunpack.c.h.b16 %v3118
        %v4342 = vunpack.c.l.b16 %v3119
        %v4343 = vunpack.c.h.b16 %v3119
        %v4344 = vunpack.c.l.b16 %v3120
        %v4345 = vunpack.c.h.b16 %v3120
        %v4346 = vunpack.c.l.b16 %v3121
        %v4347 = vunpack.c.h.b16 %v3121
        %v4348 = vunpack.c.l.b16 %v3122
        %v4349 = vunpack.c.h.b16 %v3122
        %v4350 = vunpack.c.l.b16 %v3123
        %v4351 = vunpack.c.h.b16 %v3123
        %v4352 = vunpack.c.l.b16 %v3124
        %v4353 = vunpack.c.h.b16 %v3124
        %v4354 = vunpack.c.l.b16 %v3125
        %v4355 = vunpack.c.h.b16 %v3125
        %v4356 = vunpack.c.l.b16 %v3126
        %v4357 = vunpack.c.h.b16 %v3126
        %v4358 = vunpack.c.l.b16 %v3127
        %v4359 = vunpack.c.h.b16 %v3127
        %v4360 = vunpack.c.l.b16 %v3128
        %v4361 = vunpack.c.h.b16 %v3128
        %v4362 = vunpack.c.l.b16 %v3129
        %v4363 = vunpack.c.h.b16 %v3129
        %v4364 = vunpack.c.l.b16 %v3130
        %v4365 = vunpack.c.h.b16 %v3130
        %v4366 = vunpack.c.l.b16 %v3131
        %v4367 = vunpack.c.h.b16 %v3131
        %v4368 = vunpack.c.l.b16 %v3132
        %v4369 = vunpack.c.h.b16 %v3132
        %v4370 = vunpack.c.l.b16 %v3133
        %v4371 = vunpack.c.h.b16 %v3133
        %v4372 = vunpack.c.l.b16 %v3134
        %v4373 = vunpack.c.h.b16 %v3134
        %v4374 = vunpack.c.l.b16 %v3135
        %v4375 = vunpack.c.h.b16 %v3135
        %v4376 = vunpack.c.l.b16 %v3136
        %v4377 = vunpack.c.h.b16 %v3136
        %v4378 = vunpack.c.l.b16 %v3137
        %v4379 = vunpack.c.h.b16 %v3137
        %v4380 = vunpack.c.l.b16 %v3138
        %v4381 = vunpack.c.h.b16 %v3138
        %v4382 = vunpack.c.l.b16 %v3139
        %v4383 = vunpack.c.h.b16 %v3139
        %v4384 = vunpack.c.l.b16 %v3140
        %v4385 = vunpack.c.h.b16 %v3140
        %v4386 = vunpack.c.l.b16 %v3141
        %v4387 = vunpack.c.h.b16 %v3141
        %v4388 = vunpack.c.l.b16 %v3142
        %v4389 = vunpack.c.h.b16 %v3142
        %v4390 = vunpack.c.l.b16 %v3143
        %v4391 = vunpack.c.h.b16 %v3143
        %v4392 = vunpack.c.l.b16 %v3144
        %v4393 = vunpack.c.h.b16 %v3144
        %v4394 = vunpack.c.l.b16 %v3145
        %v4395 = vunpack.c.h.b16 %v3145
        %v4396 = vunpack.c.l.b16 %v3146
        %v4397 = vunpack.c.h.b16 %v3146
        %v4398 = vunpack.c.l.b16 %v3147
        %v4399 = vunpack.c.h.b16 %v3147
        %v4400 = vunpack.c.l.b16 %v3148
        %v4401 = vunpack.c.h.b16 %v3148
        %v4402 = vunpack.c.l.b16 %v3149
        %v4403 = vunpack.c.h.b16 %v3149
        %v4404 = vunpack.c.l.b16 %v3150
        %v4405 = vunpack.c.h.b16 %v3150
        %v4406 = vunpack.c.l.b16 %v3151
        %v4407 = vunpack.c.h.b16 %v3151
        %v4408 = vunpack.c.l.b16 %v3152
        %v4409 = vunpack.c.h.b16 %v3152
        %v4410 = vunpack.c.l.b16 %v3153
        %v4411 = vunpack.c.h.b16 %v3153
        %v4412 = vunpack.c.l.b16 %v3154
        %v4413 = vunpack.c.h.b16 %v3154
        %v4414 = vunpack.c.l.b16 %v3155
        %v4415 = vunpack.c.h.b16 %v3155
        %v4416 = vunpack.c.l.b16 %v3156
        %v4417 = vunpack.c.h.b16 %v3156
        %v4418 = vunpack.c.l.b16 %v3157
        %v4419 = vunpack.c.h.b16 %v3157
        %v4420 = vunpack.c.l.b16 %v3158
        %v4421 = vunpack.c.h.b16 %v3158
        %v4422 = vunpack.c.l.b16 %v3159
        %v4423 = vunpack.c.h.b16 %v3159
        %v4424 = vunpack.c.l.b16 %v3160
        %v4425 = vunpack.c.h.b16 %v3160
        %v4426 = vunpack.c.l.b16 %v3161
        %v4427 = vunpack.c.h.b16 %v3161
        %v4428 = vunpack.c.l.b16 %v3162
        %v4429 = vunpack.c.h.b16 %v3162
        %v4430 = vunpack.c.l.b16 %v3163
        %v4431 = vunpack.c.h.b16 %v3163
        %v4432 = vunpack.c.l.b16 %v3164
        %v4433 = vunpack.c.h.b16 %v3164
        %v4434 = vunpack.c.l.b16 %v3165
        %v4435 = vunpack.c.h.b16 %v3165
        %v4436 = vunpack.c.l.b16 %v3166
        %v4437 = vunpack.c.h.b16 %v3166
        %v4438 = vunpack.c.l.b16 %v3167
        %v4439 = vunpack.c.h.b16 %v3167
        %v4440 = vunpack.c.l.b16 %v3168
        %v4441 = vunpack.c.h.b16 %v3168
        %v4442 = vunpack.c.l.b16 %v3169
        %v4443 = vunpack.c.h.b16 %v3169
        %v4444 = vunpack.c.l.b16 %v3170
        %v4445 = vunpack.c.h.b16 %v3170
        %v4446 = vunpack.c.l.b16 %v3171
        %v4447 = vunpack.c.h.b16 %v3171
        %v4448 = vunpack.c.l.b16 %v3172
        %v4449 = vunpack.c.h.b16 %v3172
        %v4450 = vunpack.c.l.b16 %v3173
        %v4451 = vunpack.c.h.b16 %v3173
        %v4452 = vunpack.c.l.b16 %v3174
        %v4453 = vunpack.c.h.b16 %v3174
        %v4454 = vunpack.c.l.b16 %v3175
        %v4455 = vunpack.c.h.b16 %v3175
        %v4456 = vunpack.c.l.b16 %v3176
        %v4457 = vunpack.c.h.b16 %v3176
        %v4458 = vunpack.c.l.b16 %v3177
        %v4459 = vunpack.c.h.b16 %v3177
        %v4460 = vunpack.c.l.b16 %v3178
        %v4461 = vunpack.c.h.b16 %v3178
        %v4462 = vunpack.c.l.b16 %v3179
        %v4463 = vunpack.c.h.b16 %v3179
        %v4464 = vunpack.c.l.b16 %v3180
        %v4465 = vunpack.c.h.b16 %v3180
        %v4466 = vunpack.c.l.b16 %v3181
        %v4467 = vunpack.c.h.b16 %v3181
        %v4468 = vunpack.c.l.b16 %v3182
        %v4469 = vunpack.c.h.b16 %v3182
        %v4470 = vunpack.c.l.b16 %v3183
        %v4471 = vunpack.c.h.b16 %v3183
        %v4472 = vunpack.c.l.b16 %v3184
        %v4473 = vunpack.c.h.b16 %v3184
        %v4474 = vunpack.c.l.b16 %v3185
        %v4475 = vunpack.c.h.b16 %v3185
        %v4476 = vunpack.c.l.b16 %v3186
        %v4477 = vunpack.c.h.b16 %v3186
        %v4478 = vunpack.c.l.b16 %v3187
        %v4479 = vunpack.c.h.b16 %v3187
        %v4480 = vunpack.c.l.b16 %v3188
        %v4481 = vunpack.c.h.b16 %v3188
        %v4482 = vunpack.c.l.b16 %v3189
        %v4483 = vunpack.c.h.b16 %v3189
        %v4484 = vunpack.c.l.b16 %v3190
        %v4485 = vunpack.c.h.b16 %v3190
        %v4486 = vunpack.c.l.b16 %v3191
        %v4487 = vunpack.c.h.b16 %v3191
        %v4488 = vunpack.c.l.b16 %v3192
        %v4489 = vunpack.c.h.b16 %v3192
        %v4490 = vunpack.c.l.b16 %v3193
        %v4491 = vunpack.c.h.b16 %v3193
        %v4492 = vunpack.c.l.b16 %v3194
        %v4493 = vunpack.c.h.b16 %v3194
        %v4494 = vunpack.c.l.b16 %v3195
        %v4495 = vunpack.c.h.b16 %v3195
        %v4496 = vunpack.c.l.b16 %v3196
        %v4497 = vunpack.c.h.b16 %v3196
        %v4498 = vunpack.c.l.b16 %v3197
        %v4499 = vunpack.c.h.b16 %v3197
        %v4500 = vunpack.c.l.b16 %v3198
        %v4501 = vunpack.c.h.b16 %v3198
        %v4502 = vunpack.c.l.b16 %v3199
        %v4503 = vunpack.c.h.b16 %v3199
        %v4504 = vunpack.c.l.b16 %v3200
        %v4505 = vunpack.c.h.b16 %v3200
        %v4506 = vunpack.c.l.b16 %v3201
        %v4507 = vunpack.c.h.b16 %v3201
        %v4508 = vunpack.c.l.b16 %v3202
        %v4509 = vunpack.c.h.b16 %v3202
        %v4510 = vunpack.c.l.b16 %v3203
        %v4511 = vunpack.c.h.b16 %v3203
        %v4512 = vunpack.c.l.b16 %v3204
        %v4513 = vunpack.c.h.b16 %v3204
        %v4514 = vunpack.c.l.b16 %v3205
        %v4515 = vunpack.c.h.b16 %v3205
        %v4516 = vunpack.c.l.b16 %v3206
        %v4517 = vunpack.c.h.b16 %v3206
        %v4518 = vunpack.c.l.b16 %v3207
        %v4519 = vunpack.c.h.b16 %v3207
        %v4520 = vunpack.c.l.b16 %v3208
        %v4521 = vunpack.c.h.b16 %v3208
        %v4522 = vunpack.c.l.b16 %v3209
        %v4523 = vunpack.c.h.b16 %v3209
        %v4524 = vunpack.c.l.b16 %v3210
        %v4525 = vunpack.c.h.b16 %v3210
        %v4526 = vunpack.c.l.b16 %v3211
        %v4527 = vunpack.c.h.b16 %v3211
        %v4528 = vunpack.c.l.b16 %v3212
        %v4529 = vunpack.c.h.b16 %v3212
        %v4530 = vunpack.c.l.b16 %v3213
        %v4531 = vunpack.c.h.b16 %v3213
        %v4532 = vunpack.c.l.b16 %v3214
        %v4533 = vunpack.c.h.b16 %v3214
        %v4534 = vunpack.c.l.b16 %v3215
        %v4535 = vunpack.c.h.b16 %v3215
        %v4536 = vunpack.c.l.b16 %v3216
        %v4537 = vunpack.c.h.b16 %v3216
        %v4538 = vunpack.c.l.b16 %v3217
        %v4539 = vunpack.c.h.b16 %v3217
        %v4540 = vunpack.c.l.b16 %v3218
        %v4541 = vunpack.c.h.b16 %v3218
        %v4542 = vunpack.c.l.b16 %v3219
        %v4543 = vunpack.c.h.b16 %v3219
        %v4544 = vunpack.c.l.b16 %v3220
        %v4545 = vunpack.c.h.b16 %v3220
        %v4546 = vunpack.c.l.b16 %v3221
        %v4547 = vunpack.c.h.b16 %v3221
        %v4548 = vunpack.c.l.b16 %v3222
        %v4549 = vunpack.c.h.b16 %v3222
        %v4550 = vunpack.c.l.b16 %v3223
        %v4551 = vunpack.c.h.b16 %v3223
        %v4552 = vunpack.c.l.b16 %v3224
        %v4553 = vunpack.c.h.b16 %v3224
        %v4554 = vunpack.c.l.b16 %v3225
        %v4555 = vunpack.c.h.b16 %v3225
        %v4556 = vunpack.c.l.b16 %v3226
        %v4557 = vunpack.c.h.b16 %v3226
        %v4558 = vunpack.c.l.b16 %v3227
        %v4559 = vunpack.c.h.b16 %v3227
        %v4560 = vunpack.c.l.b16 %v3228
        %v4561 = vunpack.c.h.b16 %v3228
        %v4562 = vunpack.c.l.b16 %v3229
        %v4563 = vunpack.c.h.b16 %v3229
        %v4564 = vunpack.c.l.b16 %v3230
        %v4565 = vunpack.c.h.b16 %v3230
        %v4566 = vunpack.c.l.b16 %v3231
        %v4567 = vunpack.c.h.b16 %v3231
        %v4568 = vunpack.c.l.b16 %v3232
        %v4569 = vunpack.c.h.b16 %v3232
        %v4570 = vunpack.c.l.b16 %v3233
        %v4571 = vunpack.c.h.b16 %v3233
        %v4572 = vunpack.c.l.b16 %v3234
        %v4573 = vunpack.c.h.b16 %v3234
        %v4574 = vunpack.c.l.b16 %v3235
        %v4575 = vunpack.c.h.b16 %v3235
        %v4576 = vunpack.c.l.b16 %v3236
        %v4577 = vunpack.c.h.b16 %v3236
        %v4578 = vunpack.c.l.b16 %v3237
        %v4579 = vunpack.c.h.b16 %v3237
        %v4580 = vunpack.c.l.b16 %v3238
        %v4581 = vunpack.c.h.b16 %v3238
        %v4582 = vunpack.c.l.b16 %v3239
        %v4583 = vunpack.c.h.b16 %v3239
        %v4584 = vunpack.c.l.b16 %v3240
        %v4585 = vunpack.c.h.b16 %v3240
        %v4586 = vunpack.c.l.b16 %v3241
        %v4587 = vunpack.c.h.b16 %v3241
        %v4588 = vunpack.c.l.b16 %v3242
        %v4589 = vunpack.c.h.b16 %v3242
        %v4590 = vunpack.c.l.b16 %v3243
        %v4591 = vunpack.c.h.b16 %v3243
        %v4592 = vunpack.c.l.b16 %v3244
        %v4593 = vunpack.c.h.b16 %v3244
        %v4594 = vunpack.c.l.b16 %v3245
        %v4595 = vunpack.c.h.b16 %v3245
        %v4596 = vunpack.c.l.b16 %v3246
        %v4597 = vunpack.c.h.b16 %v3246
        %v4598 = vunpack.c.l.b16 %v3247
        %v4599 = vunpack.c.h.b16 %v3247
        %v4600 = vunpack.c.l.b16 %v3248
        %v4601 = vunpack.c.h.b16 %v3248
        %v4602 = vunpack.c.l.b16 %v3249
        %v4603 = vunpack.c.h.b16 %v3249
        %v4604 = vunpack.c.l.b16 %v3250
        %v4605 = vunpack.c.h.b16 %v3250
        %v4606 = vunpack.c.l.b16 %v3251
        %v4607 = vunpack.c.h.b16 %v3251
        %v4608 = vunpack.c.l.b16 %v3252
        %v4609 = vunpack.c.h.b16 %v3252
        %v4610 = vunpack.c.l.b16 %v3253
        %v4611 = vunpack.c.h.b16 %v3253
        %v4612 = vunpack.c.l.b16 %v3254
        %v4613 = vunpack.c.h.b16 %v3254
        %v4614 = vunpack.c.l.b16 %v3255
        %v4615 = vunpack.c.h.b16 %v3255
        %v4616 = vunpack.c.l.b16 %v3256
        %v4617 = vunpack.c.h.b16 %v3256
        %v4618 = vunpack.c.l.b16 %v3257
        %v4619 = vunpack.c.h.b16 %v3257
        %v4620 = vunpack.c.l.b16 %v3258
        %v4621 = vunpack.c.h.b16 %v3258
        %v4622 = vunpack.c.l.b16 %v3259
        %v4623 = vunpack.c.h.b16 %v3259
        %v4624 = vunpack.c.l.b16 %v3260
        %v4625 = vunpack.c.h.b16 %v3260
        %v4626 = vunpack.c.l.b16 %v3261
        %v4627 = vunpack.c.h.b16 %v3261
        %v4628 = vunpack.c.l.b16 %v3262
        %v4629 = vunpack.c.h.b16 %v3262
        %v4630 = vunpack.c.l.b16 %v3263
        %v4631 = vunpack.c.h.b16 %v3263
        %v4632 = vunpack.c.l.b16 %v3264
        %v4633 = vunpack.c.h.b16 %v3264
        %v4634 = vunpack.c.l.b16 %v3265
        %v4635 = vunpack.c.h.b16 %v3265
        %v4636 = vunpack.c.l.b16 %v3266
        %v4637 = vunpack.c.h.b16 %v3266
        %v4638 = vunpack.c.l.b16 %v3267
        %v4639 = vunpack.c.h.b16 %v3267
        %v4640 = vunpack.c.l.b16 %v3268
        %v4641 = vunpack.c.h.b16 %v3268
        %v4642 = vunpack.c.l.b16 %v3269
        %v4643 = vunpack.c.h.b16 %v3269
        %v4644 = vunpack.c.l.b16 %v3270
        %v4645 = vunpack.c.h.b16 %v3270
        %v4646 = vunpack.c.l.b16 %v3271
        %v4647 = vunpack.c.h.b16 %v3271
        %v4648 = vunpack.c.l.b16 %v3272
        %v4649 = vunpack.c.h.b16 %v3272
        %v4650 = vunpack.c.l.b16 %v3273
        %v4651 = vunpack.c.h.b16 %v3273
        %v4652 = vunpack.c.l.b16 %v3274
        %v4653 = vunpack.c.h.b16 %v3274
        %v4654 = vunpack.c.l.b16 %v3275
        %v4655 = vunpack.c.h.b16 %v3275
        %v4656 = vunpack.c.l.b16 %v3276
        %v4657 = vunpack.c.h.b16 %v3276
        %v4658 = vunpack.c.l.b16 %v3277
        %v4659 = vunpack.c.h.b16 %v3277
        %v4660 = vunpack.c.l.b16 %v3278
        %v4661 = vunpack.c.h.b16 %v3278
        %v4662 = vunpack.c.l.b16 %v3279
        %v4663 = vunpack.c.h.b16 %v3279
        %v4664 = vunpack.c.l.b16 %v3280
        %v4665 = vunpack.c.h.b16 %v3280
        %v4666 = vunpack.c.l.b16 %v3281
        %v4667 = vunpack.c.h.b16 %v3281
        %v4668 = vunpack.c.l.b16 %v3282
        %v4669 = vunpack.c.h.b16 %v3282
        %v4670 = vunpack.c.l.b16 %v3283
        %v4671 = vunpack.c.h.b16 %v3283
        %v4672 = vunpack.c.l.b16 %v3284
        %v4673 = vunpack.c.h.b16 %v3284
        %v4674 = vunpack.c.l.b16 %v3285
        %v4675 = vunpack.c.h.b16 %v3285
        %v4676 = vunpack.c.l.b16 %v3286
        %v4677 = vunpack.c.h.b16 %v3286
        %v4678 = vunpack.c.l.b16 %v3287
        %v4679 = vunpack.c.h.b16 %v3287
        %v4680 = vunpack.c.l.b16 %v3288
        %v4681 = vunpack.c.h.b16 %v3288
        %v4682 = vunpack.c.l.b16 %v3289
        %v4683 = vunpack.c.h.b16 %v3289
        %v4684 = vunpack.c.l.b16 %v3290
        %v4685 = vunpack.c.h.b16 %v3290
        %v4686 = vunpack.c.l.b16 %v3291
        %v4687 = vunpack.c.h.b16 %v3291
        %v4688 = vunpack.c.l.b16 %v3292
        %v4689 = vunpack.c.h.b16 %v3292
        %v4690 = vunpack.c.l.b16 %v3293
        %v4691 = vunpack.c.h.b16 %v3293
        %v4692 = vunpack.c.l.b16 %v3294
        %v4693 = vunpack.c.h.b16 %v3294
        %v4694 = vunpack.c.l.b16 %v3295
        %v4695 = vunpack.c.h.b16 %v3295
        %v4696 = vunpack.c.l.b16 %v3296
        %v4697 = vunpack.c.h.b16 %v3296
        %v4698 = vunpack.c.l.b16 %v3297
        %v4699 = vunpack.c.h.b16 %v3297
        %v4700 = vunpack.c.l.b16 %v3298
        %v4701 = vunpack.c.h.b16 %v3298
        %v4702 = vunpack.c.l.b16 %v3299
        %v4703 = vunpack.c.h.b16 %v3299
        %v4704 = vunpack.c.l.b16 %v3300
        %v4705 = vunpack.c.h.b16 %v3300
        %v4706 = vunpack.c.l.b16 %v3301
        %v4707 = vunpack.c.h.b16 %v3301
        %v4708 = vunpack.c.l.b16 %v3302
        %v4709 = vunpack.c.h.b16 %v3302
        %v4710 = vunpack.c.l.b16 %v3303
        %v4711 = vunpack.c.h.b16 %v3303
        %v4712 = vunpack.c.l.b16 %v3304
        %v4713 = vunpack.c.h.b16 %v3304
        %v4714 = vunpack.c.l.b16 %v3305
        %v4715 = vunpack.c.h.b16 %v3305
        %v4716 = vunpack.c.l.b16 %v3306
        %v4717 = vunpack.c.h.b16 %v3306
        %v4718 = vunpack.c.l.b16 %v3307
        %v4719 = vunpack.c.h.b16 %v3307
        %v4720 = vunpack.c.l.b16 %v3308
        %v4721 = vunpack.c.h.b16 %v3308
        %v4722 = vunpack.c.l.b16 %v3309
        %v4723 = vunpack.c.h.b16 %v3309
        %v4724 = vunpack.c.l.b16 %v3310
        %v4725 = vunpack.c.h.b16 %v3310
        %v4726 = vunpack.c.l.b16 %v3311
        %v4727 = vunpack.c.h.b16 %v3311
        %v4728 = vunpack.c.l.b16 %v3312
        %v4729 = vunpack.c.h.b16 %v3312
        %v4730 = vunpack.c.l.b16 %v3313
        %v4731 = vunpack.c.h.b16 %v3313
        %v4732 = vunpack.c.l.b16 %v3314
        %v4733 = vunpack.c.h.b16 %v3314
        %v4734 = vunpack.c.l.b16 %v3315
        %v4735 = vunpack.c.h.b16 %v3315
        %v4736 = vunpack.c.l.b16 %v3316
        %v4737 = vunpack.c.h.b16 %v3316
        %v4738 = vunpack.c.l.b16 %v3317
        %v4739 = vunpack.c.h.b16 %v3317
        %v4740 = vunpack.c.l.b16 %v3318
        %v4741 = vunpack.c.h.b16 %v3318
        %v4742 = vunpack.c.l.b16 %v3319
        %v4743 = vunpack.c.h.b16 %v3319
        %v4744 = vunpack.c.l.b16 %v3320
        %v4745 = vunpack.c.h.b16 %v3320
        %v4746 = vunpack.c.l.b16 %v3321
        %v4747 = vunpack.c.h.b16 %v3321
        %v4748 = vunpack.c.l.b16 %v3322
        %v4749 = vunpack.c.h.b16 %v3322
        %v4750 = vunpack.c.l.b16 %v3323
        %v4751 = vunpack.c.h.b16 %v3323
        %v4752 = vunpack.c.l.b16 %v3324
        %v4753 = vunpack.c.h.b16 %v3324
        %v4754 = vunpack.c.l.b16 %v3325
        %v4755 = vunpack.c.h.b16 %v3325
        %v4756 = vunpack.c.l.b16 %v3326
        %v4757 = vunpack.c.h.b16 %v3326
        %v4758 = vunpack.c.l.b16 %v3327
        %v4759 = vunpack.c.h.b16 %v3327
        %v4760 = vunpack.c.l.b16 %v3328
        %v4761 = vunpack.c.h.b16 %v3328
        %v4762 = vunpack.c.l.b16 %v3329
        %v4763 = vunpack.c.h.b16 %v3329
        %v4764 = vunpack.c.l.b16 %v3330
        %v4765 = vunpack.c.h.b16 %v3330
        %v4766 = vunpack.c.l.b16 %v3331
        %v4767 = vunpack.c.h.b16 %v3331
        %v4768 = vunpack.c.l.b16 %v3332
        %v4769 = vunpack.c.h.b16 %v3332
        %v4770 = vunpack.c.l.b16 %v3333
        %v4771 = vunpack.c.h.b16 %v3333
        %v4772 = vunpack.c.l.b16 %v3334
        %v4773 = vunpack.c.h.b16 %v3334
        %v4774 = vunpack.c.l.b16 %v3335
        %v4775 = vunpack.c.h.b16 %v3335
        %v4776 = vunpack.c.l.b16 %v3336
        %v4777 = vunpack.c.h.b16 %v3336
        %v4778 = vunpack.c.l.b16 %v3337
        %v4779 = vunpack.c.h.b16 %v3337
        %v4780 = vunpack.c.l.b16 %v3338
        %v4781 = vunpack.c.h.b16 %v3338
        %v4782 = vunpack.c.l.b16 %v3339
        %v4783 = vunpack.c.h.b16 %v3339
        %v4784 = vunpack.c.l.b16 %v3340
        %v4785 = vunpack.c.h.b16 %v3340
        %v4786 = vunpack.c.l.b16 %v3341
        %v4787 = vunpack.c.h.b16 %v3341
        %v4788 = vunpack.c.l.b16 %v3342
        %v4789 = vunpack.c.h.b16 %v3342
        %v4790 = vunpack.c.l.b16 %v3343
        %v4791 = vunpack.c.h.b16 %v3343
        %v4792 = vunpack.c.l.b16 %v3344
        %v4793 = vunpack.c.h.b16 %v3344
        %v4794 = vunpack.c.l.b16 %v3345
        %v4795 = vunpack.c.h.b16 %v3345
        %v4796 = vunpack.c.l.b16 %v3346
        %v4797 = vunpack.c.h.b16 %v3346
        %v4798 = vunpack.c.l.b16 %v3347
        %v4799 = vunpack.c.h.b16 %v3347
        %v4800 = vunpack.c.l.b16 %v3348
        %v4801 = vunpack.c.h.b16 %v3348
        %v4802 = vunpack.c.l.b16 %v3349
        %v4803 = vunpack.c.h.b16 %v3349
        %v4804 = vunpack.c.l.b16 %v3350
        %v4805 = vunpack.c.h.b16 %v3350
        %v4806 = vunpack.c.l.b16 %v3351
        %v4807 = vunpack.c.h.b16 %v3351
        %v4808 = vunpack.c.l.b16 %v3352
        %v4809 = vunpack.c.h.b16 %v3352
        %v4810 = vunpack.c.l.b16 %v3353
        %v4811 = vunpack.c.h.b16 %v3353
        %v4812 = vunpack.c.l.b16 %v3354
        %v4813 = vunpack.c.h.b16 %v3354
        %v4814 = vunpack.c.l.b16 %v3355
        %v4815 = vunpack.c.h.b16 %v3355
        %v4816 = vunpack.c.l.b16 %v3356
        %v4817 = vunpack.c.h.b16 %v3356
        %v4818 = vunpack.c.l.b16 %v3357
        %v4819 = vunpack.c.h.b16 %v3357
        %v4820 = vunpack.c.l.b16 %v3358
        %v4821 = vunpack.c.h.b16 %v3358
        %v4822 = vunpack.c.l.b16 %v3359
        %v4823 = vunpack.c.h.b16 %v3359
        %v4824 = vunpack.c.l.b16 %v3360
        %v4825 = vunpack.c.h.b16 %v3360
        %v4826 = vunpack.c.l.b16 %v3361
        %v4827 = vunpack.c.h.b16 %v3361
        %v4828 = vunpack.c.l.b16 %v3362
        %v4829 = vunpack.c.h.b16 %v3362
        %v4830 = vunpack.c.l.b16 %v3363
        %v4831 = vunpack.c.h.b16 %v3363
        %v4832 = vunpack.c.l.b16 %v3364
        %v4833 = vunpack.c.h.b16 %v3364
        %v4834 = vunpack.c.l.b16 %v3365
        %v4835 = vunpack.c.h.b16 %v3365
        %v4836 = vunpack.c.l.b16 %v3366
        %v4837 = vunpack.c.h.b16 %v3366
        %v4838 = vunpack.c.l.b16 %v3367
        %v4839 = vunpack.c.h.b16 %v3367
        %v4840 = vunpack.c.l.b16 %v3368
        %v4841 = vunpack.c.h.b16 %v3368
        %v4842 = vunpack.c.l.b16 %v3369
        %v4843 = vunpack.c.h.b16 %v3369
        %v4844 = vunpack.c.l.b16 %v3370
        %v4845 = vunpack.c.h.b16 %v3370
        %v4846 = vunpack.c.l.b16 %v3371
        %v4847 = vunpack.c.h.b16 %v3371
        %v4848 = vunpack.c.l.b16 %v3372
        %v4849 = vunpack.c.h.b16 %v3372
        %v4850 = vunpack.c.l.b16 %v3373
        %v4851 = vunpack.c.h.b16 %v3373
        %v4852 = vunpack.c.l.b16 %v3374
        %v4853 = vunpack.c.h.b16 %v3374
        %v4854 = vunpack.c.l.b16 %v3375
        %v4855 = vunpack.c.h.b16 %v3375
        %v4856 = vunpack.c.l.b16 %v3376
        %v4857 = vunpack.c.h.b16 %v3376
        %v4858 = vunpack.c.l.b16 %v3377
        %v4859 = vunpack.c.h.b16 %v3377
        %v4860 = vunpack.c.l.b16 %v3378
        %v4861 = vunpack.c.h.b16 %v3378
        %v4862 = vunpack.c.l.b16 %v3379
        %v4863 = vunpack.c.h.b16 %v3379
        %v4864 = vunpack.c.l.b16 %v3380
        %v4865 = vunpack.c.h.b16 %v3380
        %v4866 = vunpack.c.l.b16 %v3381
        %v4867 = vunpack.c.h.b16 %v3381
        %v4868 = vunpack.c.l.b16 %v3382
        %v4869 = vunpack.c.h.b16 %v3382
        %v4870 = vunpack.c.l.b16 %v3383
        %v4871 = vunpack.c.h.b16 %v3383
        %v4872 = vunpack.c.l.b16 %v3384
        %v4873 = vunpack.c.h.b16 %v3384
        %v4874 = vunpack.c.l.b16 %v3385
        %v4875 = vunpack.c.h.b16 %v3385
        %v4876 = vunpack.c.l.b16 %v3386
        %v4877 = vunpack.c.h.b16 %v3386
        %v4878 = vunpack.c.l.b16 %v3387
        %v4879 = vunpack.c.h.b16 %v3387
        %v4880 = vunpack.c.l.b16 %v3388
        %v4881 = vunpack.c.h.b16 %v3388
        %v4882 = vunpack.c.l.b16 %v3389
        %v4883 = vunpack.c.h.b16 %v3389
        %v4884 = vunpack.c.l.b16 %v3390
        %v4885 = vunpack.c.h.b16 %v3390
        %v4886 = vunpack.c.l.b16 %v3391
        %v4887 = vunpack.c.h.b16 %v3391
        %v4888 = vunpack.c.l.b16 %v3392
        %v4889 = vunpack.c.h.b16 %v3392
        %v4890 = vunpack.c.l.b16 %v3393
        %v4891 = vunpack.c.h.b16 %v3393
        %v4892 = vunpack.c.l.b16 %v3394
        %v4893 = vunpack.c.h.b16 %v3394
        %v4894 = vunpack.c.l.b16 %v3395
        %v4895 = vunpack.c.h.b16 %v3395
        %v4896 = vunpack.c.l.b16 %v3396
        %v4897 = vunpack.c.h.b16 %v3396
        %v4898 = vunpack.c.l.b16 %v3397
        %v4899 = vunpack.c.h.b16 %v3397
        %v4900 = vunpack.c.l.b16 %v3398
        %v4901 = vunpack.c.h.b16 %v3398
        %v4902 = vunpack.c.l.b16 %v3399
        %v4903 = vunpack.c.h.b16 %v3399
        %v4904 = vunpack.c.l.b16 %v3400
        %v4905 = vunpack.c.h.b16 %v3400
        %v4906 = vunpack.c.l.b16 %v3401
        %v4907 = vunpack.c.h.b16 %v3401
        %v4908 = vunpack.c.l.b16 %v3402
        %v4909 = vunpack.c.h.b16 %v3402
        %v4910 = vunpack.c.l.b16 %v3403
        %v4911 = vunpack.c.h.b16 %v3403
        %v4912 = vunpack.c.l.b16 %v3404
        %v4913 = vunpack.c.h.b16 %v3404
        %v4914 = vunpack.c.l.b16 %v3405
        %v4915 = vunpack.c.h.b16 %v3405
        %v4916 = vunpack.c.l.b16 %v3406
        %v4917 = vunpack.c.h.b16 %v3406
        %v4918 = vunpack.c.l.b16 %v3407
        %v4919 = vunpack.c.h.b16 %v3407
        %v4920 = vunpack.c.l.b16 %v3408
        %v4921 = vunpack.c.h.b16 %v3408
        %v4922 = vunpack.c.l.b16 %v3409
        %v4923 = vunpack.c.h.b16 %v3409
        %v4924 = vunpack.c.l.b16 %v3410
        %v4925 = vunpack.c.h.b16 %v3410
        %v4926 = vunpack.c.l.b16 %v3411
        %v4927 = vunpack.c.h.b16 %v3411
        %v4928 = vunpack.c.l.b16 %v3412
        %v4929 = vunpack.c.h.b16 %v3412
        %v4930 = vunpack.c.l.b16 %v3413
        %v4931 = vunpack.c.h.b16 %v3413
        %v4932 = vunpack.c.l.b16 %v3414
        %v4933 = vunpack.c.h.b16 %v3414
        %v4934 = vunpack.c.l.b16 %v3415
        %v4935 = vunpack.c.h.b16 %v3415
        %v4936 = vunpack.c.l.b16 %v3416
        %v4937 = vunpack.c.h.b16 %v3416
        %v4938 = vunpack.c.l.b16 %v3417
        %v4939 = vunpack.c.h.b16 %v3417
        %v4940 = vunpack.c.l.b16 %v3418
        %v4941 = vunpack.c.h.b16 %v3418
        %v4942 = vunpack.c.l.b16 %v3419
        %v4943 = vunpack.c.h.b16 %v3419
        %v4944 = vunpack.c.l.b16 %v3420
        %v4945 = vunpack.c.h.b16 %v3420
        %v4946 = vunpack.c.l.b16 %v3421
        %v4947 = vunpack.c.h.b16 %v3421
        %v4948 = vunpack.c.l.b16 %v3422
        %v4949 = vunpack.c.h.b16 %v3422
        %v4950 = vunpack.c.l.b16 %v3423
        %v4951 = vunpack.c.h.b16 %v3423
        %v4952 = vunpack.c.l.b16 %v3424
        %v4953 = vunpack.c.h.b16 %v3424
        %v4954 = vunpack.c.l.b16 %v3425
        %v4955 = vunpack.c.h.b16 %v3425
        %v4956 = vunpack.c.l.b16 %v3426
        %v4957 = vunpack.c.h.b16 %v3426
        %v4958 = vunpack.c.l.b16 %v3427
        %v4959 = vunpack.c.h.b16 %v3427
        %v4960 = vunpack.c.l.b16 %v3428
        %v4961 = vunpack.c.h.b16 %v3428
        %v4962 = vunpack.c.l.b16 %v3429
        %v4963 = vunpack.c.h.b16 %v3429
        %v4964 = vunpack.c.l.b16 %v3430
        %v4965 = vunpack.c.h.b16 %v3430
        %v4966 = vunpack.c.l.b16 %v3431
        %v4967 = vunpack.c.h.b16 %v3431
        %v4968 = vunpack.c.l.b16 %v3432
        %v4969 = vunpack.c.h.b16 %v3432
        %v4970 = vunpack.c.l.b16 %v3433
        %v4971 = vunpack.c.h.b16 %v3433
        %v4972 = vunpack.c.l.b16 %v3434
        %v4973 = vunpack.c.h.b16 %v3434
        %v4974 = vunpack.c.l.b16 %v3435
        %v4975 = vunpack.c.h.b16 %v3435
        %v4976 = vunpack.c.l.b16 %v3436
        %v4977 = vunpack.c.h.b16 %v3436
        %v4978 = vunpack.c.l.b16 %v3437
        %v4979 = vunpack.c.h.b16 %v3437
        %v4980 = vunpack.c.l.b16 %v3438
        %v4981 = vunpack.c.h.b16 %v3438
        %v4982 = vunpack.c.l.b16 %v3439
        %v4983 = vunpack.c.h.b16 %v3439
        %v4984 = vunpack.c.l.b16 %v3440
        %v4985 = vunpack.c.h.b16 %v3440
        %v4986 = vunpack.c.l.b16 %v3441
        %v4987 = vunpack.c.h.b16 %v3441
        %v4988 = vunpack.c.l.b16 %v3442
        %v4989 = vunpack.c.h.b16 %v3442
        %v4990 = vunpack.c.l.b16 %v3443
        %v4991 = vunpack.c.h.b16 %v3443
        %v4992 = vunpack.c.l.b16 %v3444
        %v4993 = vunpack.c.h.b16 %v3444
        %v4994 = vunpack.c.l.b16 %v3445
        %v4995 = vunpack.c.h.b16 %v3445
        %v4996 = vunpack.c.l.b16 %v3446
        %v4997 = vunpack.c.h.b16 %v3446
        %v4998 = vunpack.c.l.b16 %v3447
        %v4999 = vunpack.c.h.b16 %v3447
        %v5000 = vunpack.c.l.b16 %v3448
        %v5001 = vunpack.c.h.b16 %v3448
        %v5002 = vunpack.c.l.b16 %v3449
        %v5003 = vunpack.c.h.b16 %v3449
        %v5004 = vunpack.c.l.b16 %v3450
        %v5005 = vunpack.c.h.b16 %v3450
        %v5006 = vunpack.c.l.b16 %v3451
        %v5007 = vunpack.c.h.b16 %v3451
        %v5008 = vunpack.c.l.b16 %v3452
        %v5009 = vunpack.c.h.b16 %v3452
        %v5010 = vunpack.c.l.b16 %v3453
        %v5011 = vunpack.c.h.b16 %v3453
        %v5012 = vunpack.c.l.b16 %v3454
        %v5013 = vunpack.c.h.b16 %v3454
        %v5014 = vunpack.c.l.b16 %v3455
        %v5015 = vunpack.c.h.b16 %v3455
        %v5016 = vunpack.c.l.b16 %v3456
        %v5017 = vunpack.c.h.b16 %v3456
        %v5018 = vunpack.c.l.b16 %v3457
        %v5019 = vunpack.c.h.b16 %v3457
        %v5020 = vunpack.c.l.b16 %v3458
        %v5021 = vunpack.c.h.b16 %v3458
        %v5022 = vunpack.c.l.b16 %v3459
        %v5023 = vunpack.c.h.b16 %v3459
        %v5024 = vunpack.c.l.b16 %v3460
        %v5025 = vunpack.c.h.b16 %v3460
        %v5026 = vunpack.c.l.b16 %v3461
        %v5027 = vunpack.c.h.b16 %v3461
        %v5028 = vunpack.c.l.b16 %v3462
        %v5029 = vunpack.c.h.b16 %v3462
        %v5030 = vunpack.c.l.b16 %v3463
        %v5031 = vunpack.c.h.b16 %v3463
        %v5032 = vunpack.c.l.b16 %v3464
        %v5033 = vunpack.c.h.b16 %v3464
        %v5034 = vunpack.c.l.b16 %v3465
        %v5035 = vunpack.c.h.b16 %v3465
        %v5036 = vunpack.c.l.b16 %v3466
        %v5037 = vunpack.c.h.b16 %v3466
        %v5038 = vunpack.c.l.b16 %v3467
        %v5039 = vunpack.c.h.b16 %v3467
        %v5040 = vunpack.c.l.b16 %v3468
        %v5041 = vunpack.c.h.b16 %v3468
        %v5042 = vunpack.c.l.b16 %v3469
        %v5043 = vunpack.c.h.b16 %v3469
        %v5044 = vunpack.c.l.b16 %v3470
        %v5045 = vunpack.c.h.b16 %v3470
        %v5046 = vunpack.c.l.b16 %v3471
        %v5047 = vunpack.c.h.b16 %v3471
        %v5048 = vunpack.c.l.b16 %v3472
        %v5049 = vunpack.c.h.b16 %v3472
        %v5050 = vunpack.c.l.b16 %v3473
        %v5051 = vunpack.c.h.b16 %v3473
        %v5052 = vpack.c.b16 %v4036, %v4028
        %v5053 = vpack.c.b16 %v4037, %v4029
        %v5054 = vpack.c.b16 %v4038, %v4030
        %v5055 = vpack.c.b16 %v4039, %v4031
        %v5056 = vpack.c.b16 %v4040, %v4032
        %v5057 = vpack.c.b16 %v4041, %v4033
        %v5058 = vpack.c.b16 %v4042, %v4034
        %v5059 = vpack.c.b16 %v4043, %v4035
        %v5060 = vpack.c.b16 %v4052, %v4044
        %v5061 = vpack.c.b16 %v4053, %v4045
        %v5062 = vpack.c.b16 %v4054, %v4046
        %v5063 = vpack.c.b16 %v4055, %v4047
        %v5064 = vpack.c.b16 %v4056, %v4048
        %v5065 = vpack.c.b16 %v4057, %v4049
        %v5066 = vpack.c.b16 %v4058, %v4050
        %v5067 = vpack.c.b16 %v4059, %v4051
        %v5068 = vpack.c.b16 %v4068, %v4060
        %v5069 = vpack.c.b16 %v4069, %v4061
        %v5070 = vpack.c.b16 %v4070, %v4062
        %v5071 = vpack.c.b16 %v4071, %v4063
        %v5072 = vpack.c.b16 %v4072, %v4064
        %v5073 = vpack.c.b16 %v4073, %v4065
        %v5074 = vpack.c.b16 %v4074, %v4066
        %v5075 = vpack.c.b16 %v4075, %v4067
        %v5076 = vpack.c.b16 %v4084, %v4076
        %v5077 = vpack.c.b16 %v4085, %v4077
        %v5078 = vpack.c.b16 %v4086, %v4078
        %v5079 = vpack.c.b16 %v4087, %v4079
        %v5080 = vpack.c.b16 %v4088, %v4080
        %v5081 = vpack.c.b16 %v4089, %v4081
        %v5082 = vpack.c.b16 %v4090, %v4082
        %v5083 = vpack.c.b16 %v4091, %v4083
        %v5084 = vpack.c.b16 %v4100, %v4092
        %v5085 = vpack.c.b16 %v4101, %v4093
        %v5086 = vpack.c.b16 %v4102, %v4094
        %v5087 = vpack.c.b16 %v4103, %v4095
        %v5088 = vpack.c.b16 %v4104, %v4096
        %v5089 = vpack.c.b16 %v4105, %v4097
        %v5090 = vpack.c.b16 %v4106, %v4098
        %v5091 = vpack.c.b16 %v4107, %v4099
        %v5092 = vpack.c.b16 %v4116, %v4108
        %v5093 = vpack.c.b16 %v4117, %v4109
        %v5094 = vpack.c.b16 %v4118, %v4110
        %v5095 = vpack.c.b16 %v4119, %v4111
        %v5096 = vpack.c.b16 %v4120, %v4112
        %v5097 = vpack.c.b16 %v4121, %v4113
        %v5098 = vpack.c.b16 %v4122, %v4114
        %v5099 = vpack.c.b16 %v4123, %v4115
        %v5100 = vpack.c.b16 %v4132, %v4124
        %v5101 = vpack.c.b16 %v4133, %v4125
        %v5102 = vpack.c.b16 %v4134, %v4126
        %v5103 = vpack.c.b16 %v4135, %v4127
        %v5104 = vpack.c.b16 %v4136, %v4128
        %v5105 = vpack.c.b16 %v4137, %v4129
        %v5106 = vpack.c.b16 %v4138, %v4130
        %v5107 = vpack.c.b16 %v4139, %v4131
        %v5108 = vpack.c.b16 %v4148, %v4140
        %v5109 = vpack.c.b16 %v4149, %v4141
        %v5110 = vpack.c.b16 %v4150, %v4142
        %v5111 = vpack.c.b16 %v4151, %v4143
        %v5112 = vpack.c.b16 %v4152, %v4144
        %v5113 = vpack.c.b16 %v4153, %v4145
        %v5114 = vpack.c.b16 %v4154, %v4146
        %v5115 = vpack.c.b16 %v4155, %v4147
        %v5116 = vpack.c.b16 %v4164, %v4156
        %v5117 = vpack.c.b16 %v4165, %v4157
        %v5118 = vpack.c.b16 %v4166, %v4158
        %v5119 = vpack.c.b16 %v4167, %v4159
        %v5120 = vpack.c.b16 %v4168, %v4160
        %v5121 = vpack.c.b16 %v4169, %v4161
        %v5122 = vpack.c.b16 %v4170, %v4162
        %v5123 = vpack.c.b16 %v4171, %v4163
        %v5124 = vpack.c.b16 %v4180, %v4172
        %v5125 = vpack.c.b16 %v4181, %v4173
        %v5126 = vpack.c.b16 %v4182, %v4174
        %v5127 = vpack.c.b16 %v4183, %v4175
        %v5128 = vpack.c.b16 %v4184, %v4176
        %v5129 = vpack.c.b16 %v4185, %v4177
        %v5130 = vpack.c.b16 %v4186, %v4178
        %v5131 = vpack.c.b16 %v4187, %v4179
        %v5132 = vpack.c.b16 %v4196, %v4188
        %v5133 = vpack.c.b16 %v4197, %v4189
        %v5134 = vpack.c.b16 %v4198, %v4190
        %v5135 = vpack.c.b16 %v4199, %v4191
        %v5136 = vpack.c.b16 %v4200, %v4192
        %v5137 = vpack.c.b16 %v4201, %v4193
        %v5138 = vpack.c.b16 %v4202, %v4194
        %v5139 = vpack.c.b16 %v4203, %v4195
        %v5140 = vpack.c.b16 %v4212, %v4204
        %v5141 = vpack.c.b16 %v4213, %v4205
        %v5142 = vpack.c.b16 %v4214, %v4206
        %v5143 = vpack.c.b16 %v4215, %v4207
        %v5144 = vpack.c.b16 %v4216, %v4208
        %v5145 = vpack.c.b16 %v4217, %v4209
        %v5146 = vpack.c.b16 %v4218, %v4210
        %v5147 = vpack.c.b16 %v4219, %v4211
        %v5148 = vpack.c.b16 %v4228, %v4220
        %v5149 = vpack.c.b16 %v4229, %v4221
        %v5150 = vpack.c.b16 %v4230, %v4222
        %v5151 = vpack.c.b16 %v4231, %v4223
        %v5152 = vpack.c.b16 %v4232, %v4224
        %v5153 = vpack.c.b16 %v4233, %v4225
        %v5154 = vpack.c.b16 %v4234, %v4226
        %v5155 = vpack.c.b16 %v4235, %v4227
        %v5156 = vpack.c.b16 %v4244, %v4236
        %v5157 = vpack.c.b16 %v4245, %v4237
        %v5158 = vpack.c.b16 %v4246, %v4238
        %v5159 = vpack.c.b16 %v4247, %v4239
        %v5160 = vpack.c.b16 %v4248, %v4240
        %v5161 = vpack.c.b16 %v4249, %v4241
        %v5162 = vpack.c.b16 %v4250, %v4242
        %v5163 = vpack.c.b16 %v4251, %v4243
        %v5164 = vpack.c.b16 %v4260, %v4252
        %v5165 = vpack.c.b16 %v4261, %v4253
        %v5166 = vpack.c.b16 %v4262, %v4254
        %v5167 = vpack.c.b16 %v4263, %v4255
        %v5168 = vpack.c.b16 %v4264, %v4256
        %v5169 = vpack.c.b16 %v4265, %v4257
        %v5170 = vpack.c.b16 %v4266, %v4258
        %v5171 = vpack.c.b16 %v4267, %v4259
        %v5172 = vpack.c.b16 %v4276, %v4268
        %v5173 = vpack.c.b16 %v4277, %v4269
        %v5174 = vpack.c.b16 %v4278, %v4270
        %v5175 = vpack.c.b16 %v4279, %v4271
        %v5176 = vpack.c.b16 %v4280, %v4272
        %v5177 = vpack.c.b16 %v4281, %v4273
        %v5178 = vpack.c.b16 %v4282, %v4274
        %v5179 = vpack.c.b16 %v4283, %v4275
        %v5180 = vpack.c.b16 %v4292, %v4284
        %v5181 = vpack.c.b16 %v4293, %v4285
        %v5182 = vpack.c.b16 %v4294, %v4286
        %v5183 = vpack.c.b16 %v4295, %v4287
        %v5184 = vpack.c.b16 %v4296, %v4288
        %v5185 = vpack.c.b16 %v4297, %v4289
        %v5186 = vpack.c.b16 %v4298, %v4290
        %v5187 = vpack.c.b16 %v4299, %v4291
        %v5188 = vpack.c.b16 %v4308, %v4300
        %v5189 = vpack.c.b16 %v4309, %v4301
        %v5190 = vpack.c.b16 %v4310, %v4302
        %v5191 = vpack.c.b16 %v4311, %v4303
        %v5192 = vpack.c.b16 %v4312, %v4304
        %v5193 = vpack.c.b16 %v4313, %v4305
        %v5194 = vpack.c.b16 %v4314, %v4306
        %v5195 = vpack.c.b16 %v4315, %v4307
        %v5196 = vpack.c.b16 %v4324, %v4316
        %v5197 = vpack.c.b16 %v4325, %v4317
        %v5198 = vpack.c.b16 %v4326, %v4318
        %v5199 = vpack.c.b16 %v4327, %v4319
        %v5200 = vpack.c.b16 %v4328, %v4320
        %v5201 = vpack.c.b16 %v4329, %v4321
        %v5202 = vpack.c.b16 %v4330, %v4322
        %v5203 = vpack.c.b16 %v4331, %v4323
        %v5204 = vpack.c.b16 %v4340, %v4332
        %v5205 = vpack.c.b16 %v4341, %v4333
        %v5206 = vpack.c.b16 %v4342, %v4334
        %v5207 = vpack.c.b16 %v4343, %v4335
        %v5208 = vpack.c.b16 %v4344, %v4336
        %v5209 = vpack.c.b16 %v4345, %v4337
        %v5210 = vpack.c.b16 %v4346, %v4338
        %v5211 = vpack.c.b16 %v4347, %v4339
        %v5212 = vpack.c.b16 %v4356, %v4348
        %v5213 = vpack.c.b16 %v4357, %v4349
        %v5214 = vpack.c.b16 %v4358, %v4350
        %v5215 = vpack.c.b16 %v4359, %v4351
        %v5216 = vpack.c.b16 %v4360, %v4352
        %v5217 = vpack.c.b16 %v4361, %v4353
        %v5218 = vpack.c.b16 %v4362, %v4354
        %v5219 = vpack.c.b16 %v4363, %v4355
        %v5220 = vpack.c.b16 %v4372, %v4364
        %v5221 = vpack.c.b16 %v4373, %v4365
        %v5222 = vpack.c.b16 %v4374, %v4366
        %v5223 = vpack.c.b16 %v4375, %v4367
        %v5224 = vpack.c.b16 %v4376, %v4368
        %v5225 = vpack.c.b16 %v4377, %v4369
        %v5226 = vpack.c.b16 %v4378, %v4370
        %v5227 = vpack.c.b16 %v4379, %v4371
        %v5228 = vpack.c.b16 %v4388, %v4380
        %v5229 = vpack.c.b16 %v4389, %v4381
        %v5230 = vpack.c.b16 %v4390, %v4382
        %v5231 = vpack.c.b16 %v4391, %v4383
        %v5232 = vpack.c.b16 %v4392, %v4384
        %v5233 = vpack.c.b16 %v4393, %v4385
        %v5234 = vpack.c.b16 %v4394, %v4386
        %v5235 = vpack.c.b16 %v4395, %v4387
        %v5236 = vpack.c.b16 %v4404, %v4396
        %v5237 = vpack.c.b16 %v4405, %v4397
        %v5238 = vpack.c.b16 %v4406, %v4398
        %v5239 = vpack.c.b16 %v4407, %v4399
        %v5240 = vpack.c.b16 %v4408, %v4400
        %v5241 = vpack.c.b16 %v4409, %v4401
        %v5242 = vpack.c.b16 %v4410, %v4402
        %v5243 = vpack.c.b16 %v4411, %v4403
        %v5244 = vpack.c.b16 %v4420, %v4412
        %v5245 = vpack.c.b16 %v4421, %v4413
        %v5246 = vpack.c.b16 %v4422, %v4414
        %v5247 = vpack.c.b16 %v4423, %v4415
        %v5248 = vpack.c.b16 %v4424, %v4416
        %v5249 = vpack.c.b16 %v4425, %v4417
        %v5250 = vpack.c.b16 %v4426, %v4418
        %v5251 = vpack.c.b16 %v4427, %v4419
        %v5252 = vpack.c.b16 %v4436, %v4428
        %v5253 = vpack.c.b16 %v4437, %v4429
        %v5254 = vpack.c.b16 %v4438, %v4430
        %v5255 = vpack.c.b16 %v4439, %v4431
        %v5256 = vpack.c.b16 %v4440, %v4432
        %v5257 = vpack.c.b16 %v4441, %v4433
        %v5258 = vpack.c.b16 %v4442, %v4434
        %v5259 = vpack.c.b16 %v4443, %v4435
        %v5260 = vpack.c.b16 %v4452, %v4444
        %v5261 = vpack.c.b16 %v4453, %v4445
        %v5262 = vpack.c.b16 %v4454, %v4446
        %v5263 = vpack.c.b16 %v4455, %v4447
        %v5264 = vpack.c.b16 %v4456, %v4448
        %v5265 = vpack.c.b16 %v4457, %v4449
        %v5266 = vpack.c.b16 %v4458, %v4450
        %v5267 = vpack.c.b16 %v4459, %v4451
        %v5268 = vpack.c.b16 %v4468, %v4460
        %v5269 = vpack.c.b16 %v4469, %v4461
        %v5270 = vpack.c.b16 %v4470, %v4462
        %v5271 = vpack.c.b16 %v4471, %v4463
        %v5272 = vpack.c.b16 %v4472, %v4464
        %v5273 = vpack.c.b16 %v4473, %v4465
        %v5274 = vpack.c.b16 %v4474, %v4466
        %v5275 = vpack.c.b16 %v4475, %v4467
        %v5276 = vpack.c.b16 %v4484, %v4476
        %v5277 = vpack.c.b16 %v4485, %v4477
        %v5278 = vpack.c.b16 %v4486, %v4478
        %v5279 = vpack.c.b16 %v4487, %v4479
        %v5280 = vpack.c.b16 %v4488, %v4480
        %v5281 = vpack.c.b16 %v4489, %v4481
        %v5282 = vpack.c.b16 %v4490, %v4482
        %v5283 = vpack.c.b16 %v4491, %v4483
        %v5284 = vpack.c.b16 %v4500, %v4492
        %v5285 = vpack.c.b16 %v4501, %v4493
        %v5286 = vpack.c.b16 %v4502, %v4494
        %v5287 = vpack.c.b16 %v4503, %v4495
        %v5288 = vpack.c.b16 %v4504, %v4496
        %v5289 = vpack.c.b16 %v4505, %v4497
        %v5290 = vpack.c.b16 %v4506, %v4498
        %v5291 = vpack.c.b16 %v4507, %v4499
        %v5292 = vpack.c.b16 %v4516, %v4508
        %v5293 = vpack.c.b16 %v4517, %v4509
        %v5294 = vpack.c.b16 %v4518, %v4510
        %v5295 = vpack.c.b16 %v4519, %v4511
        %v5296 = vpack.c.b16 %v4520, %v4512
        %v5297 = vpack.c.b16 %v4521, %v4513
        %v5298 = vpack.c.b16 %v4522, %v4514
        %v5299 = vpack.c.b16 %v4523, %v4515
        %v5300 = vpack.c.b16 %v4532, %v4524
        %v5301 = vpack.c.b16 %v4533, %v4525
        %v5302 = vpack.c.b16 %v4534, %v4526
        %v5303 = vpack.c.b16 %v4535, %v4527
        %v5304 = vpack.c.b16 %v4536, %v4528
        %v5305 = vpack.c.b16 %v4537, %v4529
        %v5306 = vpack.c.b16 %v4538, %v4530
        %v5307 = vpack.c.b16 %v4539, %v4531
        %v5308 = vpack.c.b16 %v4548, %v4540
        %v5309 = vpack.c.b16 %v4549, %v4541
        %v5310 = vpack.c.b16 %v4550, %v4542
        %v5311 = vpack.c.b16 %v4551, %v4543
        %v5312 = vpack.c.b16 %v4552, %v4544
        %v5313 = vpack.c.b16 %v4553, %v4545
        %v5314 = vpack.c.b16 %v4554, %v4546
        %v5315 = vpack.c.b16 %v4555, %v4547
        %v5316 = vpack.c.b16 %v4564, %v4556
        %v5317 = vpack.c.b16 %v4565, %v4557
        %v5318 = vpack.c.b16 %v4566, %v4558
        %v5319 = vpack.c.b16 %v4567, %v4559
        %v5320 = vpack.c.b16 %v4568, %v4560
        %v5321 = vpack.c.b16 %v4569, %v4561
        %v5322 = vpack.c.b16 %v4570, %v4562
        %v5323 = vpack.c.b16 %v4571, %v4563
        %v5324 = vpack.c.b16 %v4580, %v4572
        %v5325 = vpack.c.b16 %v4581, %v4573
        %v5326 = vpack.c.b16 %v4582, %v4574
        %v5327 = vpack.c.b16 %v4583, %v4575
        %v5328 = vpack.c.b16 %v4584, %v4576
        %v5329 = vpack.c.b16 %v4585, %v4577
        %v5330 = vpack.c.b16 %v4586, %v4578
        %v5331 = vpack.c.b16 %v4587, %v4579
        %v5332 = vpack.c.b16 %v4596, %v4588
        %v5333 = vpack.c.b16 %v4597, %v4589
        %v5334 = vpack.c.b16 %v4598, %v4590
        %v5335 = vpack.c.b16 %v4599, %v4591
        %v5336 = vpack.c.b16 %v4600, %v4592
        %v5337 = vpack.c.b16 %v4601, %v4593
        %v5338 = vpack.c.b16 %v4602, %v4594
        %v5339 = vpack.c.b16 %v4603, %v4595
        %v5340 = vpack.c.b16 %v4612, %v4604
        %v5341 = vpack.c.b16 %v4613, %v4605
        %v5342 = vpack.c.b16 %v4614, %v4606
        %v5343 = vpack.c.b16 %v4615, %v4607
        %v5344 = vpack.c.b16 %v4616, %v4608
        %v5345 = vpack.c.b16 %v4617, %v4609
        %v5346 = vpack.c.b16 %v4618, %v4610
        %v5347 = vpack.c.b16 %v4619, %v4611
        %v5348 = vpack.c.b16 %v4628, %v4620
        %v5349 = vpack.c.b16 %v4629, %v4621
        %v5350 = vpack.c.b16 %v4630, %v4622
        %v5351 = vpack.c.b16 %v4631, %v4623
        %v5352 = vpack.c.b16 %v4632, %v4624
        %v5353 = vpack.c.b16 %v4633, %v4625
        %v5354 = vpack.c.b16 %v4634, %v4626
        %v5355 = vpack.c.b16 %v4635, %v4627
        %v5356 = vpack.c.b16 %v4644, %v4636
        %v5357 = vpack.c.b16 %v4645, %v4637
        %v5358 = vpack.c.b16 %v4646, %v4638
        %v5359 = vpack.c.b16 %v4647, %v4639
        %v5360 = vpack.c.b16 %v4648, %v4640
        %v5361 = vpack.c.b16 %v4649, %v4641
        %v5362 = vpack.c.b16 %v4650, %v4642
        %v5363 = vpack.c.b16 %v4651, %v4643
        %v5364 = vpack.c.b16 %v4660, %v4652
        %v5365 = vpack.c.b16 %v4661, %v4653
        %v5366 = vpack.c.b16 %v4662, %v4654
        %v5367 = vpack.c.b16 %v4663, %v4655
        %v5368 = vpack.c.b16 %v4664, %v4656
        %v5369 = vpack.c.b16 %v4665, %v4657
        %v5370 = vpack.c.b16 %v4666, %v4658
        %v5371 = vpack.c.b16 %v4667, %v4659
        %v5372 = vpack.c.b16 %v4676, %v4668
        %v5373 = vpack.c.b16 %v4677, %v4669
        %v5374 = vpack.c.b16 %v4678, %v4670
        %v5375 = vpack.c.b16 %v4679, %v4671
        %v5376 = vpack.c.b16 %v4680, %v4672
        %v5377 = vpack.c.b16 %v4681, %v4673
        %v5378 = vpack.c.b16 %v4682, %v4674
        %v5379 = vpack.c.b16 %v4683, %v4675
        %v5380 = vpack.c.b16 %v4692, %v4684
        %v5381 = vpack.c.b16 %v4693, %v4685
        %v5382 = vpack.c.b16 %v4694, %v4686
        %v5383 = vpack.c.b16 %v4695, %v4687
        %v5384 = vpack.c.b16 %v4696, %v4688
        %v5385 = vpack.c.b16 %v4697, %v4689
        %v5386 = vpack.c.b16 %v4698, %v4690
        %v5387 = vpack.c.b16 %v4699, %v4691
        %v5388 = vpack.c.b16 %v4708, %v4700
        %v5389 = vpack.c.b16 %v4709, %v4701
        %v5390 = vpack.c.b16 %v4710, %v4702
        %v5391 = vpack.c.b16 %v4711, %v4703
        %v5392 = vpack.c.b16 %v4712, %v4704
        %v5393 = vpack.c.b16 %v4713, %v4705
        %v5394 = vpack.c.b16 %v4714, %v4706
        %v5395 = vpack.c.b16 %v4715, %v4707
        %v5396 = vpack.c.b16 %v4724, %v4716
        %v5397 = vpack.c.b16 %v4725, %v4717
        %v5398 = vpack.c.b16 %v4726, %v4718
        %v5399 = vpack.c.b16 %v4727, %v4719
        %v5400 = vpack.c.b16 %v4728, %v4720
        %v5401 = vpack.c.b16 %v4729, %v4721
        %v5402 = vpack.c.b16 %v4730, %v4722
        %v5403 = vpack.c.b16 %v4731, %v4723
        %v5404 = vpack.c.b16 %v4740, %v4732
        %v5405 = vpack.c.b16 %v4741, %v4733
        %v5406 = vpack.c.b16 %v4742, %v4734
        %v5407 = vpack.c.b16 %v4743, %v4735
        %v5408 = vpack.c.b16 %v4744, %v4736
        %v5409 = vpack.c.b16 %v4745, %v4737
        %v5410 = vpack.c.b16 %v4746, %v4738
        %v5411 = vpack.c.b16 %v4747, %v4739
        %v5412 = vpack.c.b16 %v4756, %v4748
        %v5413 = vpack.c.b16 %v4757, %v4749
        %v5414 = vpack.c.b16 %v4758, %v4750
        %v5415 = vpack.c.b16 %v4759, %v4751
        %v5416 = vpack.c.b16 %v4760, %v4752
        %v5417 = vpack.c.b16 %v4761, %v4753
        %v5418 = vpack.c.b16 %v4762, %v4754
        %v5419 = vpack.c.b16 %v4763, %v4755
        %v5420 = vpack.c.b16 %v4772, %v4764
        %v5421 = vpack.c.b16 %v4773, %v4765
        %v5422 = vpack.c.b16 %v4774, %v4766
        %v5423 = vpack.c.b16 %v4775, %v4767
        %v5424 = vpack.c.b16 %v4776, %v4768
        %v5425 = vpack.c.b16 %v4777, %v4769
        %v5426 = vpack.c.b16 %v4778, %v4770
        %v5427 = vpack.c.b16 %v4779, %v4771
        %v5428 = vpack.c.b16 %v4788, %v4780
        %v5429 = vpack.c.b16 %v4789, %v4781
        %v5430 = vpack.c.b16 %v4790, %v4782
        %v5431 = vpack.c.b16 %v4791, %v4783
        %v5432 = vpack.c.b16 %v4792, %v4784
        %v5433 = vpack.c.b16 %v4793, %v4785
        %v5434 = vpack.c.b16 %v4794, %v4786
        %v5435 = vpack.c.b16 %v4795, %v4787
        %v5436 = vpack.c.b16 %v4804, %v4796
        %v5437 = vpack.c.b16 %v4805, %v4797
        %v5438 = vpack.c.b16 %v4806, %v4798
        %v5439 = vpack.c.b16 %v4807, %v4799
        %v5440 = vpack.c.b16 %v4808, %v4800
        %v5441 = vpack.c.b16 %v4809, %v4801
        %v5442 = vpack.c.b16 %v4810, %v4802
        %v5443 = vpack.c.b16 %v4811, %v4803
        %v5444 = vpack.c.b16 %v4820, %v4812
        %v5445 = vpack.c.b16 %v4821, %v4813
        %v5446 = vpack.c.b16 %v4822, %v4814
        %v5447 = vpack.c.b16 %v4823, %v4815
        %v5448 = vpack.c.b16 %v4824, %v4816
        %v5449 = vpack.c.b16 %v4825, %v4817
        %v5450 = vpack.c.b16 %v4826, %v4818
        %v5451 = vpack.c.b16 %v4827, %v4819
        %v5452 = vpack.c.b16 %v4836, %v4828
        %v5453 = vpack.c.b16 %v4837, %v4829
        %v5454 = vpack.c.b16 %v4838, %v4830
        %v5455 = vpack.c.b16 %v4839, %v4831
        %v5456 = vpack.c.b16 %v4840, %v4832
        %v5457 = vpack.c.b16 %v4841, %v4833
        %v5458 = vpack.c.b16 %v4842, %v4834
        %v5459 = vpack.c.b16 %v4843, %v4835
        %v5460 = vpack.c.b16 %v4852, %v4844
        %v5461 = vpack.c.b16 %v4853, %v4845
        %v5462 = vpack.c.b16 %v4854, %v4846
        %v5463 = vpack.c.b16 %v4855, %v4847
        %v5464 = vpack.c.b16 %v4856, %v4848
        %v5465 = vpack.c.b16 %v4857, %v4849
        %v5466 = vpack.c.b16 %v4858, %v4850
        %v5467 = vpack.c.b16 %v4859, %v4851
        %v5468 = vpack.c.b16 %v4868, %v4860
        %v5469 = vpack.c.b16 %v4869, %v4861
        %v5470 = vpack.c.b16 %v4870, %v4862
        %v5471 = vpack.c.b16 %v4871, %v4863
        %v5472 = vpack.c.b16 %v4872, %v4864
        %v5473 = vpack.c.b16 %v4873, %v4865
        %v5474 = vpack.c.b16 %v4874, %v4866
        %v5475 = vpack.c.b16 %v4875, %v4867
        %v5476 = vpack.c.b16 %v4884, %v4876
        %v5477 = vpack.c.b16 %v4885, %v4877
        %v5478 = vpack.c.b16 %v4886, %v4878
        %v5479 = vpack.c.b16 %v4887, %v4879
        %v5480 = vpack.c.b16 %v4888, %v4880
        %v5481 = vpack.c.b16 %v4889, %v4881
        %v5482 = vpack.c.b16 %v4890, %v4882
        %v5483 = vpack.c.b16 %v4891, %v4883
        %v5484 = vpack.c.b16 %v4900, %v4892
        %v5485 = vpack.c.b16 %v4901, %v4893
        %v5486 = vpack.c.b16 %v4902, %v4894
        %v5487 = vpack.c.b16 %v4903, %v4895
        %v5488 = vpack.c.b16 %v4904, %v4896
        %v5489 = vpack.c.b16 %v4905, %v4897
        %v5490 = vpack.c.b16 %v4906, %v4898
        %v5491 = vpack.c.b16 %v4907, %v4899
        %v5492 = vpack.c.b16 %v4916, %v4908
        %v5493 = vpack.c.b16 %v4917, %v4909
        %v5494 = vpack.c.b16 %v4918, %v4910
        %v5495 = vpack.c.b16 %v4919, %v4911
        %v5496 = vpack.c.b16 %v4920, %v4912
        %v5497 = vpack.c.b16 %v4921, %v4913
        %v5498 = vpack.c.b16 %v4922, %v4914
        %v5499 = vpack.c.b16 %v4923, %v4915
        %v5500 = vpack.c.b16 %v4932, %v4924
        %v5501 = vpack.c.b16 %v4933, %v4925
        %v5502 = vpack.c.b16 %v4934, %v4926
        %v5503 = vpack.c.b16 %v4935, %v4927
        %v5504 = vpack.c.b16 %v4936, %v4928
        %v5505 = vpack.c.b16 %v4937, %v4929
        %v5506 = vpack.c.b16 %v4938, %v4930
        %v5507 = vpack.c.b16 %v4939, %v4931
        %v5508 = vpack.c.b16 %v4948, %v4940
        %v5509 = vpack.c.b16 %v4949, %v4941
        %v5510 = vpack.c.b16 %v4950, %v4942
        %v5511 = vpack.c.b16 %v4951, %v4943
        %v5512 = vpack.c.b16 %v4952, %v4944
        %v5513 = vpack.c.b16 %v4953, %v4945
        %v5514 = vpack.c.b16 %v4954, %v4946
        %v5515 = vpack.c.b16 %v4955, %v4947
        %v5516 = vpack.c.b16 %v4964, %v4956
        %v5517 = vpack.c.b16 %v4965, %v4957
        %v5518 = vpack.c.b16 %v4966, %v4958
        %v5519 = vpack.c.b16 %v4967, %v4959
        %v5520 = vpack.c.b16 %v4968, %v4960
        %v5521 = vpack.c.b16 %v4969, %v4961
        %v5522 = vpack.c.b16 %v4970, %v4962
        %v5523 = vpack.c.b16 %v4971, %v4963
        %v5524 = vpack.c.b16 %v4980, %v4972
        %v5525 = vpack.c.b16 %v4981, %v4973
        %v5526 = vpack.c.b16 %v4982, %v4974
        %v5527 = vpack.c.b16 %v4983, %v4975
        %v5528 = vpack.c.b16 %v4984, %v4976
        %v5529 = vpack.c.b16 %v4985, %v4977
        %v5530 = vpack.c.b16 %v4986, %v4978
        %v5531 = vpack.c.b16 %v4987, %v4979
        %v5532 = vpack.c.b16 %v4996, %v4988
        %v5533 = vpack.c.b16 %v4997, %v4989
        %v5534 = vpack.c.b16 %v4998, %v4990
        %v5535 = vpack.c.b16 %v4999, %v4991
        %v5536 = vpack.c.b16 %v5000, %v4992
        %v5537 = vpack.c.b16 %v5001, %v4993
        %v5538 = vpack.c.b16 %v5002, %v4994
        %v5539 = vpack.c.b16 %v5003, %v4995
        %v5540 = vpack.c.b16 %v5012, %v5004
        %v5541 = vpack.c.b16 %v5013, %v5005
        %v5542 = vpack.c.b16 %v5014, %v5006
        %v5543 = vpack.c.b16 %v5015, %v5007
        %v5544 = vpack.c.b16 %v5016, %v5008
        %v5545 = vpack.c.b16 %v5017, %v5009
        %v5546 = vpack.c.b16 %v5018, %v5010
        %v5547 = vpack.c.b16 %v5019, %v5011
        %v5548 = vpack.c.b16 %v5028, %v5020
        %v5549 = vpack.c.b16 %v5029, %v5021
        %v5550 = vpack.c.b16 %v5030, %v5022
        %v5551 = vpack.c.b16 %v5031, %v5023
        %v5552 = vpack.c.b16 %v5032, %v5024
        %v5553 = vpack.c.b16 %v5033, %v5025
        %v5554 = vpack.c.b16 %v5034, %v5026
        %v5555 = vpack.c.b16 %v5035, %v5027
        %v5556 = vpack.c.b16 %v5044, %v5036
        %v5557 = vpack.c.b16 %v5045, %v5037
        %v5558 = vpack.c.b16 %v5046, %v5038
        %v5559 = vpack.c.b16 %v5047, %v5039
        %v5560 = vpack.c.b16 %v5048, %v5040
        %v5561 = vpack.c.b16 %v5049, %v5041
        %v5562 = vpack.c.b16 %v5050, %v5042
        %v5563 = vpack.c.b16 %v5051, %v5043
        %6076 = vmatprep.subr.bf16.mxu0 %v5109
        %6077 = vmatpush1.bf16.msra.mxu0 %v5108
        %6078 = vmatprep.subr.bf16.mxu0 %v5101
        %6079 = vmatpush1.bf16.msra.mxu0 %v5100
        %6080 = vmatprep.subr.bf16.mxu0 %v5093
        %6081 = vmatpush1.bf16.msra.mxu0 %v5092
        %6082 = vmatprep.subr.bf16.mxu0 %v5085
        %6083 = vmatpush1.bf16.msra.mxu0 %v5084
        %6084 = vmatprep.subr.bf16.mxu0 %v5077
        %6085 = vmatpush1.bf16.msra.mxu0 %v5076
        %6086 = vmatprep.subr.bf16.mxu0 %v5069
        %6087 = vmatpush1.bf16.msra.mxu0 %v5068
        %6088 = vmatprep.subr.bf16.mxu0 %v5061
        %6089 = vmatpush1.bf16.msra.mxu0 %v5060
        %6090 = vmatprep.subr.bf16.mxu0 %v5053
        %6091 = vmatpush1.bf16.msra.mxu0 %v5052
        %6092 = vmatprep.subr.bf16.mxu0 %v5173
        %6093 = vmatpush2.bf16.msra.mxu0 %v5172
        %6094 = vmatprep.subr.bf16.mxu0 %v5165
        %6095 = vmatpush2.bf16.msra.mxu0 %v5164
        %6096 = vmatprep.subr.bf16.mxu0 %v5157
        %6097 = vmatpush2.bf16.msra.mxu0 %v5156
        %6098 = vmatprep.subr.bf16.mxu0 %v5149
        %6099 = vmatpush2.bf16.msra.mxu0 %v5148
        %6100 = vmatprep.subr.bf16.mxu0 %v5141
        %6101 = vmatpush2.bf16.msra.mxu0 %v5140
        %6102 = vmatprep.subr.bf16.mxu0 %v5133
        %6103 = vmatpush2.bf16.msra.mxu0 %v5132
        %6104 = vmatprep.subr.bf16.mxu0 %v5125
        %6105 = vmatpush2.bf16.msra.mxu0 %v5124
        %6106 = vmatprep.subr.bf16.mxu0 %v5117
        %6107 = vmatpush2.bf16.msra.mxu0 %v5116
        %6108 = vmatprep.mubr.bf16.mxu0 %v2955
        %6109 = vmatmul.mubr.bf16.gmra.mxu0 %v2954
        %v6110 = vpop.f32.mrf.mxu0
        %v6111 = vadd.f32 %v3479, %v6110
        %v6112 = vpop.f32.mrf.mxu0
        %v6113 = vadd.f32 %v3483, %v6112
        %v6114 = vpop.f32.mrf.mxu0
        %v6115 = vadd.f32 %v3479, %v6114
        %v6116 = vpop.f32.mrf.mxu0
        %v6117 = vadd.f32 %v3483, %v6116
        %6118 = vdwg.mxu0
        %6119 = vmatprep.subr.bf16.mxu0 %v5237
        %6120 = vmatpush1.bf16.msra.mxu0 %v5236
        %6121 = vmatprep.subr.bf16.mxu0 %v5229
        %6122 = vmatpush1.bf16.msra.mxu0 %v5228
        %6123 = vmatprep.subr.bf16.mxu0 %v5221
        %6124 = vmatpush1.bf16.msra.mxu0 %v5220
        %6125 = vmatprep.subr.bf16.mxu0 %v5213
        %6126 = vmatpush1.bf16.msra.mxu0 %v5212
        %6127 = vmatprep.subr.bf16.mxu0 %v5205
        %6128 = vmatpush1.bf16.msra.mxu0 %v5204
        %6129 = vmatprep.subr.bf16.mxu0 %v5197
        %6130 = vmatpush1.bf16.msra.mxu0 %v5196
        %6131 = vmatprep.subr.bf16.mxu0 %v5189
        %6132 = vmatpush1.bf16.msra.mxu0 %v5188
        %6133 = vmatprep.subr.bf16.mxu0 %v5181
        %6134 = vmatpush1.bf16.msra.mxu0 %v5180
        %6135 = vmatprep.subr.bf16.mxu0 %v5301
        %6136 = vmatpush2.bf16.msra.mxu0 %v5300
        %6137 = vmatprep.subr.bf16.mxu0 %v5293
        %6138 = vmatpush2.bf16.msra.mxu0 %v5292
        %6139 = vmatprep.subr.bf16.mxu0 %v5285
        %6140 = vmatpush2.bf16.msra.mxu0 %v5284
        %6141 = vmatprep.subr.bf16.mxu0 %v5277
        %6142 = vmatpush2.bf16.msra.mxu0 %v5276
        %6143 = vmatprep.subr.bf16.mxu0 %v5269
        %6144 = vmatpush2.bf16.msra.mxu0 %v5268
        %6145 = vmatprep.subr.bf16.mxu0 %v5261
        %6146 = vmatpush2.bf16.msra.mxu0 %v5260
        %6147 = vmatprep.subr.bf16.mxu0 %v5253
        %6148 = vmatpush2.bf16.msra.mxu0 %v5252
        %6149 = vmatprep.subr.bf16.mxu0 %v5245
        %6150 = vmatpush2.bf16.msra.mxu0 %v5244
        %6151 = vmatprep.mubr.bf16.mxu0 %v2957
        %6152 = vmatmul.mubr.bf16.gmra.mxu0 %v2956
        %v6153 = vpop.f32.mrf.mxu0
        %v6154 = vadd.f32 %v6111, %v6153
        %v6155 = vpop.f32.mrf.mxu0
        %v6156 = vadd.f32 %v6113, %v6155
        %v6157 = vpop.f32.mrf.mxu0
        %v6158 = vadd.f32 %v6115, %v6157
        %v6159 = vpop.f32.mrf.mxu0
        %v6160 = vadd.f32 %v6117, %v6159
        %6161 = vdwg.mxu0
        %6162 = vmatprep.subr.bf16.mxu0 %v5365
        %6163 = vmatpush1.bf16.msra.mxu0 %v5364
        %6164 = vmatprep.subr.bf16.mxu0 %v5357
        %6165 = vmatpush1.bf16.msra.mxu0 %v5356
        %6166 = vmatprep.subr.bf16.mxu0 %v5349
        %6167 = vmatpush1.bf16.msra.mxu0 %v5348
        %6168 = vmatprep.subr.bf16.mxu0 %v5341
        %6169 = vmatpush1.bf16.msra.mxu0 %v5340
        %6170 = vmatprep.subr.bf16.mxu0 %v5333
        %6171 = vmatpush1.bf16.msra.mxu0 %v5332
        %6172 = vmatprep.subr.bf16.mxu0 %v5325
        %6173 = vmatpush1.bf16.msra.mxu0 %v5324
        %6174 = vmatprep.subr.bf16.mxu0 %v5317
        %6175 = vmatpush1.bf16.msra.mxu0 %v5316
        %6176 = vmatprep.subr.bf16.mxu0 %v5309
        %6177 = vmatpush1.bf16.msra.mxu0 %v5308
        %6178 = vmatprep.subr.bf16.mxu0 %v5429
        %6179 = vmatpush2.bf16.msra.mxu0 %v5428
        %6180 = vmatprep.subr.bf16.mxu0 %v5421
        %6181 = vmatpush2.bf16.msra.mxu0 %v5420
        %6182 = vmatprep.subr.bf16.mxu0 %v5413
        %6183 = vmatpush2.bf16.msra.mxu0 %v5412
        %6184 = vmatprep.subr.bf16.mxu0 %v5405
        %6185 = vmatpush2.bf16.msra.mxu0 %v5404
        %6186 = vmatprep.subr.bf16.mxu0 %v5397
        %6187 = vmatpush2.bf16.msra.mxu0 %v5396
        %6188 = vmatprep.subr.bf16.mxu0 %v5389
        %6189 = vmatpush2.bf16.msra.mxu0 %v5388
        %6190 = vmatprep.subr.bf16.mxu0 %v5381
        %6191 = vmatpush2.bf16.msra.mxu0 %v5380
        %6192 = vmatprep.subr.bf16.mxu0 %v5373
        %6193 = vmatpush2.bf16.msra.mxu0 %v5372
        %6194 = vmatprep.mubr.bf16.mxu0 %v2959
        %6195 = vmatmul.mubr.bf16.gmra.mxu0 %v2958
        %v6196 = vpop.f32.mrf.mxu0
        %v6197 = vadd.f32 %v6154, %v6196
        %v6198 = vpop.f32.mrf.mxu0
        %v6199 = vadd.f32 %v6156, %v6198
        %v6200 = vpop.f32.mrf.mxu0
        %v6201 = vadd.f32 %v6158, %v6200
        %v6202 = vpop.f32.mrf.mxu0
        %v6203 = vadd.f32 %v6160, %v6202
        %6204 = vdwg.mxu0
        %6205 = vmatprep.subr.bf16.mxu0 %v5493
        %6206 = vmatpush1.bf16.msra.mxu0 %v5492
        %6207 = vmatprep.subr.bf16.mxu0 %v5485
        %6208 = vmatpush1.bf16.msra.mxu0 %v5484
        %6209 = vmatprep.subr.bf16.mxu0 %v5477
        %6210 = vmatpush1.bf16.msra.mxu0 %v5476
        %6211 = vmatprep.subr.bf16.mxu0 %v5469
        %6212 = vmatpush1.bf16.msra.mxu0 %v5468
        %6213 = vmatprep.subr.bf16.mxu0 %v5461
        %6214 = vmatpush1.bf16.msra.mxu0 %v5460
        %6215 = vmatprep.subr.bf16.mxu0 %v5453
        %6216 = vmatpush1.bf16.msra.mxu0 %v5452
        %6217 = vmatprep.subr.bf16.mxu0 %v5445
        %6218 = vmatpush1.bf16.msra.mxu0 %v5444
        %6219 = vmatprep.subr.bf16.mxu0 %v5437
        %6220 = vmatpush1.bf16.msra.mxu0 %v5436
        %6221 = vmatprep.subr.bf16.mxu0 %v5557
        %6222 = vmatpush2.bf16.msra.mxu0 %v5556
        %6223 = vmatprep.subr.bf16.mxu0 %v5549
        %6224 = vmatpush2.bf16.msra.mxu0 %v5548
        %6225 = vmatprep.subr.bf16.mxu0 %v5541
        %6226 = vmatpush2.bf16.msra.mxu0 %v5540
        %6227 = vmatprep.subr.bf16.mxu0 %v5533
        %6228 = vmatpush2.bf16.msra.mxu0 %v5532
        %6229 = vmatprep.subr.bf16.mxu0 %v5525
        %6230 = vmatpush2.bf16.msra.mxu0 %v5524
        %6231 = vmatprep.subr.bf16.mxu0 %v5517
        %6232 = vmatpush2.bf16.msra.mxu0 %v5516
        %6233 = vmatprep.subr.bf16.mxu0 %v5509
        %6234 = vmatpush2.bf16.msra.mxu0 %v5508
        %6235 = vmatprep.subr.bf16.mxu0 %v5501
        %6236 = vmatpush2.bf16.msra.mxu0 %v5500
        %6237 = vmatprep.mubr.bf16.mxu0 %v2961
        %6238 = vmatmul.mubr.bf16.gmra.mxu0 %v2960
        %v6239 = vpop.f32.mrf.mxu0
        %v6240 = vadd.f32 %v6197, %v6239
        %v6241 = vpop.f32.mrf.mxu0
        %v6242 = vadd.f32 %v6199, %v6241
        %v6243 = vpop.f32.mrf.mxu0
        %v6244 = vadd.f32 %v6201, %v6243
        %v6245 = vpop.f32.mrf.mxu0
        %v6246 = vadd.f32 %v6203, %v6245
        %6247 = vdwg.mxu0
        %6248 = vmatprep.subr.bf16.mxu0 %v5111
        %6249 = vmatpush1.bf16.msra.mxu0 %v5110
        %6250 = vmatprep.subr.bf16.mxu0 %v5103
        %6251 = vmatpush1.bf16.msra.mxu0 %v5102
        %6252 = vmatprep.subr.bf16.mxu0 %v5095
        %6253 = vmatpush1.bf16.msra.mxu0 %v5094
        %6254 = vmatprep.subr.bf16.mxu0 %v5087
        %6255 = vmatpush1.bf16.msra.mxu0 %v5086
        %6256 = vmatprep.subr.bf16.mxu0 %v5079
        %6257 = vmatpush1.bf16.msra.mxu0 %v5078
        %6258 = vmatprep.subr.bf16.mxu0 %v5071
        %6259 = vmatpush1.bf16.msra.mxu0 %v5070
        %6260 = vmatprep.subr.bf16.mxu0 %v5063
        %6261 = vmatpush1.bf16.msra.mxu0 %v5062
        %6262 = vmatprep.subr.bf16.mxu0 %v5055
        %6263 = vmatpush1.bf16.msra.mxu0 %v5054
        %6264 = vmatprep.subr.bf16.mxu0 %v5175
        %6265 = vmatpush2.bf16.msra.mxu0 %v5174
        %6266 = vmatprep.subr.bf16.mxu0 %v5167
        %6267 = vmatpush2.bf16.msra.mxu0 %v5166
        %6268 = vmatprep.subr.bf16.mxu0 %v5159
        %6269 = vmatpush2.bf16.msra.mxu0 %v5158
        %6270 = vmatprep.subr.bf16.mxu0 %v5151
        %6271 = vmatpush2.bf16.msra.mxu0 %v5150
        %6272 = vmatprep.subr.bf16.mxu0 %v5143
        %6273 = vmatpush2.bf16.msra.mxu0 %v5142
        %6274 = vmatprep.subr.bf16.mxu0 %v5135
        %6275 = vmatpush2.bf16.msra.mxu0 %v5134
        %6276 = vmatprep.subr.bf16.mxu0 %v5127
        %6277 = vmatpush2.bf16.msra.mxu0 %v5126
        %6278 = vmatprep.subr.bf16.mxu0 %v5119
        %6279 = vmatpush2.bf16.msra.mxu0 %v5118
        %6280 = vmatprep.mubr.bf16.mxu0 %v2955
        %6281 = vmatmul.mubr.bf16.gmra.mxu0 %v2954
        %v6282 = vpop.f32.mrf.mxu0
        %v6283 = vadd.f32 %v3487, %v6282
        %v6284 = vpop.f32.mrf.mxu0
        %v6285 = vadd.f32 %v3491, %v6284
        %v6286 = vpop.f32.mrf.mxu0
        %v6287 = vadd.f32 %v3487, %v6286
        %v6288 = vpop.f32.mrf.mxu0
        %v6289 = vadd.f32 %v3491, %v6288
        %6290 = vdwg.mxu0
        %6291 = vmatprep.subr.bf16.mxu0 %v5239
        %6292 = vmatpush1.bf16.msra.mxu0 %v5238
        %6293 = vmatprep.subr.bf16.mxu0 %v5231
        %6294 = vmatpush1.bf16.msra.mxu0 %v5230
        %6295 = vmatprep.subr.bf16.mxu0 %v5223
        %6296 = vmatpush1.bf16.msra.mxu0 %v5222
        %6297 = vmatprep.subr.bf16.mxu0 %v5215
        %6298 = vmatpush1.bf16.msra.mxu0 %v5214
        %6299 = vmatprep.subr.bf16.mxu0 %v5207
        %6300 = vmatpush1.bf16.msra.mxu0 %v5206
        %6301 = vmatprep.subr.bf16.mxu0 %v5199
        %6302 = vmatpush1.bf16.msra.mxu0 %v5198
        %6303 = vmatprep.subr.bf16.mxu0 %v5191
        %6304 = vmatpush1.bf16.msra.mxu0 %v5190
        %6305 = vmatprep.subr.bf16.mxu0 %v5183
        %6306 = vmatpush1.bf16.msra.mxu0 %v5182
        %6307 = vmatprep.subr.bf16.mxu0 %v5303
        %6308 = vmatpush2.bf16.msra.mxu0 %v5302
        %6309 = vmatprep.subr.bf16.mxu0 %v5295
        %6310 = vmatpush2.bf16.msra.mxu0 %v5294
        %6311 = vmatprep.subr.bf16.mxu0 %v5287
        %6312 = vmatpush2.bf16.msra.mxu0 %v5286
        %6313 = vmatprep.subr.bf16.mxu0 %v5279
        %6314 = vmatpush2.bf16.msra.mxu0 %v5278
        %6315 = vmatprep.subr.bf16.mxu0 %v5271
        %6316 = vmatpush2.bf16.msra.mxu0 %v5270
        %6317 = vmatprep.subr.bf16.mxu0 %v5263
        %6318 = vmatpush2.bf16.msra.mxu0 %v5262
        %6319 = vmatprep.subr.bf16.mxu0 %v5255
        %6320 = vmatpush2.bf16.msra.mxu0 %v5254
        %6321 = vmatprep.subr.bf16.mxu0 %v5247
        %6322 = vmatpush2.bf16.msra.mxu0 %v5246
        %6323 = vmatprep.mubr.bf16.mxu0 %v2957
        %6324 = vmatmul.mubr.bf16.gmra.mxu0 %v2956
        %v6325 = vpop.f32.mrf.mxu0
        %v6326 = vadd.f32 %v6283, %v6325
        %v6327 = vpop.f32.mrf.mxu0
        %v6328 = vadd.f32 %v6285, %v6327
        %v6329 = vpop.f32.mrf.mxu0
        %v6330 = vadd.f32 %v6287, %v6329
        %v6331 = vpop.f32.mrf.mxu0
        %v6332 = vadd.f32 %v6289, %v6331
        %6333 = vdwg.mxu0
        %6334 = vmatprep.subr.bf16.mxu0 %v5367
        %6335 = vmatpush1.bf16.msra.mxu0 %v5366
        %6336 = vmatprep.subr.bf16.mxu0 %v5359
        %6337 = vmatpush1.bf16.msra.mxu0 %v5358
        %6338 = vmatprep.subr.bf16.mxu0 %v5351
        %6339 = vmatpush1.bf16.msra.mxu0 %v5350
        %6340 = vmatprep.subr.bf16.mxu0 %v5343
        %6341 = vmatpush1.bf16.msra.mxu0 %v5342
        %6342 = vmatprep.subr.bf16.mxu0 %v5335
        %6343 = vmatpush1.bf16.msra.mxu0 %v5334
        %6344 = vmatprep.subr.bf16.mxu0 %v5327
        %6345 = vmatpush1.bf16.msra.mxu0 %v5326
        %6346 = vmatprep.subr.bf16.mxu0 %v5319
        %6347 = vmatpush1.bf16.msra.mxu0 %v5318
        %6348 = vmatprep.subr.bf16.mxu0 %v5311
        %6349 = vmatpush1.bf16.msra.mxu0 %v5310
        %6350 = vmatprep.subr.bf16.mxu0 %v5431
        %6351 = vmatpush2.bf16.msra.mxu0 %v5430
        %6352 = vmatprep.subr.bf16.mxu0 %v5423
        %6353 = vmatpush2.bf16.msra.mxu0 %v5422
        %6354 = vmatprep.subr.bf16.mxu0 %v5415
        %6355 = vmatpush2.bf16.msra.mxu0 %v5414
        %6356 = vmatprep.subr.bf16.mxu0 %v5407
        %6357 = vmatpush2.bf16.msra.mxu0 %v5406
        %6358 = vmatprep.subr.bf16.mxu0 %v5399
        %6359 = vmatpush2.bf16.msra.mxu0 %v5398
        %6360 = vmatprep.subr.bf16.mxu0 %v5391
        %6361 = vmatpush2.bf16.msra.mxu0 %v5390
        %6362 = vmatprep.subr.bf16.mxu0 %v5383
        %6363 = vmatpush2.bf16.msra.mxu0 %v5382
        %6364 = vmatprep.subr.bf16.mxu0 %v5375
        %6365 = vmatpush2.bf16.msra.mxu0 %v5374
        %6366 = vmatprep.mubr.bf16.mxu0 %v2959
        %6367 = vmatmul.mubr.bf16.gmra.mxu0 %v2958
        %v6368 = vpop.f32.mrf.mxu0
        %v6369 = vadd.f32 %v6326, %v6368
        %v6370 = vpop.f32.mrf.mxu0
        %v6371 = vadd.f32 %v6328, %v6370
        %v6372 = vpop.f32.mrf.mxu0
        %v6373 = vadd.f32 %v6330, %v6372
        %v6374 = vpop.f32.mrf.mxu0
        %v6375 = vadd.f32 %v6332, %v6374
        %6376 = vdwg.mxu0
        %6377 = vmatprep.subr.bf16.mxu0 %v5495
        %6378 = vmatpush1.bf16.msra.mxu0 %v5494
        %6379 = vmatprep.subr.bf16.mxu0 %v5487
        %6380 = vmatpush1.bf16.msra.mxu0 %v5486
        %6381 = vmatprep.subr.bf16.mxu0 %v5479
        %6382 = vmatpush1.bf16.msra.mxu0 %v5478
        %6383 = vmatprep.subr.bf16.mxu0 %v5471
        %6384 = vmatpush1.bf16.msra.mxu0 %v5470
        %6385 = vmatprep.subr.bf16.mxu0 %v5463
        %6386 = vmatpush1.bf16.msra.mxu0 %v5462
        %6387 = vmatprep.subr.bf16.mxu0 %v5455
        %6388 = vmatpush1.bf16.msra.mxu0 %v5454
        %6389 = vmatprep.subr.bf16.mxu0 %v5447
        %6390 = vmatpush1.bf16.msra.mxu0 %v5446
        %6391 = vmatprep.subr.bf16.mxu0 %v5439
        %6392 = vmatpush1.bf16.msra.mxu0 %v5438
        %6393 = vmatprep.subr.bf16.mxu0 %v5559
        %6394 = vmatpush2.bf16.msra.mxu0 %v5558
        %6395 = vmatprep.subr.bf16.mxu0 %v5551
        %6396 = vmatpush2.bf16.msra.mxu0 %v5550
        %6397 = vmatprep.subr.bf16.mxu0 %v5543
        %6398 = vmatpush2.bf16.msra.mxu0 %v5542
        %6399 = vmatprep.subr.bf16.mxu0 %v5535
        %6400 = vmatpush2.bf16.msra.mxu0 %v5534
        %6401 = vmatprep.subr.bf16.mxu0 %v5527
        %6402 = vmatpush2.bf16.msra.mxu0 %v5526
        %6403 = vmatprep.subr.bf16.mxu0 %v5519
        %6404 = vmatpush2.bf16.msra.mxu0 %v5518
        %6405 = vmatprep.subr.bf16.mxu0 %v5511
        %6406 = vmatpush2.bf16.msra.mxu0 %v5510
        %6407 = vmatprep.subr.bf16.mxu0 %v5503
        %6408 = vmatpush2.bf16.msra.mxu0 %v5502
        %6409 = vmatprep.mubr.bf16.mxu0 %v2961
        %6410 = vmatmul.mubr.bf16.gmra.mxu0 %v2960
        %v6411 = vpop.f32.mrf.mxu0
        %v6412 = vadd.f32 %v6369, %v6411
        %v6413 = vpop.f32.mrf.mxu0
        %v6414 = vadd.f32 %v6371, %v6413
        %v6415 = vpop.f32.mrf.mxu0
        %v6416 = vadd.f32 %v6373, %v6415
        %v6417 = vpop.f32.mrf.mxu0
        %v6418 = vadd.f32 %v6375, %v6417
        %6419 = vdwg.mxu0
        %6420 = vmatprep.subr.bf16.mxu0 %v5113
        %6421 = vmatpush1.bf16.msra.mxu0 %v5112
        %6422 = vmatprep.subr.bf16.mxu0 %v5105
        %6423 = vmatpush1.bf16.msra.mxu0 %v5104
        %6424 = vmatprep.subr.bf16.mxu0 %v5097
        %6425 = vmatpush1.bf16.msra.mxu0 %v5096
        %6426 = vmatprep.subr.bf16.mxu0 %v5089
        %6427 = vmatpush1.bf16.msra.mxu0 %v5088
        %6428 = vmatprep.subr.bf16.mxu0 %v5081
        %6429 = vmatpush1.bf16.msra.mxu0 %v5080
        %6430 = vmatprep.subr.bf16.mxu0 %v5073
        %6431 = vmatpush1.bf16.msra.mxu0 %v5072
        %6432 = vmatprep.subr.bf16.mxu0 %v5065
        %6433 = vmatpush1.bf16.msra.mxu0 %v5064
        %6434 = vmatprep.subr.bf16.mxu0 %v5057
        %6435 = vmatpush1.bf16.msra.mxu0 %v5056
        %6436 = vmatprep.subr.bf16.mxu0 %v5177
        %6437 = vmatpush2.bf16.msra.mxu0 %v5176
        %6438 = vmatprep.subr.bf16.mxu0 %v5169
        %6439 = vmatpush2.bf16.msra.mxu0 %v5168
        %6440 = vmatprep.subr.bf16.mxu0 %v5161
        %6441 = vmatpush2.bf16.msra.mxu0 %v5160
        %6442 = vmatprep.subr.bf16.mxu0 %v5153
        %6443 = vmatpush2.bf16.msra.mxu0 %v5152
        %6444 = vmatprep.subr.bf16.mxu0 %v5145
        %6445 = vmatpush2.bf16.msra.mxu0 %v5144
        %6446 = vmatprep.subr.bf16.mxu0 %v5137
        %6447 = vmatpush2.bf16.msra.mxu0 %v5136
        %6448 = vmatprep.subr.bf16.mxu0 %v5129
        %6449 = vmatpush2.bf16.msra.mxu0 %v5128
        %6450 = vmatprep.subr.bf16.mxu0 %v5121
        %6451 = vmatpush2.bf16.msra.mxu0 %v5120
        %6452 = vmatprep.mubr.bf16.mxu0 %v2955
        %6453 = vmatmul.mubr.bf16.gmra.mxu0 %v2954
        %v6454 = vpop.f32.mrf.mxu0
        %v6455 = vadd.f32 %v3495, %v6454
        %v6456 = vpop.f32.mrf.mxu0
        %v6457 = vadd.f32 %v3499, %v6456
        %v6458 = vpop.f32.mrf.mxu0
        %v6459 = vadd.f32 %v3495, %v6458
        %v6460 = vpop.f32.mrf.mxu0
        %v6461 = vadd.f32 %v3499, %v6460
        %6462 = vdwg.mxu0
        %6463 = vmatprep.subr.bf16.mxu0 %v5241
        %6464 = vmatpush1.bf16.msra.mxu0 %v5240
        %6465 = vmatprep.subr.bf16.mxu0 %v5233
        %6466 = vmatpush1.bf16.msra.mxu0 %v5232
        %6467 = vmatprep.subr.bf16.mxu0 %v5225
        %6468 = vmatpush1.bf16.msra.mxu0 %v5224
        %6469 = vmatprep.subr.bf16.mxu0 %v5217
        %6470 = vmatpush1.bf16.msra.mxu0 %v5216
        %6471 = vmatprep.subr.bf16.mxu0 %v5209
        %6472 = vmatpush1.bf16.msra.mxu0 %v5208
        %6473 = vmatprep.subr.bf16.mxu0 %v5201
        %6474 = vmatpush1.bf16.msra.mxu0 %v5200
        %6475 = vmatprep.subr.bf16.mxu0 %v5193
        %6476 = vmatpush1.bf16.msra.mxu0 %v5192
        %6477 = vmatprep.subr.bf16.mxu0 %v5185
        %6478 = vmatpush1.bf16.msra.mxu0 %v5184
        %6479 = vmatprep.subr.bf16.mxu0 %v5305
        %6480 = vmatpush2.bf16.msra.mxu0 %v5304
        %6481 = vmatprep.subr.bf16.mxu0 %v5297
        %6482 = vmatpush2.bf16.msra.mxu0 %v5296
        %6483 = vmatprep.subr.bf16.mxu0 %v5289
        %6484 = vmatpush2.bf16.msra.mxu0 %v5288
        %6485 = vmatprep.subr.bf16.mxu0 %v5281
        %6486 = vmatpush2.bf16.msra.mxu0 %v5280
        %6487 = vmatprep.subr.bf16.mxu0 %v5273
        %6488 = vmatpush2.bf16.msra.mxu0 %v5272
        %6489 = vmatprep.subr.bf16.mxu0 %v5265
        %6490 = vmatpush2.bf16.msra.mxu0 %v5264
        %6491 = vmatprep.subr.bf16.mxu0 %v5257
        %6492 = vmatpush2.bf16.msra.mxu0 %v5256
        %6493 = vmatprep.subr.bf16.mxu0 %v5249
        %6494 = vmatpush2.bf16.msra.mxu0 %v5248
        %6495 = vmatprep.mubr.bf16.mxu0 %v2957
        %6496 = vmatmul.mubr.bf16.gmra.mxu0 %v2956
        %v6497 = vpop.f32.mrf.mxu0
        %v6498 = vadd.f32 %v6455, %v6497
        %v6499 = vpop.f32.mrf.mxu0
        %v6500 = vadd.f32 %v6457, %v6499
        %v6501 = vpop.f32.mrf.mxu0
        %v6502 = vadd.f32 %v6459, %v6501
        %v6503 = vpop.f32.mrf.mxu0
        %v6504 = vadd.f32 %v6461, %v6503
        %6505 = vdwg.mxu0
        %6506 = vmatprep.subr.bf16.mxu0 %v5369
        %6507 = vmatpush1.bf16.msra.mxu0 %v5368
        %6508 = vmatprep.subr.bf16.mxu0 %v5361
        %6509 = vmatpush1.bf16.msra.mxu0 %v5360
        %6510 = vmatprep.subr.bf16.mxu0 %v5353
        %6511 = vmatpush1.bf16.msra.mxu0 %v5352
        %6512 = vmatprep.subr.bf16.mxu0 %v5345
        %6513 = vmatpush1.bf16.msra.mxu0 %v5344
        %6514 = vmatprep.subr.bf16.mxu0 %v5337
        %6515 = vmatpush1.bf16.msra.mxu0 %v5336
        %6516 = vmatprep.subr.bf16.mxu0 %v5329
        %6517 = vmatpush1.bf16.msra.mxu0 %v5328
        %6518 = vmatprep.subr.bf16.mxu0 %v5321
        %6519 = vmatpush1.bf16.msra.mxu0 %v5320
        %6520 = vmatprep.subr.bf16.mxu0 %v5313
        %6521 = vmatpush1.bf16.msra.mxu0 %v5312
        %6522 = vmatprep.subr.bf16.mxu0 %v5433
        %6523 = vmatpush2.bf16.msra.mxu0 %v5432
        %6524 = vmatprep.subr.bf16.mxu0 %v5425
        %6525 = vmatpush2.bf16.msra.mxu0 %v5424
        %6526 = vmatprep.subr.bf16.mxu0 %v5417
        %6527 = vmatpush2.bf16.msra.mxu0 %v5416
        %6528 = vmatprep.subr.bf16.mxu0 %v5409
        %6529 = vmatpush2.bf16.msra.mxu0 %v5408
        %6530 = vmatprep.subr.bf16.mxu0 %v5401
        %6531 = vmatpush2.bf16.msra.mxu0 %v5400
        %6532 = vmatprep.subr.bf16.mxu0 %v5393
        %6533 = vmatpush2.bf16.msra.mxu0 %v5392
        %6534 = vmatprep.subr.bf16.mxu0 %v5385
        %6535 = vmatpush2.bf16.msra.mxu0 %v5384
        %6536 = vmatprep.subr.bf16.mxu0 %v5377
        %6537 = vmatpush2.bf16.msra.mxu0 %v5376
        %6538 = vmatprep.mubr.bf16.mxu0 %v2959
        %6539 = vmatmul.mubr.bf16.gmra.mxu0 %v2958
        %v6540 = vpop.f32.mrf.mxu0
        %v6541 = vadd.f32 %v6498, %v6540
        %v6542 = vpop.f32.mrf.mxu0
        %v6543 = vadd.f32 %v6500, %v6542
        %v6544 = vpop.f32.mrf.mxu0
        %v6545 = vadd.f32 %v6502, %v6544
        %v6546 = vpop.f32.mrf.mxu0
        %v6547 = vadd.f32 %v6504, %v6546
        %6548 = vdwg.mxu0
        %6549 = vmatprep.subr.bf16.mxu0 %v5497
        %6550 = vmatpush1.bf16.msra.mxu0 %v5496
        %6551 = vmatprep.subr.bf16.mxu0 %v5489
        %6552 = vmatpush1.bf16.msra.mxu0 %v5488
        %6553 = vmatprep.subr.bf16.mxu0 %v5481
        %6554 = vmatpush1.bf16.msra.mxu0 %v5480
        %6555 = vmatprep.subr.bf16.mxu0 %v5473
        %6556 = vmatpush1.bf16.msra.mxu0 %v5472
        %6557 = vmatprep.subr.bf16.mxu0 %v5465
        %6558 = vmatpush1.bf16.msra.mxu0 %v5464
        %6559 = vmatprep.subr.bf16.mxu0 %v5457
        %6560 = vmatpush1.bf16.msra.mxu0 %v5456
        %6561 = vmatprep.subr.bf16.mxu0 %v5449
        %6562 = vmatpush1.bf16.msra.mxu0 %v5448
        %6563 = vmatprep.subr.bf16.mxu0 %v5441
        %6564 = vmatpush1.bf16.msra.mxu0 %v5440
        %6565 = vmatprep.subr.bf16.mxu0 %v5561
        %6566 = vmatpush2.bf16.msra.mxu0 %v5560
        %6567 = vmatprep.subr.bf16.mxu0 %v5553
        %6568 = vmatpush2.bf16.msra.mxu0 %v5552
        %6569 = vmatprep.subr.bf16.mxu0 %v5545
        %6570 = vmatpush2.bf16.msra.mxu0 %v5544
        %6571 = vmatprep.subr.bf16.mxu0 %v5537
        %6572 = vmatpush2.bf16.msra.mxu0 %v5536
        %6573 = vmatprep.subr.bf16.mxu0 %v5529
        %6574 = vmatpush2.bf16.msra.mxu0 %v5528
        %6575 = vmatprep.subr.bf16.mxu0 %v5521
        %6576 = vmatpush2.bf16.msra.mxu0 %v5520
        %6577 = vmatprep.subr.bf16.mxu0 %v5513
        %6578 = vmatpush2.bf16.msra.mxu0 %v5512
        %6579 = vmatprep.subr.bf16.mxu0 %v5505
        %6580 = vmatpush2.bf16.msra.mxu0 %v5504
        %6581 = vmatprep.mubr.bf16.mxu0 %v2961
        %6582 = vmatmul.mubr.bf16.gmra.mxu0 %v2960
        %v6583 = vpop.f32.mrf.mxu0
        %v6584 = vadd.f32 %v6541, %v6583
        %v6585 = vpop.f32.mrf.mxu0
        %v6586 = vadd.f32 %v6543, %v6585
        %v6587 = vpop.f32.mrf.mxu0
        %v6588 = vadd.f32 %v6545, %v6587
        %v6589 = vpop.f32.mrf.mxu0
        %v6590 = vadd.f32 %v6547, %v6589
        %6591 = vdwg.mxu0
        %6592 = vmatprep.subr.bf16.mxu0 %v5115
        %6593 = vmatpush1.bf16.msra.mxu0 %v5114
        %6594 = vmatprep.subr.bf16.mxu0 %v5107
        %6595 = vmatpush1.bf16.msra.mxu0 %v5106
        %6596 = vmatprep.subr.bf16.mxu0 %v5099
        %6597 = vmatpush1.bf16.msra.mxu0 %v5098
        %6598 = vmatprep.subr.bf16.mxu0 %v5091
        %6599 = vmatpush1.bf16.msra.mxu0 %v5090
        %6600 = vmatprep.subr.bf16.mxu0 %v5083
        %6601 = vmatpush1.bf16.msra.mxu0 %v5082
        %6602 = vmatprep.subr.bf16.mxu0 %v5075
        %6603 = vmatpush1.bf16.msra.mxu0 %v5074
        %6604 = vmatprep.subr.bf16.mxu0 %v5067
        %6605 = vmatpush1.bf16.msra.mxu0 %v5066
        %6606 = vmatprep.subr.bf16.mxu0 %v5059
        %6607 = vmatpush1.bf16.msra.mxu0 %v5058
        %6608 = vmatprep.subr.bf16.mxu0 %v5179
        %6609 = vmatpush2.bf16.msra.mxu0 %v5178
        %6610 = vmatprep.subr.bf16.mxu0 %v5171
        %6611 = vmatpush2.bf16.msra.mxu0 %v5170
        %6612 = vmatprep.subr.bf16.mxu0 %v5163
        %6613 = vmatpush2.bf16.msra.mxu0 %v5162
        %6614 = vmatprep.subr.bf16.mxu0 %v5155
        %6615 = vmatpush2.bf16.msra.mxu0 %v5154
        %6616 = vmatprep.subr.bf16.mxu0 %v5147
        %6617 = vmatpush2.bf16.msra.mxu0 %v5146
        %6618 = vmatprep.subr.bf16.mxu0 %v5139
        %6619 = vmatpush2.bf16.msra.mxu0 %v5138
        %6620 = vmatprep.subr.bf16.mxu0 %v5131
        %6621 = vmatpush2.bf16.msra.mxu0 %v5130
        %6622 = vmatprep.subr.bf16.mxu0 %v5123
        %6623 = vmatpush2.bf16.msra.mxu0 %v5122
        %6624 = vmatprep.mubr.bf16.mxu0 %v2955
        %6625 = vmatmul.mubr.bf16.gmra.mxu0 %v2954
        %v6626 = vpop.f32.mrf.mxu0
        %v6627 = vadd.f32 %v3503, %v6626
        %v6628 = vpop.f32.mrf.mxu0
        %v6629 = vadd.f32 %v3507, %v6628
        %v6630 = vpop.f32.mrf.mxu0
        %v6631 = vadd.f32 %v3503, %v6630
        %v6632 = vpop.f32.mrf.mxu0
        %v6633 = vadd.f32 %v3507, %v6632
        %6634 = vdwg.mxu0
        %6635 = vmatprep.subr.bf16.mxu0 %v5243
        %6636 = vmatpush1.bf16.msra.mxu0 %v5242
        %6637 = vmatprep.subr.bf16.mxu0 %v5235
        %6638 = vmatpush1.bf16.msra.mxu0 %v5234
        %6639 = vmatprep.subr.bf16.mxu0 %v5227
        %6640 = vmatpush1.bf16.msra.mxu0 %v5226
        %6641 = vmatprep.subr.bf16.mxu0 %v5219
        %6642 = vmatpush1.bf16.msra.mxu0 %v5218
        %6643 = vmatprep.subr.bf16.mxu0 %v5211
        %6644 = vmatpush1.bf16.msra.mxu0 %v5210
        %6645 = vmatprep.subr.bf16.mxu0 %v5203
        %6646 = vmatpush1.bf16.msra.mxu0 %v5202
        %6647 = vmatprep.subr.bf16.mxu0 %v5195
        %6648 = vmatpush1.bf16.msra.mxu0 %v5194
        %6649 = vmatprep.subr.bf16.mxu0 %v5187
        %6650 = vmatpush1.bf16.msra.mxu0 %v5186
        %6651 = vmatprep.subr.bf16.mxu0 %v5307
        %6652 = vmatpush2.bf16.msra.mxu0 %v5306
        %6653 = vmatprep.subr.bf16.mxu0 %v5299
        %6654 = vmatpush2.bf16.msra.mxu0 %v5298
        %6655 = vmatprep.subr.bf16.mxu0 %v5291
        %6656 = vmatpush2.bf16.msra.mxu0 %v5290
        %6657 = vmatprep.subr.bf16.mxu0 %v5283
        %6658 = vmatpush2.bf16.msra.mxu0 %v5282
        %6659 = vmatprep.subr.bf16.mxu0 %v5275
        %6660 = vmatpush2.bf16.msra.mxu0 %v5274
        %6661 = vmatprep.subr.bf16.mxu0 %v5267
        %6662 = vmatpush2.bf16.msra.mxu0 %v5266
        %6663 = vmatprep.subr.bf16.mxu0 %v5259
        %6664 = vmatpush2.bf16.msra.mxu0 %v5258
        %6665 = vmatprep.subr.bf16.mxu0 %v5251
        %6666 = vmatpush2.bf16.msra.mxu0 %v5250
        %6667 = vmatprep.mubr.bf16.mxu0 %v2957
        %6668 = vmatmul.mubr.bf16.gmra.mxu0 %v2956
        %v6669 = vpop.f32.mrf.mxu0
        %v6670 = vadd.f32 %v6627, %v6669
        %v6671 = vpop.f32.mrf.mxu0
        %v6672 = vadd.f32 %v6629, %v6671
        %v6673 = vpop.f32.mrf.mxu0
        %v6674 = vadd.f32 %v6631, %v6673
        %v6675 = vpop.f32.mrf.mxu0
        %v6676 = vadd.f32 %v6633, %v6675
        %6677 = vdwg.mxu0
        %6678 = vmatprep.subr.bf16.mxu0 %v5371
        %6679 = vmatpush1.bf16.msra.mxu0 %v5370
        %6680 = vmatprep.subr.bf16.mxu0 %v5363
        %6681 = vmatpush1.bf16.msra.mxu0 %v5362
        %6682 = vmatprep.subr.bf16.mxu0 %v5355
        %6683 = vmatpush1.bf16.msra.mxu0 %v5354
        %6684 = vmatprep.subr.bf16.mxu0 %v5347
        %6685 = vmatpush1.bf16.msra.mxu0 %v5346
        %6686 = vmatprep.subr.bf16.mxu0 %v5339
        %6687 = vmatpush1.bf16.msra.mxu0 %v5338
        %6688 = vmatprep.subr.bf16.mxu0 %v5331
        %6689 = vmatpush1.bf16.msra.mxu0 %v5330
        %6690 = vmatprep.subr.bf16.mxu0 %v5323
        %6691 = vmatpush1.bf16.msra.mxu0 %v5322
        %6692 = vmatprep.subr.bf16.mxu0 %v5315
        %6693 = vmatpush1.bf16.msra.mxu0 %v5314
        %6694 = vmatprep.subr.bf16.mxu0 %v5435
        %6695 = vmatpush2.bf16.msra.mxu0 %v5434
        %6696 = vmatprep.subr.bf16.mxu0 %v5427
        %6697 = vmatpush2.bf16.msra.mxu0 %v5426
        %6698 = vmatprep.subr.bf16.mxu0 %v5419
        %6699 = vmatpush2.bf16.msra.mxu0 %v5418
        %6700 = vmatprep.subr.bf16.mxu0 %v5411
        %6701 = vmatpush2.bf16.msra.mxu0 %v5410
        %6702 = vmatprep.subr.bf16.mxu0 %v5403
        %6703 = vmatpush2.bf16.msra.mxu0 %v5402
        %6704 = vmatprep.subr.bf16.mxu0 %v5395
        %6705 = vmatpush2.bf16.msra.mxu0 %v5394
        %6706 = vmatprep.subr.bf16.mxu0 %v5387
        %6707 = vmatpush2.bf16.msra.mxu0 %v5386
        %6708 = vmatprep.subr.bf16.mxu0 %v5379
        %6709 = vmatpush2.bf16.msra.mxu0 %v5378
        %6710 = vmatprep.mubr.bf16.mxu0 %v2959
        %6711 = vmatmul.mubr.bf16.gmra.mxu0 %v2958
        %v6712 = vpop.f32.mrf.mxu0
        %v6713 = vadd.f32 %v6670, %v6712
        %v6714 = vpop.f32.mrf.mxu0
        %v6715 = vadd.f32 %v6672, %v6714
        %v6716 = vpop.f32.mrf.mxu0
        %v6717 = vadd.f32 %v6674, %v6716
        %v6718 = vpop.f32.mrf.mxu0
        %v6719 = vadd.f32 %v6676, %v6718
        %6720 = vdwg.mxu0
        %6721 = vmatprep.subr.bf16.mxu0 %v5499
        %6722 = vmatpush1.bf16.msra.mxu0 %v5498
        %6723 = vmatprep.subr.bf16.mxu0 %v5491
        %6724 = vmatpush1.bf16.msra.mxu0 %v5490
        %6725 = vmatprep.subr.bf16.mxu0 %v5483
        %6726 = vmatpush1.bf16.msra.mxu0 %v5482
        %6727 = vmatprep.subr.bf16.mxu0 %v5475
        %6728 = vmatpush1.bf16.msra.mxu0 %v5474
        %6729 = vmatprep.subr.bf16.mxu0 %v5467
        %6730 = vmatpush1.bf16.msra.mxu0 %v5466
        %6731 = vmatprep.subr.bf16.mxu0 %v5459
        %6732 = vmatpush1.bf16.msra.mxu0 %v5458
        %6733 = vmatprep.subr.bf16.mxu0 %v5451
        %6734 = vmatpush1.bf16.msra.mxu0 %v5450
        %6735 = vmatprep.subr.bf16.mxu0 %v5443
        %6736 = vmatpush1.bf16.msra.mxu0 %v5442
        %6737 = vmatprep.subr.bf16.mxu0 %v5563
        %6738 = vmatpush2.bf16.msra.mxu0 %v5562
        %6739 = vmatprep.subr.bf16.mxu0 %v5555
        %6740 = vmatpush2.bf16.msra.mxu0 %v5554
        %6741 = vmatprep.subr.bf16.mxu0 %v5547
        %6742 = vmatpush2.bf16.msra.mxu0 %v5546
        %6743 = vmatprep.subr.bf16.mxu0 %v5539
        %6744 = vmatpush2.bf16.msra.mxu0 %v5538
        %6745 = vmatprep.subr.bf16.mxu0 %v5531
        %6746 = vmatpush2.bf16.msra.mxu0 %v5530
        %6747 = vmatprep.subr.bf16.mxu0 %v5523
        %6748 = vmatpush2.bf16.msra.mxu0 %v5522
        %6749 = vmatprep.subr.bf16.mxu0 %v5515
        %6750 = vmatpush2.bf16.msra.mxu0 %v5514
        %6751 = vmatprep.subr.bf16.mxu0 %v5507
        %6752 = vmatpush2.bf16.msra.mxu0 %v5506
        %6753 = vmatprep.mubr.bf16.mxu0 %v2961
        %6754 = vmatmul.mubr.bf16.gmra.mxu0 %v2960
        %v6755 = vpop.f32.mrf.mxu0
        %v6756 = vadd.f32 %v6713, %v6755
        %v6757 = vpop.f32.mrf.mxu0
        %v6758 = vadd.f32 %v6715, %v6757
        %v6759 = vpop.f32.mrf.mxu0
        %v6760 = vadd.f32 %v6717, %v6759
        %v6761 = vpop.f32.mrf.mxu0
        %v6762 = vadd.f32 %v6719, %v6761
        %6763 = vdwg.mxu0
        %v6764 = vmax.f32 %v6240, 0.0
        %v6765 = vmax.f32 %v6242, 0.0
        %v6766 = vmax.f32 %v6412, 0.0
        %v6767 = vmax.f32 %v6414, 0.0
        %v6768 = vmax.f32 %v6584, 0.0
        %v6769 = vmax.f32 %v6586, 0.0
        %v6770 = vmax.f32 %v6756, 0.0
        %v6771 = vmax.f32 %v6758, 0.0
        %v6772 = vmax.f32 %v6244, 0.0
        %v6773 = vmax.f32 %v6246, 0.0
        %v6774 = vmax.f32 %v6416, 0.0
        %v6775 = vmax.f32 %v6418, 0.0
        %v6776 = vmax.f32 %v6588, 0.0
        %v6777 = vmax.f32 %v6590, 0.0
        %v6778 = vmax.f32 %v6760, 0.0
        %v6779 = vmax.f32 %v6762, 0.0
        %v6780 = vpack.c.bf16 %v6772, %v6764
        %v6781 = vpack.c.bf16 %v6773, %v6765
        %v6782 = vpack.c.bf16 %v6774, %v6766
        %v6783 = vpack.c.bf16 %v6775, %v6767
        %v6784 = vpack.c.bf16 %v6776, %v6768
        %v6785 = vpack.c.bf16 %v6777, %v6769
        %v6786 = vpack.c.bf16 %v6778, %v6770
        %v6787 = vpack.c.bf16 %v6779, %v6771
        %v6788 = vld [vmem:[%s469] sm:$0xff]
        %v6789 = vld [vmem:[%s469 + $0x8] sm:$0xff]
        %v6790 = vld [vmem:[%s469 + $0x10] sm:$0xff]
        %v6791 = vld [vmem:[%s469 + $0x18] sm:$0xff]
        %v6792 = vld [vmem:[%s469 + $0x20] sm:$0xff]
        %v6793 = vld [vmem:[%s469 + $0x28] sm:$0xff]
        %v6794 = vld [vmem:[%s469 + $0x30] sm:$0xff]
        %v6795 = vld [vmem:[%s469 + $0x38] sm:$0xff]
        %v6796 = vld [vmem:[%s469 + $0x40] sm:$0xff]
        %v6797 = vld [vmem:[%s469 + $0x48] sm:$0xff]
        %v6798 = vld [vmem:[%s469 + $0x50] sm:$0xff]
        %v6799 = vld [vmem:[%s469 + $0x58] sm:$0xff]
        %v6800 = vld [vmem:[%s469 + $0x60] sm:$0xff]
        %v6801 = vld [vmem:[%s469 + $0x68] sm:$0xff]
        %v6802 = vld [vmem:[%s469 + $0x70] sm:$0xff]
        %v6803 = vld [vmem:[%s469 + $0x78] sm:$0xff]
        %v6804 = vld [vmem:[%s469 + $0x80] sm:$0xff]
        %v6805 = vld [vmem:[%s469 + $0x88] sm:$0xff]
        %v6806 = vld [vmem:[%s469 + $0x90] sm:$0xff]
        %v6807 = vld [vmem:[%s469 + $0x98] sm:$0xff]
        %v6808 = vld [vmem:[%s469 + $0xa0] sm:$0xff]
        %v6809 = vld [vmem:[%s469 + $0xa8] sm:$0xff]
        %v6810 = vld [vmem:[%s469 + $0xb0] sm:$0xff]
        %v6811 = vld [vmem:[%s469 + $0xb8] sm:$0xff]
        %v6812 = vld [vmem:[%s469 + $0xc0] sm:$0xff]
        %v6813 = vld [vmem:[%s469 + $0xc8] sm:$0xff]
        %v6814 = vld [vmem:[%s469 + $0xd0] sm:$0xff]
        %v6815 = vld [vmem:[%s469 + $0xd8] sm:$0xff]
        %v6816 = vld [vmem:[%s469 + $0xe0] sm:$0xff]
        %v6817 = vld [vmem:[%s469 + $0xe8] sm:$0xff]
        %v6818 = vld [vmem:[%s469 + $0xf0] sm:$0xff]
        %v6819 = vld [vmem:[%s469 + $0xf8] sm:$0xff]
        %v6820 = vld [vmem:[%s469 + $0x100] sm:$0xff]
        %v6821 = vld [vmem:[%s469 + $0x108] sm:$0xff]
        %v6822 = vld [vmem:[%s469 + $0x110] sm:$0xff]
        %v6823 = vld [vmem:[%s469 + $0x118] sm:$0xff]
        %v6824 = vld [vmem:[%s469 + $0x120] sm:$0xff]
        %v6825 = vld [vmem:[%s469 + $0x128] sm:$0xff]
        %v6826 = vld [vmem:[%s469 + $0x130] sm:$0xff]
        %v6827 = vld [vmem:[%s469 + $0x138] sm:$0xff]
        %v6828 = vld [vmem:[%s469 + $0x140] sm:$0xff]
        %v6829 = vld [vmem:[%s469 + $0x148] sm:$0xff]
        %v6830 = vld [vmem:[%s469 + $0x150] sm:$0xff]
        %v6831 = vld [vmem:[%s469 + $0x158] sm:$0xff]
        %v6832 = vld [vmem:[%s469 + $0x160] sm:$0xff]
        %v6833 = vld [vmem:[%s469 + $0x168] sm:$0xff]
        %v6834 = vld [vmem:[%s469 + $0x170] sm:$0xff]
        %v6835 = vld [vmem:[%s469 + $0x178] sm:$0xff]
        %v6836 = vld [vmem:[%s469 + $0x180] sm:$0xff]
        %v6837 = vld [vmem:[%s469 + $0x188] sm:$0xff]
        %v6838 = vld [vmem:[%s469 + $0x190] sm:$0xff]
        %v6839 = vld [vmem:[%s469 + $0x198] sm:$0xff]
        %v6840 = vld [vmem:[%s469 + $0x1a0] sm:$0xff]
        %v6841 = vld [vmem:[%s469 + $0x1a8] sm:$0xff]
        %v6842 = vld [vmem:[%s469 + $0x1b0] sm:$0xff]
        %v6843 = vld [vmem:[%s469 + $0x1b8] sm:$0xff]
        %v6844 = vld [vmem:[%s469 + $0x1c0] sm:$0xff]
        %v6845 = vld [vmem:[%s469 + $0x1c8] sm:$0xff]
        %v6846 = vld [vmem:[%s469 + $0x1d0] sm:$0xff]
        %v6847 = vld [vmem:[%s469 + $0x1d8] sm:$0xff]
        %v6848 = vld [vmem:[%s469 + $0x1e0] sm:$0xff]
        %v6849 = vld [vmem:[%s469 + $0x1e8] sm:$0xff]
        %v6850 = vld [vmem:[%s469 + $0x1f0] sm:$0xff]
        %v6851 = vld [vmem:[%s469 + $0x1f8] sm:$0xff]
        %v6852 = vld [vmem:[%s469 + $0x200] sm:$0xff]
        %v6853 = vld [vmem:[%s469 + $0x208] sm:$0xff]
        %v6854 = vld [vmem:[%s469 + $0x210] sm:$0xff]
        %v6855 = vld [vmem:[%s469 + $0x218] sm:$0xff]
        %v6856 = vld [vmem:[%s469 + $0x220] sm:$0xff]
        %v6857 = vld [vmem:[%s469 + $0x228] sm:$0xff]
        %v6858 = vld [vmem:[%s469 + $0x230] sm:$0xff]
        %v6859 = vld [vmem:[%s469 + $0x238] sm:$0xff]
        %v6860 = vld [vmem:[%s469 + $0x240] sm:$0xff]
        %v6861 = vld [vmem:[%s469 + $0x248] sm:$0xff]
        %v6862 = vld [vmem:[%s469 + $0x250] sm:$0xff]
        %v6863 = vld [vmem:[%s469 + $0x258] sm:$0xff]
        %v6864 = vld [vmem:[%s469 + $0x260] sm:$0xff]
        %v6865 = vld [vmem:[%s469 + $0x268] sm:$0xff]
        %v6866 = vld [vmem:[%s469 + $0x270] sm:$0xff]
        %v6867 = vld [vmem:[%s469 + $0x278] sm:$0xff]
        %v6868 = vld [vmem:[%s469 + $0x280] sm:$0xff]
        %v6869 = vld [vmem:[%s469 + $0x288] sm:$0xff]
        %v6870 = vld [vmem:[%s469 + $0x290] sm:$0xff]
        %v6871 = vld [vmem:[%s469 + $0x298] sm:$0xff]
        %v6872 = vld [vmem:[%s469 + $0x2a0] sm:$0xff]
        %v6873 = vld [vmem:[%s469 + $0x2a8] sm:$0xff]
        %v6874 = vld [vmem:[%s469 + $0x2b0] sm:$0xff]
        %v6875 = vld [vmem:[%s469 + $0x2b8] sm:$0xff]
        %v6876 = vld [vmem:[%s469 + $0x2c0] sm:$0xff]
        %v6877 = vld [vmem:[%s469 + $0x2c8] sm:$0xff]
        %v6878 = vld [vmem:[%s469 + $0x2d0] sm:$0xff]
        %v6879 = vld [vmem:[%s469 + $0x2d8] sm:$0xff]
        %v6880 = vld [vmem:[%s469 + $0x2e0] sm:$0xff]
        %v6881 = vld [vmem:[%s469 + $0x2e8] sm:$0xff]
        %v6882 = vld [vmem:[%s469 + $0x2f0] sm:$0xff]
        %v6883 = vld [vmem:[%s469 + $0x2f8] sm:$0xff]
        %v6884 = vld [vmem:[%s469 + $0x300] sm:$0xff]
        %v6885 = vld [vmem:[%s469 + $0x308] sm:$0xff]
        %v6886 = vld [vmem:[%s469 + $0x310] sm:$0xff]
        %v6887 = vld [vmem:[%s469 + $0x318] sm:$0xff]
        %v6888 = vld [vmem:[%s469 + $0x320] sm:$0xff]
        %v6889 = vld [vmem:[%s469 + $0x328] sm:$0xff]
        %v6890 = vld [vmem:[%s469 + $0x330] sm:$0xff]
        %v6891 = vld [vmem:[%s469 + $0x338] sm:$0xff]
        %v6892 = vld [vmem:[%s469 + $0x340] sm:$0xff]
        %v6893 = vld [vmem:[%s469 + $0x348] sm:$0xff]
        %v6894 = vld [vmem:[%s469 + $0x350] sm:$0xff]
        %v6895 = vld [vmem:[%s469 + $0x358] sm:$0xff]
        %v6896 = vld [vmem:[%s469 + $0x360] sm:$0xff]
        %v6897 = vld [vmem:[%s469 + $0x368] sm:$0xff]
        %v6898 = vld [vmem:[%s469 + $0x370] sm:$0xff]
        %v6899 = vld [vmem:[%s469 + $0x378] sm:$0xff]
        %v6900 = vld [vmem:[%s469 + $0x380] sm:$0xff]
        %v6901 = vld [vmem:[%s469 + $0x388] sm:$0xff]
        %v6902 = vld [vmem:[%s469 + $0x390] sm:$0xff]
        %v6903 = vld [vmem:[%s469 + $0x398] sm:$0xff]
        %v6904 = vld [vmem:[%s469 + $0x3a0] sm:$0xff]
        %v6905 = vld [vmem:[%s469 + $0x3a8] sm:$0xff]
        %v6906 = vld [vmem:[%s469 + $0x3b0] sm:$0xff]
        %v6907 = vld [vmem:[%s469 + $0x3b8] sm:$0xff]
        %v6908 = vld [vmem:[%s469 + $0x3c0] sm:$0xff]
        %v6909 = vld [vmem:[%s469 + $0x3c8] sm:$0xff]
        %v6910 = vld [vmem:[%s469 + $0x3d0] sm:$0xff]
        %v6911 = vld [vmem:[%s469 + $0x3d8] sm:$0xff]
        %v6912 = vld [vmem:[%s469 + $0x3e0] sm:$0xff]
        %v6913 = vld [vmem:[%s469 + $0x3e8] sm:$0xff]
        %v6914 = vld [vmem:[%s469 + $0x3f0] sm:$0xff]
        %v6915 = vld [vmem:[%s469 + $0x3f8] sm:$0xff]
        %v6916 = vld [vmem:[%s469 + $0x400] sm:$0xff]
        %v6917 = vld [vmem:[%s469 + $0x408] sm:$0xff]
        %v6918 = vld [vmem:[%s469 + $0x410] sm:$0xff]
        %v6919 = vld [vmem:[%s469 + $0x418] sm:$0xff]
        %v6920 = vld [vmem:[%s469 + $0x420] sm:$0xff]
        %v6921 = vld [vmem:[%s469 + $0x428] sm:$0xff]
        %v6922 = vld [vmem:[%s469 + $0x430] sm:$0xff]
        %v6923 = vld [vmem:[%s469 + $0x438] sm:$0xff]
        %v6924 = vld [vmem:[%s469 + $0x440] sm:$0xff]
        %v6925 = vld [vmem:[%s469 + $0x448] sm:$0xff]
        %v6926 = vld [vmem:[%s469 + $0x450] sm:$0xff]
        %v6927 = vld [vmem:[%s469 + $0x458] sm:$0xff]
        %v6928 = vld [vmem:[%s469 + $0x460] sm:$0xff]
        %v6929 = vld [vmem:[%s469 + $0x468] sm:$0xff]
        %v6930 = vld [vmem:[%s469 + $0x470] sm:$0xff]
        %v6931 = vld [vmem:[%s469 + $0x478] sm:$0xff]
        %v6932 = vld [vmem:[%s469 + $0x480] sm:$0xff]
        %v6933 = vld [vmem:[%s469 + $0x488] sm:$0xff]
        %v6934 = vld [vmem:[%s469 + $0x490] sm:$0xff]
        %v6935 = vld [vmem:[%s469 + $0x498] sm:$0xff]
        %v6936 = vld [vmem:[%s469 + $0x4a0] sm:$0xff]
        %v6937 = vld [vmem:[%s469 + $0x4a8] sm:$0xff]
        %v6938 = vld [vmem:[%s469 + $0x4b0] sm:$0xff]
        %v6939 = vld [vmem:[%s469 + $0x4b8] sm:$0xff]
        %v6940 = vld [vmem:[%s469 + $0x4c0] sm:$0xff]
        %v6941 = vld [vmem:[%s469 + $0x4c8] sm:$0xff]
        %v6942 = vld [vmem:[%s469 + $0x4d0] sm:$0xff]
        %v6943 = vld [vmem:[%s469 + $0x4d8] sm:$0xff]
        %v6944 = vld [vmem:[%s469 + $0x4e0] sm:$0xff]
        %v6945 = vld [vmem:[%s469 + $0x4e8] sm:$0xff]
        %v6946 = vld [vmem:[%s469 + $0x4f0] sm:$0xff]
        %v6947 = vld [vmem:[%s469 + $0x4f8] sm:$0xff]
        %v6948 = vld [vmem:[%s469 + $0x500] sm:$0xff]
        %v6949 = vld [vmem:[%s469 + $0x508] sm:$0xff]
        %v6950 = vld [vmem:[%s469 + $0x510] sm:$0xff]
        %v6951 = vld [vmem:[%s469 + $0x518] sm:$0xff]
        %v6952 = vld [vmem:[%s469 + $0x520] sm:$0xff]
        %v6953 = vld [vmem:[%s469 + $0x528] sm:$0xff]
        %v6954 = vld [vmem:[%s469 + $0x530] sm:$0xff]
        %v6955 = vld [vmem:[%s469 + $0x538] sm:$0xff]
        %v6956 = vld [vmem:[%s469 + $0x540] sm:$0xff]
        %v6957 = vld [vmem:[%s469 + $0x548] sm:$0xff]
        %v6958 = vld [vmem:[%s469 + $0x550] sm:$0xff]
        %v6959 = vld [vmem:[%s469 + $0x558] sm:$0xff]
        %v6960 = vld [vmem:[%s469 + $0x560] sm:$0xff]
        %v6961 = vld [vmem:[%s469 + $0x568] sm:$0xff]
        %v6962 = vld [vmem:[%s469 + $0x570] sm:$0xff]
        %v6963 = vld [vmem:[%s469 + $0x578] sm:$0xff]
        %v6964 = vld [vmem:[%s469 + $0x580] sm:$0xff]
        %v6965 = vld [vmem:[%s469 + $0x588] sm:$0xff]
        %v6966 = vld [vmem:[%s469 + $0x590] sm:$0xff]
        %v6967 = vld [vmem:[%s469 + $0x598] sm:$0xff]
        %v6968 = vld [vmem:[%s469 + $0x5a0] sm:$0xff]
        %v6969 = vld [vmem:[%s469 + $0x5a8] sm:$0xff]
        %v6970 = vld [vmem:[%s469 + $0x5b0] sm:$0xff]
        %v6971 = vld [vmem:[%s469 + $0x5b8] sm:$0xff]
        %v6972 = vld [vmem:[%s469 + $0x5c0] sm:$0xff]
        %v6973 = vld [vmem:[%s469 + $0x5c8] sm:$0xff]
        %v6974 = vld [vmem:[%s469 + $0x5d0] sm:$0xff]
        %v6975 = vld [vmem:[%s469 + $0x5d8] sm:$0xff]
        %v6976 = vld [vmem:[%s469 + $0x5e0] sm:$0xff]
        %v6977 = vld [vmem:[%s469 + $0x5e8] sm:$0xff]
        %v6978 = vld [vmem:[%s469 + $0x5f0] sm:$0xff]
        %v6979 = vld [vmem:[%s469 + $0x5f8] sm:$0xff]
        %v6980 = vld [vmem:[%s469 + $0x600] sm:$0xff]
        %v6981 = vld [vmem:[%s469 + $0x608] sm:$0xff]
        %v6982 = vld [vmem:[%s469 + $0x610] sm:$0xff]
        %v6983 = vld [vmem:[%s469 + $0x618] sm:$0xff]
        %v6984 = vld [vmem:[%s469 + $0x620] sm:$0xff]
        %v6985 = vld [vmem:[%s469 + $0x628] sm:$0xff]
        %v6986 = vld [vmem:[%s469 + $0x630] sm:$0xff]
        %v6987 = vld [vmem:[%s469 + $0x638] sm:$0xff]
        %v6988 = vld [vmem:[%s469 + $0x640] sm:$0xff]
        %v6989 = vld [vmem:[%s469 + $0x648] sm:$0xff]
        %v6990 = vld [vmem:[%s469 + $0x650] sm:$0xff]
        %v6991 = vld [vmem:[%s469 + $0x658] sm:$0xff]
        %v6992 = vld [vmem:[%s469 + $0x660] sm:$0xff]
        %v6993 = vld [vmem:[%s469 + $0x668] sm:$0xff]
        %v6994 = vld [vmem:[%s469 + $0x670] sm:$0xff]
        %v6995 = vld [vmem:[%s469 + $0x678] sm:$0xff]
        %v6996 = vld [vmem:[%s469 + $0x680] sm:$0xff]
        %v6997 = vld [vmem:[%s469 + $0x688] sm:$0xff]
        %v6998 = vld [vmem:[%s469 + $0x690] sm:$0xff]
        %v6999 = vld [vmem:[%s469 + $0x698] sm:$0xff]
        %v7000 = vld [vmem:[%s469 + $0x6a0] sm:$0xff]
        %v7001 = vld [vmem:[%s469 + $0x6a8] sm:$0xff]
        %v7002 = vld [vmem:[%s469 + $0x6b0] sm:$0xff]
        %v7003 = vld [vmem:[%s469 + $0x6b8] sm:$0xff]
        %v7004 = vld [vmem:[%s469 + $0x6c0] sm:$0xff]
        %v7005 = vld [vmem:[%s469 + $0x6c8] sm:$0xff]
        %v7006 = vld [vmem:[%s469 + $0x6d0] sm:$0xff]
        %v7007 = vld [vmem:[%s469 + $0x6d8] sm:$0xff]
        %v7008 = vld [vmem:[%s469 + $0x6e0] sm:$0xff]
        %v7009 = vld [vmem:[%s469 + $0x6e8] sm:$0xff]
        %v7010 = vld [vmem:[%s469 + $0x6f0] sm:$0xff]
        %v7011 = vld [vmem:[%s469 + $0x6f8] sm:$0xff]
        %v7012 = vld [vmem:[%s469 + $0x700] sm:$0xff]
        %v7013 = vld [vmem:[%s469 + $0x708] sm:$0xff]
        %v7014 = vld [vmem:[%s469 + $0x710] sm:$0xff]
        %v7015 = vld [vmem:[%s469 + $0x718] sm:$0xff]
        %v7016 = vld [vmem:[%s469 + $0x720] sm:$0xff]
        %v7017 = vld [vmem:[%s469 + $0x728] sm:$0xff]
        %v7018 = vld [vmem:[%s469 + $0x730] sm:$0xff]
        %v7019 = vld [vmem:[%s469 + $0x738] sm:$0xff]
        %v7020 = vld [vmem:[%s469 + $0x740] sm:$0xff]
        %v7021 = vld [vmem:[%s469 + $0x748] sm:$0xff]
        %v7022 = vld [vmem:[%s469 + $0x750] sm:$0xff]
        %v7023 = vld [vmem:[%s469 + $0x758] sm:$0xff]
        %v7024 = vld [vmem:[%s469 + $0x760] sm:$0xff]
        %v7025 = vld [vmem:[%s469 + $0x768] sm:$0xff]
        %v7026 = vld [vmem:[%s469 + $0x770] sm:$0xff]
        %v7027 = vld [vmem:[%s469 + $0x778] sm:$0xff]
        %v7028 = vld [vmem:[%s469 + $0x780] sm:$0xff]
        %v7029 = vld [vmem:[%s469 + $0x788] sm:$0xff]
        %v7030 = vld [vmem:[%s469 + $0x790] sm:$0xff]
        %v7031 = vld [vmem:[%s469 + $0x798] sm:$0xff]
        %v7032 = vld [vmem:[%s469 + $0x7a0] sm:$0xff]
        %v7033 = vld [vmem:[%s469 + $0x7a8] sm:$0xff]
        %v7034 = vld [vmem:[%s469 + $0x7b0] sm:$0xff]
        %v7035 = vld [vmem:[%s469 + $0x7b8] sm:$0xff]
        %v7036 = vld [vmem:[%s469 + $0x7c0] sm:$0xff]
        %v7037 = vld [vmem:[%s469 + $0x7c8] sm:$0xff]
        %v7038 = vld [vmem:[%s469 + $0x7d0] sm:$0xff]
        %v7039 = vld [vmem:[%s469 + $0x7d8] sm:$0xff]
        %v7040 = vld [vmem:[%s469 + $0x7e0] sm:$0xff]
        %v7041 = vld [vmem:[%s469 + $0x7e8] sm:$0xff]
        %v7042 = vld [vmem:[%s469 + $0x7f0] sm:$0xff]
        %v7043 = vld [vmem:[%s469 + $0x7f8] sm:$0xff]
        %v7044 = vld [vmem:[%s469 + $0x800] sm:$0xff]
        %v7045 = vld [vmem:[%s469 + $0x808] sm:$0xff]
        %v7046 = vld [vmem:[%s469 + $0x810] sm:$0xff]
        %v7047 = vld [vmem:[%s469 + $0x818] sm:$0xff]
        %v7048 = vld [vmem:[%s469 + $0x820] sm:$0xff]
        %v7049 = vld [vmem:[%s469 + $0x828] sm:$0xff]
        %v7050 = vld [vmem:[%s469 + $0x830] sm:$0xff]
        %v7051 = vld [vmem:[%s469 + $0x838] sm:$0xff]
        %v7052 = vld [vmem:[%s469 + $0x840] sm:$0xff]
        %v7053 = vld [vmem:[%s469 + $0x848] sm:$0xff]
        %v7054 = vld [vmem:[%s469 + $0x850] sm:$0xff]
        %v7055 = vld [vmem:[%s469 + $0x858] sm:$0xff]
        %v7056 = vld [vmem:[%s469 + $0x860] sm:$0xff]
        %v7057 = vld [vmem:[%s469 + $0x868] sm:$0xff]
        %v7058 = vld [vmem:[%s469 + $0x870] sm:$0xff]
        %v7059 = vld [vmem:[%s469 + $0x878] sm:$0xff]
        %v7060 = vld [vmem:[%s469 + $0x880] sm:$0xff]
        %v7061 = vld [vmem:[%s469 + $0x888] sm:$0xff]
        %v7062 = vld [vmem:[%s469 + $0x890] sm:$0xff]
        %v7063 = vld [vmem:[%s469 + $0x898] sm:$0xff]
        %v7064 = vld [vmem:[%s469 + $0x8a0] sm:$0xff]
        %v7065 = vld [vmem:[%s469 + $0x8a8] sm:$0xff]
        %v7066 = vld [vmem:[%s469 + $0x8b0] sm:$0xff]
        %v7067 = vld [vmem:[%s469 + $0x8b8] sm:$0xff]
        %v7068 = vld [vmem:[%s469 + $0x8c0] sm:$0xff]
        %v7069 = vld [vmem:[%s469 + $0x8c8] sm:$0xff]
        %v7070 = vld [vmem:[%s469 + $0x8d0] sm:$0xff]
        %v7071 = vld [vmem:[%s469 + $0x8d8] sm:$0xff]
        %v7072 = vld [vmem:[%s469 + $0x8e0] sm:$0xff]
        %v7073 = vld [vmem:[%s469 + $0x8e8] sm:$0xff]
        %v7074 = vld [vmem:[%s469 + $0x8f0] sm:$0xff]
        %v7075 = vld [vmem:[%s469 + $0x8f8] sm:$0xff]
        %v7076 = vld [vmem:[%s469 + $0x900] sm:$0xff]
        %v7077 = vld [vmem:[%s469 + $0x908] sm:$0xff]
        %v7078 = vld [vmem:[%s469 + $0x910] sm:$0xff]
        %v7079 = vld [vmem:[%s469 + $0x918] sm:$0xff]
        %v7080 = vld [vmem:[%s469 + $0x920] sm:$0xff]
        %v7081 = vld [vmem:[%s469 + $0x928] sm:$0xff]
        %v7082 = vld [vmem:[%s469 + $0x930] sm:$0xff]
        %v7083 = vld [vmem:[%s469 + $0x938] sm:$0xff]
        %v7084 = vld [vmem:[%s469 + $0x940] sm:$0xff]
        %v7085 = vld [vmem:[%s469 + $0x948] sm:$0xff]
        %v7086 = vld [vmem:[%s469 + $0x950] sm:$0xff]
        %v7087 = vld [vmem:[%s469 + $0x958] sm:$0xff]
        %v7088 = vld [vmem:[%s469 + $0x960] sm:$0xff]
        %v7089 = vld [vmem:[%s469 + $0x968] sm:$0xff]
        %v7090 = vld [vmem:[%s469 + $0x970] sm:$0xff]
        %v7091 = vld [vmem:[%s469 + $0x978] sm:$0xff]
        %v7092 = vld [vmem:[%s469 + $0x980] sm:$0xff]
        %v7093 = vld [vmem:[%s469 + $0x988] sm:$0xff]
        %v7094 = vld [vmem:[%s469 + $0x990] sm:$0xff]
        %v7095 = vld [vmem:[%s469 + $0x998] sm:$0xff]
        %v7096 = vld [vmem:[%s469 + $0x9a0] sm:$0xff]
        %v7097 = vld [vmem:[%s469 + $0x9a8] sm:$0xff]
        %v7098 = vld [vmem:[%s469 + $0x9b0] sm:$0xff]
        %v7099 = vld [vmem:[%s469 + $0x9b8] sm:$0xff]
        %v7100 = vld [vmem:[%s469 + $0x9c0] sm:$0xff]
        %v7101 = vld [vmem:[%s469 + $0x9c8] sm:$0xff]
        %v7102 = vld [vmem:[%s469 + $0x9d0] sm:$0xff]
        %v7103 = vld [vmem:[%s469 + $0x9d8] sm:$0xff]
        %v7104 = vld [vmem:[%s469 + $0x9e0] sm:$0xff]
        %v7105 = vld [vmem:[%s469 + $0x9e8] sm:$0xff]
        %v7106 = vld [vmem:[%s469 + $0x9f0] sm:$0xff]
        %v7107 = vld [vmem:[%s469 + $0x9f8] sm:$0xff]
        %v7108 = vld [vmem:[%s469 + $0xa00] sm:$0xff]
        %v7109 = vld [vmem:[%s469 + $0xa08] sm:$0xff]
        %v7110 = vld [vmem:[%s469 + $0xa10] sm:$0xff]
        %v7111 = vld [vmem:[%s469 + $0xa18] sm:$0xff]
        %v7112 = vld [vmem:[%s469 + $0xa20] sm:$0xff]
        %v7113 = vld [vmem:[%s469 + $0xa28] sm:$0xff]
        %v7114 = vld [vmem:[%s469 + $0xa30] sm:$0xff]
        %v7115 = vld [vmem:[%s469 + $0xa38] sm:$0xff]
        %v7116 = vld [vmem:[%s469 + $0xa40] sm:$0xff]
        %v7117 = vld [vmem:[%s469 + $0xa48] sm:$0xff]
        %v7118 = vld [vmem:[%s469 + $0xa50] sm:$0xff]
        %v7119 = vld [vmem:[%s469 + $0xa58] sm:$0xff]
        %v7120 = vld [vmem:[%s469 + $0xa60] sm:$0xff]
        %v7121 = vld [vmem:[%s469 + $0xa68] sm:$0xff]
        %v7122 = vld [vmem:[%s469 + $0xa70] sm:$0xff]
        %v7123 = vld [vmem:[%s469 + $0xa78] sm:$0xff]
        %v7124 = vld [vmem:[%s469 + $0xa80] sm:$0xff]
        %v7125 = vld [vmem:[%s469 + $0xa88] sm:$0xff]
        %v7126 = vld [vmem:[%s469 + $0xa90] sm:$0xff]
        %v7127 = vld [vmem:[%s469 + $0xa98] sm:$0xff]
        %v7128 = vld [vmem:[%s469 + $0xaa0] sm:$0xff]
        %v7129 = vld [vmem:[%s469 + $0xaa8] sm:$0xff]
        %v7130 = vld [vmem:[%s469 + $0xab0] sm:$0xff]
        %v7131 = vld [vmem:[%s469 + $0xab8] sm:$0xff]
        %v7132 = vld [vmem:[%s469 + $0xac0] sm:$0xff]
        %v7133 = vld [vmem:[%s469 + $0xac8] sm:$0xff]
        %v7134 = vld [vmem:[%s469 + $0xad0] sm:$0xff]
        %v7135 = vld [vmem:[%s469 + $0xad8] sm:$0xff]
        %v7136 = vld [vmem:[%s469 + $0xae0] sm:$0xff]
        %v7137 = vld [vmem:[%s469 + $0xae8] sm:$0xff]
        %v7138 = vld [vmem:[%s469 + $0xaf0] sm:$0xff]
        %v7139 = vld [vmem:[%s469 + $0xaf8] sm:$0xff]
        %v7140 = vld [vmem:[%s469 + $0xb00] sm:$0xff]
        %v7141 = vld [vmem:[%s469 + $0xb08] sm:$0xff]
        %v7142 = vld [vmem:[%s469 + $0xb10] sm:$0xff]
        %v7143 = vld [vmem:[%s469 + $0xb18] sm:$0xff]
        %v7144 = vld [vmem:[%s469 + $0xb20] sm:$0xff]
        %v7145 = vld [vmem:[%s469 + $0xb28] sm:$0xff]
        %v7146 = vld [vmem:[%s469 + $0xb30] sm:$0xff]
        %v7147 = vld [vmem:[%s469 + $0xb38] sm:$0xff]
        %v7148 = vld [vmem:[%s469 + $0xb40] sm:$0xff]
        %v7149 = vld [vmem:[%s469 + $0xb48] sm:$0xff]
        %v7150 = vld [vmem:[%s469 + $0xb50] sm:$0xff]
        %v7151 = vld [vmem:[%s469 + $0xb58] sm:$0xff]
        %v7152 = vld [vmem:[%s469 + $0xb60] sm:$0xff]
        %v7153 = vld [vmem:[%s469 + $0xb68] sm:$0xff]
        %v7154 = vld [vmem:[%s469 + $0xb70] sm:$0xff]
        %v7155 = vld [vmem:[%s469 + $0xb78] sm:$0xff]
        %v7156 = vld [vmem:[%s469 + $0xb80] sm:$0xff]
        %v7157 = vld [vmem:[%s469 + $0xb88] sm:$0xff]
        %v7158 = vld [vmem:[%s469 + $0xb90] sm:$0xff]
        %v7159 = vld [vmem:[%s469 + $0xb98] sm:$0xff]
        %v7160 = vld [vmem:[%s469 + $0xba0] sm:$0xff]
        %v7161 = vld [vmem:[%s469 + $0xba8] sm:$0xff]
        %v7162 = vld [vmem:[%s469 + $0xbb0] sm:$0xff]
        %v7163 = vld [vmem:[%s469 + $0xbb8] sm:$0xff]
        %v7164 = vld [vmem:[%s469 + $0xbc0] sm:$0xff]
        %v7165 = vld [vmem:[%s469 + $0xbc8] sm:$0xff]
        %v7166 = vld [vmem:[%s469 + $0xbd0] sm:$0xff]
        %v7167 = vld [vmem:[%s469 + $0xbd8] sm:$0xff]
        %v7168 = vld [vmem:[%s469 + $0xbe0] sm:$0xff]
        %v7169 = vld [vmem:[%s469 + $0xbe8] sm:$0xff]
        %v7170 = vld [vmem:[%s469 + $0xbf0] sm:$0xff]
        %v7171 = vld [vmem:[%s469 + $0xbf8] sm:$0xff]
        %v7172 = vld [vmem:[%s469 + $0xc00] sm:$0xff]
        %v7173 = vld [vmem:[%s469 + $0xc08] sm:$0xff]
        %v7174 = vld [vmem:[%s469 + $0xc10] sm:$0xff]
        %v7175 = vld [vmem:[%s469 + $0xc18] sm:$0xff]
        %v7176 = vld [vmem:[%s469 + $0xc20] sm:$0xff]
        %v7177 = vld [vmem:[%s469 + $0xc28] sm:$0xff]
        %v7178 = vld [vmem:[%s469 + $0xc30] sm:$0xff]
        %v7179 = vld [vmem:[%s469 + $0xc38] sm:$0xff]
        %v7180 = vld [vmem:[%s469 + $0xc40] sm:$0xff]
        %v7181 = vld [vmem:[%s469 + $0xc48] sm:$0xff]
        %v7182 = vld [vmem:[%s469 + $0xc50] sm:$0xff]
        %v7183 = vld [vmem:[%s469 + $0xc58] sm:$0xff]
        %v7184 = vld [vmem:[%s469 + $0xc60] sm:$0xff]
        %v7185 = vld [vmem:[%s469 + $0xc68] sm:$0xff]
        %v7186 = vld [vmem:[%s469 + $0xc70] sm:$0xff]
        %v7187 = vld [vmem:[%s469 + $0xc78] sm:$0xff]
        %v7188 = vld [vmem:[%s469 + $0xc80] sm:$0xff]
        %v7189 = vld [vmem:[%s469 + $0xc88] sm:$0xff]
        %v7190 = vld [vmem:[%s469 + $0xc90] sm:$0xff]
        %v7191 = vld [vmem:[%s469 + $0xc98] sm:$0xff]
        %v7192 = vld [vmem:[%s469 + $0xca0] sm:$0xff]
        %v7193 = vld [vmem:[%s469 + $0xca8] sm:$0xff]
        %v7194 = vld [vmem:[%s469 + $0xcb0] sm:$0xff]
        %v7195 = vld [vmem:[%s469 + $0xcb8] sm:$0xff]
        %v7196 = vld [vmem:[%s469 + $0xcc0] sm:$0xff]
        %v7197 = vld [vmem:[%s469 + $0xcc8] sm:$0xff]
        %v7198 = vld [vmem:[%s469 + $0xcd0] sm:$0xff]
        %v7199 = vld [vmem:[%s469 + $0xcd8] sm:$0xff]
        %v7200 = vld [vmem:[%s469 + $0xce0] sm:$0xff]
        %v7201 = vld [vmem:[%s469 + $0xce8] sm:$0xff]
        %v7202 = vld [vmem:[%s469 + $0xcf0] sm:$0xff]
        %v7203 = vld [vmem:[%s469 + $0xcf8] sm:$0xff]
        %v7204 = vld [vmem:[%s469 + $0xd00] sm:$0xff]
        %v7205 = vld [vmem:[%s469 + $0xd08] sm:$0xff]
        %v7206 = vld [vmem:[%s469 + $0xd10] sm:$0xff]
        %v7207 = vld [vmem:[%s469 + $0xd18] sm:$0xff]
        %v7208 = vld [vmem:[%s469 + $0xd20] sm:$0xff]
        %v7209 = vld [vmem:[%s469 + $0xd28] sm:$0xff]
        %v7210 = vld [vmem:[%s469 + $0xd30] sm:$0xff]
        %v7211 = vld [vmem:[%s469 + $0xd38] sm:$0xff]
        %v7212 = vld [vmem:[%s469 + $0xd40] sm:$0xff]
        %v7213 = vld [vmem:[%s469 + $0xd48] sm:$0xff]
        %v7214 = vld [vmem:[%s469 + $0xd50] sm:$0xff]
        %v7215 = vld [vmem:[%s469 + $0xd58] sm:$0xff]
        %v7216 = vld [vmem:[%s469 + $0xd60] sm:$0xff]
        %v7217 = vld [vmem:[%s469 + $0xd68] sm:$0xff]
        %v7218 = vld [vmem:[%s469 + $0xd70] sm:$0xff]
        %v7219 = vld [vmem:[%s469 + $0xd78] sm:$0xff]
        %v7220 = vld [vmem:[%s469 + $0xd80] sm:$0xff]
        %v7221 = vld [vmem:[%s469 + $0xd88] sm:$0xff]
        %v7222 = vld [vmem:[%s469 + $0xd90] sm:$0xff]
        %v7223 = vld [vmem:[%s469 + $0xd98] sm:$0xff]
        %v7224 = vld [vmem:[%s469 + $0xda0] sm:$0xff]
        %v7225 = vld [vmem:[%s469 + $0xda8] sm:$0xff]
        %v7226 = vld [vmem:[%s469 + $0xdb0] sm:$0xff]
        %v7227 = vld [vmem:[%s469 + $0xdb8] sm:$0xff]
        %v7228 = vld [vmem:[%s469 + $0xdc0] sm:$0xff]
        %v7229 = vld [vmem:[%s469 + $0xdc8] sm:$0xff]
        %v7230 = vld [vmem:[%s469 + $0xdd0] sm:$0xff]
        %v7231 = vld [vmem:[%s469 + $0xdd8] sm:$0xff]
        %v7232 = vld [vmem:[%s469 + $0xde0] sm:$0xff]
        %v7233 = vld [vmem:[%s469 + $0xde8] sm:$0xff]
        %v7234 = vld [vmem:[%s469 + $0xdf0] sm:$0xff]
        %v7235 = vld [vmem:[%s469 + $0xdf8] sm:$0xff]
        %v7236 = vld [vmem:[%s469 + $0xe00] sm:$0xff]
        %v7237 = vld [vmem:[%s469 + $0xe08] sm:$0xff]
        %v7238 = vld [vmem:[%s469 + $0xe10] sm:$0xff]
        %v7239 = vld [vmem:[%s469 + $0xe18] sm:$0xff]
        %v7240 = vld [vmem:[%s469 + $0xe20] sm:$0xff]
        %v7241 = vld [vmem:[%s469 + $0xe28] sm:$0xff]
        %v7242 = vld [vmem:[%s469 + $0xe30] sm:$0xff]
        %v7243 = vld [vmem:[%s469 + $0xe38] sm:$0xff]
        %v7244 = vld [vmem:[%s469 + $0xe40] sm:$0xff]
        %v7245 = vld [vmem:[%s469 + $0xe48] sm:$0xff]
        %v7246 = vld [vmem:[%s469 + $0xe50] sm:$0xff]
        %v7247 = vld [vmem:[%s469 + $0xe58] sm:$0xff]
        %v7248 = vld [vmem:[%s469 + $0xe60] sm:$0xff]
        %v7249 = vld [vmem:[%s469 + $0xe68] sm:$0xff]
        %v7250 = vld [vmem:[%s469 + $0xe70] sm:$0xff]
        %v7251 = vld [vmem:[%s469 + $0xe78] sm:$0xff]
        %v7252 = vld [vmem:[%s469 + $0xe80] sm:$0xff]
        %v7253 = vld [vmem:[%s469 + $0xe88] sm:$0xff]
        %v7254 = vld [vmem:[%s469 + $0xe90] sm:$0xff]
        %v7255 = vld [vmem:[%s469 + $0xe98] sm:$0xff]
        %v7256 = vld [vmem:[%s469 + $0xea0] sm:$0xff]
        %v7257 = vld [vmem:[%s469 + $0xea8] sm:$0xff]
        %v7258 = vld [vmem:[%s469 + $0xeb0] sm:$0xff]
        %v7259 = vld [vmem:[%s469 + $0xeb8] sm:$0xff]
        %v7260 = vld [vmem:[%s469 + $0xec0] sm:$0xff]
        %v7261 = vld [vmem:[%s469 + $0xec8] sm:$0xff]
        %v7262 = vld [vmem:[%s469 + $0xed0] sm:$0xff]
        %v7263 = vld [vmem:[%s469 + $0xed8] sm:$0xff]
        %v7264 = vld [vmem:[%s469 + $0xee0] sm:$0xff]
        %v7265 = vld [vmem:[%s469 + $0xee8] sm:$0xff]
        %v7266 = vld [vmem:[%s469 + $0xef0] sm:$0xff]
        %v7267 = vld [vmem:[%s469 + $0xef8] sm:$0xff]
        %v7268 = vld [vmem:[%s469 + $0xf00] sm:$0xff]
        %v7269 = vld [vmem:[%s469 + $0xf08] sm:$0xff]
        %v7270 = vld [vmem:[%s469 + $0xf10] sm:$0xff]
        %v7271 = vld [vmem:[%s469 + $0xf18] sm:$0xff]
        %v7272 = vld [vmem:[%s469 + $0xf20] sm:$0xff]
        %v7273 = vld [vmem:[%s469 + $0xf28] sm:$0xff]
        %v7274 = vld [vmem:[%s469 + $0xf30] sm:$0xff]
        %v7275 = vld [vmem:[%s469 + $0xf38] sm:$0xff]
        %v7276 = vld [vmem:[%s469 + $0xf40] sm:$0xff]
        %v7277 = vld [vmem:[%s469 + $0xf48] sm:$0xff]
        %v7278 = vld [vmem:[%s469 + $0xf50] sm:$0xff]
        %v7279 = vld [vmem:[%s469 + $0xf58] sm:$0xff]
        %v7280 = vld [vmem:[%s469 + $0xf60] sm:$0xff]
        %v7281 = vld [vmem:[%s469 + $0xf68] sm:$0xff]
        %v7282 = vld [vmem:[%s469 + $0xf70] sm:$0xff]
        %v7283 = vld [vmem:[%s469 + $0xf78] sm:$0xff]
        %v7284 = vld [vmem:[%s469 + $0xf80] sm:$0xff]
        %v7285 = vld [vmem:[%s469 + $0xf88] sm:$0xff]
        %v7286 = vld [vmem:[%s469 + $0xf90] sm:$0xff]
        %v7287 = vld [vmem:[%s469 + $0xf98] sm:$0xff]
        %v7288 = vld [vmem:[%s469 + $0xfa0] sm:$0xff]
        %v7289 = vld [vmem:[%s469 + $0xfa8] sm:$0xff]
        %v7290 = vld [vmem:[%s469 + $0xfb0] sm:$0xff]
        %v7291 = vld [vmem:[%s469 + $0xfb8] sm:$0xff]
        %v7292 = vld [vmem:[%s469 + $0xfc0] sm:$0xff]
        %v7293 = vld [vmem:[%s469 + $0xfc8] sm:$0xff]
        %v7294 = vld [vmem:[%s469 + $0xfd0] sm:$0xff]
        %v7295 = vld [vmem:[%s469 + $0xfd8] sm:$0xff]
        %v7296 = vld [vmem:[%s469 + $0xfe0] sm:$0xff]
        %v7297 = vld [vmem:[%s469 + $0xfe8] sm:$0xff]
        %v7298 = vld [vmem:[%s469 + $0xff0] sm:$0xff]
        %v7299 = vld [vmem:[%s469 + $0xff8] sm:$0xff]
        %v7300 = vld [vmem:[%s478] sm:$0xff]
        %v7302 = vlaneseq
        %v7303 = vshrl.u32 %v7302, 7
        %v7304 = vsub.s32 0, %v7303
        %v7305 = vrot.slane %v7300, %v7304
        %v7306 = vlaneseq
        %v7307 = vshrl.u32 %v7306, 7
        %v7308 = vsub.s32 1, %v7307
        %v7309 = vrot.slane %v7300, %v7308
        %v7310 = vlaneseq
        %v7311 = vshrl.u32 %v7310, 7
        %v7312 = vsub.s32 2, %v7311
        %v7313 = vrot.slane %v7300, %v7312
        %v7314 = vlaneseq
        %v7315 = vshrl.u32 %v7314, 7
        %v7316 = vsub.s32 3, %v7315
        %v7317 = vrot.slane %v7300, %v7316
        %v7318 = vlaneseq
        %v7319 = vshrl.u32 %v7318, 7
        %v7320 = vsub.s32 4, %v7319
        %v7321 = vrot.slane %v7300, %v7320
        %v7322 = vlaneseq
        %v7323 = vshrl.u32 %v7322, 7
        %v7324 = vsub.s32 5, %v7323
        %v7325 = vrot.slane %v7300, %v7324
        %v7326 = vlaneseq
        %v7327 = vshrl.u32 %v7326, 7
        %v7328 = vsub.s32 6, %v7327
        %v7329 = vrot.slane %v7300, %v7328
        %v7330 = vlaneseq
        %v7331 = vshrl.u32 %v7330, 7
        %v7332 = vsub.s32 7, %v7331
        %v7333 = vrot.slane %v7300, %v7332
        %v7854 = vunpack.c.l.b16 %v6788
        %v7855 = vunpack.c.h.b16 %v6788
        %v7856 = vunpack.c.l.b16 %v6789
        %v7857 = vunpack.c.h.b16 %v6789
        %v7858 = vunpack.c.l.b16 %v6790
        %v7859 = vunpack.c.h.b16 %v6790
        %v7860 = vunpack.c.l.b16 %v6791
        %v7861 = vunpack.c.h.b16 %v6791
        %v7862 = vunpack.c.l.b16 %v6792
        %v7863 = vunpack.c.h.b16 %v6792
        %v7864 = vunpack.c.l.b16 %v6793
        %v7865 = vunpack.c.h.b16 %v6793
        %v7866 = vunpack.c.l.b16 %v6794
        %v7867 = vunpack.c.h.b16 %v6794
        %v7868 = vunpack.c.l.b16 %v6795
        %v7869 = vunpack.c.h.b16 %v6795
        %v7870 = vunpack.c.l.b16 %v6796
        %v7871 = vunpack.c.h.b16 %v6796
        %v7872 = vunpack.c.l.b16 %v6797
        %v7873 = vunpack.c.h.b16 %v6797
        %v7874 = vunpack.c.l.b16 %v6798
        %v7875 = vunpack.c.h.b16 %v6798
        %v7876 = vunpack.c.l.b16 %v6799
        %v7877 = vunpack.c.h.b16 %v6799
        %v7878 = vunpack.c.l.b16 %v6800
        %v7879 = vunpack.c.h.b16 %v6800
        %v7880 = vunpack.c.l.b16 %v6801
        %v7881 = vunpack.c.h.b16 %v6801
        %v7882 = vunpack.c.l.b16 %v6802
        %v7883 = vunpack.c.h.b16 %v6802
        %v7884 = vunpack.c.l.b16 %v6803
        %v7885 = vunpack.c.h.b16 %v6803
        %v7886 = vunpack.c.l.b16 %v6804
        %v7887 = vunpack.c.h.b16 %v6804
        %v7888 = vunpack.c.l.b16 %v6805
        %v7889 = vunpack.c.h.b16 %v6805
        %v7890 = vunpack.c.l.b16 %v6806
        %v7891 = vunpack.c.h.b16 %v6806
        %v7892 = vunpack.c.l.b16 %v6807
        %v7893 = vunpack.c.h.b16 %v6807
        %v7894 = vunpack.c.l.b16 %v6808
        %v7895 = vunpack.c.h.b16 %v6808
        %v7896 = vunpack.c.l.b16 %v6809
        %v7897 = vunpack.c.h.b16 %v6809
        %v7898 = vunpack.c.l.b16 %v6810
        %v7899 = vunpack.c.h.b16 %v6810
        %v7900 = vunpack.c.l.b16 %v6811
        %v7901 = vunpack.c.h.b16 %v6811
        %v7902 = vunpack.c.l.b16 %v6812
        %v7903 = vunpack.c.h.b16 %v6812
        %v7904 = vunpack.c.l.b16 %v6813
        %v7905 = vunpack.c.h.b16 %v6813
        %v7906 = vunpack.c.l.b16 %v6814
        %v7907 = vunpack.c.h.b16 %v6814
        %v7908 = vunpack.c.l.b16 %v6815
        %v7909 = vunpack.c.h.b16 %v6815
        %v7910 = vunpack.c.l.b16 %v6816
        %v7911 = vunpack.c.h.b16 %v6816
        %v7912 = vunpack.c.l.b16 %v6817
        %v7913 = vunpack.c.h.b16 %v6817
        %v7914 = vunpack.c.l.b16 %v6818
        %v7915 = vunpack.c.h.b16 %v6818
        %v7916 = vunpack.c.l.b16 %v6819
        %v7917 = vunpack.c.h.b16 %v6819
        %v7918 = vunpack.c.l.b16 %v6820
        %v7919 = vunpack.c.h.b16 %v6820
        %v7920 = vunpack.c.l.b16 %v6821
        %v7921 = vunpack.c.h.b16 %v6821
        %v7922 = vunpack.c.l.b16 %v6822
        %v7923 = vunpack.c.h.b16 %v6822
        %v7924 = vunpack.c.l.b16 %v6823
        %v7925 = vunpack.c.h.b16 %v6823
        %v7926 = vunpack.c.l.b16 %v6824
        %v7927 = vunpack.c.h.b16 %v6824
        %v7928 = vunpack.c.l.b16 %v6825
        %v7929 = vunpack.c.h.b16 %v6825
        %v7930 = vunpack.c.l.b16 %v6826
        %v7931 = vunpack.c.h.b16 %v6826
        %v7932 = vunpack.c.l.b16 %v6827
        %v7933 = vunpack.c.h.b16 %v6827
        %v7934 = vunpack.c.l.b16 %v6828
        %v7935 = vunpack.c.h.b16 %v6828
        %v7936 = vunpack.c.l.b16 %v6829
        %v7937 = vunpack.c.h.b16 %v6829
        %v7938 = vunpack.c.l.b16 %v6830
        %v7939 = vunpack.c.h.b16 %v6830
        %v7940 = vunpack.c.l.b16 %v6831
        %v7941 = vunpack.c.h.b16 %v6831
        %v7942 = vunpack.c.l.b16 %v6832
        %v7943 = vunpack.c.h.b16 %v6832
        %v7944 = vunpack.c.l.b16 %v6833
        %v7945 = vunpack.c.h.b16 %v6833
        %v7946 = vunpack.c.l.b16 %v6834
        %v7947 = vunpack.c.h.b16 %v6834
        %v7948 = vunpack.c.l.b16 %v6835
        %v7949 = vunpack.c.h.b16 %v6835
        %v7950 = vunpack.c.l.b16 %v6836
        %v7951 = vunpack.c.h.b16 %v6836
        %v7952 = vunpack.c.l.b16 %v6837
        %v7953 = vunpack.c.h.b16 %v6837
        %v7954 = vunpack.c.l.b16 %v6838
        %v7955 = vunpack.c.h.b16 %v6838
        %v7956 = vunpack.c.l.b16 %v6839
        %v7957 = vunpack.c.h.b16 %v6839
        %v7958 = vunpack.c.l.b16 %v6840
        %v7959 = vunpack.c.h.b16 %v6840
        %v7960 = vunpack.c.l.b16 %v6841
        %v7961 = vunpack.c.h.b16 %v6841
        %v7962 = vunpack.c.l.b16 %v6842
        %v7963 = vunpack.c.h.b16 %v6842
        %v7964 = vunpack.c.l.b16 %v6843
        %v7965 = vunpack.c.h.b16 %v6843
        %v7966 = vunpack.c.l.b16 %v6844
        %v7967 = vunpack.c.h.b16 %v6844
        %v7968 = vunpack.c.l.b16 %v6845
        %v7969 = vunpack.c.h.b16 %v6845
        %v7970 = vunpack.c.l.b16 %v6846
        %v7971 = vunpack.c.h.b16 %v6846
        %v7972 = vunpack.c.l.b16 %v6847
        %v7973 = vunpack.c.h.b16 %v6847
        %v7974 = vunpack.c.l.b16 %v6848
        %v7975 = vunpack.c.h.b16 %v6848
        %v7976 = vunpack.c.l.b16 %v6849
        %v7977 = vunpack.c.h.b16 %v6849
        %v7978 = vunpack.c.l.b16 %v6850
        %v7979 = vunpack.c.h.b16 %v6850
        %v7980 = vunpack.c.l.b16 %v6851
        %v7981 = vunpack.c.h.b16 %v6851
        %v7982 = vunpack.c.l.b16 %v6852
        %v7983 = vunpack.c.h.b16 %v6852
        %v7984 = vunpack.c.l.b16 %v6853
        %v7985 = vunpack.c.h.b16 %v6853
        %v7986 = vunpack.c.l.b16 %v6854
        %v7987 = vunpack.c.h.b16 %v6854
        %v7988 = vunpack.c.l.b16 %v6855
        %v7989 = vunpack.c.h.b16 %v6855
        %v7990 = vunpack.c.l.b16 %v6856
        %v7991 = vunpack.c.h.b16 %v6856
        %v7992 = vunpack.c.l.b16 %v6857
        %v7993 = vunpack.c.h.b16 %v6857
        %v7994 = vunpack.c.l.b16 %v6858
        %v7995 = vunpack.c.h.b16 %v6858
        %v7996 = vunpack.c.l.b16 %v6859
        %v7997 = vunpack.c.h.b16 %v6859
        %v7998 = vunpack.c.l.b16 %v6860
        %v7999 = vunpack.c.h.b16 %v6860
        %v8000 = vunpack.c.l.b16 %v6861
        %v8001 = vunpack.c.h.b16 %v6861
        %v8002 = vunpack.c.l.b16 %v6862
        %v8003 = vunpack.c.h.b16 %v6862
        %v8004 = vunpack.c.l.b16 %v6863
        %v8005 = vunpack.c.h.b16 %v6863
        %v8006 = vunpack.c.l.b16 %v6864
        %v8007 = vunpack.c.h.b16 %v6864
        %v8008 = vunpack.c.l.b16 %v6865
        %v8009 = vunpack.c.h.b16 %v6865
        %v8010 = vunpack.c.l.b16 %v6866
        %v8011 = vunpack.c.h.b16 %v6866
        %v8012 = vunpack.c.l.b16 %v6867
        %v8013 = vunpack.c.h.b16 %v6867
        %v8014 = vunpack.c.l.b16 %v6868
        %v8015 = vunpack.c.h.b16 %v6868
        %v8016 = vunpack.c.l.b16 %v6869
        %v8017 = vunpack.c.h.b16 %v6869
        %v8018 = vunpack.c.l.b16 %v6870
        %v8019 = vunpack.c.h.b16 %v6870
        %v8020 = vunpack.c.l.b16 %v6871
        %v8021 = vunpack.c.h.b16 %v6871
        %v8022 = vunpack.c.l.b16 %v6872
        %v8023 = vunpack.c.h.b16 %v6872
        %v8024 = vunpack.c.l.b16 %v6873
        %v8025 = vunpack.c.h.b16 %v6873
        %v8026 = vunpack.c.l.b16 %v6874
        %v8027 = vunpack.c.h.b16 %v6874
        %v8028 = vunpack.c.l.b16 %v6875
        %v8029 = vunpack.c.h.b16 %v6875
        %v8030 = vunpack.c.l.b16 %v6876
        %v8031 = vunpack.c.h.b16 %v6876
        %v8032 = vunpack.c.l.b16 %v6877
        %v8033 = vunpack.c.h.b16 %v6877
        %v8034 = vunpack.c.l.b16 %v6878
        %v8035 = vunpack.c.h.b16 %v6878
        %v8036 = vunpack.c.l.b16 %v6879
        %v8037 = vunpack.c.h.b16 %v6879
        %v8038 = vunpack.c.l.b16 %v6880
        %v8039 = vunpack.c.h.b16 %v6880
        %v8040 = vunpack.c.l.b16 %v6881
        %v8041 = vunpack.c.h.b16 %v6881
        %v8042 = vunpack.c.l.b16 %v6882
        %v8043 = vunpack.c.h.b16 %v6882
        %v8044 = vunpack.c.l.b16 %v6883
        %v8045 = vunpack.c.h.b16 %v6883
        %v8046 = vunpack.c.l.b16 %v6884
        %v8047 = vunpack.c.h.b16 %v6884
        %v8048 = vunpack.c.l.b16 %v6885
        %v8049 = vunpack.c.h.b16 %v6885
        %v8050 = vunpack.c.l.b16 %v6886
        %v8051 = vunpack.c.h.b16 %v6886
        %v8052 = vunpack.c.l.b16 %v6887
        %v8053 = vunpack.c.h.b16 %v6887
        %v8054 = vunpack.c.l.b16 %v6888
        %v8055 = vunpack.c.h.b16 %v6888
        %v8056 = vunpack.c.l.b16 %v6889
        %v8057 = vunpack.c.h.b16 %v6889
        %v8058 = vunpack.c.l.b16 %v6890
        %v8059 = vunpack.c.h.b16 %v6890
        %v8060 = vunpack.c.l.b16 %v6891
        %v8061 = vunpack.c.h.b16 %v6891
        %v8062 = vunpack.c.l.b16 %v6892
        %v8063 = vunpack.c.h.b16 %v6892
        %v8064 = vunpack.c.l.b16 %v6893
        %v8065 = vunpack.c.h.b16 %v6893
        %v8066 = vunpack.c.l.b16 %v6894
        %v8067 = vunpack.c.h.b16 %v6894
        %v8068 = vunpack.c.l.b16 %v6895
        %v8069 = vunpack.c.h.b16 %v6895
        %v8070 = vunpack.c.l.b16 %v6896
        %v8071 = vunpack.c.h.b16 %v6896
        %v8072 = vunpack.c.l.b16 %v6897
        %v8073 = vunpack.c.h.b16 %v6897
        %v8074 = vunpack.c.l.b16 %v6898
        %v8075 = vunpack.c.h.b16 %v6898
        %v8076 = vunpack.c.l.b16 %v6899
        %v8077 = vunpack.c.h.b16 %v6899
        %v8078 = vunpack.c.l.b16 %v6900
        %v8079 = vunpack.c.h.b16 %v6900
        %v8080 = vunpack.c.l.b16 %v6901
        %v8081 = vunpack.c.h.b16 %v6901
        %v8082 = vunpack.c.l.b16 %v6902
        %v8083 = vunpack.c.h.b16 %v6902
        %v8084 = vunpack.c.l.b16 %v6903
        %v8085 = vunpack.c.h.b16 %v6903
        %v8086 = vunpack.c.l.b16 %v6904
        %v8087 = vunpack.c.h.b16 %v6904
        %v8088 = vunpack.c.l.b16 %v6905
        %v8089 = vunpack.c.h.b16 %v6905
        %v8090 = vunpack.c.l.b16 %v6906
        %v8091 = vunpack.c.h.b16 %v6906
        %v8092 = vunpack.c.l.b16 %v6907
        %v8093 = vunpack.c.h.b16 %v6907
        %v8094 = vunpack.c.l.b16 %v6908
        %v8095 = vunpack.c.h.b16 %v6908
        %v8096 = vunpack.c.l.b16 %v6909
        %v8097 = vunpack.c.h.b16 %v6909
        %v8098 = vunpack.c.l.b16 %v6910
        %v8099 = vunpack.c.h.b16 %v6910
        %v8100 = vunpack.c.l.b16 %v6911
        %v8101 = vunpack.c.h.b16 %v6911
        %v8102 = vunpack.c.l.b16 %v6912
        %v8103 = vunpack.c.h.b16 %v6912
        %v8104 = vunpack.c.l.b16 %v6913
        %v8105 = vunpack.c.h.b16 %v6913
        %v8106 = vunpack.c.l.b16 %v6914
        %v8107 = vunpack.c.h.b16 %v6914
        %v8108 = vunpack.c.l.b16 %v6915
        %v8109 = vunpack.c.h.b16 %v6915
        %v8110 = vunpack.c.l.b16 %v6916
        %v8111 = vunpack.c.h.b16 %v6916
        %v8112 = vunpack.c.l.b16 %v6917
        %v8113 = vunpack.c.h.b16 %v6917
        %v8114 = vunpack.c.l.b16 %v6918
        %v8115 = vunpack.c.h.b16 %v6918
        %v8116 = vunpack.c.l.b16 %v6919
        %v8117 = vunpack.c.h.b16 %v6919
        %v8118 = vunpack.c.l.b16 %v6920
        %v8119 = vunpack.c.h.b16 %v6920
        %v8120 = vunpack.c.l.b16 %v6921
        %v8121 = vunpack.c.h.b16 %v6921
        %v8122 = vunpack.c.l.b16 %v6922
        %v8123 = vunpack.c.h.b16 %v6922
        %v8124 = vunpack.c.l.b16 %v6923
        %v8125 = vunpack.c.h.b16 %v6923
        %v8126 = vunpack.c.l.b16 %v6924
        %v8127 = vunpack.c.h.b16 %v6924
        %v8128 = vunpack.c.l.b16 %v6925
        %v8129 = vunpack.c.h.b16 %v6925
        %v8130 = vunpack.c.l.b16 %v6926
        %v8131 = vunpack.c.h.b16 %v6926
        %v8132 = vunpack.c.l.b16 %v6927
        %v8133 = vunpack.c.h.b16 %v6927
        %v8134 = vunpack.c.l.b16 %v6928
        %v8135 = vunpack.c.h.b16 %v6928
        %v8136 = vunpack.c.l.b16 %v6929
        %v8137 = vunpack.c.h.b16 %v6929
        %v8138 = vunpack.c.l.b16 %v6930
        %v8139 = vunpack.c.h.b16 %v6930
        %v8140 = vunpack.c.l.b16 %v6931
        %v8141 = vunpack.c.h.b16 %v6931
        %v8142 = vunpack.c.l.b16 %v6932
        %v8143 = vunpack.c.h.b16 %v6932
        %v8144 = vunpack.c.l.b16 %v6933
        %v8145 = vunpack.c.h.b16 %v6933
        %v8146 = vunpack.c.l.b16 %v6934
        %v8147 = vunpack.c.h.b16 %v6934
        %v8148 = vunpack.c.l.b16 %v6935
        %v8149 = vunpack.c.h.b16 %v6935
        %v8150 = vunpack.c.l.b16 %v6936
        %v8151 = vunpack.c.h.b16 %v6936
        %v8152 = vunpack.c.l.b16 %v6937
        %v8153 = vunpack.c.h.b16 %v6937
        %v8154 = vunpack.c.l.b16 %v6938
        %v8155 = vunpack.c.h.b16 %v6938
        %v8156 = vunpack.c.l.b16 %v6939
        %v8157 = vunpack.c.h.b16 %v6939
        %v8158 = vunpack.c.l.b16 %v6940
        %v8159 = vunpack.c.h.b16 %v6940
        %v8160 = vunpack.c.l.b16 %v6941
        %v8161 = vunpack.c.h.b16 %v6941
        %v8162 = vunpack.c.l.b16 %v6942
        %v8163 = vunpack.c.h.b16 %v6942
        %v8164 = vunpack.c.l.b16 %v6943
        %v8165 = vunpack.c.h.b16 %v6943
        %v8166 = vunpack.c.l.b16 %v6944
        %v8167 = vunpack.c.h.b16 %v6944
        %v8168 = vunpack.c.l.b16 %v6945
        %v8169 = vunpack.c.h.b16 %v6945
        %v8170 = vunpack.c.l.b16 %v6946
        %v8171 = vunpack.c.h.b16 %v6946
        %v8172 = vunpack.c.l.b16 %v6947
        %v8173 = vunpack.c.h.b16 %v6947
        %v8174 = vunpack.c.l.b16 %v6948
        %v8175 = vunpack.c.h.b16 %v6948
        %v8176 = vunpack.c.l.b16 %v6949
        %v8177 = vunpack.c.h.b16 %v6949
        %v8178 = vunpack.c.l.b16 %v6950
        %v8179 = vunpack.c.h.b16 %v6950
        %v8180 = vunpack.c.l.b16 %v6951
        %v8181 = vunpack.c.h.b16 %v6951
        %v8182 = vunpack.c.l.b16 %v6952
        %v8183 = vunpack.c.h.b16 %v6952
        %v8184 = vunpack.c.l.b16 %v6953
        %v8185 = vunpack.c.h.b16 %v6953
        %v8186 = vunpack.c.l.b16 %v6954
        %v8187 = vunpack.c.h.b16 %v6954
        %v8188 = vunpack.c.l.b16 %v6955
        %v8189 = vunpack.c.h.b16 %v6955
        %v8190 = vunpack.c.l.b16 %v6956
        %v8191 = vunpack.c.h.b16 %v6956
        %v8192 = vunpack.c.l.b16 %v6957
        %v8193 = vunpack.c.h.b16 %v6957
        %v8194 = vunpack.c.l.b16 %v6958
        %v8195 = vunpack.c.h.b16 %v6958
        %v8196 = vunpack.c.l.b16 %v6959
        %v8197 = vunpack.c.h.b16 %v6959
        %v8198 = vunpack.c.l.b16 %v6960
        %v8199 = vunpack.c.h.b16 %v6960
        %v8200 = vunpack.c.l.b16 %v6961
        %v8201 = vunpack.c.h.b16 %v6961
        %v8202 = vunpack.c.l.b16 %v6962
        %v8203 = vunpack.c.h.b16 %v6962
        %v8204 = vunpack.c.l.b16 %v6963
        %v8205 = vunpack.c.h.b16 %v6963
        %v8206 = vunpack.c.l.b16 %v6964
        %v8207 = vunpack.c.h.b16 %v6964
        %v8208 = vunpack.c.l.b16 %v6965
        %v8209 = vunpack.c.h.b16 %v6965
        %v8210 = vunpack.c.l.b16 %v6966
        %v8211 = vunpack.c.h.b16 %v6966
        %v8212 = vunpack.c.l.b16 %v6967
        %v8213 = vunpack.c.h.b16 %v6967
        %v8214 = vunpack.c.l.b16 %v6968
        %v8215 = vunpack.c.h.b16 %v6968
        %v8216 = vunpack.c.l.b16 %v6969
        %v8217 = vunpack.c.h.b16 %v6969
        %v8218 = vunpack.c.l.b16 %v6970
        %v8219 = vunpack.c.h.b16 %v6970
        %v8220 = vunpack.c.l.b16 %v6971
        %v8221 = vunpack.c.h.b16 %v6971
        %v8222 = vunpack.c.l.b16 %v6972
        %v8223 = vunpack.c.h.b16 %v6972
        %v8224 = vunpack.c.l.b16 %v6973
        %v8225 = vunpack.c.h.b16 %v6973
        %v8226 = vunpack.c.l.b16 %v6974
        %v8227 = vunpack.c.h.b16 %v6974
        %v8228 = vunpack.c.l.b16 %v6975
        %v8229 = vunpack.c.h.b16 %v6975
        %v8230 = vunpack.c.l.b16 %v6976
        %v8231 = vunpack.c.h.b16 %v6976
        %v8232 = vunpack.c.l.b16 %v6977
        %v8233 = vunpack.c.h.b16 %v6977
        %v8234 = vunpack.c.l.b16 %v6978
        %v8235 = vunpack.c.h.b16 %v6978
        %v8236 = vunpack.c.l.b16 %v6979
        %v8237 = vunpack.c.h.b16 %v6979
        %v8238 = vunpack.c.l.b16 %v6980
        %v8239 = vunpack.c.h.b16 %v6980
        %v8240 = vunpack.c.l.b16 %v6981
        %v8241 = vunpack.c.h.b16 %v6981
        %v8242 = vunpack.c.l.b16 %v6982
        %v8243 = vunpack.c.h.b16 %v6982
        %v8244 = vunpack.c.l.b16 %v6983
        %v8245 = vunpack.c.h.b16 %v6983
        %v8246 = vunpack.c.l.b16 %v6984
        %v8247 = vunpack.c.h.b16 %v6984
        %v8248 = vunpack.c.l.b16 %v6985
        %v8249 = vunpack.c.h.b16 %v6985
        %v8250 = vunpack.c.l.b16 %v6986
        %v8251 = vunpack.c.h.b16 %v6986
        %v8252 = vunpack.c.l.b16 %v6987
        %v8253 = vunpack.c.h.b16 %v6987
        %v8254 = vunpack.c.l.b16 %v6988
        %v8255 = vunpack.c.h.b16 %v6988
        %v8256 = vunpack.c.l.b16 %v6989
        %v8257 = vunpack.c.h.b16 %v6989
        %v8258 = vunpack.c.l.b16 %v6990
        %v8259 = vunpack.c.h.b16 %v6990
        %v8260 = vunpack.c.l.b16 %v6991
        %v8261 = vunpack.c.h.b16 %v6991
        %v8262 = vunpack.c.l.b16 %v6992
        %v8263 = vunpack.c.h.b16 %v6992
        %v8264 = vunpack.c.l.b16 %v6993
        %v8265 = vunpack.c.h.b16 %v6993
        %v8266 = vunpack.c.l.b16 %v6994
        %v8267 = vunpack.c.h.b16 %v6994
        %v8268 = vunpack.c.l.b16 %v6995
        %v8269 = vunpack.c.h.b16 %v6995
        %v8270 = vunpack.c.l.b16 %v6996
        %v8271 = vunpack.c.h.b16 %v6996
        %v8272 = vunpack.c.l.b16 %v6997
        %v8273 = vunpack.c.h.b16 %v6997
        %v8274 = vunpack.c.l.b16 %v6998
        %v8275 = vunpack.c.h.b16 %v6998
        %v8276 = vunpack.c.l.b16 %v6999
        %v8277 = vunpack.c.h.b16 %v6999
        %v8278 = vunpack.c.l.b16 %v7000
        %v8279 = vunpack.c.h.b16 %v7000
        %v8280 = vunpack.c.l.b16 %v7001
        %v8281 = vunpack.c.h.b16 %v7001
        %v8282 = vunpack.c.l.b16 %v7002
        %v8283 = vunpack.c.h.b16 %v7002
        %v8284 = vunpack.c.l.b16 %v7003
        %v8285 = vunpack.c.h.b16 %v7003
        %v8286 = vunpack.c.l.b16 %v7004
        %v8287 = vunpack.c.h.b16 %v7004
        %v8288 = vunpack.c.l.b16 %v7005
        %v8289 = vunpack.c.h.b16 %v7005
        %v8290 = vunpack.c.l.b16 %v7006
        %v8291 = vunpack.c.h.b16 %v7006
        %v8292 = vunpack.c.l.b16 %v7007
        %v8293 = vunpack.c.h.b16 %v7007
        %v8294 = vunpack.c.l.b16 %v7008
        %v8295 = vunpack.c.h.b16 %v7008
        %v8296 = vunpack.c.l.b16 %v7009
        %v8297 = vunpack.c.h.b16 %v7009
        %v8298 = vunpack.c.l.b16 %v7010
        %v8299 = vunpack.c.h.b16 %v7010
        %v8300 = vunpack.c.l.b16 %v7011
        %v8301 = vunpack.c.h.b16 %v7011
        %v8302 = vunpack.c.l.b16 %v7012
        %v8303 = vunpack.c.h.b16 %v7012
        %v8304 = vunpack.c.l.b16 %v7013
        %v8305 = vunpack.c.h.b16 %v7013
        %v8306 = vunpack.c.l.b16 %v7014
        %v8307 = vunpack.c.h.b16 %v7014
        %v8308 = vunpack.c.l.b16 %v7015
        %v8309 = vunpack.c.h.b16 %v7015
        %v8310 = vunpack.c.l.b16 %v7016
        %v8311 = vunpack.c.h.b16 %v7016
        %v8312 = vunpack.c.l.b16 %v7017
        %v8313 = vunpack.c.h.b16 %v7017
        %v8314 = vunpack.c.l.b16 %v7018
        %v8315 = vunpack.c.h.b16 %v7018
        %v8316 = vunpack.c.l.b16 %v7019
        %v8317 = vunpack.c.h.b16 %v7019
        %v8318 = vunpack.c.l.b16 %v7020
        %v8319 = vunpack.c.h.b16 %v7020
        %v8320 = vunpack.c.l.b16 %v7021
        %v8321 = vunpack.c.h.b16 %v7021
        %v8322 = vunpack.c.l.b16 %v7022
        %v8323 = vunpack.c.h.b16 %v7022
        %v8324 = vunpack.c.l.b16 %v7023
        %v8325 = vunpack.c.h.b16 %v7023
        %v8326 = vunpack.c.l.b16 %v7024
        %v8327 = vunpack.c.h.b16 %v7024
        %v8328 = vunpack.c.l.b16 %v7025
        %v8329 = vunpack.c.h.b16 %v7025
        %v8330 = vunpack.c.l.b16 %v7026
        %v8331 = vunpack.c.h.b16 %v7026
        %v8332 = vunpack.c.l.b16 %v7027
        %v8333 = vunpack.c.h.b16 %v7027
        %v8334 = vunpack.c.l.b16 %v7028
        %v8335 = vunpack.c.h.b16 %v7028
        %v8336 = vunpack.c.l.b16 %v7029
        %v8337 = vunpack.c.h.b16 %v7029
        %v8338 = vunpack.c.l.b16 %v7030
        %v8339 = vunpack.c.h.b16 %v7030
        %v8340 = vunpack.c.l.b16 %v7031
        %v8341 = vunpack.c.h.b16 %v7031
        %v8342 = vunpack.c.l.b16 %v7032
        %v8343 = vunpack.c.h.b16 %v7032
        %v8344 = vunpack.c.l.b16 %v7033
        %v8345 = vunpack.c.h.b16 %v7033
        %v8346 = vunpack.c.l.b16 %v7034
        %v8347 = vunpack.c.h.b16 %v7034
        %v8348 = vunpack.c.l.b16 %v7035
        %v8349 = vunpack.c.h.b16 %v7035
        %v8350 = vunpack.c.l.b16 %v7036
        %v8351 = vunpack.c.h.b16 %v7036
        %v8352 = vunpack.c.l.b16 %v7037
        %v8353 = vunpack.c.h.b16 %v7037
        %v8354 = vunpack.c.l.b16 %v7038
        %v8355 = vunpack.c.h.b16 %v7038
        %v8356 = vunpack.c.l.b16 %v7039
        %v8357 = vunpack.c.h.b16 %v7039
        %v8358 = vunpack.c.l.b16 %v7040
        %v8359 = vunpack.c.h.b16 %v7040
        %v8360 = vunpack.c.l.b16 %v7041
        %v8361 = vunpack.c.h.b16 %v7041
        %v8362 = vunpack.c.l.b16 %v7042
        %v8363 = vunpack.c.h.b16 %v7042
        %v8364 = vunpack.c.l.b16 %v7043
        %v8365 = vunpack.c.h.b16 %v7043
        %v8366 = vunpack.c.l.b16 %v7044
        %v8367 = vunpack.c.h.b16 %v7044
        %v8368 = vunpack.c.l.b16 %v7045
        %v8369 = vunpack.c.h.b16 %v7045
        %v8370 = vunpack.c.l.b16 %v7046
        %v8371 = vunpack.c.h.b16 %v7046
        %v8372 = vunpack.c.l.b16 %v7047
        %v8373 = vunpack.c.h.b16 %v7047
        %v8374 = vunpack.c.l.b16 %v7048
        %v8375 = vunpack.c.h.b16 %v7048
        %v8376 = vunpack.c.l.b16 %v7049
        %v8377 = vunpack.c.h.b16 %v7049
        %v8378 = vunpack.c.l.b16 %v7050
        %v8379 = vunpack.c.h.b16 %v7050
        %v8380 = vunpack.c.l.b16 %v7051
        %v8381 = vunpack.c.h.b16 %v7051
        %v8382 = vunpack.c.l.b16 %v7052
        %v8383 = vunpack.c.h.b16 %v7052
        %v8384 = vunpack.c.l.b16 %v7053
        %v8385 = vunpack.c.h.b16 %v7053
        %v8386 = vunpack.c.l.b16 %v7054
        %v8387 = vunpack.c.h.b16 %v7054
        %v8388 = vunpack.c.l.b16 %v7055
        %v8389 = vunpack.c.h.b16 %v7055
        %v8390 = vunpack.c.l.b16 %v7056
        %v8391 = vunpack.c.h.b16 %v7056
        %v8392 = vunpack.c.l.b16 %v7057
        %v8393 = vunpack.c.h.b16 %v7057
        %v8394 = vunpack.c.l.b16 %v7058
        %v8395 = vunpack.c.h.b16 %v7058
        %v8396 = vunpack.c.l.b16 %v7059
        %v8397 = vunpack.c.h.b16 %v7059
        %v8398 = vunpack.c.l.b16 %v7060
        %v8399 = vunpack.c.h.b16 %v7060
        %v8400 = vunpack.c.l.b16 %v7061
        %v8401 = vunpack.c.h.b16 %v7061
        %v8402 = vunpack.c.l.b16 %v7062
        %v8403 = vunpack.c.h.b16 %v7062
        %v8404 = vunpack.c.l.b16 %v7063
        %v8405 = vunpack.c.h.b16 %v7063
        %v8406 = vunpack.c.l.b16 %v7064
        %v8407 = vunpack.c.h.b16 %v7064
        %v8408 = vunpack.c.l.b16 %v7065
        %v8409 = vunpack.c.h.b16 %v7065
        %v8410 = vunpack.c.l.b16 %v7066
        %v8411 = vunpack.c.h.b16 %v7066
        %v8412 = vunpack.c.l.b16 %v7067
        %v8413 = vunpack.c.h.b16 %v7067
        %v8414 = vunpack.c.l.b16 %v7068
        %v8415 = vunpack.c.h.b16 %v7068
        %v8416 = vunpack.c.l.b16 %v7069
        %v8417 = vunpack.c.h.b16 %v7069
        %v8418 = vunpack.c.l.b16 %v7070
        %v8419 = vunpack.c.h.b16 %v7070
        %v8420 = vunpack.c.l.b16 %v7071
        %v8421 = vunpack.c.h.b16 %v7071
        %v8422 = vunpack.c.l.b16 %v7072
        %v8423 = vunpack.c.h.b16 %v7072
        %v8424 = vunpack.c.l.b16 %v7073
        %v8425 = vunpack.c.h.b16 %v7073
        %v8426 = vunpack.c.l.b16 %v7074
        %v8427 = vunpack.c.h.b16 %v7074
        %v8428 = vunpack.c.l.b16 %v7075
        %v8429 = vunpack.c.h.b16 %v7075
        %v8430 = vunpack.c.l.b16 %v7076
        %v8431 = vunpack.c.h.b16 %v7076
        %v8432 = vunpack.c.l.b16 %v7077
        %v8433 = vunpack.c.h.b16 %v7077
        %v8434 = vunpack.c.l.b16 %v7078
        %v8435 = vunpack.c.h.b16 %v7078
        %v8436 = vunpack.c.l.b16 %v7079
        %v8437 = vunpack.c.h.b16 %v7079
        %v8438 = vunpack.c.l.b16 %v7080
        %v8439 = vunpack.c.h.b16 %v7080
        %v8440 = vunpack.c.l.b16 %v7081
        %v8441 = vunpack.c.h.b16 %v7081
        %v8442 = vunpack.c.l.b16 %v7082
        %v8443 = vunpack.c.h.b16 %v7082
        %v8444 = vunpack.c.l.b16 %v7083
        %v8445 = vunpack.c.h.b16 %v7083
        %v8446 = vunpack.c.l.b16 %v7084
        %v8447 = vunpack.c.h.b16 %v7084
        %v8448 = vunpack.c.l.b16 %v7085
        %v8449 = vunpack.c.h.b16 %v7085
        %v8450 = vunpack.c.l.b16 %v7086
        %v8451 = vunpack.c.h.b16 %v7086
        %v8452 = vunpack.c.l.b16 %v7087
        %v8453 = vunpack.c.h.b16 %v7087
        %v8454 = vunpack.c.l.b16 %v7088
        %v8455 = vunpack.c.h.b16 %v7088
        %v8456 = vunpack.c.l.b16 %v7089
        %v8457 = vunpack.c.h.b16 %v7089
        %v8458 = vunpack.c.l.b16 %v7090
        %v8459 = vunpack.c.h.b16 %v7090
        %v8460 = vunpack.c.l.b16 %v7091
        %v8461 = vunpack.c.h.b16 %v7091
        %v8462 = vunpack.c.l.b16 %v7092
        %v8463 = vunpack.c.h.b16 %v7092
        %v8464 = vunpack.c.l.b16 %v7093
        %v8465 = vunpack.c.h.b16 %v7093
        %v8466 = vunpack.c.l.b16 %v7094
        %v8467 = vunpack.c.h.b16 %v7094
        %v8468 = vunpack.c.l.b16 %v7095
        %v8469 = vunpack.c.h.b16 %v7095
        %v8470 = vunpack.c.l.b16 %v7096
        %v8471 = vunpack.c.h.b16 %v7096
        %v8472 = vunpack.c.l.b16 %v7097
        %v8473 = vunpack.c.h.b16 %v7097
        %v8474 = vunpack.c.l.b16 %v7098
        %v8475 = vunpack.c.h.b16 %v7098
        %v8476 = vunpack.c.l.b16 %v7099
        %v8477 = vunpack.c.h.b16 %v7099
        %v8478 = vunpack.c.l.b16 %v7100
        %v8479 = vunpack.c.h.b16 %v7100
        %v8480 = vunpack.c.l.b16 %v7101
        %v8481 = vunpack.c.h.b16 %v7101
        %v8482 = vunpack.c.l.b16 %v7102
        %v8483 = vunpack.c.h.b16 %v7102
        %v8484 = vunpack.c.l.b16 %v7103
        %v8485 = vunpack.c.h.b16 %v7103
        %v8486 = vunpack.c.l.b16 %v7104
        %v8487 = vunpack.c.h.b16 %v7104
        %v8488 = vunpack.c.l.b16 %v7105
        %v8489 = vunpack.c.h.b16 %v7105
        %v8490 = vunpack.c.l.b16 %v7106
        %v8491 = vunpack.c.h.b16 %v7106
        %v8492 = vunpack.c.l.b16 %v7107
        %v8493 = vunpack.c.h.b16 %v7107
        %v8494 = vunpack.c.l.b16 %v7108
        %v8495 = vunpack.c.h.b16 %v7108
        %v8496 = vunpack.c.l.b16 %v7109
        %v8497 = vunpack.c.h.b16 %v7109
        %v8498 = vunpack.c.l.b16 %v7110
        %v8499 = vunpack.c.h.b16 %v7110
        %v8500 = vunpack.c.l.b16 %v7111
        %v8501 = vunpack.c.h.b16 %v7111
        %v8502 = vunpack.c.l.b16 %v7112
        %v8503 = vunpack.c.h.b16 %v7112
        %v8504 = vunpack.c.l.b16 %v7113
        %v8505 = vunpack.c.h.b16 %v7113
        %v8506 = vunpack.c.l.b16 %v7114
        %v8507 = vunpack.c.h.b16 %v7114
        %v8508 = vunpack.c.l.b16 %v7115
        %v8509 = vunpack.c.h.b16 %v7115
        %v8510 = vunpack.c.l.b16 %v7116
        %v8511 = vunpack.c.h.b16 %v7116
        %v8512 = vunpack.c.l.b16 %v7117
        %v8513 = vunpack.c.h.b16 %v7117
        %v8514 = vunpack.c.l.b16 %v7118
        %v8515 = vunpack.c.h.b16 %v7118
        %v8516 = vunpack.c.l.b16 %v7119
        %v8517 = vunpack.c.h.b16 %v7119
        %v8518 = vunpack.c.l.b16 %v7120
        %v8519 = vunpack.c.h.b16 %v7120
        %v8520 = vunpack.c.l.b16 %v7121
        %v8521 = vunpack.c.h.b16 %v7121
        %v8522 = vunpack.c.l.b16 %v7122
        %v8523 = vunpack.c.h.b16 %v7122
        %v8524 = vunpack.c.l.b16 %v7123
        %v8525 = vunpack.c.h.b16 %v7123
        %v8526 = vunpack.c.l.b16 %v7124
        %v8527 = vunpack.c.h.b16 %v7124
        %v8528 = vunpack.c.l.b16 %v7125
        %v8529 = vunpack.c.h.b16 %v7125
        %v8530 = vunpack.c.l.b16 %v7126
        %v8531 = vunpack.c.h.b16 %v7126
        %v8532 = vunpack.c.l.b16 %v7127
        %v8533 = vunpack.c.h.b16 %v7127
        %v8534 = vunpack.c.l.b16 %v7128
        %v8535 = vunpack.c.h.b16 %v7128
        %v8536 = vunpack.c.l.b16 %v7129
        %v8537 = vunpack.c.h.b16 %v7129
        %v8538 = vunpack.c.l.b16 %v7130
        %v8539 = vunpack.c.h.b16 %v7130
        %v8540 = vunpack.c.l.b16 %v7131
        %v8541 = vunpack.c.h.b16 %v7131
        %v8542 = vunpack.c.l.b16 %v7132
        %v8543 = vunpack.c.h.b16 %v7132
        %v8544 = vunpack.c.l.b16 %v7133
        %v8545 = vunpack.c.h.b16 %v7133
        %v8546 = vunpack.c.l.b16 %v7134
        %v8547 = vunpack.c.h.b16 %v7134
        %v8548 = vunpack.c.l.b16 %v7135
        %v8549 = vunpack.c.h.b16 %v7135
        %v8550 = vunpack.c.l.b16 %v7136
        %v8551 = vunpack.c.h.b16 %v7136
        %v8552 = vunpack.c.l.b16 %v7137
        %v8553 = vunpack.c.h.b16 %v7137
        %v8554 = vunpack.c.l.b16 %v7138
        %v8555 = vunpack.c.h.b16 %v7138
        %v8556 = vunpack.c.l.b16 %v7139
        %v8557 = vunpack.c.h.b16 %v7139
        %v8558 = vunpack.c.l.b16 %v7140
        %v8559 = vunpack.c.h.b16 %v7140
        %v8560 = vunpack.c.l.b16 %v7141
        %v8561 = vunpack.c.h.b16 %v7141
        %v8562 = vunpack.c.l.b16 %v7142
        %v8563 = vunpack.c.h.b16 %v7142
        %v8564 = vunpack.c.l.b16 %v7143
        %v8565 = vunpack.c.h.b16 %v7143
        %v8566 = vunpack.c.l.b16 %v7144
        %v8567 = vunpack.c.h.b16 %v7144
        %v8568 = vunpack.c.l.b16 %v7145
        %v8569 = vunpack.c.h.b16 %v7145
        %v8570 = vunpack.c.l.b16 %v7146
        %v8571 = vunpack.c.h.b16 %v7146
        %v8572 = vunpack.c.l.b16 %v7147
        %v8573 = vunpack.c.h.b16 %v7147
        %v8574 = vunpack.c.l.b16 %v7148
        %v8575 = vunpack.c.h.b16 %v7148
        %v8576 = vunpack.c.l.b16 %v7149
        %v8577 = vunpack.c.h.b16 %v7149
        %v8578 = vunpack.c.l.b16 %v7150
        %v8579 = vunpack.c.h.b16 %v7150
        %v8580 = vunpack.c.l.b16 %v7151
        %v8581 = vunpack.c.h.b16 %v7151
        %v8582 = vunpack.c.l.b16 %v7152
        %v8583 = vunpack.c.h.b16 %v7152
        %v8584 = vunpack.c.l.b16 %v7153
        %v8585 = vunpack.c.h.b16 %v7153
        %v8586 = vunpack.c.l.b16 %v7154
        %v8587 = vunpack.c.h.b16 %v7154
        %v8588 = vunpack.c.l.b16 %v7155
        %v8589 = vunpack.c.h.b16 %v7155
        %v8590 = vunpack.c.l.b16 %v7156
        %v8591 = vunpack.c.h.b16 %v7156
        %v8592 = vunpack.c.l.b16 %v7157
        %v8593 = vunpack.c.h.b16 %v7157
        %v8594 = vunpack.c.l.b16 %v7158
        %v8595 = vunpack.c.h.b16 %v7158
        %v8596 = vunpack.c.l.b16 %v7159
        %v8597 = vunpack.c.h.b16 %v7159
        %v8598 = vunpack.c.l.b16 %v7160
        %v8599 = vunpack.c.h.b16 %v7160
        %v8600 = vunpack.c.l.b16 %v7161
        %v8601 = vunpack.c.h.b16 %v7161
        %v8602 = vunpack.c.l.b16 %v7162
        %v8603 = vunpack.c.h.b16 %v7162
        %v8604 = vunpack.c.l.b16 %v7163
        %v8605 = vunpack.c.h.b16 %v7163
        %v8606 = vunpack.c.l.b16 %v7164
        %v8607 = vunpack.c.h.b16 %v7164
        %v8608 = vunpack.c.l.b16 %v7165
        %v8609 = vunpack.c.h.b16 %v7165
        %v8610 = vunpack.c.l.b16 %v7166
        %v8611 = vunpack.c.h.b16 %v7166
        %v8612 = vunpack.c.l.b16 %v7167
        %v8613 = vunpack.c.h.b16 %v7167
        %v8614 = vunpack.c.l.b16 %v7168
        %v8615 = vunpack.c.h.b16 %v7168
        %v8616 = vunpack.c.l.b16 %v7169
        %v8617 = vunpack.c.h.b16 %v7169
        %v8618 = vunpack.c.l.b16 %v7170
        %v8619 = vunpack.c.h.b16 %v7170
        %v8620 = vunpack.c.l.b16 %v7171
        %v8621 = vunpack.c.h.b16 %v7171
        %v8622 = vunpack.c.l.b16 %v7172
        %v8623 = vunpack.c.h.b16 %v7172
        %v8624 = vunpack.c.l.b16 %v7173
        %v8625 = vunpack.c.h.b16 %v7173
        %v8626 = vunpack.c.l.b16 %v7174
        %v8627 = vunpack.c.h.b16 %v7174
        %v8628 = vunpack.c.l.b16 %v7175
        %v8629 = vunpack.c.h.b16 %v7175
        %v8630 = vunpack.c.l.b16 %v7176
        %v8631 = vunpack.c.h.b16 %v7176
        %v8632 = vunpack.c.l.b16 %v7177
        %v8633 = vunpack.c.h.b16 %v7177
        %v8634 = vunpack.c.l.b16 %v7178
        %v8635 = vunpack.c.h.b16 %v7178
        %v8636 = vunpack.c.l.b16 %v7179
        %v8637 = vunpack.c.h.b16 %v7179
        %v8638 = vunpack.c.l.b16 %v7180
        %v8639 = vunpack.c.h.b16 %v7180
        %v8640 = vunpack.c.l.b16 %v7181
        %v8641 = vunpack.c.h.b16 %v7181
        %v8642 = vunpack.c.l.b16 %v7182
        %v8643 = vunpack.c.h.b16 %v7182
        %v8644 = vunpack.c.l.b16 %v7183
        %v8645 = vunpack.c.h.b16 %v7183
        %v8646 = vunpack.c.l.b16 %v7184
        %v8647 = vunpack.c.h.b16 %v7184
        %v8648 = vunpack.c.l.b16 %v7185
        %v8649 = vunpack.c.h.b16 %v7185
        %v8650 = vunpack.c.l.b16 %v7186
        %v8651 = vunpack.c.h.b16 %v7186
        %v8652 = vunpack.c.l.b16 %v7187
        %v8653 = vunpack.c.h.b16 %v7187
        %v8654 = vunpack.c.l.b16 %v7188
        %v8655 = vunpack.c.h.b16 %v7188
        %v8656 = vunpack.c.l.b16 %v7189
        %v8657 = vunpack.c.h.b16 %v7189
        %v8658 = vunpack.c.l.b16 %v7190
        %v8659 = vunpack.c.h.b16 %v7190
        %v8660 = vunpack.c.l.b16 %v7191
        %v8661 = vunpack.c.h.b16 %v7191
        %v8662 = vunpack.c.l.b16 %v7192
        %v8663 = vunpack.c.h.b16 %v7192
        %v8664 = vunpack.c.l.b16 %v7193
        %v8665 = vunpack.c.h.b16 %v7193
        %v8666 = vunpack.c.l.b16 %v7194
        %v8667 = vunpack.c.h.b16 %v7194
        %v8668 = vunpack.c.l.b16 %v7195
        %v8669 = vunpack.c.h.b16 %v7195
        %v8670 = vunpack.c.l.b16 %v7196
        %v8671 = vunpack.c.h.b16 %v7196
        %v8672 = vunpack.c.l.b16 %v7197
        %v8673 = vunpack.c.h.b16 %v7197
        %v8674 = vunpack.c.l.b16 %v7198
        %v8675 = vunpack.c.h.b16 %v7198
        %v8676 = vunpack.c.l.b16 %v7199
        %v8677 = vunpack.c.h.b16 %v7199
        %v8678 = vunpack.c.l.b16 %v7200
        %v8679 = vunpack.c.h.b16 %v7200
        %v8680 = vunpack.c.l.b16 %v7201
        %v8681 = vunpack.c.h.b16 %v7201
        %v8682 = vunpack.c.l.b16 %v7202
        %v8683 = vunpack.c.h.b16 %v7202
        %v8684 = vunpack.c.l.b16 %v7203
        %v8685 = vunpack.c.h.b16 %v7203
        %v8686 = vunpack.c.l.b16 %v7204
        %v8687 = vunpack.c.h.b16 %v7204
        %v8688 = vunpack.c.l.b16 %v7205
        %v8689 = vunpack.c.h.b16 %v7205
        %v8690 = vunpack.c.l.b16 %v7206
        %v8691 = vunpack.c.h.b16 %v7206
        %v8692 = vunpack.c.l.b16 %v7207
        %v8693 = vunpack.c.h.b16 %v7207
        %v8694 = vunpack.c.l.b16 %v7208
        %v8695 = vunpack.c.h.b16 %v7208
        %v8696 = vunpack.c.l.b16 %v7209
        %v8697 = vunpack.c.h.b16 %v7209
        %v8698 = vunpack.c.l.b16 %v7210
        %v8699 = vunpack.c.h.b16 %v7210
        %v8700 = vunpack.c.l.b16 %v7211
        %v8701 = vunpack.c.h.b16 %v7211
        %v8702 = vunpack.c.l.b16 %v7212
        %v8703 = vunpack.c.h.b16 %v7212
        %v8704 = vunpack.c.l.b16 %v7213
        %v8705 = vunpack.c.h.b16 %v7213
        %v8706 = vunpack.c.l.b16 %v7214
        %v8707 = vunpack.c.h.b16 %v7214
        %v8708 = vunpack.c.l.b16 %v7215
        %v8709 = vunpack.c.h.b16 %v7215
        %v8710 = vunpack.c.l.b16 %v7216
        %v8711 = vunpack.c.h.b16 %v7216
        %v8712 = vunpack.c.l.b16 %v7217
        %v8713 = vunpack.c.h.b16 %v7217
        %v8714 = vunpack.c.l.b16 %v7218
        %v8715 = vunpack.c.h.b16 %v7218
        %v8716 = vunpack.c.l.b16 %v7219
        %v8717 = vunpack.c.h.b16 %v7219
        %v8718 = vunpack.c.l.b16 %v7220
        %v8719 = vunpack.c.h.b16 %v7220
        %v8720 = vunpack.c.l.b16 %v7221
        %v8721 = vunpack.c.h.b16 %v7221
        %v8722 = vunpack.c.l.b16 %v7222
        %v8723 = vunpack.c.h.b16 %v7222
        %v8724 = vunpack.c.l.b16 %v7223
        %v8725 = vunpack.c.h.b16 %v7223
        %v8726 = vunpack.c.l.b16 %v7224
        %v8727 = vunpack.c.h.b16 %v7224
        %v8728 = vunpack.c.l.b16 %v7225
        %v8729 = vunpack.c.h.b16 %v7225
        %v8730 = vunpack.c.l.b16 %v7226
        %v8731 = vunpack.c.h.b16 %v7226
        %v8732 = vunpack.c.l.b16 %v7227
        %v8733 = vunpack.c.h.b16 %v7227
        %v8734 = vunpack.c.l.b16 %v7228
        %v8735 = vunpack.c.h.b16 %v7228
        %v8736 = vunpack.c.l.b16 %v7229
        %v8737 = vunpack.c.h.b16 %v7229
        %v8738 = vunpack.c.l.b16 %v7230
        %v8739 = vunpack.c.h.b16 %v7230
        %v8740 = vunpack.c.l.b16 %v7231
        %v8741 = vunpack.c.h.b16 %v7231
        %v8742 = vunpack.c.l.b16 %v7232
        %v8743 = vunpack.c.h.b16 %v7232
        %v8744 = vunpack.c.l.b16 %v7233
        %v8745 = vunpack.c.h.b16 %v7233
        %v8746 = vunpack.c.l.b16 %v7234
        %v8747 = vunpack.c.h.b16 %v7234
        %v8748 = vunpack.c.l.b16 %v7235
        %v8749 = vunpack.c.h.b16 %v7235
        %v8750 = vunpack.c.l.b16 %v7236
        %v8751 = vunpack.c.h.b16 %v7236
        %v8752 = vunpack.c.l.b16 %v7237
        %v8753 = vunpack.c.h.b16 %v7237
        %v8754 = vunpack.c.l.b16 %v7238
        %v8755 = vunpack.c.h.b16 %v7238
        %v8756 = vunpack.c.l.b16 %v7239
        %v8757 = vunpack.c.h.b16 %v7239
        %v8758 = vunpack.c.l.b16 %v7240
        %v8759 = vunpack.c.h.b16 %v7240
        %v8760 = vunpack.c.l.b16 %v7241
        %v8761 = vunpack.c.h.b16 %v7241
        %v8762 = vunpack.c.l.b16 %v7242
        %v8763 = vunpack.c.h.b16 %v7242
        %v8764 = vunpack.c.l.b16 %v7243
        %v8765 = vunpack.c.h.b16 %v7243
        %v8766 = vunpack.c.l.b16 %v7244
        %v8767 = vunpack.c.h.b16 %v7244
        %v8768 = vunpack.c.l.b16 %v7245
        %v8769 = vunpack.c.h.b16 %v7245
        %v8770 = vunpack.c.l.b16 %v7246
        %v8771 = vunpack.c.h.b16 %v7246
        %v8772 = vunpack.c.l.b16 %v7247
        %v8773 = vunpack.c.h.b16 %v7247
        %v8774 = vunpack.c.l.b16 %v7248
        %v8775 = vunpack.c.h.b16 %v7248
        %v8776 = vunpack.c.l.b16 %v7249
        %v8777 = vunpack.c.h.b16 %v7249
        %v8778 = vunpack.c.l.b16 %v7250
        %v8779 = vunpack.c.h.b16 %v7250
        %v8780 = vunpack.c.l.b16 %v7251
        %v8781 = vunpack.c.h.b16 %v7251
        %v8782 = vunpack.c.l.b16 %v7252
        %v8783 = vunpack.c.h.b16 %v7252
        %v8784 = vunpack.c.l.b16 %v7253
        %v8785 = vunpack.c.h.b16 %v7253
        %v8786 = vunpack.c.l.b16 %v7254
        %v8787 = vunpack.c.h.b16 %v7254
        %v8788 = vunpack.c.l.b16 %v7255
        %v8789 = vunpack.c.h.b16 %v7255
        %v8790 = vunpack.c.l.b16 %v7256
        %v8791 = vunpack.c.h.b16 %v7256
        %v8792 = vunpack.c.l.b16 %v7257
        %v8793 = vunpack.c.h.b16 %v7257
        %v8794 = vunpack.c.l.b16 %v7258
        %v8795 = vunpack.c.h.b16 %v7258
        %v8796 = vunpack.c.l.b16 %v7259
        %v8797 = vunpack.c.h.b16 %v7259
        %v8798 = vunpack.c.l.b16 %v7260
        %v8799 = vunpack.c.h.b16 %v7260
        %v8800 = vunpack.c.l.b16 %v7261
        %v8801 = vunpack.c.h.b16 %v7261
        %v8802 = vunpack.c.l.b16 %v7262
        %v8803 = vunpack.c.h.b16 %v7262
        %v8804 = vunpack.c.l.b16 %v7263
        %v8805 = vunpack.c.h.b16 %v7263
        %v8806 = vunpack.c.l.b16 %v7264
        %v8807 = vunpack.c.h.b16 %v7264
        %v8808 = vunpack.c.l.b16 %v7265
        %v8809 = vunpack.c.h.b16 %v7265
        %v8810 = vunpack.c.l.b16 %v7266
        %v8811 = vunpack.c.h.b16 %v7266
        %v8812 = vunpack.c.l.b16 %v7267
        %v8813 = vunpack.c.h.b16 %v7267
        %v8814 = vunpack.c.l.b16 %v7268
        %v8815 = vunpack.c.h.b16 %v7268
        %v8816 = vunpack.c.l.b16 %v7269
        %v8817 = vunpack.c.h.b16 %v7269
        %v8818 = vunpack.c.l.b16 %v7270
        %v8819 = vunpack.c.h.b16 %v7270
        %v8820 = vunpack.c.l.b16 %v7271
        %v8821 = vunpack.c.h.b16 %v7271
        %v8822 = vunpack.c.l.b16 %v7272
        %v8823 = vunpack.c.h.b16 %v7272
        %v8824 = vunpack.c.l.b16 %v7273
        %v8825 = vunpack.c.h.b16 %v7273
        %v8826 = vunpack.c.l.b16 %v7274
        %v8827 = vunpack.c.h.b16 %v7274
        %v8828 = vunpack.c.l.b16 %v7275
        %v8829 = vunpack.c.h.b16 %v7275
        %v8830 = vunpack.c.l.b16 %v7276
        %v8831 = vunpack.c.h.b16 %v7276
        %v8832 = vunpack.c.l.b16 %v7277
        %v8833 = vunpack.c.h.b16 %v7277
        %v8834 = vunpack.c.l.b16 %v7278
        %v8835 = vunpack.c.h.b16 %v7278
        %v8836 = vunpack.c.l.b16 %v7279
        %v8837 = vunpack.c.h.b16 %v7279
        %v8838 = vunpack.c.l.b16 %v7280
        %v8839 = vunpack.c.h.b16 %v7280
        %v8840 = vunpack.c.l.b16 %v7281
        %v8841 = vunpack.c.h.b16 %v7281
        %v8842 = vunpack.c.l.b16 %v7282
        %v8843 = vunpack.c.h.b16 %v7282
        %v8844 = vunpack.c.l.b16 %v7283
        %v8845 = vunpack.c.h.b16 %v7283
        %v8846 = vunpack.c.l.b16 %v7284
        %v8847 = vunpack.c.h.b16 %v7284
        %v8848 = vunpack.c.l.b16 %v7285
        %v8849 = vunpack.c.h.b16 %v7285
        %v8850 = vunpack.c.l.b16 %v7286
        %v8851 = vunpack.c.h.b16 %v7286
        %v8852 = vunpack.c.l.b16 %v7287
        %v8853 = vunpack.c.h.b16 %v7287
        %v8854 = vunpack.c.l.b16 %v7288
        %v8855 = vunpack.c.h.b16 %v7288
        %v8856 = vunpack.c.l.b16 %v7289
        %v8857 = vunpack.c.h.b16 %v7289
        %v8858 = vunpack.c.l.b16 %v7290
        %v8859 = vunpack.c.h.b16 %v7290
        %v8860 = vunpack.c.l.b16 %v7291
        %v8861 = vunpack.c.h.b16 %v7291
        %v8862 = vunpack.c.l.b16 %v7292
        %v8863 = vunpack.c.h.b16 %v7292
        %v8864 = vunpack.c.l.b16 %v7293
        %v8865 = vunpack.c.h.b16 %v7293
        %v8866 = vunpack.c.l.b16 %v7294
        %v8867 = vunpack.c.h.b16 %v7294
        %v8868 = vunpack.c.l.b16 %v7295
        %v8869 = vunpack.c.h.b16 %v7295
        %v8870 = vunpack.c.l.b16 %v7296
        %v8871 = vunpack.c.h.b16 %v7296
        %v8872 = vunpack.c.l.b16 %v7297
        %v8873 = vunpack.c.h.b16 %v7297
        %v8874 = vunpack.c.l.b16 %v7298
        %v8875 = vunpack.c.h.b16 %v7298
        %v8876 = vunpack.c.l.b16 %v7299
        %v8877 = vunpack.c.h.b16 %v7299
        %v8878 = vpack.c.b16 %v7862, %v7854
        %v8879 = vpack.c.b16 %v7863, %v7855
        %v8880 = vpack.c.b16 %v7864, %v7856
        %v8881 = vpack.c.b16 %v7865, %v7857
        %v8882 = vpack.c.b16 %v7866, %v7858
        %v8883 = vpack.c.b16 %v7867, %v7859
        %v8884 = vpack.c.b16 %v7868, %v7860
        %v8885 = vpack.c.b16 %v7869, %v7861
        %v8886 = vpack.c.b16 %v7878, %v7870
        %v8887 = vpack.c.b16 %v7879, %v7871
        %v8888 = vpack.c.b16 %v7880, %v7872
        %v8889 = vpack.c.b16 %v7881, %v7873
        %v8890 = vpack.c.b16 %v7882, %v7874
        %v8891 = vpack.c.b16 %v7883, %v7875
        %v8892 = vpack.c.b16 %v7884, %v7876
        %v8893 = vpack.c.b16 %v7885, %v7877
        %v8894 = vpack.c.b16 %v7894, %v7886
        %v8895 = vpack.c.b16 %v7895, %v7887
        %v8896 = vpack.c.b16 %v7896, %v7888
        %v8897 = vpack.c.b16 %v7897, %v7889
        %v8898 = vpack.c.b16 %v7898, %v7890
        %v8899 = vpack.c.b16 %v7899, %v7891
        %v8900 = vpack.c.b16 %v7900, %v7892
        %v8901 = vpack.c.b16 %v7901, %v7893
        %v8902 = vpack.c.b16 %v7910, %v7902
        %v8903 = vpack.c.b16 %v7911, %v7903
        %v8904 = vpack.c.b16 %v7912, %v7904
        %v8905 = vpack.c.b16 %v7913, %v7905
        %v8906 = vpack.c.b16 %v7914, %v7906
        %v8907 = vpack.c.b16 %v7915, %v7907
        %v8908 = vpack.c.b16 %v7916, %v7908
        %v8909 = vpack.c.b16 %v7917, %v7909
        %v8910 = vpack.c.b16 %v7926, %v7918
        %v8911 = vpack.c.b16 %v7927, %v7919
        %v8912 = vpack.c.b16 %v7928, %v7920
        %v8913 = vpack.c.b16 %v7929, %v7921
        %v8914 = vpack.c.b16 %v7930, %v7922
        %v8915 = vpack.c.b16 %v7931, %v7923
        %v8916 = vpack.c.b16 %v7932, %v7924
        %v8917 = vpack.c.b16 %v7933, %v7925
        %v8918 = vpack.c.b16 %v7942, %v7934
        %v8919 = vpack.c.b16 %v7943, %v7935
        %v8920 = vpack.c.b16 %v7944, %v7936
        %v8921 = vpack.c.b16 %v7945, %v7937
        %v8922 = vpack.c.b16 %v7946, %v7938
        %v8923 = vpack.c.b16 %v7947, %v7939
        %v8924 = vpack.c.b16 %v7948, %v7940
        %v8925 = vpack.c.b16 %v7949, %v7941
        %v8926 = vpack.c.b16 %v7958, %v7950
        %v8927 = vpack.c.b16 %v7959, %v7951
        %v8928 = vpack.c.b16 %v7960, %v7952
        %v8929 = vpack.c.b16 %v7961, %v7953
        %v8930 = vpack.c.b16 %v7962, %v7954
        %v8931 = vpack.c.b16 %v7963, %v7955
        %v8932 = vpack.c.b16 %v7964, %v7956
        %v8933 = vpack.c.b16 %v7965, %v7957
        %v8934 = vpack.c.b16 %v7974, %v7966
        %v8935 = vpack.c.b16 %v7975, %v7967
        %v8936 = vpack.c.b16 %v7976, %v7968
        %v8937 = vpack.c.b16 %v7977, %v7969
        %v8938 = vpack.c.b16 %v7978, %v7970
        %v8939 = vpack.c.b16 %v7979, %v7971
        %v8940 = vpack.c.b16 %v7980, %v7972
        %v8941 = vpack.c.b16 %v7981, %v7973
        %v8942 = vpack.c.b16 %v7990, %v7982
        %v8943 = vpack.c.b16 %v7991, %v7983
        %v8944 = vpack.c.b16 %v7992, %v7984
        %v8945 = vpack.c.b16 %v7993, %v7985
        %v8946 = vpack.c.b16 %v7994, %v7986
        %v8947 = vpack.c.b16 %v7995, %v7987
        %v8948 = vpack.c.b16 %v7996, %v7988
        %v8949 = vpack.c.b16 %v7997, %v7989
        %v8950 = vpack.c.b16 %v8006, %v7998
        %v8951 = vpack.c.b16 %v8007, %v7999
        %v8952 = vpack.c.b16 %v8008, %v8000
        %v8953 = vpack.c.b16 %v8009, %v8001
        %v8954 = vpack.c.b16 %v8010, %v8002
        %v8955 = vpack.c.b16 %v8011, %v8003
        %v8956 = vpack.c.b16 %v8012, %v8004
        %v8957 = vpack.c.b16 %v8013, %v8005
        %v8958 = vpack.c.b16 %v8022, %v8014
        %v8959 = vpack.c.b16 %v8023, %v8015
        %v8960 = vpack.c.b16 %v8024, %v8016
        %v8961 = vpack.c.b16 %v8025, %v8017
        %v8962 = vpack.c.b16 %v8026, %v8018
        %v8963 = vpack.c.b16 %v8027, %v8019
        %v8964 = vpack.c.b16 %v8028, %v8020
        %v8965 = vpack.c.b16 %v8029, %v8021
        %v8966 = vpack.c.b16 %v8038, %v8030
        %v8967 = vpack.c.b16 %v8039, %v8031
        %v8968 = vpack.c.b16 %v8040, %v8032
        %v8969 = vpack.c.b16 %v8041, %v8033
        %v8970 = vpack.c.b16 %v8042, %v8034
        %v8971 = vpack.c.b16 %v8043, %v8035
        %v8972 = vpack.c.b16 %v8044, %v8036
        %v8973 = vpack.c.b16 %v8045, %v8037
        %v8974 = vpack.c.b16 %v8054, %v8046
        %v8975 = vpack.c.b16 %v8055, %v8047
        %v8976 = vpack.c.b16 %v8056, %v8048
        %v8977 = vpack.c.b16 %v8057, %v8049
        %v8978 = vpack.c.b16 %v8058, %v8050
        %v8979 = vpack.c.b16 %v8059, %v8051
        %v8980 = vpack.c.b16 %v8060, %v8052
        %v8981 = vpack.c.b16 %v8061, %v8053
        %v8982 = vpack.c.b16 %v8070, %v8062
        %v8983 = vpack.c.b16 %v8071, %v8063
        %v8984 = vpack.c.b16 %v8072, %v8064
        %v8985 = vpack.c.b16 %v8073, %v8065
        %v8986 = vpack.c.b16 %v8074, %v8066
        %v8987 = vpack.c.b16 %v8075, %v8067
        %v8988 = vpack.c.b16 %v8076, %v8068
        %v8989 = vpack.c.b16 %v8077, %v8069
        %v8990 = vpack.c.b16 %v8086, %v8078
        %v8991 = vpack.c.b16 %v8087, %v8079
        %v8992 = vpack.c.b16 %v8088, %v8080
        %v8993 = vpack.c.b16 %v8089, %v8081
        %v8994 = vpack.c.b16 %v8090, %v8082
        %v8995 = vpack.c.b16 %v8091, %v8083
        %v8996 = vpack.c.b16 %v8092, %v8084
        %v8997 = vpack.c.b16 %v8093, %v8085
        %v8998 = vpack.c.b16 %v8102, %v8094
        %v8999 = vpack.c.b16 %v8103, %v8095
        %v9000 = vpack.c.b16 %v8104, %v8096
        %v9001 = vpack.c.b16 %v8105, %v8097
        %v9002 = vpack.c.b16 %v8106, %v8098
        %v9003 = vpack.c.b16 %v8107, %v8099
        %v9004 = vpack.c.b16 %v8108, %v8100
        %v9005 = vpack.c.b16 %v8109, %v8101
        %v9006 = vpack.c.b16 %v8118, %v8110
        %v9007 = vpack.c.b16 %v8119, %v8111
        %v9008 = vpack.c.b16 %v8120, %v8112
        %v9009 = vpack.c.b16 %v8121, %v8113
        %v9010 = vpack.c.b16 %v8122, %v8114
        %v9011 = vpack.c.b16 %v8123, %v8115
        %v9012 = vpack.c.b16 %v8124, %v8116
        %v9013 = vpack.c.b16 %v8125, %v8117
        %v9014 = vpack.c.b16 %v8134, %v8126
        %v9015 = vpack.c.b16 %v8135, %v8127
        %v9016 = vpack.c.b16 %v8136, %v8128
        %v9017 = vpack.c.b16 %v8137, %v8129
        %v9018 = vpack.c.b16 %v8138, %v8130
        %v9019 = vpack.c.b16 %v8139, %v8131
        %v9020 = vpack.c.b16 %v8140, %v8132
        %v9021 = vpack.c.b16 %v8141, %v8133
        %v9022 = vpack.c.b16 %v8150, %v8142
        %v9023 = vpack.c.b16 %v8151, %v8143
        %v9024 = vpack.c.b16 %v8152, %v8144
        %v9025 = vpack.c.b16 %v8153, %v8145
        %v9026 = vpack.c.b16 %v8154, %v8146
        %v9027 = vpack.c.b16 %v8155, %v8147
        %v9028 = vpack.c.b16 %v8156, %v8148
        %v9029 = vpack.c.b16 %v8157, %v8149
        %v9030 = vpack.c.b16 %v8166, %v8158
        %v9031 = vpack.c.b16 %v8167, %v8159
        %v9032 = vpack.c.b16 %v8168, %v8160
        %v9033 = vpack.c.b16 %v8169, %v8161
        %v9034 = vpack.c.b16 %v8170, %v8162
        %v9035 = vpack.c.b16 %v8171, %v8163
        %v9036 = vpack.c.b16 %v8172, %v8164
        %v9037 = vpack.c.b16 %v8173, %v8165
        %v9038 = vpack.c.b16 %v8182, %v8174
        %v9039 = vpack.c.b16 %v8183, %v8175
        %v9040 = vpack.c.b16 %v8184, %v8176
        %v9041 = vpack.c.b16 %v8185, %v8177
        %v9042 = vpack.c.b16 %v8186, %v8178
        %v9043 = vpack.c.b16 %v8187, %v8179
        %v9044 = vpack.c.b16 %v8188, %v8180
        %v9045 = vpack.c.b16 %v8189, %v8181
        %v9046 = vpack.c.b16 %v8198, %v8190
        %v9047 = vpack.c.b16 %v8199, %v8191
        %v9048 = vpack.c.b16 %v8200, %v8192
        %v9049 = vpack.c.b16 %v8201, %v8193
        %v9050 = vpack.c.b16 %v8202, %v8194
        %v9051 = vpack.c.b16 %v8203, %v8195
        %v9052 = vpack.c.b16 %v8204, %v8196
        %v9053 = vpack.c.b16 %v8205, %v8197
        %v9054 = vpack.c.b16 %v8214, %v8206
        %v9055 = vpack.c.b16 %v8215, %v8207
        %v9056 = vpack.c.b16 %v8216, %v8208
        %v9057 = vpack.c.b16 %v8217, %v8209
        %v9058 = vpack.c.b16 %v8218, %v8210
        %v9059 = vpack.c.b16 %v8219, %v8211
        %v9060 = vpack.c.b16 %v8220, %v8212
        %v9061 = vpack.c.b16 %v8221, %v8213
        %v9062 = vpack.c.b16 %v8230, %v8222
        %v9063 = vpack.c.b16 %v8231, %v8223
        %v9064 = vpack.c.b16 %v8232, %v8224
        %v9065 = vpack.c.b16 %v8233, %v8225
        %v9066 = vpack.c.b16 %v8234, %v8226
        %v9067 = vpack.c.b16 %v8235, %v8227
        %v9068 = vpack.c.b16 %v8236, %v8228
        %v9069 = vpack.c.b16 %v8237, %v8229
        %v9070 = vpack.c.b16 %v8246, %v8238
        %v9071 = vpack.c.b16 %v8247, %v8239
        %v9072 = vpack.c.b16 %v8248, %v8240
        %v9073 = vpack.c.b16 %v8249, %v8241
        %v9074 = vpack.c.b16 %v8250, %v8242
        %v9075 = vpack.c.b16 %v8251, %v8243
        %v9076 = vpack.c.b16 %v8252, %v8244
        %v9077 = vpack.c.b16 %v8253, %v8245
        %v9078 = vpack.c.b16 %v8262, %v8254
        %v9079 = vpack.c.b16 %v8263, %v8255
        %v9080 = vpack.c.b16 %v8264, %v8256
        %v9081 = vpack.c.b16 %v8265, %v8257
        %v9082 = vpack.c.b16 %v8266, %v8258
        %v9083 = vpack.c.b16 %v8267, %v8259
        %v9084 = vpack.c.b16 %v8268, %v8260
        %v9085 = vpack.c.b16 %v8269, %v8261
        %v9086 = vpack.c.b16 %v8278, %v8270
        %v9087 = vpack.c.b16 %v8279, %v8271
        %v9088 = vpack.c.b16 %v8280, %v8272
        %v9089 = vpack.c.b16 %v8281, %v8273
        %v9090 = vpack.c.b16 %v8282, %v8274
        %v9091 = vpack.c.b16 %v8283, %v8275
        %v9092 = vpack.c.b16 %v8284, %v8276
        %v9093 = vpack.c.b16 %v8285, %v8277
        %v9094 = vpack.c.b16 %v8294, %v8286
        %v9095 = vpack.c.b16 %v8295, %v8287
        %v9096 = vpack.c.b16 %v8296, %v8288
        %v9097 = vpack.c.b16 %v8297, %v8289
        %v9098 = vpack.c.b16 %v8298, %v8290
        %v9099 = vpack.c.b16 %v8299, %v8291
        %v9100 = vpack.c.b16 %v8300, %v8292
        %v9101 = vpack.c.b16 %v8301, %v8293
        %v9102 = vpack.c.b16 %v8310, %v8302
        %v9103 = vpack.c.b16 %v8311, %v8303
        %v9104 = vpack.c.b16 %v8312, %v8304
        %v9105 = vpack.c.b16 %v8313, %v8305
        %v9106 = vpack.c.b16 %v8314, %v8306
        %v9107 = vpack.c.b16 %v8315, %v8307
        %v9108 = vpack.c.b16 %v8316, %v8308
        %v9109 = vpack.c.b16 %v8317, %v8309
        %v9110 = vpack.c.b16 %v8326, %v8318
        %v9111 = vpack.c.b16 %v8327, %v8319
        %v9112 = vpack.c.b16 %v8328, %v8320
        %v9113 = vpack.c.b16 %v8329, %v8321
        %v9114 = vpack.c.b16 %v8330, %v8322
        %v9115 = vpack.c.b16 %v8331, %v8323
        %v9116 = vpack.c.b16 %v8332, %v8324
        %v9117 = vpack.c.b16 %v8333, %v8325
        %v9118 = vpack.c.b16 %v8342, %v8334
        %v9119 = vpack.c.b16 %v8343, %v8335
        %v9120 = vpack.c.b16 %v8344, %v8336
        %v9121 = vpack.c.b16 %v8345, %v8337
        %v9122 = vpack.c.b16 %v8346, %v8338
        %v9123 = vpack.c.b16 %v8347, %v8339
        %v9124 = vpack.c.b16 %v8348, %v8340
        %v9125 = vpack.c.b16 %v8349, %v8341
        %v9126 = vpack.c.b16 %v8358, %v8350
        %v9127 = vpack.c.b16 %v8359, %v8351
        %v9128 = vpack.c.b16 %v8360, %v8352
        %v9129 = vpack.c.b16 %v8361, %v8353
        %v9130 = vpack.c.b16 %v8362, %v8354
        %v9131 = vpack.c.b16 %v8363, %v8355
        %v9132 = vpack.c.b16 %v8364, %v8356
        %v9133 = vpack.c.b16 %v8365, %v8357
        %v9134 = vpack.c.b16 %v8374, %v8366
        %v9135 = vpack.c.b16 %v8375, %v8367
        %v9136 = vpack.c.b16 %v8376, %v8368
        %v9137 = vpack.c.b16 %v8377, %v8369
        %v9138 = vpack.c.b16 %v8378, %v8370
        %v9139 = vpack.c.b16 %v8379, %v8371
        %v9140 = vpack.c.b16 %v8380, %v8372
        %v9141 = vpack.c.b16 %v8381, %v8373
        %v9142 = vpack.c.b16 %v8390, %v8382
        %v9143 = vpack.c.b16 %v8391, %v8383
        %v9144 = vpack.c.b16 %v8392, %v8384
        %v9145 = vpack.c.b16 %v8393, %v8385
        %v9146 = vpack.c.b16 %v8394, %v8386
        %v9147 = vpack.c.b16 %v8395, %v8387
        %v9148 = vpack.c.b16 %v8396, %v8388
        %v9149 = vpack.c.b16 %v8397, %v8389
        %v9150 = vpack.c.b16 %v8406, %v8398
        %v9151 = vpack.c.b16 %v8407, %v8399
        %v9152 = vpack.c.b16 %v8408, %v8400
        %v9153 = vpack.c.b16 %v8409, %v8401
        %v9154 = vpack.c.b16 %v8410, %v8402
        %v9155 = vpack.c.b16 %v8411, %v8403
        %v9156 = vpack.c.b16 %v8412, %v8404
        %v9157 = vpack.c.b16 %v8413, %v8405
        %v9158 = vpack.c.b16 %v8422, %v8414
        %v9159 = vpack.c.b16 %v8423, %v8415
        %v9160 = vpack.c.b16 %v8424, %v8416
        %v9161 = vpack.c.b16 %v8425, %v8417
        %v9162 = vpack.c.b16 %v8426, %v8418
        %v9163 = vpack.c.b16 %v8427, %v8419
        %v9164 = vpack.c.b16 %v8428, %v8420
        %v9165 = vpack.c.b16 %v8429, %v8421
        %v9166 = vpack.c.b16 %v8438, %v8430
        %v9167 = vpack.c.b16 %v8439, %v8431
        %v9168 = vpack.c.b16 %v8440, %v8432
        %v9169 = vpack.c.b16 %v8441, %v8433
        %v9170 = vpack.c.b16 %v8442, %v8434
        %v9171 = vpack.c.b16 %v8443, %v8435
        %v9172 = vpack.c.b16 %v8444, %v8436
        %v9173 = vpack.c.b16 %v8445, %v8437
        %v9174 = vpack.c.b16 %v8454, %v8446
        %v9175 = vpack.c.b16 %v8455, %v8447
        %v9176 = vpack.c.b16 %v8456, %v8448
        %v9177 = vpack.c.b16 %v8457, %v8449
        %v9178 = vpack.c.b16 %v8458, %v8450
        %v9179 = vpack.c.b16 %v8459, %v8451
        %v9180 = vpack.c.b16 %v8460, %v8452
        %v9181 = vpack.c.b16 %v8461, %v8453
        %v9182 = vpack.c.b16 %v8470, %v8462
        %v9183 = vpack.c.b16 %v8471, %v8463
        %v9184 = vpack.c.b16 %v8472, %v8464
        %v9185 = vpack.c.b16 %v8473, %v8465
        %v9186 = vpack.c.b16 %v8474, %v8466
        %v9187 = vpack.c.b16 %v8475, %v8467
        %v9188 = vpack.c.b16 %v8476, %v8468
        %v9189 = vpack.c.b16 %v8477, %v8469
        %v9190 = vpack.c.b16 %v8486, %v8478
        %v9191 = vpack.c.b16 %v8487, %v8479
        %v9192 = vpack.c.b16 %v8488, %v8480
        %v9193 = vpack.c.b16 %v8489, %v8481
        %v9194 = vpack.c.b16 %v8490, %v8482
        %v9195 = vpack.c.b16 %v8491, %v8483
        %v9196 = vpack.c.b16 %v8492, %v8484
        %v9197 = vpack.c.b16 %v8493, %v8485
        %v9198 = vpack.c.b16 %v8502, %v8494
        %v9199 = vpack.c.b16 %v8503, %v8495
        %v9200 = vpack.c.b16 %v8504, %v8496
        %v9201 = vpack.c.b16 %v8505, %v8497
        %v9202 = vpack.c.b16 %v8506, %v8498
        %v9203 = vpack.c.b16 %v8507, %v8499
        %v9204 = vpack.c.b16 %v8508, %v8500
        %v9205 = vpack.c.b16 %v8509, %v8501
        %v9206 = vpack.c.b16 %v8518, %v8510
        %v9207 = vpack.c.b16 %v8519, %v8511
        %v9208 = vpack.c.b16 %v8520, %v8512
        %v9209 = vpack.c.b16 %v8521, %v8513
        %v9210 = vpack.c.b16 %v8522, %v8514
        %v9211 = vpack.c.b16 %v8523, %v8515
        %v9212 = vpack.c.b16 %v8524, %v8516
        %v9213 = vpack.c.b16 %v8525, %v8517
        %v9214 = vpack.c.b16 %v8534, %v8526
        %v9215 = vpack.c.b16 %v8535, %v8527
        %v9216 = vpack.c.b16 %v8536, %v8528
        %v9217 = vpack.c.b16 %v8537, %v8529
        %v9218 = vpack.c.b16 %v8538, %v8530
        %v9219 = vpack.c.b16 %v8539, %v8531
        %v9220 = vpack.c.b16 %v8540, %v8532
        %v9221 = vpack.c.b16 %v8541, %v8533
        %v9222 = vpack.c.b16 %v8550, %v8542
        %v9223 = vpack.c.b16 %v8551, %v8543
        %v9224 = vpack.c.b16 %v8552, %v8544
        %v9225 = vpack.c.b16 %v8553, %v8545
        %v9226 = vpack.c.b16 %v8554, %v8546
        %v9227 = vpack.c.b16 %v8555, %v8547
        %v9228 = vpack.c.b16 %v8556, %v8548
        %v9229 = vpack.c.b16 %v8557, %v8549
        %v9230 = vpack.c.b16 %v8566, %v8558
        %v9231 = vpack.c.b16 %v8567, %v8559
        %v9232 = vpack.c.b16 %v8568, %v8560
        %v9233 = vpack.c.b16 %v8569, %v8561
        %v9234 = vpack.c.b16 %v8570, %v8562
        %v9235 = vpack.c.b16 %v8571, %v8563
        %v9236 = vpack.c.b16 %v8572, %v8564
        %v9237 = vpack.c.b16 %v8573, %v8565
        %v9238 = vpack.c.b16 %v8582, %v8574
        %v9239 = vpack.c.b16 %v8583, %v8575
        %v9240 = vpack.c.b16 %v8584, %v8576
        %v9241 = vpack.c.b16 %v8585, %v8577
        %v9242 = vpack.c.b16 %v8586, %v8578
        %v9243 = vpack.c.b16 %v8587, %v8579
        %v9244 = vpack.c.b16 %v8588, %v8580
        %v9245 = vpack.c.b16 %v8589, %v8581
        %v9246 = vpack.c.b16 %v8598, %v8590
        %v9247 = vpack.c.b16 %v8599, %v8591
        %v9248 = vpack.c.b16 %v8600, %v8592
        %v9249 = vpack.c.b16 %v8601, %v8593
        %v9250 = vpack.c.b16 %v8602, %v8594
        %v9251 = vpack.c.b16 %v8603, %v8595
        %v9252 = vpack.c.b16 %v8604, %v8596
        %v9253 = vpack.c.b16 %v8605, %v8597
        %v9254 = vpack.c.b16 %v8614, %v8606
        %v9255 = vpack.c.b16 %v8615, %v8607
        %v9256 = vpack.c.b16 %v8616, %v8608
        %v9257 = vpack.c.b16 %v8617, %v8609
        %v9258 = vpack.c.b16 %v8618, %v8610
        %v9259 = vpack.c.b16 %v8619, %v8611
        %v9260 = vpack.c.b16 %v8620, %v8612
        %v9261 = vpack.c.b16 %v8621, %v8613
        %v9262 = vpack.c.b16 %v8630, %v8622
        %v9263 = vpack.c.b16 %v8631, %v8623
        %v9264 = vpack.c.b16 %v8632, %v8624
        %v9265 = vpack.c.b16 %v8633, %v8625
        %v9266 = vpack.c.b16 %v8634, %v8626
        %v9267 = vpack.c.b16 %v8635, %v8627
        %v9268 = vpack.c.b16 %v8636, %v8628
        %v9269 = vpack.c.b16 %v8637, %v8629
        %v9270 = vpack.c.b16 %v8646, %v8638
        %v9271 = vpack.c.b16 %v8647, %v8639
        %v9272 = vpack.c.b16 %v8648, %v8640
        %v9273 = vpack.c.b16 %v8649, %v8641
        %v9274 = vpack.c.b16 %v8650, %v8642
        %v9275 = vpack.c.b16 %v8651, %v8643
        %v9276 = vpack.c.b16 %v8652, %v8644
        %v9277 = vpack.c.b16 %v8653, %v8645
        %v9278 = vpack.c.b16 %v8662, %v8654
        %v9279 = vpack.c.b16 %v8663, %v8655
        %v9280 = vpack.c.b16 %v8664, %v8656
        %v9281 = vpack.c.b16 %v8665, %v8657
        %v9282 = vpack.c.b16 %v8666, %v8658
        %v9283 = vpack.c.b16 %v8667, %v8659
        %v9284 = vpack.c.b16 %v8668, %v8660
        %v9285 = vpack.c.b16 %v8669, %v8661
        %v9286 = vpack.c.b16 %v8678, %v8670
        %v9287 = vpack.c.b16 %v8679, %v8671
        %v9288 = vpack.c.b16 %v8680, %v8672
        %v9289 = vpack.c.b16 %v8681, %v8673
        %v9290 = vpack.c.b16 %v8682, %v8674
        %v9291 = vpack.c.b16 %v8683, %v8675
        %v9292 = vpack.c.b16 %v8684, %v8676
        %v9293 = vpack.c.b16 %v8685, %v8677
        %v9294 = vpack.c.b16 %v8694, %v8686
        %v9295 = vpack.c.b16 %v8695, %v8687
        %v9296 = vpack.c.b16 %v8696, %v8688
        %v9297 = vpack.c.b16 %v8697, %v8689
        %v9298 = vpack.c.b16 %v8698, %v8690
        %v9299 = vpack.c.b16 %v8699, %v8691
        %v9300 = vpack.c.b16 %v8700, %v8692
        %v9301 = vpack.c.b16 %v8701, %v8693
        %v9302 = vpack.c.b16 %v8710, %v8702
        %v9303 = vpack.c.b16 %v8711, %v8703
        %v9304 = vpack.c.b16 %v8712, %v8704
        %v9305 = vpack.c.b16 %v8713, %v8705
        %v9306 = vpack.c.b16 %v8714, %v8706
        %v9307 = vpack.c.b16 %v8715, %v8707
        %v9308 = vpack.c.b16 %v8716, %v8708
        %v9309 = vpack.c.b16 %v8717, %v8709
        %v9310 = vpack.c.b16 %v8726, %v8718
        %v9311 = vpack.c.b16 %v8727, %v8719
        %v9312 = vpack.c.b16 %v8728, %v8720
        %v9313 = vpack.c.b16 %v8729, %v8721
        %v9314 = vpack.c.b16 %v8730, %v8722
        %v9315 = vpack.c.b16 %v8731, %v8723
        %v9316 = vpack.c.b16 %v8732, %v8724
        %v9317 = vpack.c.b16 %v8733, %v8725
        %v9318 = vpack.c.b16 %v8742, %v8734
        %v9319 = vpack.c.b16 %v8743, %v8735
        %v9320 = vpack.c.b16 %v8744, %v8736
        %v9321 = vpack.c.b16 %v8745, %v8737
        %v9322 = vpack.c.b16 %v8746, %v8738
        %v9323 = vpack.c.b16 %v8747, %v8739
        %v9324 = vpack.c.b16 %v8748, %v8740
        %v9325 = vpack.c.b16 %v8749, %v8741
        %v9326 = vpack.c.b16 %v8758, %v8750
        %v9327 = vpack.c.b16 %v8759, %v8751
        %v9328 = vpack.c.b16 %v8760, %v8752
        %v9329 = vpack.c.b16 %v8761, %v8753
        %v9330 = vpack.c.b16 %v8762, %v8754
        %v9331 = vpack.c.b16 %v8763, %v8755
        %v9332 = vpack.c.b16 %v8764, %v8756
        %v9333 = vpack.c.b16 %v8765, %v8757
        %v9334 = vpack.c.b16 %v8774, %v8766
        %v9335 = vpack.c.b16 %v8775, %v8767
        %v9336 = vpack.c.b16 %v8776, %v8768
        %v9337 = vpack.c.b16 %v8777, %v8769
        %v9338 = vpack.c.b16 %v8778, %v8770
        %v9339 = vpack.c.b16 %v8779, %v8771
        %v9340 = vpack.c.b16 %v8780, %v8772
        %v9341 = vpack.c.b16 %v8781, %v8773
        %v9342 = vpack.c.b16 %v8790, %v8782
        %v9343 = vpack.c.b16 %v8791, %v8783
        %v9344 = vpack.c.b16 %v8792, %v8784
        %v9345 = vpack.c.b16 %v8793, %v8785
        %v9346 = vpack.c.b16 %v8794, %v8786
        %v9347 = vpack.c.b16 %v8795, %v8787
        %v9348 = vpack.c.b16 %v8796, %v8788
        %v9349 = vpack.c.b16 %v8797, %v8789
        %v9350 = vpack.c.b16 %v8806, %v8798
        %v9351 = vpack.c.b16 %v8807, %v8799
        %v9352 = vpack.c.b16 %v8808, %v8800
        %v9353 = vpack.c.b16 %v8809, %v8801
        %v9354 = vpack.c.b16 %v8810, %v8802
        %v9355 = vpack.c.b16 %v8811, %v8803
        %v9356 = vpack.c.b16 %v8812, %v8804
        %v9357 = vpack.c.b16 %v8813, %v8805
        %v9358 = vpack.c.b16 %v8822, %v8814
        %v9359 = vpack.c.b16 %v8823, %v8815
        %v9360 = vpack.c.b16 %v8824, %v8816
        %v9361 = vpack.c.b16 %v8825, %v8817
        %v9362 = vpack.c.b16 %v8826, %v8818
        %v9363 = vpack.c.b16 %v8827, %v8819
        %v9364 = vpack.c.b16 %v8828, %v8820
        %v9365 = vpack.c.b16 %v8829, %v8821
        %v9366 = vpack.c.b16 %v8838, %v8830
        %v9367 = vpack.c.b16 %v8839, %v8831
        %v9368 = vpack.c.b16 %v8840, %v8832
        %v9369 = vpack.c.b16 %v8841, %v8833
        %v9370 = vpack.c.b16 %v8842, %v8834
        %v9371 = vpack.c.b16 %v8843, %v8835
        %v9372 = vpack.c.b16 %v8844, %v8836
        %v9373 = vpack.c.b16 %v8845, %v8837
        %v9374 = vpack.c.b16 %v8854, %v8846
        %v9375 = vpack.c.b16 %v8855, %v8847
        %v9376 = vpack.c.b16 %v8856, %v8848
        %v9377 = vpack.c.b16 %v8857, %v8849
        %v9378 = vpack.c.b16 %v8858, %v8850
        %v9379 = vpack.c.b16 %v8859, %v8851
        %v9380 = vpack.c.b16 %v8860, %v8852
        %v9381 = vpack.c.b16 %v8861, %v8853
        %v9382 = vpack.c.b16 %v8870, %v8862
        %v9383 = vpack.c.b16 %v8871, %v8863
        %v9384 = vpack.c.b16 %v8872, %v8864
        %v9385 = vpack.c.b16 %v8873, %v8865
        %v9386 = vpack.c.b16 %v8874, %v8866
        %v9387 = vpack.c.b16 %v8875, %v8867
        %v9388 = vpack.c.b16 %v8876, %v8868
        %v9389 = vpack.c.b16 %v8877, %v8869
        %9902 = vmatprep.subr.bf16.mxu0 %v8935
        %9903 = vmatpush1.bf16.msra.mxu0 %v8934
        %9904 = vmatprep.subr.bf16.mxu0 %v8927
        %9905 = vmatpush1.bf16.msra.mxu0 %v8926
        %9906 = vmatprep.subr.bf16.mxu0 %v8919
        %9907 = vmatpush1.bf16.msra.mxu0 %v8918
        %9908 = vmatprep.subr.bf16.mxu0 %v8911
        %9909 = vmatpush1.bf16.msra.mxu0 %v8910
        %9910 = vmatprep.subr.bf16.mxu0 %v8903
        %9911 = vmatpush1.bf16.msra.mxu0 %v8902
        %9912 = vmatprep.subr.bf16.mxu0 %v8895
        %9913 = vmatpush1.bf16.msra.mxu0 %v8894
        %9914 = vmatprep.subr.bf16.mxu0 %v8887
        %9915 = vmatpush1.bf16.msra.mxu0 %v8886
        %9916 = vmatprep.subr.bf16.mxu0 %v8879
        %9917 = vmatpush1.bf16.msra.mxu0 %v8878
        %9918 = vmatprep.subr.bf16.mxu0 %v8999
        %9919 = vmatpush2.bf16.msra.mxu0 %v8998
        %9920 = vmatprep.subr.bf16.mxu0 %v8991
        %9921 = vmatpush2.bf16.msra.mxu0 %v8990
        %9922 = vmatprep.subr.bf16.mxu0 %v8983
        %9923 = vmatpush2.bf16.msra.mxu0 %v8982
        %9924 = vmatprep.subr.bf16.mxu0 %v8975
        %9925 = vmatpush2.bf16.msra.mxu0 %v8974
        %9926 = vmatprep.subr.bf16.mxu0 %v8967
        %9927 = vmatpush2.bf16.msra.mxu0 %v8966
        %9928 = vmatprep.subr.bf16.mxu0 %v8959
        %9929 = vmatpush2.bf16.msra.mxu0 %v8958
        %9930 = vmatprep.subr.bf16.mxu0 %v8951
        %9931 = vmatpush2.bf16.msra.mxu0 %v8950
        %9932 = vmatprep.subr.bf16.mxu0 %v8943
        %9933 = vmatpush2.bf16.msra.mxu0 %v8942
        %9934 = vmatprep.mubr.bf16.mxu0 %v6781
        %9935 = vmatmul.mubr.bf16.gmra.mxu0 %v6780
        %v9936 = vpop.f32.mrf.mxu0
        %v9937 = vadd.f32 %v7305, %v9936
        %v9938 = vpop.f32.mrf.mxu0
        %v9939 = vadd.f32 %v7309, %v9938
        %v9940 = vpop.f32.mrf.mxu0
        %v9941 = vadd.f32 %v7305, %v9940
        %v9942 = vpop.f32.mrf.mxu0
        %v9943 = vadd.f32 %v7309, %v9942
        %9944 = vdwg.mxu0
        %9945 = vmatprep.subr.bf16.mxu0 %v9063
        %9946 = vmatpush1.bf16.msra.mxu0 %v9062
        %9947 = vmatprep.subr.bf16.mxu0 %v9055
        %9948 = vmatpush1.bf16.msra.mxu0 %v9054
        %9949 = vmatprep.subr.bf16.mxu0 %v9047
        %9950 = vmatpush1.bf16.msra.mxu0 %v9046
        %9951 = vmatprep.subr.bf16.mxu0 %v9039
        %9952 = vmatpush1.bf16.msra.mxu0 %v9038
        %9953 = vmatprep.subr.bf16.mxu0 %v9031
        %9954 = vmatpush1.bf16.msra.mxu0 %v9030
        %9955 = vmatprep.subr.bf16.mxu0 %v9023
        %9956 = vmatpush1.bf16.msra.mxu0 %v9022
        %9957 = vmatprep.subr.bf16.mxu0 %v9015
        %9958 = vmatpush1.bf16.msra.mxu0 %v9014
        %9959 = vmatprep.subr.bf16.mxu0 %v9007
        %9960 = vmatpush1.bf16.msra.mxu0 %v9006
        %9961 = vmatprep.subr.bf16.mxu0 %v9127
        %9962 = vmatpush2.bf16.msra.mxu0 %v9126
        %9963 = vmatprep.subr.bf16.mxu0 %v9119
        %9964 = vmatpush2.bf16.msra.mxu0 %v9118
        %9965 = vmatprep.subr.bf16.mxu0 %v9111
        %9966 = vmatpush2.bf16.msra.mxu0 %v9110
        %9967 = vmatprep.subr.bf16.mxu0 %v9103
        %9968 = vmatpush2.bf16.msra.mxu0 %v9102
        %9969 = vmatprep.subr.bf16.mxu0 %v9095
        %9970 = vmatpush2.bf16.msra.mxu0 %v9094
        %9971 = vmatprep.subr.bf16.mxu0 %v9087
        %9972 = vmatpush2.bf16.msra.mxu0 %v9086
        %9973 = vmatprep.subr.bf16.mxu0 %v9079
        %9974 = vmatpush2.bf16.msra.mxu0 %v9078
        %9975 = vmatprep.subr.bf16.mxu0 %v9071
        %9976 = vmatpush2.bf16.msra.mxu0 %v9070
        %9977 = vmatprep.mubr.bf16.mxu0 %v6783
        %9978 = vmatmul.mubr.bf16.gmra.mxu0 %v6782
        %v9979 = vpop.f32.mrf.mxu0
        %v9980 = vadd.f32 %v9937, %v9979
        %v9981 = vpop.f32.mrf.mxu0
        %v9982 = vadd.f32 %v9939, %v9981
        %v9983 = vpop.f32.mrf.mxu0
        %v9984 = vadd.f32 %v9941, %v9983
        %v9985 = vpop.f32.mrf.mxu0
        %v9986 = vadd.f32 %v9943, %v9985
        %9987 = vdwg.mxu0
        %9988 = vmatprep.subr.bf16.mxu0 %v9191
        %9989 = vmatpush1.bf16.msra.mxu0 %v9190
        %9990 = vmatprep.subr.bf16.mxu0 %v9183
        %9991 = vmatpush1.bf16.msra.mxu0 %v9182
        %9992 = vmatprep.subr.bf16.mxu0 %v9175
        %9993 = vmatpush1.bf16.msra.mxu0 %v9174
        %9994 = vmatprep.subr.bf16.mxu0 %v9167
        %9995 = vmatpush1.bf16.msra.mxu0 %v9166
        %9996 = vmatprep.subr.bf16.mxu0 %v9159
        %9997 = vmatpush1.bf16.msra.mxu0 %v9158
        %9998 = vmatprep.subr.bf16.mxu0 %v9151
        %9999 = vmatpush1.bf16.msra.mxu0 %v9150
        %10000 = vmatprep.subr.bf16.mxu0 %v9143
        %10001 = vmatpush1.bf16.msra.mxu0 %v9142
        %10002 = vmatprep.subr.bf16.mxu0 %v9135
        %10003 = vmatpush1.bf16.msra.mxu0 %v9134
        %10004 = vmatprep.subr.bf16.mxu0 %v9255
        %10005 = vmatpush2.bf16.msra.mxu0 %v9254
        %10006 = vmatprep.subr.bf16.mxu0 %v9247
        %10007 = vmatpush2.bf16.msra.mxu0 %v9246
        %10008 = vmatprep.subr.bf16.mxu0 %v9239
        %10009 = vmatpush2.bf16.msra.mxu0 %v9238
        %10010 = vmatprep.subr.bf16.mxu0 %v9231
        %10011 = vmatpush2.bf16.msra.mxu0 %v9230
        %10012 = vmatprep.subr.bf16.mxu0 %v9223
        %10013 = vmatpush2.bf16.msra.mxu0 %v9222
        %10014 = vmatprep.subr.bf16.mxu0 %v9215
        %10015 = vmatpush2.bf16.msra.mxu0 %v9214
        %10016 = vmatprep.subr.bf16.mxu0 %v9207
        %10017 = vmatpush2.bf16.msra.mxu0 %v9206
        %10018 = vmatprep.subr.bf16.mxu0 %v9199
        %10019 = vmatpush2.bf16.msra.mxu0 %v9198
        %10020 = vmatprep.mubr.bf16.mxu0 %v6785
        %10021 = vmatmul.mubr.bf16.gmra.mxu0 %v6784
        %v10022 = vpop.f32.mrf.mxu0
        %v10023 = vadd.f32 %v9980, %v10022
        %v10024 = vpop.f32.mrf.mxu0
        %v10025 = vadd.f32 %v9982, %v10024
        %v10026 = vpop.f32.mrf.mxu0
        %v10027 = vadd.f32 %v9984, %v10026
        %v10028 = vpop.f32.mrf.mxu0
        %v10029 = vadd.f32 %v9986, %v10028
        %10030 = vdwg.mxu0
        %10031 = vmatprep.subr.bf16.mxu0 %v9319
        %10032 = vmatpush1.bf16.msra.mxu0 %v9318
        %10033 = vmatprep.subr.bf16.mxu0 %v9311
        %10034 = vmatpush1.bf16.msra.mxu0 %v9310
        %10035 = vmatprep.subr.bf16.mxu0 %v9303
        %10036 = vmatpush1.bf16.msra.mxu0 %v9302
        %10037 = vmatprep.subr.bf16.mxu0 %v9295
        %10038 = vmatpush1.bf16.msra.mxu0 %v9294
        %10039 = vmatprep.subr.bf16.mxu0 %v9287
        %10040 = vmatpush1.bf16.msra.mxu0 %v9286
        %10041 = vmatprep.subr.bf16.mxu0 %v9279
        %10042 = vmatpush1.bf16.msra.mxu0 %v9278
        %10043 = vmatprep.subr.bf16.mxu0 %v9271
        %10044 = vmatpush1.bf16.msra.mxu0 %v9270
        %10045 = vmatprep.subr.bf16.mxu0 %v9263
        %10046 = vmatpush1.bf16.msra.mxu0 %v9262
        %10047 = vmatprep.subr.bf16.mxu0 %v9383
        %10048 = vmatpush2.bf16.msra.mxu0 %v9382
        %10049 = vmatprep.subr.bf16.mxu0 %v9375
        %10050 = vmatpush2.bf16.msra.mxu0 %v9374
        %10051 = vmatprep.subr.bf16.mxu0 %v9367
        %10052 = vmatpush2.bf16.msra.mxu0 %v9366
        %10053 = vmatprep.subr.bf16.mxu0 %v9359
        %10054 = vmatpush2.bf16.msra.mxu0 %v9358
        %10055 = vmatprep.subr.bf16.mxu0 %v9351
        %10056 = vmatpush2.bf16.msra.mxu0 %v9350
        %10057 = vmatprep.subr.bf16.mxu0 %v9343
        %10058 = vmatpush2.bf16.msra.mxu0 %v9342
        %10059 = vmatprep.subr.bf16.mxu0 %v9335
        %10060 = vmatpush2.bf16.msra.mxu0 %v9334
        %10061 = vmatprep.subr.bf16.mxu0 %v9327
        %10062 = vmatpush2.bf16.msra.mxu0 %v9326
        %10063 = vmatprep.mubr.bf16.mxu0 %v6787
        %10064 = vmatmul.mubr.bf16.gmra.mxu0 %v6786
        %v10065 = vpop.f32.mrf.mxu0
        %v10066 = vadd.f32 %v10023, %v10065
        %v10067 = vpop.f32.mrf.mxu0
        %v10068 = vadd.f32 %v10025, %v10067
        %v10069 = vpop.f32.mrf.mxu0
        %v10070 = vadd.f32 %v10027, %v10069
        %v10071 = vpop.f32.mrf.mxu0
        %v10072 = vadd.f32 %v10029, %v10071
        %10073 = vdwg.mxu0
        %10074 = vmatprep.subr.bf16.mxu0 %v8937
        %10075 = vmatpush1.bf16.msra.mxu0 %v8936
        %10076 = vmatprep.subr.bf16.mxu0 %v8929
        %10077 = vmatpush1.bf16.msra.mxu0 %v8928
        %10078 = vmatprep.subr.bf16.mxu0 %v8921
        %10079 = vmatpush1.bf16.msra.mxu0 %v8920
        %10080 = vmatprep.subr.bf16.mxu0 %v8913
        %10081 = vmatpush1.bf16.msra.mxu0 %v8912
        %10082 = vmatprep.subr.bf16.mxu0 %v8905
        %10083 = vmatpush1.bf16.msra.mxu0 %v8904
        %10084 = vmatprep.subr.bf16.mxu0 %v8897
        %10085 = vmatpush1.bf16.msra.mxu0 %v8896
        %10086 = vmatprep.subr.bf16.mxu0 %v8889
        %10087 = vmatpush1.bf16.msra.mxu0 %v8888
        %10088 = vmatprep.subr.bf16.mxu0 %v8881
        %10089 = vmatpush1.bf16.msra.mxu0 %v8880
        %10090 = vmatprep.subr.bf16.mxu0 %v9001
        %10091 = vmatpush2.bf16.msra.mxu0 %v9000
        %10092 = vmatprep.subr.bf16.mxu0 %v8993
        %10093 = vmatpush2.bf16.msra.mxu0 %v8992
        %10094 = vmatprep.subr.bf16.mxu0 %v8985
        %10095 = vmatpush2.bf16.msra.mxu0 %v8984
        %10096 = vmatprep.subr.bf16.mxu0 %v8977
        %10097 = vmatpush2.bf16.msra.mxu0 %v8976
        %10098 = vmatprep.subr.bf16.mxu0 %v8969
        %10099 = vmatpush2.bf16.msra.mxu0 %v8968
        %10100 = vmatprep.subr.bf16.mxu0 %v8961
        %10101 = vmatpush2.bf16.msra.mxu0 %v8960
        %10102 = vmatprep.subr.bf16.mxu0 %v8953
        %10103 = vmatpush2.bf16.msra.mxu0 %v8952
        %10104 = vmatprep.subr.bf16.mxu0 %v8945
        %10105 = vmatpush2.bf16.msra.mxu0 %v8944
        %10106 = vmatprep.mubr.bf16.mxu0 %v6781
        %10107 = vmatmul.mubr.bf16.gmra.mxu0 %v6780
        %v10108 = vpop.f32.mrf.mxu0
        %v10109 = vadd.f32 %v7313, %v10108
        %v10110 = vpop.f32.mrf.mxu0
        %v10111 = vadd.f32 %v7317, %v10110
        %v10112 = vpop.f32.mrf.mxu0
        %v10113 = vadd.f32 %v7313, %v10112
        %v10114 = vpop.f32.mrf.mxu0
        %v10115 = vadd.f32 %v7317, %v10114
        %10116 = vdwg.mxu0
        %10117 = vmatprep.subr.bf16.mxu0 %v9065
        %10118 = vmatpush1.bf16.msra.mxu0 %v9064
        %10119 = vmatprep.subr.bf16.mxu0 %v9057
        %10120 = vmatpush1.bf16.msra.mxu0 %v9056
        %10121 = vmatprep.subr.bf16.mxu0 %v9049
        %10122 = vmatpush1.bf16.msra.mxu0 %v9048
        %10123 = vmatprep.subr.bf16.mxu0 %v9041
        %10124 = vmatpush1.bf16.msra.mxu0 %v9040
        %10125 = vmatprep.subr.bf16.mxu0 %v9033
        %10126 = vmatpush1.bf16.msra.mxu0 %v9032
        %10127 = vmatprep.subr.bf16.mxu0 %v9025
        %10128 = vmatpush1.bf16.msra.mxu0 %v9024
        %10129 = vmatprep.subr.bf16.mxu0 %v9017
        %10130 = vmatpush1.bf16.msra.mxu0 %v9016
        %10131 = vmatprep.subr.bf16.mxu0 %v9009
        %10132 = vmatpush1.bf16.msra.mxu0 %v9008
        %10133 = vmatprep.subr.bf16.mxu0 %v9129
        %10134 = vmatpush2.bf16.msra.mxu0 %v9128
        %10135 = vmatprep.subr.bf16.mxu0 %v9121
        %10136 = vmatpush2.bf16.msra.mxu0 %v9120
        %10137 = vmatprep.subr.bf16.mxu0 %v9113
        %10138 = vmatpush2.bf16.msra.mxu0 %v9112
        %10139 = vmatprep.subr.bf16.mxu0 %v9105
        %10140 = vmatpush2.bf16.msra.mxu0 %v9104
        %10141 = vmatprep.subr.bf16.mxu0 %v9097
        %10142 = vmatpush2.bf16.msra.mxu0 %v9096
        %10143 = vmatprep.subr.bf16.mxu0 %v9089
        %10144 = vmatpush2.bf16.msra.mxu0 %v9088
        %10145 = vmatprep.subr.bf16.mxu0 %v9081
        %10146 = vmatpush2.bf16.msra.mxu0 %v9080
        %10147 = vmatprep.subr.bf16.mxu0 %v9073
        %10148 = vmatpush2.bf16.msra.mxu0 %v9072
        %10149 = vmatprep.mubr.bf16.mxu0 %v6783
        %10150 = vmatmul.mubr.bf16.gmra.mxu0 %v6782
        %v10151 = vpop.f32.mrf.mxu0
        %v10152 = vadd.f32 %v10109, %v10151
        %v10153 = vpop.f32.mrf.mxu0
        %v10154 = vadd.f32 %v10111, %v10153
        %v10155 = vpop.f32.mrf.mxu0
        %v10156 = vadd.f32 %v10113, %v10155
        %v10157 = vpop.f32.mrf.mxu0
        %v10158 = vadd.f32 %v10115, %v10157
        %10159 = vdwg.mxu0
        %10160 = vmatprep.subr.bf16.mxu0 %v9193
        %10161 = vmatpush1.bf16.msra.mxu0 %v9192
        %10162 = vmatprep.subr.bf16.mxu0 %v9185
        %10163 = vmatpush1.bf16.msra.mxu0 %v9184
        %10164 = vmatprep.subr.bf16.mxu0 %v9177
        %10165 = vmatpush1.bf16.msra.mxu0 %v9176
        %10166 = vmatprep.subr.bf16.mxu0 %v9169
        %10167 = vmatpush1.bf16.msra.mxu0 %v9168
        %10168 = vmatprep.subr.bf16.mxu0 %v9161
        %10169 = vmatpush1.bf16.msra.mxu0 %v9160
        %10170 = vmatprep.subr.bf16.mxu0 %v9153
        %10171 = vmatpush1.bf16.msra.mxu0 %v9152
        %10172 = vmatprep.subr.bf16.mxu0 %v9145
        %10173 = vmatpush1.bf16.msra.mxu0 %v9144
        %10174 = vmatprep.subr.bf16.mxu0 %v9137
        %10175 = vmatpush1.bf16.msra.mxu0 %v9136
        %10176 = vmatprep.subr.bf16.mxu0 %v9257
        %10177 = vmatpush2.bf16.msra.mxu0 %v9256
        %10178 = vmatprep.subr.bf16.mxu0 %v9249
        %10179 = vmatpush2.bf16.msra.mxu0 %v9248
        %10180 = vmatprep.subr.bf16.mxu0 %v9241
        %10181 = vmatpush2.bf16.msra.mxu0 %v9240
        %10182 = vmatprep.subr.bf16.mxu0 %v9233
        %10183 = vmatpush2.bf16.msra.mxu0 %v9232
        %10184 = vmatprep.subr.bf16.mxu0 %v9225
        %10185 = vmatpush2.bf16.msra.mxu0 %v9224
        %10186 = vmatprep.subr.bf16.mxu0 %v9217
        %10187 = vmatpush2.bf16.msra.mxu0 %v9216
        %10188 = vmatprep.subr.bf16.mxu0 %v9209
        %10189 = vmatpush2.bf16.msra.mxu0 %v9208
        %10190 = vmatprep.subr.bf16.mxu0 %v9201
        %10191 = vmatpush2.bf16.msra.mxu0 %v9200
        %10192 = vmatprep.mubr.bf16.mxu0 %v6785
        %10193 = vmatmul.mubr.bf16.gmra.mxu0 %v6784
        %v10194 = vpop.f32.mrf.mxu0
        %v10195 = vadd.f32 %v10152, %v10194
        %v10196 = vpop.f32.mrf.mxu0
        %v10197 = vadd.f32 %v10154, %v10196
        %v10198 = vpop.f32.mrf.mxu0
        %v10199 = vadd.f32 %v10156, %v10198
        %v10200 = vpop.f32.mrf.mxu0
        %v10201 = vadd.f32 %v10158, %v10200
        %10202 = vdwg.mxu0
        %10203 = vmatprep.subr.bf16.mxu0 %v9321
        %10204 = vmatpush1.bf16.msra.mxu0 %v9320
        %10205 = vmatprep.subr.bf16.mxu0 %v9313
        %10206 = vmatpush1.bf16.msra.mxu0 %v9312
        %10207 = vmatprep.subr.bf16.mxu0 %v9305
        %10208 = vmatpush1.bf16.msra.mxu0 %v9304
        %10209 = vmatprep.subr.bf16.mxu0 %v9297
        %10210 = vmatpush1.bf16.msra.mxu0 %v9296
        %10211 = vmatprep.subr.bf16.mxu0 %v9289
        %10212 = vmatpush1.bf16.msra.mxu0 %v9288
        %10213 = vmatprep.subr.bf16.mxu0 %v9281
        %10214 = vmatpush1.bf16.msra.mxu0 %v9280
        %10215 = vmatprep.subr.bf16.mxu0 %v9273
        %10216 = vmatpush1.bf16.msra.mxu0 %v9272
        %10217 = vmatprep.subr.bf16.mxu0 %v9265
        %10218 = vmatpush1.bf16.msra.mxu0 %v9264
        %10219 = vmatprep.subr.bf16.mxu0 %v9385
        %10220 = vmatpush2.bf16.msra.mxu0 %v9384
        %10221 = vmatprep.subr.bf16.mxu0 %v9377
        %10222 = vmatpush2.bf16.msra.mxu0 %v9376
        %10223 = vmatprep.subr.bf16.mxu0 %v9369
        %10224 = vmatpush2.bf16.msra.mxu0 %v9368
        %10225 = vmatprep.subr.bf16.mxu0 %v9361
        %10226 = vmatpush2.bf16.msra.mxu0 %v9360
        %10227 = vmatprep.subr.bf16.mxu0 %v9353
        %10228 = vmatpush2.bf16.msra.mxu0 %v9352
        %10229 = vmatprep.subr.bf16.mxu0 %v9345
        %10230 = vmatpush2.bf16.msra.mxu0 %v9344
        %10231 = vmatprep.subr.bf16.mxu0 %v9337
        %10232 = vmatpush2.bf16.msra.mxu0 %v9336
        %10233 = vmatprep.subr.bf16.mxu0 %v9329
        %10234 = vmatpush2.bf16.msra.mxu0 %v9328
        %10235 = vmatprep.mubr.bf16.mxu0 %v6787
        %10236 = vmatmul.mubr.bf16.gmra.mxu0 %v6786
        %v10237 = vpop.f32.mrf.mxu0
        %v10238 = vadd.f32 %v10195, %v10237
        %v10239 = vpop.f32.mrf.mxu0
        %v10240 = vadd.f32 %v10197, %v10239
        %v10241 = vpop.f32.mrf.mxu0
        %v10242 = vadd.f32 %v10199, %v10241
        %v10243 = vpop.f32.mrf.mxu0
        %v10244 = vadd.f32 %v10201, %v10243
        %10245 = vdwg.mxu0
        %10246 = vmatprep.subr.bf16.mxu0 %v8939
        %10247 = vmatpush1.bf16.msra.mxu0 %v8938
        %10248 = vmatprep.subr.bf16.mxu0 %v8931
        %10249 = vmatpush1.bf16.msra.mxu0 %v8930
        %10250 = vmatprep.subr.bf16.mxu0 %v8923
        %10251 = vmatpush1.bf16.msra.mxu0 %v8922
        %10252 = vmatprep.subr.bf16.mxu0 %v8915
        %10253 = vmatpush1.bf16.msra.mxu0 %v8914
        %10254 = vmatprep.subr.bf16.mxu0 %v8907
        %10255 = vmatpush1.bf16.msra.mxu0 %v8906
        %10256 = vmatprep.subr.bf16.mxu0 %v8899
        %10257 = vmatpush1.bf16.msra.mxu0 %v8898
        %10258 = vmatprep.subr.bf16.mxu0 %v8891
        %10259 = vmatpush1.bf16.msra.mxu0 %v8890
        %10260 = vmatprep.subr.bf16.mxu0 %v8883
        %10261 = vmatpush1.bf16.msra.mxu0 %v8882
        %10262 = vmatprep.subr.bf16.mxu0 %v9003
        %10263 = vmatpush2.bf16.msra.mxu0 %v9002
        %10264 = vmatprep.subr.bf16.mxu0 %v8995
        %10265 = vmatpush2.bf16.msra.mxu0 %v8994
        %10266 = vmatprep.subr.bf16.mxu0 %v8987
        %10267 = vmatpush2.bf16.msra.mxu0 %v8986
        %10268 = vmatprep.subr.bf16.mxu0 %v8979
        %10269 = vmatpush2.bf16.msra.mxu0 %v8978
        %10270 = vmatprep.subr.bf16.mxu0 %v8971
        %10271 = vmatpush2.bf16.msra.mxu0 %v8970
        %10272 = vmatprep.subr.bf16.mxu0 %v8963
        %10273 = vmatpush2.bf16.msra.mxu0 %v8962
        %10274 = vmatprep.subr.bf16.mxu0 %v8955
        %10275 = vmatpush2.bf16.msra.mxu0 %v8954
        %10276 = vmatprep.subr.bf16.mxu0 %v8947
        %10277 = vmatpush2.bf16.msra.mxu0 %v8946
        %10278 = vmatprep.mubr.bf16.mxu0 %v6781
        %10279 = vmatmul.mubr.bf16.gmra.mxu0 %v6780
        %v10280 = vpop.f32.mrf.mxu0
        %v10281 = vadd.f32 %v7321, %v10280
        %v10282 = vpop.f32.mrf.mxu0
        %v10283 = vadd.f32 %v7325, %v10282
        %v10284 = vpop.f32.mrf.mxu0
        %v10285 = vadd.f32 %v7321, %v10284
        %v10286 = vpop.f32.mrf.mxu0
        %v10287 = vadd.f32 %v7325, %v10286
        %10288 = vdwg.mxu0
        %10289 = vmatprep.subr.bf16.mxu0 %v9067
        %10290 = vmatpush1.bf16.msra.mxu0 %v9066
        %10291 = vmatprep.subr.bf16.mxu0 %v9059
        %10292 = vmatpush1.bf16.msra.mxu0 %v9058
        %10293 = vmatprep.subr.bf16.mxu0 %v9051
        %10294 = vmatpush1.bf16.msra.mxu0 %v9050
        %10295 = vmatprep.subr.bf16.mxu0 %v9043
        %10296 = vmatpush1.bf16.msra.mxu0 %v9042
        %10297 = vmatprep.subr.bf16.mxu0 %v9035
        %10298 = vmatpush1.bf16.msra.mxu0 %v9034
        %10299 = vmatprep.subr.bf16.mxu0 %v9027
        %10300 = vmatpush1.bf16.msra.mxu0 %v9026
        %10301 = vmatprep.subr.bf16.mxu0 %v9019
        %10302 = vmatpush1.bf16.msra.mxu0 %v9018
        %10303 = vmatprep.subr.bf16.mxu0 %v9011
        %10304 = vmatpush1.bf16.msra.mxu0 %v9010
        %10305 = vmatprep.subr.bf16.mxu0 %v9131
        %10306 = vmatpush2.bf16.msra.mxu0 %v9130
        %10307 = vmatprep.subr.bf16.mxu0 %v9123
        %10308 = vmatpush2.bf16.msra.mxu0 %v9122
        %10309 = vmatprep.subr.bf16.mxu0 %v9115
        %10310 = vmatpush2.bf16.msra.mxu0 %v9114
        %10311 = vmatprep.subr.bf16.mxu0 %v9107
        %10312 = vmatpush2.bf16.msra.mxu0 %v9106
        %10313 = vmatprep.subr.bf16.mxu0 %v9099
        %10314 = vmatpush2.bf16.msra.mxu0 %v9098
        %10315 = vmatprep.subr.bf16.mxu0 %v9091
        %10316 = vmatpush2.bf16.msra.mxu0 %v9090
        %10317 = vmatprep.subr.bf16.mxu0 %v9083
        %10318 = vmatpush2.bf16.msra.mxu0 %v9082
        %10319 = vmatprep.subr.bf16.mxu0 %v9075
        %10320 = vmatpush2.bf16.msra.mxu0 %v9074
        %10321 = vmatprep.mubr.bf16.mxu0 %v6783
        %10322 = vmatmul.mubr.bf16.gmra.mxu0 %v6782
        %v10323 = vpop.f32.mrf.mxu0
        %v10324 = vadd.f32 %v10281, %v10323
        %v10325 = vpop.f32.mrf.mxu0
        %v10326 = vadd.f32 %v10283, %v10325
        %v10327 = vpop.f32.mrf.mxu0
        %v10328 = vadd.f32 %v10285, %v10327
        %v10329 = vpop.f32.mrf.mxu0
        %v10330 = vadd.f32 %v10287, %v10329
        %10331 = vdwg.mxu0
        %10332 = vmatprep.subr.bf16.mxu0 %v9195
        %10333 = vmatpush1.bf16.msra.mxu0 %v9194
        %10334 = vmatprep.subr.bf16.mxu0 %v9187
        %10335 = vmatpush1.bf16.msra.mxu0 %v9186
        %10336 = vmatprep.subr.bf16.mxu0 %v9179
        %10337 = vmatpush1.bf16.msra.mxu0 %v9178
        %10338 = vmatprep.subr.bf16.mxu0 %v9171
        %10339 = vmatpush1.bf16.msra.mxu0 %v9170
        %10340 = vmatprep.subr.bf16.mxu0 %v9163
        %10341 = vmatpush1.bf16.msra.mxu0 %v9162
        %10342 = vmatprep.subr.bf16.mxu0 %v9155
        %10343 = vmatpush1.bf16.msra.mxu0 %v9154
        %10344 = vmatprep.subr.bf16.mxu0 %v9147
        %10345 = vmatpush1.bf16.msra.mxu0 %v9146
        %10346 = vmatprep.subr.bf16.mxu0 %v9139
        %10347 = vmatpush1.bf16.msra.mxu0 %v9138
        %10348 = vmatprep.subr.bf16.mxu0 %v9259
        %10349 = vmatpush2.bf16.msra.mxu0 %v9258
        %10350 = vmatprep.subr.bf16.mxu0 %v9251
        %10351 = vmatpush2.bf16.msra.mxu0 %v9250
        %10352 = vmatprep.subr.bf16.mxu0 %v9243
        %10353 = vmatpush2.bf16.msra.mxu0 %v9242
        %10354 = vmatprep.subr.bf16.mxu0 %v9235
        %10355 = vmatpush2.bf16.msra.mxu0 %v9234
        %10356 = vmatprep.subr.bf16.mxu0 %v9227
        %10357 = vmatpush2.bf16.msra.mxu0 %v9226
        %10358 = vmatprep.subr.bf16.mxu0 %v9219
        %10359 = vmatpush2.bf16.msra.mxu0 %v9218
        %10360 = vmatprep.subr.bf16.mxu0 %v9211
        %10361 = vmatpush2.bf16.msra.mxu0 %v9210
        %10362 = vmatprep.subr.bf16.mxu0 %v9203
        %10363 = vmatpush2.bf16.msra.mxu0 %v9202
        %10364 = vmatprep.mubr.bf16.mxu0 %v6785
        %10365 = vmatmul.mubr.bf16.gmra.mxu0 %v6784
        %v10366 = vpop.f32.mrf.mxu0
        %v10367 = vadd.f32 %v10324, %v10366
        %v10368 = vpop.f32.mrf.mxu0
        %v10369 = vadd.f32 %v10326, %v10368
        %v10370 = vpop.f32.mrf.mxu0
        %v10371 = vadd.f32 %v10328, %v10370
        %v10372 = vpop.f32.mrf.mxu0
        %v10373 = vadd.f32 %v10330, %v10372
        %10374 = vdwg.mxu0
        %10375 = vmatprep.subr.bf16.mxu0 %v9323
        %10376 = vmatpush1.bf16.msra.mxu0 %v9322
        %10377 = vmatprep.subr.bf16.mxu0 %v9315
        %10378 = vmatpush1.bf16.msra.mxu0 %v9314
        %10379 = vmatprep.subr.bf16.mxu0 %v9307
        %10380 = vmatpush1.bf16.msra.mxu0 %v9306
        %10381 = vmatprep.subr.bf16.mxu0 %v9299
        %10382 = vmatpush1.bf16.msra.mxu0 %v9298
        %10383 = vmatprep.subr.bf16.mxu0 %v9291
        %10384 = vmatpush1.bf16.msra.mxu0 %v9290
        %10385 = vmatprep.subr.bf16.mxu0 %v9283
        %10386 = vmatpush1.bf16.msra.mxu0 %v9282
        %10387 = vmatprep.subr.bf16.mxu0 %v9275
        %10388 = vmatpush1.bf16.msra.mxu0 %v9274
        %10389 = vmatprep.subr.bf16.mxu0 %v9267
        %10390 = vmatpush1.bf16.msra.mxu0 %v9266
        %10391 = vmatprep.subr.bf16.mxu0 %v9387
        %10392 = vmatpush2.bf16.msra.mxu0 %v9386
        %10393 = vmatprep.subr.bf16.mxu0 %v9379
        %10394 = vmatpush2.bf16.msra.mxu0 %v9378
        %10395 = vmatprep.subr.bf16.mxu0 %v9371
        %10396 = vmatpush2.bf16.msra.mxu0 %v9370
        %10397 = vmatprep.subr.bf16.mxu0 %v9363
        %10398 = vmatpush2.bf16.msra.mxu0 %v9362
        %10399 = vmatprep.subr.bf16.mxu0 %v9355
        %10400 = vmatpush2.bf16.msra.mxu0 %v9354
        %10401 = vmatprep.subr.bf16.mxu0 %v9347
        %10402 = vmatpush2.bf16.msra.mxu0 %v9346
        %10403 = vmatprep.subr.bf16.mxu0 %v9339
        %10404 = vmatpush2.bf16.msra.mxu0 %v9338
        %10405 = vmatprep.subr.bf16.mxu0 %v9331
        %10406 = vmatpush2.bf16.msra.mxu0 %v9330
        %10407 = vmatprep.mubr.bf16.mxu0 %v6787
        %10408 = vmatmul.mubr.bf16.gmra.mxu0 %v6786
        %v10409 = vpop.f32.mrf.mxu0
        %v10410 = vadd.f32 %v10367, %v10409
        %v10411 = vpop.f32.mrf.mxu0
        %v10412 = vadd.f32 %v10369, %v10411
        %v10413 = vpop.f32.mrf.mxu0
        %v10414 = vadd.f32 %v10371, %v10413
        %v10415 = vpop.f32.mrf.mxu0
        %v10416 = vadd.f32 %v10373, %v10415
        %10417 = vdwg.mxu0
        %10418 = vmatprep.subr.bf16.mxu0 %v8941
        %10419 = vmatpush1.bf16.msra.mxu0 %v8940
        %10420 = vmatprep.subr.bf16.mxu0 %v8933
        %10421 = vmatpush1.bf16.msra.mxu0 %v8932
        %10422 = vmatprep.subr.bf16.mxu0 %v8925
        %10423 = vmatpush1.bf16.msra.mxu0 %v8924
        %10424 = vmatprep.subr.bf16.mxu0 %v8917
        %10425 = vmatpush1.bf16.msra.mxu0 %v8916
        %10426 = vmatprep.subr.bf16.mxu0 %v8909
        %10427 = vmatpush1.bf16.msra.mxu0 %v8908
        %10428 = vmatprep.subr.bf16.mxu0 %v8901
        %10429 = vmatpush1.bf16.msra.mxu0 %v8900
        %10430 = vmatprep.subr.bf16.mxu0 %v8893
        %10431 = vmatpush1.bf16.msra.mxu0 %v8892
        %10432 = vmatprep.subr.bf16.mxu0 %v8885
        %10433 = vmatpush1.bf16.msra.mxu0 %v8884
        %10434 = vmatprep.subr.bf16.mxu0 %v9005
        %10435 = vmatpush2.bf16.msra.mxu0 %v9004
        %10436 = vmatprep.subr.bf16.mxu0 %v8997
        %10437 = vmatpush2.bf16.msra.mxu0 %v8996
        %10438 = vmatprep.subr.bf16.mxu0 %v8989
        %10439 = vmatpush2.bf16.msra.mxu0 %v8988
        %10440 = vmatprep.subr.bf16.mxu0 %v8981
        %10441 = vmatpush2.bf16.msra.mxu0 %v8980
        %10442 = vmatprep.subr.bf16.mxu0 %v8973
        %10443 = vmatpush2.bf16.msra.mxu0 %v8972
        %10444 = vmatprep.subr.bf16.mxu0 %v8965
        %10445 = vmatpush2.bf16.msra.mxu0 %v8964
        %10446 = vmatprep.subr.bf16.mxu0 %v8957
        %10447 = vmatpush2.bf16.msra.mxu0 %v8956
        %10448 = vmatprep.subr.bf16.mxu0 %v8949
        %10449 = vmatpush2.bf16.msra.mxu0 %v8948
        %10450 = vmatprep.mubr.bf16.mxu0 %v6781
        %10451 = vmatmul.mubr.bf16.gmra.mxu0 %v6780
        %v10452 = vpop.f32.mrf.mxu0
        %v10453 = vadd.f32 %v7329, %v10452
        %v10454 = vpop.f32.mrf.mxu0
        %v10455 = vadd.f32 %v7333, %v10454
        %v10456 = vpop.f32.mrf.mxu0
        %v10457 = vadd.f32 %v7329, %v10456
        %v10458 = vpop.f32.mrf.mxu0
        %v10459 = vadd.f32 %v7333, %v10458
        %10460 = vdwg.mxu0
        %10461 = vmatprep.subr.bf16.mxu0 %v9069
        %10462 = vmatpush1.bf16.msra.mxu0 %v9068
        %10463 = vmatprep.subr.bf16.mxu0 %v9061
        %10464 = vmatpush1.bf16.msra.mxu0 %v9060
        %10465 = vmatprep.subr.bf16.mxu0 %v9053
        %10466 = vmatpush1.bf16.msra.mxu0 %v9052
        %10467 = vmatprep.subr.bf16.mxu0 %v9045
        %10468 = vmatpush1.bf16.msra.mxu0 %v9044
        %10469 = vmatprep.subr.bf16.mxu0 %v9037
        %10470 = vmatpush1.bf16.msra.mxu0 %v9036
        %10471 = vmatprep.subr.bf16.mxu0 %v9029
        %10472 = vmatpush1.bf16.msra.mxu0 %v9028
        %10473 = vmatprep.subr.bf16.mxu0 %v9021
        %10474 = vmatpush1.bf16.msra.mxu0 %v9020
        %10475 = vmatprep.subr.bf16.mxu0 %v9013
        %10476 = vmatpush1.bf16.msra.mxu0 %v9012
        %10477 = vmatprep.subr.bf16.mxu0 %v9133
        %10478 = vmatpush2.bf16.msra.mxu0 %v9132
        %10479 = vmatprep.subr.bf16.mxu0 %v9125
        %10480 = vmatpush2.bf16.msra.mxu0 %v9124
        %10481 = vmatprep.subr.bf16.mxu0 %v9117
        %10482 = vmatpush2.bf16.msra.mxu0 %v9116
        %10483 = vmatprep.subr.bf16.mxu0 %v9109
        %10484 = vmatpush2.bf16.msra.mxu0 %v9108
        %10485 = vmatprep.subr.bf16.mxu0 %v9101
        %10486 = vmatpush2.bf16.msra.mxu0 %v9100
        %10487 = vmatprep.subr.bf16.mxu0 %v9093
        %10488 = vmatpush2.bf16.msra.mxu0 %v9092
        %10489 = vmatprep.subr.bf16.mxu0 %v9085
        %10490 = vmatpush2.bf16.msra.mxu0 %v9084
        %10491 = vmatprep.subr.bf16.mxu0 %v9077
        %10492 = vmatpush2.bf16.msra.mxu0 %v9076
        %10493 = vmatprep.mubr.bf16.mxu0 %v6783
        %10494 = vmatmul.mubr.bf16.gmra.mxu0 %v6782
        %v10495 = vpop.f32.mrf.mxu0
        %v10496 = vadd.f32 %v10453, %v10495
        %v10497 = vpop.f32.mrf.mxu0
        %v10498 = vadd.f32 %v10455, %v10497
        %v10499 = vpop.f32.mrf.mxu0
        %v10500 = vadd.f32 %v10457, %v10499
        %v10501 = vpop.f32.mrf.mxu0
        %v10502 = vadd.f32 %v10459, %v10501
        %10503 = vdwg.mxu0
        %10504 = vmatprep.subr.bf16.mxu0 %v9197
        %10505 = vmatpush1.bf16.msra.mxu0 %v9196
        %10506 = vmatprep.subr.bf16.mxu0 %v9189
        %10507 = vmatpush1.bf16.msra.mxu0 %v9188
        %10508 = vmatprep.subr.bf16.mxu0 %v9181
        %10509 = vmatpush1.bf16.msra.mxu0 %v9180
        %10510 = vmatprep.subr.bf16.mxu0 %v9173
        %10511 = vmatpush1.bf16.msra.mxu0 %v9172
        %10512 = vmatprep.subr.bf16.mxu0 %v9165
        %10513 = vmatpush1.bf16.msra.mxu0 %v9164
        %10514 = vmatprep.subr.bf16.mxu0 %v9157
        %10515 = vmatpush1.bf16.msra.mxu0 %v9156
        %10516 = vmatprep.subr.bf16.mxu0 %v9149
        %10517 = vmatpush1.bf16.msra.mxu0 %v9148
        %10518 = vmatprep.subr.bf16.mxu0 %v9141
        %10519 = vmatpush1.bf16.msra.mxu0 %v9140
        %10520 = vmatprep.subr.bf16.mxu0 %v9261
        %10521 = vmatpush2.bf16.msra.mxu0 %v9260
        %10522 = vmatprep.subr.bf16.mxu0 %v9253
        %10523 = vmatpush2.bf16.msra.mxu0 %v9252
        %10524 = vmatprep.subr.bf16.mxu0 %v9245
        %10525 = vmatpush2.bf16.msra.mxu0 %v9244
        %10526 = vmatprep.subr.bf16.mxu0 %v9237
        %10527 = vmatpush2.bf16.msra.mxu0 %v9236
        %10528 = vmatprep.subr.bf16.mxu0 %v9229
        %10529 = vmatpush2.bf16.msra.mxu0 %v9228
        %10530 = vmatprep.subr.bf16.mxu0 %v9221
        %10531 = vmatpush2.bf16.msra.mxu0 %v9220
        %10532 = vmatprep.subr.bf16.mxu0 %v9213
        %10533 = vmatpush2.bf16.msra.mxu0 %v9212
        %10534 = vmatprep.subr.bf16.mxu0 %v9205
        %10535 = vmatpush2.bf16.msra.mxu0 %v9204
        %10536 = vmatprep.mubr.bf16.mxu0 %v6785
        %10537 = vmatmul.mubr.bf16.gmra.mxu0 %v6784
        %v10538 = vpop.f32.mrf.mxu0
        %v10539 = vadd.f32 %v10496, %v10538
        %v10540 = vpop.f32.mrf.mxu0
        %v10541 = vadd.f32 %v10498, %v10540
        %v10542 = vpop.f32.mrf.mxu0
        %v10543 = vadd.f32 %v10500, %v10542
        %v10544 = vpop.f32.mrf.mxu0
        %v10545 = vadd.f32 %v10502, %v10544
        %10546 = vdwg.mxu0
        %10547 = vmatprep.subr.bf16.mxu0 %v9325
        %10548 = vmatpush1.bf16.msra.mxu0 %v9324
        %10549 = vmatprep.subr.bf16.mxu0 %v9317
        %10550 = vmatpush1.bf16.msra.mxu0 %v9316
        %10551 = vmatprep.subr.bf16.mxu0 %v9309
        %10552 = vmatpush1.bf16.msra.mxu0 %v9308
        %10553 = vmatprep.subr.bf16.mxu0 %v9301
        %10554 = vmatpush1.bf16.msra.mxu0 %v9300
        %10555 = vmatprep.subr.bf16.mxu0 %v9293
        %10556 = vmatpush1.bf16.msra.mxu0 %v9292
        %10557 = vmatprep.subr.bf16.mxu0 %v9285
        %10558 = vmatpush1.bf16.msra.mxu0 %v9284
        %10559 = vmatprep.subr.bf16.mxu0 %v9277
        %10560 = vmatpush1.bf16.msra.mxu0 %v9276
        %10561 = vmatprep.subr.bf16.mxu0 %v9269
        %10562 = vmatpush1.bf16.msra.mxu0 %v9268
        %10563 = vmatprep.subr.bf16.mxu0 %v9389
        %10564 = vmatpush2.bf16.msra.mxu0 %v9388
        %10565 = vmatprep.subr.bf16.mxu0 %v9381
        %10566 = vmatpush2.bf16.msra.mxu0 %v9380
        %10567 = vmatprep.subr.bf16.mxu0 %v9373
        %10568 = vmatpush2.bf16.msra.mxu0 %v9372
        %10569 = vmatprep.subr.bf16.mxu0 %v9365
        %10570 = vmatpush2.bf16.msra.mxu0 %v9364
        %10571 = vmatprep.subr.bf16.mxu0 %v9357
        %10572 = vmatpush2.bf16.msra.mxu0 %v9356
        %10573 = vmatprep.subr.bf16.mxu0 %v9349
        %10574 = vmatpush2.bf16.msra.mxu0 %v9348
        %10575 = vmatprep.subr.bf16.mxu0 %v9341
        %10576 = vmatpush2.bf16.msra.mxu0 %v9340
        %10577 = vmatprep.subr.bf16.mxu0 %v9333
        %10578 = vmatpush2.bf16.msra.mxu0 %v9332
        %10579 = vmatprep.mubr.bf16.mxu0 %v6787
        %10580 = vmatmul.mubr.bf16.gmra.mxu0 %v6786
        %v10581 = vpop.f32.mrf.mxu0
        %v10582 = vadd.f32 %v10539, %v10581
        %v10583 = vpop.f32.mrf.mxu0
        %v10584 = vadd.f32 %v10541, %v10583
        %v10585 = vpop.f32.mrf.mxu0
        %v10586 = vadd.f32 %v10543, %v10585
        %v10587 = vpop.f32.mrf.mxu0
        %v10588 = vadd.f32 %v10545, %v10587
        %10589 = vdwg.mxu0
        %v10590 = vtanh.pop %v10066
        %v10591 = vtanh.pop %v10068
        %v10592 = vtanh.pop %v10238
        %v10593 = vtanh.pop %v10240
        %v10594 = vtanh.pop %v10070
        %v10595 = vtanh.pop %v10072
        %v10596 = vtanh.pop %v10242
        %v10597 = vtanh.pop %v10244
        %v10598 = vmul.f32 %v10590, 1.442695
        %v10599 = vpow.pop %v10598
        %v10600 = vmul.f32 %v10591, 1.442695
        %v10601 = vpow.pop %v10600
        %v10602 = vmul.f32 %v10592, 1.442695
        %v10603 = vpow.pop %v10602
        %v10604 = vmul.f32 %v10593, 1.442695
        %v10605 = vpow.pop %v10604
        %v10606 = vmul.f32 %v10594, 1.442695
        %v10607 = vpow.pop %v10606
        %v10608 = vmul.f32 %v10595, 1.442695
        %v10609 = vpow.pop %v10608
        %v10610 = vmul.f32 %v10596, 1.442695
        %v10611 = vpow.pop %v10610
        %v10612 = vmul.f32 %v10597, 1.442695
        %v10613 = vpow.pop %v10612
        %v10614 = vmul.f32 %v1004, %v10599
        %v10615 = vmul.f32 %v1005, %v10601
        %v10616 = vmul.f32 %v1006, %v10603
        %v10617 = vmul.f32 %v1007, %v10605
        %v10618 = vmul.f32 %v1008, %v10607
        %v10619 = vmul.f32 %v1009, %v10609
        %v10620 = vmul.f32 %v1010, %v10611
        %v10621 = vmul.f32 %v1011, %v10613
        %v10622 = vadd.f32 %v10614, %v10410
        %v10623 = vadd.f32 %v10615, %v10412
        %v10624 = vadd.f32 %v10616, %v10582
        %v10625 = vadd.f32 %v10617, %v10584
        %v10626 = vadd.f32 %v10618, %v10414
        %v10627 = vadd.f32 %v10619, %v10416
        %v10628 = vadd.f32 %v10620, %v10586
        %v10629 = vadd.f32 %v10621, %v10588
        %v10630 = vsel %vm995, %v977, %v10622
        %v10631 = vsel %vm995, %v978, %v10623
        %v10632 = vsel %vm995, %v979, %v10624
        %v10633 = vsel %vm995, %v980, %v10625
        %v10634 = vsel %vm995, %v981, %v10626
        %v10635 = vsel %vm995, %v982, %v10627
        %v10636 = vsel %vm995, %v983, %v10628
        %v10637 = vsel %vm995, %v984, %v10629
        %10638 = vst [vmem:[#allocation2] sm:$0xff] %v10630
        %10639 = vst [vmem:[#allocation2 + $0x8] sm:$0xff] %v10631
        %10640 = vst [vmem:[#allocation2 + $0x10] sm:$0xff] %v10632
        %10641 = vst [vmem:[#allocation2 + $0x18] sm:$0xff] %v10633
        %10642 = vst [vmem:[#allocation2 + $0x20] sm:$0xff] %v10634
        %10643 = vst [vmem:[#allocation2 + $0x28] sm:$0xff] %v10635
        %10644 = vst [vmem:[#allocation2 + $0x30] sm:$0xff] %v10636
        %10645 = vst [vmem:[#allocation2 + $0x38] sm:$0xff] %v10637
        %v10646 = vsel %vm995, %v10622, %v985
        %v10647 = vsel %vm995, %v10623, %v986
        %v10648 = vsel %vm995, %v10624, %v987
        %v10649 = vsel %vm995, %v10625, %v988
        %v10650 = vsel %vm995, %v10626, %v989
        %v10651 = vsel %vm995, %v10627, %v990
        %v10652 = vsel %vm995, %v10628, %v991
        %v10653 = vsel %vm995, %v10629, %v992
        %10654 = vst [vmem:[#allocation3] sm:$0xff] %v10646
        %10655 = vst [vmem:[#allocation3 + $0x8] sm:$0xff] %v10647
        %10656 = vst [vmem:[#allocation3 + $0x10] sm:$0xff] %v10648
        %10657 = vst [vmem:[#allocation3 + $0x18] sm:$0xff] %v10649
        %10658 = vst [vmem:[#allocation3 + $0x20] sm:$0xff] %v10650
        %10659 = vst [vmem:[#allocation3 + $0x28] sm:$0xff] %v10651
        %10660 = vst [vmem:[#allocation3 + $0x30] sm:$0xff] %v10652
        %10661 = vst [vmem:[#allocation3 + $0x38] sm:$0xff] %v10653
        %v10662 = vld [vmem:[#allocation4] sm:$0xff]
        %v10663 = vld [vmem:[#allocation4 + $0x8] sm:$0xff]
        %v10664 = vadd.f32 %v10590, %v10591
        %v10665 = vadd.f32 %v10664, %v10592
        %v10666 = vadd.f32 %v10665, %v10593
        %10667 = vadd.xlane.f32.xlu0 %v10666
        %v10668 = vpop.xlane.xlu0 %10667
        %v10669 = vadd.f32 %v10594, %v10595
        %v10670 = vadd.f32 %v10669, %v10596
        %v10671 = vadd.f32 %v10670, %v10597
        %10672 = vadd.xlane.f32.xlu0 %v10671
        %v10673 = vpop.xlane.xlu0 %10672
        %v10674 = vadd.f32 %v10662, %v10668
        %v10675 = vadd.f32 %v10663, %v10673
        %vm10676 = vcmask 7168
        %10677 = vst.msk [vmem:[#allocation4] sm:$0xff] %vm10676, %v10674
        %10678 = vst.msk [vmem:[#allocation4 + $0x8] sm:$0xff] %vm10676, %v10675
        %p10679 = scmp.eq.s32.totalorder %s37, 7
        // Predicated region
        $region77: #{flow_forward_pallas.1} parent=47 // pred_check
          %p10680 = pneg %p10679
        $region78: #{flow_forward_pallas.1} parent=47 // pred_check_branch
          %10682 = sbr.rel (%p10680) target = $region80
        $region79: #{flow_forward_pallas.1} parent=47 // pred_region
          %v10683 = vld [vmem:[#allocation2] sm:$0xff]
          %v10684 = vld [vmem:[#allocation2 + $0x8] sm:$0xff]
          %v10685 = vld [vmem:[#allocation2 + $0x10] sm:$0xff]
          %v10686 = vld [vmem:[#allocation2 + $0x18] sm:$0xff]
          %v10687 = vld [vmem:[#allocation2 + $0x20] sm:$0xff]
          %v10688 = vld [vmem:[#allocation2 + $0x28] sm:$0xff]
          %v10689 = vld [vmem:[#allocation2 + $0x30] sm:$0xff]
          %v10690 = vld [vmem:[#allocation2 + $0x38] sm:$0xff]
          %v10691 = vld [vmem:[#allocation3] sm:$0xff]
          %v10692 = vld [vmem:[#allocation3 + $0x8] sm:$0xff]
          %v10693 = vld [vmem:[#allocation3 + $0x10] sm:$0xff]
          %v10694 = vld [vmem:[#allocation3 + $0x18] sm:$0xff]
          %v10695 = vld [vmem:[#allocation3 + $0x20] sm:$0xff]
          %v10696 = vld [vmem:[#allocation3 + $0x28] sm:$0xff]
          %v10697 = vld [vmem:[#allocation3 + $0x30] sm:$0xff]
          %v10698 = vld [vmem:[#allocation3 + $0x38] sm:$0xff]
          %v10699 = vmul.f32 %v10683, %v10683
          %v10700 = vmul.f32 %v10684, %v10684
          %v10701 = vmul.f32 %v10685, %v10685
          %v10702 = vmul.f32 %v10686, %v10686
          %v10703 = vmul.f32 %v10687, %v10687
          %v10704 = vmul.f32 %v10688, %v10688
          %v10705 = vmul.f32 %v10689, %v10689
          %v10706 = vmul.f32 %v10690, %v10690
          %v10707 = vadd.f32 %v10699, %v10700
          %v10708 = vadd.f32 %v10707, %v10701
          %v10709 = vadd.f32 %v10708, %v10702
          %10710 = vadd.xlane.f32.xlu0 %v10709
          %v10711 = vpop.xlane.xlu0 %10710
          %v10712 = vadd.f32 %v10703, %v10704
          %v10713 = vadd.f32 %v10712, %v10705
          %v10714 = vadd.f32 %v10713, %v10706
          %10715 = vadd.xlane.f32.xlu0 %v10714
          %v10716 = vpop.xlane.xlu0 %10715
          %v10717 = vmul.f32 %v10691, %v10691
          %v10718 = vmul.f32 %v10692, %v10692
          %v10719 = vmul.f32 %v10693, %v10693
          %v10720 = vmul.f32 %v10694, %v10694
          %v10721 = vmul.f32 %v10695, %v10695
          %v10722 = vmul.f32 %v10696, %v10696
          %v10723 = vmul.f32 %v10697, %v10697
          %v10724 = vmul.f32 %v10698, %v10698
          %v10725 = vadd.f32 %v10717, %v10718
          %v10726 = vadd.f32 %v10725, %v10719
          %v10727 = vadd.f32 %v10726, %v10720
          %10728 = vadd.xlane.f32.xlu0 %v10727
          %v10729 = vpop.xlane.xlu0 %10728
          %v10730 = vadd.f32 %v10721, %v10722
          %v10731 = vadd.f32 %v10730, %v10723
          %v10732 = vadd.f32 %v10731, %v10724
          %10733 = vadd.xlane.f32.xlu0 %v10732
          %v10734 = vpop.xlane.xlu0 %10733
          %v10735 = vadd.f32 %v10711, %v10729
          %v10736 = vadd.f32 %v10716, %v10734
          %v10737 = vmul.f32 %v10735, 0.5
          %v10738 = vmul.f32 %v10736, 0.5
          %v10739 = vsub.f32 -720.4478, %v10737
          %v10740 = vsub.f32 -720.4478, %v10738
          %10741 = vst [vmem:[%s560] sm:$0xff] %v10683
          %10742 = vst [vmem:[%s560 + $0x8] sm:$0xff] %v10684
          %10743 = vst [vmem:[%s560 + $0x10] sm:$0xff] %v10685
          %10744 = vst [vmem:[%s560 + $0x18] sm:$0xff] %v10686
          %10745 = vst [vmem:[%s560 + $0x40] sm:$0xff] %v10687
          %10746 = vst [vmem:[%s560 + $0x48] sm:$0xff] %v10688
          %10747 = vst [vmem:[%s560 + $0x50] sm:$0xff] %v10689
          %10748 = vst [vmem:[%s560 + $0x58] sm:$0xff] %v10690
          %10749 = vst [vmem:[%s560 + $0x20] sm:$0xff] %v10691
          %10750 = vst [vmem:[%s560 + $0x28] sm:$0xff] %v10692
          %10751 = vst [vmem:[%s560 + $0x30] sm:$0xff] %v10693
          %10752 = vst [vmem:[%s560 + $0x38] sm:$0xff] %v10694
          %10753 = vst [vmem:[%s560 + $0x60] sm:$0xff] %v10695
          %10754 = vst [vmem:[%s560 + $0x68] sm:$0xff] %v10696
          %10755 = vst [vmem:[%s560 + $0x70] sm:$0xff] %v10697
          %10756 = vst [vmem:[%s560 + $0x78] sm:$0xff] %v10698
          %v10757 = vld [vmem:[#allocation4] sm:$0xff]
          %v10758 = vld [vmem:[#allocation4 + $0x8] sm:$0xff]
          %v10759 = vadd.f32 %v10739, %v10757
          %v10760 = vadd.f32 %v10740, %v10758
          %10761 = vst.msk [vmem:[%s566] sm:$0xff] %vm10676, %v10759
          %10762 = vst.msk [vmem:[%s566 + $0x8] sm:$0xff] %vm10676, %v10760
        $region80: #{flow_forward_pallas.1} parent=47 // pred_fallthru
          _
        %s10763 = smul.u32 2, %s36
        %p10764 = scmp.lt.s32.totalorder %s10763, 1
        %s10765 = scalar_select %p10764, %s10763, 1
        %s10766 = smul.addr %s10765, 8
        %s10767 = smul.addr %s10766, 8
        %s10768 = scalar_lea.vmem %s7, %s10767
        %s10769 = smul.u32 2, %s36
        %p10770 = scmp.lt.s32.totalorder %s10769, 1
        %s10771 = scalar_select %p10770, %s10769, 1
        %s10772 = smul.addr %s10771, 8
        %s10773 = scalar_lea.vmem %s8, %s10772
        // Predicated region
        $region81: #{flow_forward_pallas.1} parent=47 // pred_check
          %p10774 = pneg %p244
        $region82: #{flow_forward_pallas.1} parent=47 // pred_check_branch
          %10776 = sbr.rel (%p10774) target = $region84
        $region83: #{flow_forward_pallas.1} parent=47 // pred_region
          %s10777 = smul.u32 2, %s36
        $region84: #{flow_forward_pallas.1} parent=47 // pred_fallthru
          _
        // Predicated region
        $region85: #{flow_forward_pallas.1} parent=47 // pred_check
          %p10778 = pneg %p270
        $region86: #{flow_forward_pallas.1} parent=47 // pred_check_branch
          %10780 = sbr.rel (%p10778) target = $region88
        $region87: #{flow_forward_pallas.1} parent=47 // pred_region
          %s10781 = smul.u32 2, %s36
        $region88: #{flow_forward_pallas.1} parent=47 // pred_fallthru
          _
        // Predicated region
        $region89: #{flow_forward_pallas.1} parent=47 // pred_check
          %p10782 = pneg %p244
        $region90: #{flow_forward_pallas.1} parent=47 // pred_check_branch
          %10784 = sbr.rel (%p10782) target = $region92
        $region91: #{flow_forward_pallas.1} parent=47 // pred_region
          %s10785 = smul.u32 2, %s36
          %p10786 = scmp.lt.s32.totalorder %s10785, 1
          %s10787 = scalar_select %p10786, %s10785, 1
          %s10788 = smul.addr %s10787, 8
          %s10789 = smul.addr %s10788, 8
          %s10790 = scalar_lea.vmem %s7, %s10789
        $region92: #{flow_forward_pallas.1} parent=47 // pred_fallthru
          _
        // Predicated region
        $region93: #{flow_forward_pallas.1} parent=47 // pred_check
          %p10791 = pneg %p270
        $region94: #{flow_forward_pallas.1} parent=47 // pred_check_branch
          %10793 = sbr.rel (%p10791) target = $region96
        $region95: #{flow_forward_pallas.1} parent=47 // pred_region
          %s10794 = smul.u32 2, %s36
          %p10795 = scmp.lt.s32.totalorder %s10794, 1
          %s10796 = scalar_select %p10795, %s10794, 1
          %s10797 = smul.addr %s10796, 8
          %s10798 = scalar_lea.vmem %s8, %s10797
        $region96: #{flow_forward_pallas.1} parent=47 // pred_fallthru
          _
      $region48: #{flow_forward_pallas.1} parent=5 // pred_fallthru
        _
      %p10799 = scmp.le.s32.totalorder 2, %s27
      // Predicated region
      $region97: #{flow_forward_pallas.1} parent=5 // pred_check
        %p10800 = pneg %p10799
      $region98: #{flow_forward_pallas.1} parent=5 // pred_check_branch
        %10802 = sbr.rel (%p10800) target = $region100
      $region99: #{flow_forward_pallas.1} parent=5 // pred_region
        %s10803 = ssub.s32 %s27, 2
      $region100: #{flow_forward_pallas.1} parent=5 // pred_fallthru
        _
    $region6: #{flow_forward_pallas.1} parent=1 // loop_footer
      %s31 = sadd.s32 1, %s27
    $region7: #{flow_forward_pallas.1} parent=1 // loop_footer_branch
      %26 = sbr.rel target = $region3
    $region8: #{flow_forward_pallas.1} parent=1 // loop_exit
      _
    %10804 = vsyncpa [#allocation6], 1
    %s10805 = scalar_lea.sflag [#allocation6], 1
    %10806 = vsyncpa %s10805, 1
    %10807 = vsyncpa [#allocation8], 1
    %s10808 = scalar_lea.sflag [#allocation8], 1
    %10809 = vsyncpa %s10808, 1
    %10810 = vsyncpa [#allocation11], 1
    %s10811 = scalar_lea.sflag [#allocation11], 1
    %10812 = vsyncpa %s10811, 1
    %10813 = vsyncpa [#allocation14], 1
    %s10814 = scalar_lea.sflag [#allocation14], 1
    %10815 = vsyncpa %s10814, 1

</llo_original>
